<compile_context>
chip_gen: v7x
topology: tpu7x:2x2x1
jax: 0.10.0
libtpu: 0.0.40
codegen_flags: <defaults>
</compile_context>

<pallas_src>
import jax
import jax.numpy as jnp
from jax.experimental import pallas as pl
from jax.experimental.pallas import tpu as pltpu


def _fused_forward_kernel(xpad_ref, w1_ref, b1_ref, w2_ref, b2_ref,
                          fc1w_ref, fc1b_ref, fc2w_ref, fc2b_ref,
                          out_ref, a1pad_ref):
    f32, bf16 = jnp.float32, jnp.bfloat16
    bt = xpad_ref.shape[0]
    H = xpad_ref.shape[1] - 2
    W = xpad_ref.shape[2] - 2
    C1 = w1_ref.shape[1]
    C2 = w2_ref.shape[1]
    HO, WO = H // 2, W // 2

    def im2col(src):
        # src: (bt, H+2, W+2, cin) value.  Lane-concatenate the 9 shifted
        # views so the whole 3x3 conv is a single MXU matmul with K = 9*cin
        # (instead of 9 near-empty K=cin matmuls + 8 VPU accumulate adds).
        taps = [src[:, kh:kh + H, kw:kw + W, :]
                for kh in range(3) for kw in range(3)]
        patches = jnp.concatenate(taps, axis=-1)               # (bt,H,W,9*cin)
        # Leading-dims-only reshape (lane dim unchanged) -> no relayout.
        return patches.reshape(bt * H * W, patches.shape[-1]).astype(bf16)

    # ---- conv1 + bias + ReLU: ONE matmul, K = 9*CIN ------------------------
    a1 = jnp.dot(im2col(xpad_ref[...]), w1_ref[...],
                 preferred_element_type=f32)
    a1 = jnp.maximum(a1 + b1_ref[...], 0.0)                    # (bt*H*W, C1) f32

    # ---- re-pad conv1 activation for conv2; zero ONLY the 1-pixel halo -----
    a1pad_ref[:, 0:1, :, :] = jnp.zeros((bt, 1, W + 2, C1), f32)
    a1pad_ref[:, H + 1:H + 2, :, :] = jnp.zeros((bt, 1, W + 2, C1), f32)
    a1pad_ref[:, :, 0:1, :] = jnp.zeros((bt, H + 2, 1, C1), f32)
    a1pad_ref[:, :, W + 1:W + 2, :] = jnp.zeros((bt, H + 2, 1, C1), f32)
    a1pad_ref[:, 1:H + 1, 1:W + 1, :] = a1.reshape(bt, H, W, C1)

    # ---- conv2 + bias + ReLU: ONE matmul, K = 9*C1 -------------------------
    a2 = jnp.dot(im2col(a1pad_ref[...]), w2_ref[...],
                 preferred_element_type=f32)
    a2 = jnp.maximum(a2 + b2_ref[...], 0.0)                    # (bt*H*W, C2) f32

    # ---- 2x2 max-pool, value-level (no scratch stores, no strided ref loads)
    # Rows of a2 are ordered (b, h, w); every reshape below only splits
    # leading dims (lane dim untouched), so there is no relayout.
    t = a2.reshape(bt * H, WO, 2, C2)
    wmax = jnp.maximum(t[:, :, 0, :], t[:, :, 1, :])           # (bt*H, WO, C2)
    t = wmax.reshape(bt * HO, 2, WO, C2)
    pooled = jnp.maximum(t[:, 0, :, :], t[:, 1, :, :])         # (bt*HO, WO, C2)

    # ---- flatten to (bt, HO*WO*C2) with lane-axis concats ------------------
    # (the PyTorch NCHW flatten permutation is pre-baked into fc1w on the host)
    rows = jnp.concatenate([pooled[:, wo, :] for wo in range(WO)], axis=-1)
    rows = rows.reshape(bt, HO, WO * C2)                       # leading split
    feat = jnp.concatenate([rows[:, ho, :] for ho in range(HO)], axis=-1)

    # ---- fc1 + ReLU: ONE (bt, 1024) @ (1024, NH) matmul --------------------
    h = jnp.dot(feat.astype(bf16), fc1w_ref[...], preferred_element_type=f32)
    h = jnp.maximum(h + fc1b_ref[...], 0.0)                    # (bt, NH) f32

    # ---- fc2: logits padded to 128 lanes -> single lane-dense HBM store ----
    logits = jnp.dot(h.astype(bf16), fc2w_ref[...], preferred_element_type=f32)
    out_ref[...] = (logits + fc2b_ref[...]).astype(out_ref.dtype)


def conv_classifier_forward(x, params, *, batch_tile=None,
                            vmem_limit_bytes=32 * 1024 * 1024):
    """Forward pass matching the PyTorch ConvClassifier (NCHW input)."""
    B, CIN, H, W = x.shape
    C1 = params["conv1_w"].shape[0]
    C2 = params["conv2_w"].shape[0]
    HO, WO = H // 2, W // 2
    NH = params["fc1_w"].shape[0]
    NC = params["fc2_w"].shape[0]
    NCP = 128 * pl.cdiv(NC, 128)          # logits padded to full lane tiles
    f32, bf16 = jnp.float32, jnp.bfloat16

    # Per-step batch tile: single step for small B; for large B use a multiple
    # of 8 capped so per-step live VMEM stays well under v7x's 64 MiB while
    # the "parallel" grid axis pipelines DMAs and engages both v7x TCs.
    if batch_tile is None:
        bt = B if B <= 64 else 64
    else:
        bt = batch_tile
    assert B % bt == 0, (B, bt)

    # ---- one-time host-side layout prep (pre-packed once in practice) ------
    xt = jnp.transpose(x, (0, 2, 3, 1)).astype(f32)                  # NHWC
    xpad = jnp.pad(xt, ((0, 0), (1, 1), (1, 1), (0, 0)))             # (B,H+2,W+2,CIN)

    # Conv weights packed to (9*cin, cout) in the kernel's (kh, kw, c) tap
    # order; bf16 operands, f32 MXU accumulation.
    w1 = jnp.transpose(params["conv1_w"], (2, 3, 1, 0)).reshape(9 * CIN, C1).astype(bf16)
    b1 = params["conv1_b"].reshape(1, C1).astype(f32)
    w2 = jnp.transpose(params["conv2_w"], (2, 3, 1, 0)).reshape(9 * C1, C2).astype(bf16)
    b2 = params["conv2_b"].reshape(1, C2).astype(f32)

    # fc1 columns reordered from PyTorch's NCHW flatten (c, ho, wo) to the
    # kernel's (ho, wo, c) feature order -> fc1 is one K=HO*WO*C2 matmul.
    fc1w = params["fc1_w"].reshape(NH, C2, HO, WO)
    fc1w = jnp.transpose(fc1w, (2, 3, 1, 0)).reshape(HO * WO * C2, NH).astype(bf16)
    fc1b = params["fc1_b"].reshape(1, NH).astype(f32)

    # fc2 padded to 128 output lanes so the only HBM store is lane-dense.
    fc2w = jnp.zeros((NH, NCP), bf16).at[:, :NC].set(params["fc2_w"].T.astype(bf16))
    fc2b = jnp.zeros((1, NCP), f32).at[:, :NC].set(params["fc2_b"][None, :].astype(f32))

    out_padded = pl.pallas_call(
        _fused_forward_kernel,
        out_shape=jax.ShapeDtypeStruct((B, NCP), f32),
        grid=(B // bt,),
        in_specs=[
            pl.BlockSpec((bt, H + 2, W + 2, CIN), lambda i: (i, 0, 0, 0)),
            pl.BlockSpec(w1.shape, lambda i: (0, 0)),      # weights stay resident
            pl.BlockSpec(b1.shape, lambda i: (0, 0)),
            pl.BlockSpec(w2.shape, lambda i: (0, 0)),
            pl.BlockSpec(b2.shape, lambda i: (0, 0)),
            pl.BlockSpec(fc1w.shape, lambda i: (0, 0)),
            pl.BlockSpec(fc1b.shape, lambda i: (0, 0)),
            pl.BlockSpec(fc2w.shape, lambda i: (0, 0)),
            pl.BlockSpec(fc2b.shape, lambda i: (0, 0)),
        ],
        out_specs=pl.BlockSpec((bt, NCP), lambda i: (i, 0)),
        scratch_shapes=[
            pltpu.VMEM((bt, H + 2, W + 2, C1), f32),   # zero-haloed conv1 act.
        ],
        compiler_params=pltpu.CompilerParams(
            dimension_semantics=("parallel",),
            vmem_limit_bytes=vmem_limit_bytes),
    )(xpad, w1, b1, w2, b2, fc1w, fc1b, fc2w, fc2b)

    return out_padded[:, :NC]


# ---------------------------------------------------------------------------
# Pure-JAX reference for validation.
# ---------------------------------------------------------------------------
def reference_forward(x, params):
    def conv(x, w, b):
        y = jax.lax.conv_general_dilated(
            x, w, window_strides=(1, 1), padding=((1, 1), (1, 1)),
            dimension_numbers=("NCHW", "OIHW", "NCHW"))
        return jax.nn.relu(y + b[None, :, None, None])

    h = conv(x, params["conv1_w"], params["conv1_b"])
    h = conv(h, params["conv2_w"], params["conv2_b"])
    h = jax.lax.reduce_window(h, -jnp.inf, jax.lax.max,
                              (1, 1, 2, 2), (1, 1, 2, 2), "VALID")
    feats = h.reshape(h.shape[0], -1)
    h = jax.nn.relu(feats @ params["fc1_w"].T + params["fc1_b"])
    return h @ params["fc2_w"].T + params["fc2_b"]


if __name__ == "__main__":
    key = jax.random.PRNGKey(0)
    ks = jax.random.split(key, 9)

    # Input: batch=2, in_size=(4, 16, 16)
    x = jax.random.normal(ks[0], (2, 4, 16, 16), jnp.float32)

    # Deterministic synthetic parameters (same shapes as the torch module).
    params = {
        "conv1_w": 0.1 * jax.random.normal(ks[1], (8, 4, 3, 3), jnp.float32),
        "conv1_b": 0.1 * jax.random.normal(ks[2], (8,), jnp.float32),
        "conv2_w": 0.1 * jax.random.normal(ks[3], (16, 8, 3, 3), jnp.float32),
        "conv2_b": 0.1 * jax.random.normal(ks[4], (16,), jnp.float32),
        "fc1_w": 0.05 * jax.random.normal(ks[5], (32, 16 * 8 * 8), jnp.float32),
        "fc1_b": 0.05 * jax.random.normal(ks[6], (32,), jnp.float32),
        "fc2_w": 0.1 * jax.random.normal(ks[7], (10, 32), jnp.float32),
        "fc2_b": 0.1 * jax.random.normal(ks[8], (10,), jnp.float32),
    }

    out = jax.jit(conv_classifier_forward)(x, params)
    out = jax.block_until_ready(out)
    assert out.shape == (2, 10), out.shape

    ref = reference_forward(x, params)
    # bf16 MXU operands (with f32 accumulation) introduce ~1e-3..1e-2 error
    # vs. the f32 reference at this depth; 2e-2 comfortably covers it.
    err = float(jnp.max(jnp.abs(out - ref)))
    assert jnp.allclose(out, ref, rtol=2e-2, atol=2e-2), err

    print("KERNEL_OK")
</pallas_src>

<mosaic_0001>
module attributes {stable_mosaic.version = 11 : i64} {
  func.func @_fused_forward_kernel(%arg0: i32, %arg1: memref<2x18x18x4xf32, #tpu.memory_space<vmem>>, %arg2: memref<36x8xbf16, #tpu.memory_space<vmem>>, %arg3: memref<1x8xf32, #tpu.memory_space<vmem>>, %arg4: memref<72x16xbf16, #tpu.memory_space<vmem>>, %arg5: memref<1x16xf32, #tpu.memory_space<vmem>>, %arg6: memref<1024x32xbf16, #tpu.memory_space<vmem>>, %arg7: memref<1x32xf32, #tpu.memory_space<vmem>>, %arg8: memref<32x128xbf16, #tpu.memory_space<vmem>>, %arg9: memref<1x128xf32, #tpu.memory_space<vmem>>, %arg10: memref<2x128xf32, #tpu.memory_space<vmem>>, %arg11: memref<2x18x18x8xf32, #tpu.memory_space<vmem>>) attributes {dimension_semantics = [#tpu.dimension_semantics<parallel>], iteration_bounds = array<i64: 1>, scalar_prefetch = 0 : i64, scratch_operands = 1 : i64, tpu.core_type = #tpu.core_type<tc>, window_params = [{transform_indices = @transform_0, window_bounds = array<i64: 2, 18, 18, 4>}, {pipeline_mode = #tpu.pipeline_mode<synchronous>, transform_indices = @transform_1, window_bounds = array<i64: 36, 8>}, {pipeline_mode = #tpu.pipeline_mode<synchronous>, transform_indices = @transform_2, window_bounds = array<i64: 1, 8>}, {pipeline_mode = #tpu.pipeline_mode<synchronous>, transform_indices = @transform_3, window_bounds = array<i64: 72, 16>}, {pipeline_mode = #tpu.pipeline_mode<synchronous>, transform_indices = @transform_4, window_bounds = array<i64: 1, 16>}, {pipeline_mode = #tpu.pipeline_mode<synchronous>, transform_indices = @transform_5, window_bounds = array<i64: 1024, 32>}, {pipeline_mode = #tpu.pipeline_mode<synchronous>, transform_indices = @transform_6, window_bounds = array<i64: 1, 32>}, {pipeline_mode = #tpu.pipeline_mode<synchronous>, transform_indices = @transform_7, window_bounds = array<i64: 32, 128>}, {pipeline_mode = #tpu.pipeline_mode<synchronous>, transform_indices = @transform_8, window_bounds = array<i64: 1, 128>}, {transform_indices = @transform_9, window_bounds = array<i64: 2, 128>}]} {
    %c0 = arith.constant 0 : index
    %c0_0 = arith.constant 0 : index
    %c0_1 = arith.constant 0 : index
    %c0_2 = arith.constant 0 : index
    %0 = vector.load %arg1[%c0, %c0_0, %c0_1, %c0_2] : memref<2x18x18x4xf32, #tpu.memory_space<vmem>>, vector<2x18x18x4xf32>
    %1 = vector.extract_strided_slice %0 {offsets = [0, 0, 0, 0], sizes = [2, 16, 16, 4], strides = [1, 1, 1, 1]} : vector<2x18x18x4xf32> to vector<2x16x16x4xf32>
    %2 = vector.extract_strided_slice %0 {offsets = [0, 0, 1, 0], sizes = [2, 16, 16, 4], strides = [1, 1, 1, 1]} : vector<2x18x18x4xf32> to vector<2x16x16x4xf32>
    %3 = vector.extract_strided_slice %0 {offsets = [0, 0, 2, 0], sizes = [2, 16, 16, 4], strides = [1, 1, 1, 1]} : vector<2x18x18x4xf32> to vector<2x16x16x4xf32>
    %4 = vector.extract_strided_slice %0 {offsets = [0, 1, 0, 0], sizes = [2, 16, 16, 4], strides = [1, 1, 1, 1]} : vector<2x18x18x4xf32> to vector<2x16x16x4xf32>
    %5 = vector.extract_strided_slice %0 {offsets = [0, 1, 1, 0], sizes = [2, 16, 16, 4], strides = [1, 1, 1, 1]} : vector<2x18x18x4xf32> to vector<2x16x16x4xf32>
    %6 = vector.extract_strided_slice %0 {offsets = [0, 1, 2, 0], sizes = [2, 16, 16, 4], strides = [1, 1, 1, 1]} : vector<2x18x18x4xf32> to vector<2x16x16x4xf32>
    %7 = vector.extract_strided_slice %0 {offsets = [0, 2, 0, 0], sizes = [2, 16, 16, 4], strides = [1, 1, 1, 1]} : vector<2x18x18x4xf32> to vector<2x16x16x4xf32>
    %8 = vector.extract_strided_slice %0 {offsets = [0, 2, 1, 0], sizes = [2, 16, 16, 4], strides = [1, 1, 1, 1]} : vector<2x18x18x4xf32> to vector<2x16x16x4xf32>
    %9 = vector.extract_strided_slice %0 {offsets = [0, 2, 2, 0], sizes = [2, 16, 16, 4], strides = [1, 1, 1, 1]} : vector<2x18x18x4xf32> to vector<2x16x16x4xf32>
    %10 = tpu.concatenate %1, %2, %3, %4, %5, %6, %7, %8, %9 in 3 : vector<2x16x16x4xf32>, vector<2x16x16x4xf32>, vector<2x16x16x4xf32>, vector<2x16x16x4xf32>, vector<2x16x16x4xf32>, vector<2x16x16x4xf32>, vector<2x16x16x4xf32>, vector<2x16x16x4xf32>, vector<2x16x16x4xf32> -> vector<2x16x16x36xf32>
    %11 = vector.shape_cast %10 : vector<2x16x16x36xf32> to vector<512x36xf32>
    %12 = arith.truncf %11 : vector<512x36xf32> to vector<512x36xbf16>
    %c0_3 = arith.constant 0 : index
    %c0_4 = arith.constant 0 : index
    %13 = vector.load %arg2[%c0_3, %c0_4] : memref<36x8xbf16, #tpu.memory_space<vmem>>, vector<36x8xbf16>
    %cst = arith.constant dense<0.000000e+00> : vector<512x8xf32>
    %14 = tpu.matmul %12, %13, %cst {dimension_numbers = #tpu.dot_dimension_numbers<[1], [0], [0], [1], [0, 0, 1, 1], [], []>} : vector<512x36xbf16>, vector<36x8xbf16>, vector<512x8xf32> -> vector<512x8xf32>
    %c0_5 = arith.constant 0 : index
    %c0_6 = arith.constant 0 : index
    %15 = vector.load %arg3[%c0_5, %c0_6] : memref<1x8xf32, #tpu.memory_space<vmem>>, vector<1x8xf32>
    %16 = vector.broadcast %15 : vector<1x8xf32> to vector<512x8xf32>
    %17 = arith.addf %14, %16 : vector<512x8xf32>
    %cst_7 = arith.constant 0.000000e+00 : f32
    %18 = vector.broadcast %cst_7 : f32 to vector<512x8xf32>
    %19 = arith.maximumf %17, %18 : vector<512x8xf32>
    %cst_8 = arith.constant 0.000000e+00 : f32
    %20 = vector.broadcast %cst_8 : f32 to vector<2x1x18x8xf32>
    %c0_9 = arith.constant 0 : index
    %c0_10 = arith.constant 0 : index
    %c0_11 = arith.constant 0 : index
    %c0_12 = arith.constant 0 : index
    %21 = vector.load %arg11[%c0_9, %c0_10, %c0_11, %c0_12] : memref<2x18x18x8xf32, #tpu.memory_space<vmem>>, vector<2x1x18x8xf32>
    tpu.vector_store %arg11[%c0_9, %c0_10, %c0_11, %c0_12], %20 {strides = array<i32>} : memref<2x18x18x8xf32, #tpu.memory_space<vmem>>, vector<2x1x18x8xf32>,
    %cst_13 = arith.constant 0.000000e+00 : f32
    %22 = vector.broadcast %cst_13 : f32 to vector<2x1x18x8xf32>
    %c0_14 = arith.constant 0 : index
    %c17 = arith.constant 17 : index
    %c0_15 = arith.constant 0 : index
    %c0_16 = arith.constant 0 : index
    %23 = vector.load %arg11[%c0_14, %c17, %c0_15, %c0_16] : memref<2x18x18x8xf32, #tpu.memory_space<vmem>>, vector<2x1x18x8xf32>
    tpu.vector_store %arg11[%c0_14, %c17, %c0_15, %c0_16], %22 {strides = array<i32>} : memref<2x18x18x8xf32, #tpu.memory_space<vmem>>, vector<2x1x18x8xf32>,
    %cst_17 = arith.constant 0.000000e+00 : f32
    %24 = vector.broadcast %cst_17 : f32 to vector<2x18x1x8xf32>
    %c0_18 = arith.constant 0 : index
    %c0_19 = arith.constant 0 : index
    %c0_20 = arith.constant 0 : index
    %c0_21 = arith.constant 0 : index
    %25 = vector.load %arg11[%c0_18, %c0_19, %c0_20, %c0_21] : memref<2x18x18x8xf32, #tpu.memory_space<vmem>>, vector<2x18x1x8xf32>
    tpu.vector_store %arg11[%c0_18, %c0_19, %c0_20, %c0_21], %24 {strides = array<i32>} : memref<2x18x18x8xf32, #tpu.memory_space<vmem>>, vector<2x18x1x8xf32>,
    %cst_22 = arith.constant 0.000000e+00 : f32
    %26 = vector.broadcast %cst_22 : f32 to vector<2x18x1x8xf32>
    %c0_23 = arith.constant 0 : index
    %c0_24 = arith.constant 0 : index
    %c17_25 = arith.constant 17 : index
    %c0_26 = arith.constant 0 : index
    %27 = vector.load %arg11[%c0_23, %c0_24, %c17_25, %c0_26] : memref<2x18x18x8xf32, #tpu.memory_space<vmem>>, vector<2x18x1x8xf32>
    tpu.vector_store %arg11[%c0_23, %c0_24, %c17_25, %c0_26], %26 {strides = array<i32>} : memref<2x18x18x8xf32, #tpu.memory_space<vmem>>, vector<2x18x1x8xf32>,
    %28 = vector.shape_cast %19 : vector<512x8xf32> to vector<2x16x16x8xf32>
    %c0_27 = arith.constant 0 : index
    %c1 = arith.constant 1 : index
    %c1_28 = arith.constant 1 : index
    %c0_29 = arith.constant 0 : index
    %29 = vector.load %arg11[%c0_27, %c1, %c1_28, %c0_29] : memref<2x18x18x8xf32, #tpu.memory_space<vmem>>, vector<2x16x16x8xf32>
    tpu.vector_store %arg11[%c0_27, %c1, %c1_28, %c0_29], %28 {strides = array<i32>} : memref<2x18x18x8xf32, #tpu.memory_space<vmem>>, vector<2x16x16x8xf32>,
    %c0_30 = arith.constant 0 : index
    %c0_31 = arith.constant 0 : index
    %c0_32 = arith.constant 0 : index
    %c0_33 = arith.constant 0 : index
    %30 = vector.load %arg11[%c0_30, %c0_31, %c0_32, %c0_33] : memref<2x18x18x8xf32, #tpu.memory_space<vmem>>, vector<2x18x18x8xf32>
    %31 = vector.extract_strided_slice %30 {offsets = [0, 0, 0, 0], sizes = [2, 16, 16, 8], strides = [1, 1, 1, 1]} : vector<2x18x18x8xf32> to vector<2x16x16x8xf32>
    %32 = vector.extract_strided_slice %30 {offsets = [0, 0, 1, 0], sizes = [2, 16, 16, 8], strides = [1, 1, 1, 1]} : vector<2x18x18x8xf32> to vector<2x16x16x8xf32>
    %33 = vector.extract_strided_slice %30 {offsets = [0, 0, 2, 0], sizes = [2, 16, 16, 8], strides = [1, 1, 1, 1]} : vector<2x18x18x8xf32> to vector<2x16x16x8xf32>
    %34 = vector.extract_strided_slice %30 {offsets = [0, 1, 0, 0], sizes = [2, 16, 16, 8], strides = [1, 1, 1, 1]} : vector<2x18x18x8xf32> to vector<2x16x16x8xf32>
    %35 = vector.extract_strided_slice %30 {offsets = [0, 1, 1, 0], sizes = [2, 16, 16, 8], strides = [1, 1, 1, 1]} : vector<2x18x18x8xf32> to vector<2x16x16x8xf32>
    %36 = vector.extract_strided_slice %30 {offsets = [0, 1, 2, 0], sizes = [2, 16, 16, 8], strides = [1, 1, 1, 1]} : vector<2x18x18x8xf32> to vector<2x16x16x8xf32>
    %37 = vector.extract_strided_slice %30 {offsets = [0, 2, 0, 0], sizes = [2, 16, 16, 8], strides = [1, 1, 1, 1]} : vector<2x18x18x8xf32> to vector<2x16x16x8xf32>
    %38 = vector.extract_strided_slice %30 {offsets = [0, 2, 1, 0], sizes = [2, 16, 16, 8], strides = [1, 1, 1, 1]} : vector<2x18x18x8xf32> to vector<2x16x16x8xf32>
    %39 = vector.extract_strided_slice %30 {offsets = [0, 2, 2, 0], sizes = [2, 16, 16, 8], strides = [1, 1, 1, 1]} : vector<2x18x18x8xf32> to vector<2x16x16x8xf32>
    %40 = tpu.concatenate %31, %32, %33, %34, %35, %36, %37, %38, %39 in 3 : vector<2x16x16x8xf32>, vector<2x16x16x8xf32>, vector<2x16x16x8xf32>, vector<2x16x16x8xf32>, vector<2x16x16x8xf32>, vector<2x16x16x8xf32>, vector<2x16x16x8xf32>, vector<2x16x16x8xf32>, vector<2x16x16x8xf32> -> vector<2x16x16x72xf32>
    %41 = vector.shape_cast %40 : vector<2x16x16x72xf32> to vector<512x72xf32>
    %42 = arith.truncf %41 : vector<512x72xf32> to vector<512x72xbf16>
    %c0_34 = arith.constant 0 : index
    %c0_35 = arith.constant 0 : index
    %43 = vector.load %arg4[%c0_34, %c0_35] : memref<72x16xbf16, #tpu.memory_space<vmem>>, vector<72x16xbf16>
    %cst_36 = arith.constant dense<0.000000e+00> : vector<512x16xf32>
    %44 = tpu.matmul %42, %43, %cst_36 {dimension_numbers = #tpu.dot_dimension_numbers<[1], [0], [0], [1], [0, 0, 1, 1], [], []>} : vector<512x72xbf16>, vector<72x16xbf16>, vector<512x16xf32> -> vector<512x16xf32>
    %c0_37 = arith.constant 0 : index
    %c0_38 = arith.constant 0 : index
    %45 = vector.load %arg5[%c0_37, %c0_38] : memref<1x16xf32, #tpu.memory_space<vmem>>, vector<1x16xf32>
    %46 = vector.broadcast %45 : vector<1x16xf32> to vector<512x16xf32>
    %47 = arith.addf %44, %46 : vector<512x16xf32>
    %cst_39 = arith.constant 0.000000e+00 : f32
    %48 = vector.broadcast %cst_39 : f32 to vector<512x16xf32>
    %49 = arith.maximumf %47, %48 : vector<512x16xf32>
    %50 = vector.shape_cast %49 : vector<512x16xf32> to vector<32x8x2x16xf32>
    %51 = vector.extract_strided_slice %50 {offsets = [0, 0, 0, 0], sizes = [32, 8, 1, 16], strides = [1, 1, 1, 1]} : vector<32x8x2x16xf32> to vector<32x8x1x16xf32>
    %52 = vector.shape_cast %51 : vector<32x8x1x16xf32> to vector<32x8x16xf32>
    %53 = vector.extract_strided_slice %50 {offsets = [0, 0, 1, 0], sizes = [32, 8, 1, 16], strides = [1, 1, 1, 1]} : vector<32x8x2x16xf32> to vector<32x8x1x16xf32>
    %54 = vector.shape_cast %53 : vector<32x8x1x16xf32> to vector<32x8x16xf32>
    %55 = arith.maximumf %52, %54 : vector<32x8x16xf32>
    %56 = vector.shape_cast %55 : vector<32x8x16xf32> to vector<16x2x8x16xf32>
    %57 = vector.extract_strided_slice %56 {offsets = [0, 0, 0, 0], sizes = [16, 1, 8, 16], strides = [1, 1, 1, 1]} : vector<16x2x8x16xf32> to vector<16x1x8x16xf32>
    %58 = vector.shape_cast %57 : vector<16x1x8x16xf32> to vector<16x8x16xf32>
    %59 = vector.extract_strided_slice %56 {offsets = [0, 1, 0, 0], sizes = [16, 1, 8, 16], strides = [1, 1, 1, 1]} : vector<16x2x8x16xf32> to vector<16x1x8x16xf32>
    %60 = vector.shape_cast %59 : vector<16x1x8x16xf32> to vector<16x8x16xf32>
    %61 = arith.maximumf %58, %60 : vector<16x8x16xf32>
    %62 = vector.extract_strided_slice %61 {offsets = [0, 0, 0], sizes = [16, 1, 16], strides = [1, 1, 1]} : vector<16x8x16xf32> to vector<16x1x16xf32>
    %63 = vector.shape_cast %62 : vector<16x1x16xf32> to vector<16x16xf32>
    %64 = vector.extract_strided_slice %61 {offsets = [0, 1, 0], sizes = [16, 1, 16], strides = [1, 1, 1]} : vector<16x8x16xf32> to vector<16x1x16xf32>
    %65 = vector.shape_cast %64 : vector<16x1x16xf32> to vector<16x16xf32>
    %66 = vector.extract_strided_slice %61 {offsets = [0, 2, 0], sizes = [16, 1, 16], strides = [1, 1, 1]} : vector<16x8x16xf32> to vector<16x1x16xf32>
    %67 = vector.shape_cast %66 : vector<16x1x16xf32> to vector<16x16xf32>
    %68 = vector.extract_strided_slice %61 {offsets = [0, 3, 0], sizes = [16, 1, 16], strides = [1, 1, 1]} : vector<16x8x16xf32> to vector<16x1x16xf32>
    %69 = vector.shape_cast %68 : vector<16x1x16xf32> to vector<16x16xf32>
    %70 = vector.extract_strided_slice %61 {offsets = [0, 4, 0], sizes = [16, 1, 16], strides = [1, 1, 1]} : vector<16x8x16xf32> to vector<16x1x16xf32>
    %71 = vector.shape_cast %70 : vector<16x1x16xf32> to vector<16x16xf32>
    %72 = vector.extract_strided_slice %61 {offsets = [0, 5, 0], sizes = [16, 1, 16], strides = [1, 1, 1]} : vector<16x8x16xf32> to vector<16x1x16xf32>
    %73 = vector.shape_cast %72 : vector<16x1x16xf32> to vector<16x16xf32>
    %74 = vector.extract_strided_slice %61 {offsets = [0, 6, 0], sizes = [16, 1, 16], strides = [1, 1, 1]} : vector<16x8x16xf32> to vector<16x1x16xf32>
    %75 = vector.shape_cast %74 : vector<16x1x16xf32> to vector<16x16xf32>
    %76 = vector.extract_strided_slice %61 {offsets = [0, 7, 0], sizes = [16, 1, 16], strides = [1, 1, 1]} : vector<16x8x16xf32> to vector<16x1x16xf32>
    %77 = vector.shape_cast %76 : vector<16x1x16xf32> to vector<16x16xf32>
    %78 = tpu.concatenate %63, %65, %67, %69, %71, %73, %75, %77 in 1 : vector<16x16xf32>, vector<16x16xf32>, vector<16x16xf32>, vector<16x16xf32>, vector<16x16xf32>, vector<16x16xf32>, vector<16x16xf32>, vector<16x16xf32> -> vector<16x128xf32>
    %79 = vector.shape_cast %78 : vector<16x128xf32> to vector<2x8x128xf32>
    %80 = vector.extract_strided_slice %79 {offsets = [0, 0, 0], sizes = [2, 1, 128], strides = [1, 1, 1]} : vector<2x8x128xf32> to vector<2x1x128xf32>
    %81 = vector.shape_cast %80 : vector<2x1x128xf32> to vector<2x128xf32>
    %82 = vector.extract_strided_slice %79 {offsets = [0, 1, 0], sizes = [2, 1, 128], strides = [1, 1, 1]} : vector<2x8x128xf32> to vector<2x1x128xf32>
    %83 = vector.shape_cast %82 : vector<2x1x128xf32> to vector<2x128xf32>
    %84 = vector.extract_strided_slice %79 {offsets = [0, 2, 0], sizes = [2, 1, 128], strides = [1, 1, 1]} : vector<2x8x128xf32> to vector<2x1x128xf32>
    %85 = vector.shape_cast %84 : vector<2x1x128xf32> to vector<2x128xf32>
    %86 = vector.extract_strided_slice %79 {offsets = [0, 3, 0], sizes = [2, 1, 128], strides = [1, 1, 1]} : vector<2x8x128xf32> to vector<2x1x128xf32>
    %87 = vector.shape_cast %86 : vector<2x1x128xf32> to vector<2x128xf32>
    %88 = vector.extract_strided_slice %79 {offsets = [0, 4, 0], sizes = [2, 1, 128], strides = [1, 1, 1]} : vector<2x8x128xf32> to vector<2x1x128xf32>
    %89 = vector.shape_cast %88 : vector<2x1x128xf32> to vector<2x128xf32>
    %90 = vector.extract_strided_slice %79 {offsets = [0, 5, 0], sizes = [2, 1, 128], strides = [1, 1, 1]} : vector<2x8x128xf32> to vector<2x1x128xf32>
    %91 = vector.shape_cast %90 : vector<2x1x128xf32> to vector<2x128xf32>
    %92 = vector.extract_strided_slice %79 {offsets = [0, 6, 0], sizes = [2, 1, 128], strides = [1, 1, 1]} : vector<2x8x128xf32> to vector<2x1x128xf32>
    %93 = vector.shape_cast %92 : vector<2x1x128xf32> to vector<2x128xf32>
    %94 = vector.extract_strided_slice %79 {offsets = [0, 7, 0], sizes = [2, 1, 128], strides = [1, 1, 1]} : vector<2x8x128xf32> to vector<2x1x128xf32>
    %95 = vector.shape_cast %94 : vector<2x1x128xf32> to vector<2x128xf32>
    %96 = tpu.concatenate %81, %83, %85, %87, %89, %91, %93, %95 in 1 : vector<2x128xf32>, vector<2x128xf32>, vector<2x128xf32>, vector<2x128xf32>, vector<2x128xf32>, vector<2x128xf32>, vector<2x128xf32>, vector<2x128xf32> -> vector<2x1024xf32>
    %97 = arith.truncf %96 : vector<2x1024xf32> to vector<2x1024xbf16>
    %c0_40 = arith.constant 0 : index
    %c0_41 = arith.constant 0 : index
    %98 = vector.load %arg6[%c0_40, %c0_41] : memref<1024x32xbf16, #tpu.memory_space<vmem>>, vector<1024x32xbf16>
    %cst_42 = arith.constant dense<0.000000e+00> : vector<2x32xf32>
    %99 = tpu.matmul %97, %98, %cst_42 {dimension_numbers = #tpu.dot_dimension_numbers<[1], [0], [0], [1], [0, 0, 1, 1], [], []>} : vector<2x1024xbf16>, vector<1024x32xbf16>, vector<2x32xf32> -> vector<2x32xf32>
    %c0_43 = arith.constant 0 : index
    %c0_44 = arith.constant 0 : index
    %100 = vector.load %arg7[%c0_43, %c0_44] : memref<1x32xf32, #tpu.memory_space<vmem>>, vector<1x32xf32>
    %101 = vector.broadcast %100 : vector<1x32xf32> to vector<2x32xf32>
    %102 = arith.addf %99, %101 : vector<2x32xf32>
    %cst_45 = arith.constant 0.000000e+00 : f32
    %103 = vector.broadcast %cst_45 : f32 to vector<2x32xf32>
    %104 = arith.maximumf %102, %103 : vector<2x32xf32>
    %105 = arith.truncf %104 : vector<2x32xf32> to vector<2x32xbf16>
    %c0_46 = arith.constant 0 : index
    %c0_47 = arith.constant 0 : index
    %106 = vector.load %arg8[%c0_46, %c0_47] : memref<32x128xbf16, #tpu.memory_space<vmem>>, vector<32x128xbf16>
    %cst_48 = arith.constant dense<0.000000e+00> : vector<2x128xf32>
    %107 = tpu.matmul %105, %106, %cst_48 {dimension_numbers = #tpu.dot_dimension_numbers<[1], [0], [0], [1], [0, 0, 1, 1], [], []>} : vector<2x32xbf16>, vector<32x128xbf16>, vector<2x128xf32> -> vector<2x128xf32>
    %c0_49 = arith.constant 0 : index
    %c0_50 = arith.constant 0 : index
    %108 = vector.load %arg9[%c0_49, %c0_50] : memref<1x128xf32, #tpu.memory_space<vmem>>, vector<1x128xf32>
    %109 = vector.broadcast %108 : vector<1x128xf32> to vector<2x128xf32>
    %110 = arith.addf %107, %109 : vector<2x128xf32>
    %c0_51 = arith.constant 0 : index
    %c0_52 = arith.constant 0 : index
    %111 = vector.load %arg10[%c0_51, %c0_52] : memref<2x128xf32, #tpu.memory_space<vmem>>, vector<2x128xf32>
    tpu.vector_store %arg10[%c0_51, %c0_52], %110 {strides = array<i32>} : memref<2x128xf32, #tpu.memory_space<vmem>>, vector<2x128xf32>,
    return
  }
  func.func @transform_0(%arg0: i32) -> (i32, i32, i32, i32) {
    %c0_i32 = arith.constant 0 : i32
    %c0_i32_0 = arith.constant 0 : i32
    %c0_i32_1 = arith.constant 0 : i32
    %c0_i32_2 = arith.constant 0 : i32
    return %arg0, %c0_i32, %c0_i32_0, %c0_i32_1 : i32, i32, i32, i32
  }
  func.func @transform_1(%arg0: i32) -> (i32, i32) {
    %c0_i32 = arith.constant 0 : i32
    %c0_i32_0 = arith.constant 0 : i32
    %c0_i32_1 = arith.constant 0 : i32
    return %c0_i32, %c0_i32_0 : i32, i32
  }
  func.func @transform_2(%arg0: i32) -> (i32, i32) {
    %c0_i32 = arith.constant 0 : i32
    %c0_i32_0 = arith.constant 0 : i32
    %c0_i32_1 = arith.constant 0 : i32
    return %c0_i32, %c0_i32_0 : i32, i32
  }
  func.func @transform_3(%arg0: i32) -> (i32, i32) {
    %c0_i32 = arith.constant 0 : i32
    %c0_i32_0 = arith.constant 0 : i32
    %c0_i32_1 = arith.constant 0 : i32
    return %c0_i32, %c0_i32_0 : i32, i32
  }
  func.func @transform_4(%arg0: i32) -> (i32, i32) {
    %c0_i32 = arith.constant 0 : i32
    %c0_i32_0 = arith.constant 0 : i32
    %c0_i32_1 = arith.constant 0 : i32
    return %c0_i32, %c0_i32_0 : i32, i32
  }
  func.func @transform_5(%arg0: i32) -> (i32, i32) {
    %c0_i32 = arith.constant 0 : i32
    %c0_i32_0 = arith.constant 0 : i32
    %c0_i32_1 = arith.constant 0 : i32
    return %c0_i32, %c0_i32_0 : i32, i32
  }
  func.func @transform_6(%arg0: i32) -> (i32, i32) {
    %c0_i32 = arith.constant 0 : i32
    %c0_i32_0 = arith.constant 0 : i32
    %c0_i32_1 = arith.constant 0 : i32
    return %c0_i32, %c0_i32_0 : i32, i32
  }
  func.func @transform_7(%arg0: i32) -> (i32, i32) {
    %c0_i32 = arith.constant 0 : i32
    %c0_i32_0 = arith.constant 0 : i32
    %c0_i32_1 = arith.constant 0 : i32
    return %c0_i32, %c0_i32_0 : i32, i32
  }
  func.func @transform_8(%arg0: i32) -> (i32, i32) {
    %c0_i32 = arith.constant 0 : i32
    %c0_i32_0 = arith.constant 0 : i32
    %c0_i32_1 = arith.constant 0 : i32
    return %c0_i32, %c0_i32_0 : i32, i32
  }
  func.func @transform_9(%arg0: i32) -> (i32, i32) {
    %c0_i32 = arith.constant 0 : i32
    %c0_i32_0 = arith.constant 0 : i32
    return %arg0, %c0_i32 : i32, i32
  }
}

</mosaic_0001>

<llo_original>
// kernel: conv_classifier_forward.1
$region0: #{conv_classifier_forward.1}
  #allocation0 [shape = 'u32[]', space=smem, size = 0x4, offset = 0x4, fixed_abs, tag = 'smem constant byte address 0x4 - core index']
  #allocation1 [shape = 'u32[144,128]{1,0:T(1,128)}', space=vmem, size = 0x12000, scoped, tag = 'internal scratch']
  #allocation2 [shape = 'f32[2,18,18,8]{3,2,1,0:T(8,128)}', space=vmem, size = 0x6c000, scoped, tag = 'scratch operand']
  %s0 = inlined_call_operand.vmem [shape: f32[2,18,18,4], index: 0, kind: input, shape index: {}]
  %s1 = inlined_call_operand.vmem [shape: bf16[36,8], index: 1, kind: input, shape index: {}]
  %s2 = inlined_call_operand.vmem [shape: f32[1,8], index: 2, kind: input, shape index: {}]
  %s3 = inlined_call_operand.vmem [shape: bf16[72,16], index: 3, kind: input, shape index: {}]
  %s4 = inlined_call_operand.vmem [shape: f32[1,16], index: 4, kind: input, shape index: {}]
  %s5 = inlined_call_operand.vmem [shape: bf16[1024,32], index: 5, kind: input, shape index: {}]
  %s6 = inlined_call_operand.vmem [shape: f32[1,32], index: 6, kind: input, shape index: {}]
  %s7 = inlined_call_operand.vmem [shape: bf16[32,128], index: 7, kind: input, shape index: {}]
  %s8 = inlined_call_operand.vmem [shape: f32[1,128], index: 8, kind: input, shape index: {}]
  %s9 = inlined_call_operand.hbm [shape: f32[2,128], index: 9, kind: output, shape index: {}]
  %s10 = sld [smem:[#allocation0]]
  $region46: #{conv_classifier_forward.1} parent=0
    _
  %s12 = ssub.s32 1, %s10
  %s13 = scalar_select 0, %s12, %s10
  $region1: #{conv_classifier_forward.1} parent=0
    #allocation3 [shape = 'u8[1024]{0}', space=vmem, size = 0x400, scoped, tag = 'output window, operand 0, single buffered']
    #allocation4 [shape = 's32[1]{0}', space=sflag, size = 0x4, scoped, tag = 'scoped memory for conv_classifier_forward.1']
    %14 = vsyncpa [#allocation4], 0
    // Predicated region
    $region2: #{conv_classifier_forward.1} parent=1 // pred_check
      _
    $region3: #{conv_classifier_forward.1} parent=1 // pred_check_branch
      %16 = sbr.rel (0) target = $region5
    $region4: #{conv_classifier_forward.1} parent=1 // pred_region
      _
    $region5: #{conv_classifier_forward.1} parent=1 // pred_fallthru
      _
    // Predicated region
    $region6: #{conv_classifier_forward.1} parent=1 // pred_check
      _
    $region7: #{conv_classifier_forward.1} parent=1 // pred_check_branch
      %18 = sbr.rel (0) target = $region9
    $region8: #{conv_classifier_forward.1} parent=1 // pred_region
      _
    $region9: #{conv_classifier_forward.1} parent=1 // pred_fallthru
      _
    // Predicated region
    $region10: #{conv_classifier_forward.1} parent=1 // pred_check
      _
    $region11: #{conv_classifier_forward.1} parent=1 // pred_check_branch
      %20 = sbr.rel (0) target = $region13
    $region12: #{conv_classifier_forward.1} parent=1 // pred_region
      _
    $region13: #{conv_classifier_forward.1} parent=1 // pred_fallthru
      _
    // Predicated region
    $region14: #{conv_classifier_forward.1} parent=1 // pred_check
      _
    $region15: #{conv_classifier_forward.1} parent=1 // pred_check_branch
      %22 = sbr.rel (0) target = $region17
    $region16: #{conv_classifier_forward.1} parent=1 // pred_region
      _
    $region17: #{conv_classifier_forward.1} parent=1 // pred_fallthru
      _
    // Predicated region
    $region18: #{conv_classifier_forward.1} parent=1 // pred_check
      _
    $region19: #{conv_classifier_forward.1} parent=1 // pred_check_branch
      %24 = sbr.rel (0) target = $region21
    $region20: #{conv_classifier_forward.1} parent=1 // pred_region
      _
    $region21: #{conv_classifier_forward.1} parent=1 // pred_fallthru
      _
    // Predicated region
    $region22: #{conv_classifier_forward.1} parent=1 // pred_check
      _
    $region23: #{conv_classifier_forward.1} parent=1 // pred_check_branch
      %26 = sbr.rel (0) target = $region25
    $region24: #{conv_classifier_forward.1} parent=1 // pred_region
      _
    $region25: #{conv_classifier_forward.1} parent=1 // pred_fallthru
      _
    // Predicated region
    $region26: #{conv_classifier_forward.1} parent=1 // pred_check
      _
    $region27: #{conv_classifier_forward.1} parent=1 // pred_check_branch
      %28 = sbr.rel (0) target = $region29
    $region28: #{conv_classifier_forward.1} parent=1 // pred_region
      _
    $region29: #{conv_classifier_forward.1} parent=1 // pred_fallthru
      _
    // Predicated region
    $region30: #{conv_classifier_forward.1} parent=1 // pred_check
      _
    $region31: #{conv_classifier_forward.1} parent=1 // pred_check_branch
      %30 = sbr.rel (0) target = $region33
    $region32: #{conv_classifier_forward.1} parent=1 // pred_region
      _
    $region33: #{conv_classifier_forward.1} parent=1 // pred_fallthru
      _
    // Predicated region
    $region34: #{conv_classifier_forward.1} parent=1 // pred_check
      _
    $region35: #{conv_classifier_forward.1} parent=1 // pred_check_branch
      %32 = sbr.rel (0) target = $region37
    $region36: #{conv_classifier_forward.1} parent=1 // pred_region
      _
    $region37: #{conv_classifier_forward.1} parent=1 // pred_fallthru
      _
    %v34 = vld [vmem:[%s0] sm:$0xff]
    %v35 = vld [vmem:[%s0 + $0x8] sm:$0xff]
    %v36 = vld [vmem:[%s0 + $0x10] sm:$0x3]
    %v37 = vld [vmem:[%s0 + $0x18] sm:$0xff]
    %v38 = vld [vmem:[%s0 + $0x20] sm:$0xff]
    %v39 = vld [vmem:[%s0 + $0x28] sm:$0x3]
    %v40 = vld [vmem:[%s0 + $0x30] sm:$0xff]
    %v41 = vld [vmem:[%s0 + $0x38] sm:$0xff]
    %v42 = vld [vmem:[%s0 + $0x40] sm:$0x3]
    %v43 = vld [vmem:[%s0 + $0x48] sm:$0xff]
    %v44 = vld [vmem:[%s0 + $0x50] sm:$0xff]
    %v45 = vld [vmem:[%s0 + $0x58] sm:$0x3]
    %v46 = vld [vmem:[%s0 + $0x60] sm:$0xff]
    %v47 = vld [vmem:[%s0 + $0x68] sm:$0xff]
    %v48 = vld [vmem:[%s0 + $0x70] sm:$0x3]
    %v49 = vld [vmem:[%s0 + $0x78] sm:$0xff]
    %v50 = vld [vmem:[%s0 + $0x80] sm:$0xff]
    %v51 = vld [vmem:[%s0 + $0x88] sm:$0x3]
    %v52 = vld [vmem:[%s0 + $0x90] sm:$0xff]
    %v53 = vld [vmem:[%s0 + $0x98] sm:$0xff]
    %v54 = vld [vmem:[%s0 + $0xa0] sm:$0x3]
    %v55 = vld [vmem:[%s0 + $0xa8] sm:$0xff]
    %v56 = vld [vmem:[%s0 + $0xb0] sm:$0xff]
    %v57 = vld [vmem:[%s0 + $0xb8] sm:$0x3]
    %v58 = vld [vmem:[%s0 + $0xc0] sm:$0xff]
    %v59 = vld [vmem:[%s0 + $0xc8] sm:$0xff]
    %v60 = vld [vmem:[%s0 + $0xd0] sm:$0x3]
    %v61 = vld [vmem:[%s0 + $0xd8] sm:$0xff]
    %v62 = vld [vmem:[%s0 + $0xe0] sm:$0xff]
    %v63 = vld [vmem:[%s0 + $0xe8] sm:$0x3]
    %v64 = vld [vmem:[%s0 + $0xf0] sm:$0xff]
    %v65 = vld [vmem:[%s0 + $0xf8] sm:$0xff]
    %v66 = vld [vmem:[%s0 + $0x100] sm:$0x3]
    %v67 = vld [vmem:[%s0 + $0x108] sm:$0xff]
    %v68 = vld [vmem:[%s0 + $0x110] sm:$0xff]
    %v69 = vld [vmem:[%s0 + $0x118] sm:$0x3]
    %v70 = vld [vmem:[%s0 + $0x120] sm:$0xff]
    %v71 = vld [vmem:[%s0 + $0x128] sm:$0xff]
    %v72 = vld [vmem:[%s0 + $0x130] sm:$0x3]
    %v73 = vld [vmem:[%s0 + $0x138] sm:$0xff]
    %v74 = vld [vmem:[%s0 + $0x140] sm:$0xff]
    %v75 = vld [vmem:[%s0 + $0x148] sm:$0x3]
    %v76 = vld [vmem:[%s0 + $0x150] sm:$0xff]
    %v77 = vld [vmem:[%s0 + $0x158] sm:$0xff]
    %v78 = vld [vmem:[%s0 + $0x160] sm:$0x3]
    %v79 = vld [vmem:[%s0 + $0x168] sm:$0xff]
    %v80 = vld [vmem:[%s0 + $0x170] sm:$0xff]
    %v81 = vld [vmem:[%s0 + $0x178] sm:$0x3]
    %v82 = vld [vmem:[%s0 + $0x180] sm:$0xff]
    %v83 = vld [vmem:[%s0 + $0x188] sm:$0xff]
    %v84 = vld [vmem:[%s0 + $0x190] sm:$0x3]
    %v85 = vld [vmem:[%s0 + $0x198] sm:$0xff]
    %v86 = vld [vmem:[%s0 + $0x1a0] sm:$0xff]
    %v87 = vld [vmem:[%s0 + $0x1a8] sm:$0x3]
    %v88 = vld [vmem:[%s0 + $0x1b0] sm:$0xff]
    %v89 = vld [vmem:[%s0 + $0x1b8] sm:$0xff]
    %v90 = vld [vmem:[%s0 + $0x1c0] sm:$0x3]
    %v91 = vld [vmem:[%s0 + $0x1c8] sm:$0xff]
    %v92 = vld [vmem:[%s0 + $0x1d0] sm:$0xff]
    %v93 = vld [vmem:[%s0 + $0x1d8] sm:$0x3]
    %v94 = vld [vmem:[%s0 + $0x1e0] sm:$0xff]
    %v95 = vld [vmem:[%s0 + $0x1e8] sm:$0xff]
    %v96 = vld [vmem:[%s0 + $0x1f0] sm:$0x3]
    %v97 = vld [vmem:[%s0 + $0x1f8] sm:$0xff]
    %v98 = vld [vmem:[%s0 + $0x200] sm:$0xff]
    %v99 = vld [vmem:[%s0 + $0x208] sm:$0x3]
    %v100 = vld [vmem:[%s0 + $0x210] sm:$0xff]
    %v101 = vld [vmem:[%s0 + $0x218] sm:$0xff]
    %v102 = vld [vmem:[%s0 + $0x220] sm:$0x3]
    %v103 = vld [vmem:[%s0 + $0x228] sm:$0xff]
    %v104 = vld [vmem:[%s0 + $0x230] sm:$0xff]
    %v105 = vld [vmem:[%s0 + $0x238] sm:$0x3]
    %v106 = vld [vmem:[%s0 + $0x240] sm:$0xff]
    %v107 = vld [vmem:[%s0 + $0x248] sm:$0xff]
    %v108 = vld [vmem:[%s0 + $0x250] sm:$0x3]
    %v109 = vld [vmem:[%s0 + $0x258] sm:$0xff]
    %v110 = vld [vmem:[%s0 + $0x260] sm:$0xff]
    %v111 = vld [vmem:[%s0 + $0x268] sm:$0x3]
    %v112 = vld [vmem:[%s0 + $0x270] sm:$0xff]
    %v113 = vld [vmem:[%s0 + $0x278] sm:$0xff]
    %v114 = vld [vmem:[%s0 + $0x280] sm:$0x3]
    %v115 = vld [vmem:[%s0 + $0x288] sm:$0xff]
    %v116 = vld [vmem:[%s0 + $0x290] sm:$0xff]
    %v117 = vld [vmem:[%s0 + $0x298] sm:$0x3]
    %v118 = vld [vmem:[%s0 + $0x2a0] sm:$0xff]
    %v119 = vld [vmem:[%s0 + $0x2a8] sm:$0xff]
    %v120 = vld [vmem:[%s0 + $0x2b0] sm:$0x3]
    %v121 = vld [vmem:[%s0 + $0x2b8] sm:$0xff]
    %v122 = vld [vmem:[%s0 + $0x2c0] sm:$0xff]
    %v123 = vld [vmem:[%s0 + $0x2c8] sm:$0x3]
    %v124 = vld [vmem:[%s0 + $0x2d0] sm:$0xff]
    %v125 = vld [vmem:[%s0 + $0x2d8] sm:$0xff]
    %v126 = vld [vmem:[%s0 + $0x2e0] sm:$0x3]
    %v127 = vld [vmem:[%s0 + $0x2e8] sm:$0xff]
    %v128 = vld [vmem:[%s0 + $0x2f0] sm:$0xff]
    %v129 = vld [vmem:[%s0 + $0x2f8] sm:$0x3]
    %v130 = vld [vmem:[%s0 + $0x300] sm:$0xff]
    %v131 = vld [vmem:[%s0 + $0x308] sm:$0xff]
    %v132 = vld [vmem:[%s0 + $0x310] sm:$0x3]
    %v133 = vld [vmem:[%s0 + $0x318] sm:$0xff]
    %v134 = vld [vmem:[%s0 + $0x320] sm:$0xff]
    %v135 = vld [vmem:[%s0 + $0x328] sm:$0x3]
    %v136 = vld [vmem:[%s0 + $0x330] sm:$0xff]
    %v137 = vld [vmem:[%s0 + $0x338] sm:$0xff]
    %v138 = vld [vmem:[%s0 + $0x340] sm:$0x3]
    %v139 = vld [vmem:[%s0 + $0x348] sm:$0xff]
    %v140 = vld [vmem:[%s0 + $0x350] sm:$0xff]
    %v141 = vld [vmem:[%s0 + $0x358] sm:$0x3]
    %vm238 = vcmask 1046528
    %v239 = vrot.slane %v34, 1
    %v240 = vrot.slane %v35, 1
    %v241 = vsel %vm238, %v239, %v240
    %v242 = vrot.slane %v36, 1
    %v243 = vsel %vm238, %v240, %v242
    %v244 = vrot.slane %v37, 1
    %v245 = vrot.slane %v38, 1
    %v246 = vsel %vm238, %v244, %v245
    %v247 = vrot.slane %v39, 1
    %v248 = vsel %vm238, %v245, %v247
    %v249 = vrot.slane %v40, 1
    %v250 = vrot.slane %v41, 1
    %v251 = vsel %vm238, %v249, %v250
    %v252 = vrot.slane %v42, 1
    %v253 = vsel %vm238, %v250, %v252
    %v254 = vrot.slane %v43, 1
    %v255 = vrot.slane %v44, 1
    %v256 = vsel %vm238, %v254, %v255
    %v257 = vrot.slane %v45, 1
    %v258 = vsel %vm238, %v255, %v257
    %v259 = vrot.slane %v46, 1
    %v260 = vrot.slane %v47, 1
    %v261 = vsel %vm238, %v259, %v260
    %v262 = vrot.slane %v48, 1
    %v263 = vsel %vm238, %v260, %v262
    %v264 = vrot.slane %v49, 1
    %v265 = vrot.slane %v50, 1
    %v266 = vsel %vm238, %v264, %v265
    %v267 = vrot.slane %v51, 1
    %v268 = vsel %vm238, %v265, %v267
    %v269 = vrot.slane %v52, 1
    %v270 = vrot.slane %v53, 1
    %v271 = vsel %vm238, %v269, %v270
    %v272 = vrot.slane %v54, 1
    %v273 = vsel %vm238, %v270, %v272
    %v274 = vrot.slane %v55, 1
    %v275 = vrot.slane %v56, 1
    %v276 = vsel %vm238, %v274, %v275
    %v277 = vrot.slane %v57, 1
    %v278 = vsel %vm238, %v275, %v277
    %v279 = vrot.slane %v58, 1
    %v280 = vrot.slane %v59, 1
    %v281 = vsel %vm238, %v279, %v280
    %v282 = vrot.slane %v60, 1
    %v283 = vsel %vm238, %v280, %v282
    %v284 = vrot.slane %v61, 1
    %v285 = vrot.slane %v62, 1
    %v286 = vsel %vm238, %v284, %v285
    %v287 = vrot.slane %v63, 1
    %v288 = vsel %vm238, %v285, %v287
    %v289 = vrot.slane %v64, 1
    %v290 = vrot.slane %v65, 1
    %v291 = vsel %vm238, %v289, %v290
    %v292 = vrot.slane %v66, 1
    %v293 = vsel %vm238, %v290, %v292
    %v294 = vrot.slane %v67, 1
    %v295 = vrot.slane %v68, 1
    %v296 = vsel %vm238, %v294, %v295
    %v297 = vrot.slane %v69, 1
    %v298 = vsel %vm238, %v295, %v297
    %v299 = vrot.slane %v70, 1
    %v300 = vrot.slane %v71, 1
    %v301 = vsel %vm238, %v299, %v300
    %v302 = vrot.slane %v72, 1
    %v303 = vsel %vm238, %v300, %v302
    %v304 = vrot.slane %v73, 1
    %v305 = vrot.slane %v74, 1
    %v306 = vsel %vm238, %v304, %v305
    %v307 = vrot.slane %v75, 1
    %v308 = vsel %vm238, %v305, %v307
    %v309 = vrot.slane %v76, 1
    %v310 = vrot.slane %v77, 1
    %v311 = vsel %vm238, %v309, %v310
    %v312 = vrot.slane %v78, 1
    %v313 = vsel %vm238, %v310, %v312
    %v314 = vrot.slane %v79, 1
    %v315 = vrot.slane %v80, 1
    %v316 = vsel %vm238, %v314, %v315
    %v317 = vrot.slane %v81, 1
    %v318 = vsel %vm238, %v315, %v317
    %v319 = vrot.slane %v88, 1
    %v320 = vrot.slane %v89, 1
    %v321 = vsel %vm238, %v319, %v320
    %v322 = vrot.slane %v90, 1
    %v323 = vsel %vm238, %v320, %v322
    %v324 = vrot.slane %v91, 1
    %v325 = vrot.slane %v92, 1
    %v326 = vsel %vm238, %v324, %v325
    %v327 = vrot.slane %v93, 1
    %v328 = vsel %vm238, %v325, %v327
    %v329 = vrot.slane %v94, 1
    %v330 = vrot.slane %v95, 1
    %v331 = vsel %vm238, %v329, %v330
    %v332 = vrot.slane %v96, 1
    %v333 = vsel %vm238, %v330, %v332
    %v334 = vrot.slane %v97, 1
    %v335 = vrot.slane %v98, 1
    %v336 = vsel %vm238, %v334, %v335
    %v337 = vrot.slane %v99, 1
    %v338 = vsel %vm238, %v335, %v337
    %v339 = vrot.slane %v100, 1
    %v340 = vrot.slane %v101, 1
    %v341 = vsel %vm238, %v339, %v340
    %v342 = vrot.slane %v102, 1
    %v343 = vsel %vm238, %v340, %v342
    %v344 = vrot.slane %v103, 1
    %v345 = vrot.slane %v104, 1
    %v346 = vsel %vm238, %v344, %v345
    %v347 = vrot.slane %v105, 1
    %v348 = vsel %vm238, %v345, %v347
    %v349 = vrot.slane %v106, 1
    %v350 = vrot.slane %v107, 1
    %v351 = vsel %vm238, %v349, %v350
    %v352 = vrot.slane %v108, 1
    %v353 = vsel %vm238, %v350, %v352
    %v354 = vrot.slane %v109, 1
    %v355 = vrot.slane %v110, 1
    %v356 = vsel %vm238, %v354, %v355
    %v357 = vrot.slane %v111, 1
    %v358 = vsel %vm238, %v355, %v357
    %v359 = vrot.slane %v112, 1
    %v360 = vrot.slane %v113, 1
    %v361 = vsel %vm238, %v359, %v360
    %v362 = vrot.slane %v114, 1
    %v363 = vsel %vm238, %v360, %v362
    %v364 = vrot.slane %v115, 1
    %v365 = vrot.slane %v116, 1
    %v366 = vsel %vm238, %v364, %v365
    %v367 = vrot.slane %v117, 1
    %v368 = vsel %vm238, %v365, %v367
    %v369 = vrot.slane %v118, 1
    %v370 = vrot.slane %v119, 1
    %v371 = vsel %vm238, %v369, %v370
    %v372 = vrot.slane %v120, 1
    %v373 = vsel %vm238, %v370, %v372
    %v374 = vrot.slane %v121, 1
    %v375 = vrot.slane %v122, 1
    %v376 = vsel %vm238, %v374, %v375
    %v377 = vrot.slane %v123, 1
    %v378 = vsel %vm238, %v375, %v377
    %v379 = vrot.slane %v124, 1
    %v380 = vrot.slane %v125, 1
    %v381 = vsel %vm238, %v379, %v380
    %v382 = vrot.slane %v126, 1
    %v383 = vsel %vm238, %v380, %v382
    %v384 = vrot.slane %v127, 1
    %v385 = vrot.slane %v128, 1
    %v386 = vsel %vm238, %v384, %v385
    %v387 = vrot.slane %v129, 1
    %v388 = vsel %vm238, %v385, %v387
    %v389 = vrot.slane %v130, 1
    %v390 = vrot.slane %v131, 1
    %v391 = vsel %vm238, %v389, %v390
    %v392 = vrot.slane %v132, 1
    %v393 = vsel %vm238, %v390, %v392
    %v394 = vrot.slane %v133, 1
    %v395 = vrot.slane %v134, 1
    %v396 = vsel %vm238, %v394, %v395
    %v397 = vrot.slane %v135, 1
    %v398 = vsel %vm238, %v395, %v397
    %399 = vrot.lane.b32.xlu0 %v241, 4
    %v400 = vpop.permute.xlu0 %399
    %401 = vrot.lane.b32.xlu0 %v243, 4
    %v402 = vpop.permute.xlu0 %401
    %403 = vrot.lane.b32.xlu0 %v246, 4
    %v404 = vpop.permute.xlu0 %403
    %405 = vrot.lane.b32.xlu0 %v248, 4
    %v406 = vpop.permute.xlu0 %405
    %407 = vrot.lane.b32.xlu0 %v251, 4
    %v408 = vpop.permute.xlu0 %407
    %409 = vrot.lane.b32.xlu0 %v253, 4
    %v410 = vpop.permute.xlu0 %409
    %411 = vrot.lane.b32.xlu0 %v256, 4
    %v412 = vpop.permute.xlu0 %411
    %413 = vrot.lane.b32.xlu0 %v258, 4
    %v414 = vpop.permute.xlu0 %413
    %415 = vrot.lane.b32.xlu0 %v261, 4
    %v416 = vpop.permute.xlu0 %415
    %417 = vrot.lane.b32.xlu0 %v263, 4
    %v418 = vpop.permute.xlu0 %417
    %419 = vrot.lane.b32.xlu0 %v266, 4
    %v420 = vpop.permute.xlu0 %419
    %421 = vrot.lane.b32.xlu0 %v268, 4
    %v422 = vpop.permute.xlu0 %421
    %423 = vrot.lane.b32.xlu0 %v271, 4
    %v424 = vpop.permute.xlu0 %423
    %425 = vrot.lane.b32.xlu0 %v273, 4
    %v426 = vpop.permute.xlu0 %425
    %427 = vrot.lane.b32.xlu0 %v276, 4
    %v428 = vpop.permute.xlu0 %427
    %429 = vrot.lane.b32.xlu0 %v278, 4
    %v430 = vpop.permute.xlu0 %429
    %431 = vrot.lane.b32.xlu0 %v281, 4
    %v432 = vpop.permute.xlu0 %431
    %433 = vrot.lane.b32.xlu0 %v283, 4
    %v434 = vpop.permute.xlu0 %433
    %435 = vrot.lane.b32.xlu0 %v286, 4
    %v436 = vpop.permute.xlu0 %435
    %437 = vrot.lane.b32.xlu0 %v288, 4
    %v438 = vpop.permute.xlu0 %437
    %439 = vrot.lane.b32.xlu0 %v291, 4
    %v440 = vpop.permute.xlu0 %439
    %441 = vrot.lane.b32.xlu0 %v293, 4
    %v442 = vpop.permute.xlu0 %441
    %443 = vrot.lane.b32.xlu0 %v296, 4
    %v444 = vpop.permute.xlu0 %443
    %445 = vrot.lane.b32.xlu0 %v298, 4
    %v446 = vpop.permute.xlu0 %445
    %447 = vrot.lane.b32.xlu0 %v301, 4
    %v448 = vpop.permute.xlu0 %447
    %449 = vrot.lane.b32.xlu0 %v303, 4
    %v450 = vpop.permute.xlu0 %449
    %451 = vrot.lane.b32.xlu0 %v306, 4
    %v452 = vpop.permute.xlu0 %451
    %453 = vrot.lane.b32.xlu0 %v308, 4
    %v454 = vpop.permute.xlu0 %453
    %455 = vrot.lane.b32.xlu0 %v311, 4
    %v456 = vpop.permute.xlu0 %455
    %457 = vrot.lane.b32.xlu0 %v313, 4
    %v458 = vpop.permute.xlu0 %457
    %459 = vrot.lane.b32.xlu0 %v316, 4
    %v460 = vpop.permute.xlu0 %459
    %461 = vrot.lane.b32.xlu0 %v318, 4
    %v462 = vpop.permute.xlu0 %461
    %463 = vrot.lane.b32.xlu0 %v321, 4
    %v464 = vpop.permute.xlu0 %463
    %465 = vrot.lane.b32.xlu0 %v323, 4
    %v466 = vpop.permute.xlu0 %465
    %467 = vrot.lane.b32.xlu0 %v326, 4
    %v468 = vpop.permute.xlu0 %467
    %469 = vrot.lane.b32.xlu0 %v328, 4
    %v470 = vpop.permute.xlu0 %469
    %471 = vrot.lane.b32.xlu0 %v331, 4
    %v472 = vpop.permute.xlu0 %471
    %473 = vrot.lane.b32.xlu0 %v333, 4
    %v474 = vpop.permute.xlu0 %473
    %475 = vrot.lane.b32.xlu0 %v336, 4
    %v476 = vpop.permute.xlu0 %475
    %477 = vrot.lane.b32.xlu0 %v338, 4
    %v478 = vpop.permute.xlu0 %477
    %479 = vrot.lane.b32.xlu0 %v341, 4
    %v480 = vpop.permute.xlu0 %479
    %481 = vrot.lane.b32.xlu0 %v343, 4
    %v482 = vpop.permute.xlu0 %481
    %483 = vrot.lane.b32.xlu0 %v346, 4
    %v484 = vpop.permute.xlu0 %483
    %485 = vrot.lane.b32.xlu0 %v348, 4
    %v486 = vpop.permute.xlu0 %485
    %487 = vrot.lane.b32.xlu0 %v351, 4
    %v488 = vpop.permute.xlu0 %487
    %489 = vrot.lane.b32.xlu0 %v353, 4
    %v490 = vpop.permute.xlu0 %489
    %491 = vrot.lane.b32.xlu0 %v356, 4
    %v492 = vpop.permute.xlu0 %491
    %493 = vrot.lane.b32.xlu0 %v358, 4
    %v494 = vpop.permute.xlu0 %493
    %495 = vrot.lane.b32.xlu0 %v361, 4
    %v496 = vpop.permute.xlu0 %495
    %497 = vrot.lane.b32.xlu0 %v363, 4
    %v498 = vpop.permute.xlu0 %497
    %499 = vrot.lane.b32.xlu0 %v366, 4
    %v500 = vpop.permute.xlu0 %499
    %501 = vrot.lane.b32.xlu0 %v368, 4
    %v502 = vpop.permute.xlu0 %501
    %503 = vrot.lane.b32.xlu0 %v371, 4
    %v504 = vpop.permute.xlu0 %503
    %505 = vrot.lane.b32.xlu0 %v373, 4
    %v506 = vpop.permute.xlu0 %505
    %507 = vrot.lane.b32.xlu0 %v376, 4
    %v508 = vpop.permute.xlu0 %507
    %509 = vrot.lane.b32.xlu0 %v378, 4
    %v510 = vpop.permute.xlu0 %509
    %511 = vrot.lane.b32.xlu0 %v381, 4
    %v512 = vpop.permute.xlu0 %511
    %513 = vrot.lane.b32.xlu0 %v383, 4
    %v514 = vpop.permute.xlu0 %513
    %515 = vrot.lane.b32.xlu0 %v386, 4
    %v516 = vpop.permute.xlu0 %515
    %517 = vrot.lane.b32.xlu0 %v388, 4
    %v518 = vpop.permute.xlu0 %517
    %519 = vrot.lane.b32.xlu0 %v391, 4
    %v520 = vpop.permute.xlu0 %519
    %521 = vrot.lane.b32.xlu0 %v393, 4
    %v522 = vpop.permute.xlu0 %521
    %523 = vrot.lane.b32.xlu0 %v396, 4
    %v524 = vpop.permute.xlu0 %523
    %525 = vrot.lane.b32.xlu0 %v398, 4
    %v526 = vpop.permute.xlu0 %525
    %vm591 = vcmask 1045504
    %v592 = vrot.slane %v34, 2
    %v593 = vrot.slane %v35, 2
    %v594 = vsel %vm591, %v592, %v593
    %v595 = vrot.slane %v36, 2
    %v596 = vsel %vm591, %v593, %v595
    %v597 = vrot.slane %v37, 2
    %v598 = vrot.slane %v38, 2
    %v599 = vsel %vm591, %v597, %v598
    %v600 = vrot.slane %v39, 2
    %v601 = vsel %vm591, %v598, %v600
    %v602 = vrot.slane %v40, 2
    %v603 = vrot.slane %v41, 2
    %v604 = vsel %vm591, %v602, %v603
    %v605 = vrot.slane %v42, 2
    %v606 = vsel %vm591, %v603, %v605
    %v607 = vrot.slane %v43, 2
    %v608 = vrot.slane %v44, 2
    %v609 = vsel %vm591, %v607, %v608
    %v610 = vrot.slane %v45, 2
    %v611 = vsel %vm591, %v608, %v610
    %v612 = vrot.slane %v46, 2
    %v613 = vrot.slane %v47, 2
    %v614 = vsel %vm591, %v612, %v613
    %v615 = vrot.slane %v48, 2
    %v616 = vsel %vm591, %v613, %v615
    %v617 = vrot.slane %v49, 2
    %v618 = vrot.slane %v50, 2
    %v619 = vsel %vm591, %v617, %v618
    %v620 = vrot.slane %v51, 2
    %v621 = vsel %vm591, %v618, %v620
    %v622 = vrot.slane %v52, 2
    %v623 = vrot.slane %v53, 2
    %v624 = vsel %vm591, %v622, %v623
    %v625 = vrot.slane %v54, 2
    %v626 = vsel %vm591, %v623, %v625
    %v627 = vrot.slane %v55, 2
    %v628 = vrot.slane %v56, 2
    %v629 = vsel %vm591, %v627, %v628
    %v630 = vrot.slane %v57, 2
    %v631 = vsel %vm591, %v628, %v630
    %v632 = vrot.slane %v58, 2
    %v633 = vrot.slane %v59, 2
    %v634 = vsel %vm591, %v632, %v633
    %v635 = vrot.slane %v60, 2
    %v636 = vsel %vm591, %v633, %v635
    %v637 = vrot.slane %v61, 2
    %v638 = vrot.slane %v62, 2
    %v639 = vsel %vm591, %v637, %v638
    %v640 = vrot.slane %v63, 2
    %v641 = vsel %vm591, %v638, %v640
    %v642 = vrot.slane %v64, 2
    %v643 = vrot.slane %v65, 2
    %v644 = vsel %vm591, %v642, %v643
    %v645 = vrot.slane %v66, 2
    %v646 = vsel %vm591, %v643, %v645
    %v647 = vrot.slane %v67, 2
    %v648 = vrot.slane %v68, 2
    %v649 = vsel %vm591, %v647, %v648
    %v650 = vrot.slane %v69, 2
    %v651 = vsel %vm591, %v648, %v650
    %v652 = vrot.slane %v70, 2
    %v653 = vrot.slane %v71, 2
    %v654 = vsel %vm591, %v652, %v653
    %v655 = vrot.slane %v72, 2
    %v656 = vsel %vm591, %v653, %v655
    %v657 = vrot.slane %v73, 2
    %v658 = vrot.slane %v74, 2
    %v659 = vsel %vm591, %v657, %v658
    %v660 = vrot.slane %v75, 2
    %v661 = vsel %vm591, %v658, %v660
    %v662 = vrot.slane %v76, 2
    %v663 = vrot.slane %v77, 2
    %v664 = vsel %vm591, %v662, %v663
    %v665 = vrot.slane %v78, 2
    %v666 = vsel %vm591, %v663, %v665
    %v667 = vrot.slane %v79, 2
    %v668 = vrot.slane %v80, 2
    %v669 = vsel %vm591, %v667, %v668
    %v670 = vrot.slane %v81, 2
    %v671 = vsel %vm591, %v668, %v670
    %v672 = vrot.slane %v88, 2
    %v673 = vrot.slane %v89, 2
    %v674 = vsel %vm591, %v672, %v673
    %v675 = vrot.slane %v90, 2
    %v676 = vsel %vm591, %v673, %v675
    %v677 = vrot.slane %v91, 2
    %v678 = vrot.slane %v92, 2
    %v679 = vsel %vm591, %v677, %v678
    %v680 = vrot.slane %v93, 2
    %v681 = vsel %vm591, %v678, %v680
    %v682 = vrot.slane %v94, 2
    %v683 = vrot.slane %v95, 2
    %v684 = vsel %vm591, %v682, %v683
    %v685 = vrot.slane %v96, 2
    %v686 = vsel %vm591, %v683, %v685
    %v687 = vrot.slane %v97, 2
    %v688 = vrot.slane %v98, 2
    %v689 = vsel %vm591, %v687, %v688
    %v690 = vrot.slane %v99, 2
    %v691 = vsel %vm591, %v688, %v690
    %v692 = vrot.slane %v100, 2
    %v693 = vrot.slane %v101, 2
    %v694 = vsel %vm591, %v692, %v693
    %v695 = vrot.slane %v102, 2
    %v696 = vsel %vm591, %v693, %v695
    %v697 = vrot.slane %v103, 2
    %v698 = vrot.slane %v104, 2
    %v699 = vsel %vm591, %v697, %v698
    %v700 = vrot.slane %v105, 2
    %v701 = vsel %vm591, %v698, %v700
    %v702 = vrot.slane %v106, 2
    %v703 = vrot.slane %v107, 2
    %v704 = vsel %vm591, %v702, %v703
    %v705 = vrot.slane %v108, 2
    %v706 = vsel %vm591, %v703, %v705
    %v707 = vrot.slane %v109, 2
    %v708 = vrot.slane %v110, 2
    %v709 = vsel %vm591, %v707, %v708
    %v710 = vrot.slane %v111, 2
    %v711 = vsel %vm591, %v708, %v710
    %v712 = vrot.slane %v112, 2
    %v713 = vrot.slane %v113, 2
    %v714 = vsel %vm591, %v712, %v713
    %v715 = vrot.slane %v114, 2
    %v716 = vsel %vm591, %v713, %v715
    %v717 = vrot.slane %v115, 2
    %v718 = vrot.slane %v116, 2
    %v719 = vsel %vm591, %v717, %v718
    %v720 = vrot.slane %v117, 2
    %v721 = vsel %vm591, %v718, %v720
    %v722 = vrot.slane %v118, 2
    %v723 = vrot.slane %v119, 2
    %v724 = vsel %vm591, %v722, %v723
    %v725 = vrot.slane %v120, 2
    %v726 = vsel %vm591, %v723, %v725
    %v727 = vrot.slane %v121, 2
    %v728 = vrot.slane %v122, 2
    %v729 = vsel %vm591, %v727, %v728
    %v730 = vrot.slane %v123, 2
    %v731 = vsel %vm591, %v728, %v730
    %v732 = vrot.slane %v124, 2
    %v733 = vrot.slane %v125, 2
    %v734 = vsel %vm591, %v732, %v733
    %v735 = vrot.slane %v126, 2
    %v736 = vsel %vm591, %v733, %v735
    %v737 = vrot.slane %v127, 2
    %v738 = vrot.slane %v128, 2
    %v739 = vsel %vm591, %v737, %v738
    %v740 = vrot.slane %v129, 2
    %v741 = vsel %vm591, %v738, %v740
    %v742 = vrot.slane %v130, 2
    %v743 = vrot.slane %v131, 2
    %v744 = vsel %vm591, %v742, %v743
    %v745 = vrot.slane %v132, 2
    %v746 = vsel %vm591, %v743, %v745
    %v747 = vrot.slane %v133, 2
    %v748 = vrot.slane %v134, 2
    %v749 = vsel %vm591, %v747, %v748
    %v750 = vrot.slane %v135, 2
    %v751 = vsel %vm591, %v748, %v750
    %752 = vrot.lane.b32.xlu0 %v594, 8
    %v753 = vpop.permute.xlu0 %752
    %754 = vrot.lane.b32.xlu0 %v596, 8
    %v755 = vpop.permute.xlu0 %754
    %756 = vrot.lane.b32.xlu0 %v599, 8
    %v757 = vpop.permute.xlu0 %756
    %758 = vrot.lane.b32.xlu0 %v601, 8
    %v759 = vpop.permute.xlu0 %758
    %760 = vrot.lane.b32.xlu0 %v604, 8
    %v761 = vpop.permute.xlu0 %760
    %762 = vrot.lane.b32.xlu0 %v606, 8
    %v763 = vpop.permute.xlu0 %762
    %764 = vrot.lane.b32.xlu0 %v609, 8
    %v765 = vpop.permute.xlu0 %764
    %766 = vrot.lane.b32.xlu0 %v611, 8
    %v767 = vpop.permute.xlu0 %766
    %768 = vrot.lane.b32.xlu0 %v614, 8
    %v769 = vpop.permute.xlu0 %768
    %770 = vrot.lane.b32.xlu0 %v616, 8
    %v771 = vpop.permute.xlu0 %770
    %772 = vrot.lane.b32.xlu0 %v619, 8
    %v773 = vpop.permute.xlu0 %772
    %774 = vrot.lane.b32.xlu0 %v621, 8
    %v775 = vpop.permute.xlu0 %774
    %776 = vrot.lane.b32.xlu0 %v624, 8
    %v777 = vpop.permute.xlu0 %776
    %778 = vrot.lane.b32.xlu0 %v626, 8
    %v779 = vpop.permute.xlu0 %778
    %780 = vrot.lane.b32.xlu0 %v629, 8
    %v781 = vpop.permute.xlu0 %780
    %782 = vrot.lane.b32.xlu0 %v631, 8
    %v783 = vpop.permute.xlu0 %782
    %784 = vrot.lane.b32.xlu0 %v634, 8
    %v785 = vpop.permute.xlu0 %784
    %786 = vrot.lane.b32.xlu0 %v636, 8
    %v787 = vpop.permute.xlu0 %786
    %788 = vrot.lane.b32.xlu0 %v639, 8
    %v789 = vpop.permute.xlu0 %788
    %790 = vrot.lane.b32.xlu0 %v641, 8
    %v791 = vpop.permute.xlu0 %790
    %792 = vrot.lane.b32.xlu0 %v644, 8
    %v793 = vpop.permute.xlu0 %792
    %794 = vrot.lane.b32.xlu0 %v646, 8
    %v795 = vpop.permute.xlu0 %794
    %796 = vrot.lane.b32.xlu0 %v649, 8
    %v797 = vpop.permute.xlu0 %796
    %798 = vrot.lane.b32.xlu0 %v651, 8
    %v799 = vpop.permute.xlu0 %798
    %800 = vrot.lane.b32.xlu0 %v654, 8
    %v801 = vpop.permute.xlu0 %800
    %802 = vrot.lane.b32.xlu0 %v656, 8
    %v803 = vpop.permute.xlu0 %802
    %804 = vrot.lane.b32.xlu0 %v659, 8
    %v805 = vpop.permute.xlu0 %804
    %806 = vrot.lane.b32.xlu0 %v661, 8
    %v807 = vpop.permute.xlu0 %806
    %808 = vrot.lane.b32.xlu0 %v664, 8
    %v809 = vpop.permute.xlu0 %808
    %810 = vrot.lane.b32.xlu0 %v666, 8
    %v811 = vpop.permute.xlu0 %810
    %812 = vrot.lane.b32.xlu0 %v669, 8
    %v813 = vpop.permute.xlu0 %812
    %814 = vrot.lane.b32.xlu0 %v671, 8
    %v815 = vpop.permute.xlu0 %814
    %816 = vrot.lane.b32.xlu0 %v674, 8
    %v817 = vpop.permute.xlu0 %816
    %818 = vrot.lane.b32.xlu0 %v676, 8
    %v819 = vpop.permute.xlu0 %818
    %820 = vrot.lane.b32.xlu0 %v679, 8
    %v821 = vpop.permute.xlu0 %820
    %822 = vrot.lane.b32.xlu0 %v681, 8
    %v823 = vpop.permute.xlu0 %822
    %824 = vrot.lane.b32.xlu0 %v684, 8
    %v825 = vpop.permute.xlu0 %824
    %826 = vrot.lane.b32.xlu0 %v686, 8
    %v827 = vpop.permute.xlu0 %826
    %828 = vrot.lane.b32.xlu0 %v689, 8
    %v829 = vpop.permute.xlu0 %828
    %830 = vrot.lane.b32.xlu0 %v691, 8
    %v831 = vpop.permute.xlu0 %830
    %832 = vrot.lane.b32.xlu0 %v694, 8
    %v833 = vpop.permute.xlu0 %832
    %834 = vrot.lane.b32.xlu0 %v696, 8
    %v835 = vpop.permute.xlu0 %834
    %836 = vrot.lane.b32.xlu0 %v699, 8
    %v837 = vpop.permute.xlu0 %836
    %838 = vrot.lane.b32.xlu0 %v701, 8
    %v839 = vpop.permute.xlu0 %838
    %840 = vrot.lane.b32.xlu0 %v704, 8
    %v841 = vpop.permute.xlu0 %840
    %842 = vrot.lane.b32.xlu0 %v706, 8
    %v843 = vpop.permute.xlu0 %842
    %844 = vrot.lane.b32.xlu0 %v709, 8
    %v845 = vpop.permute.xlu0 %844
    %846 = vrot.lane.b32.xlu0 %v711, 8
    %v847 = vpop.permute.xlu0 %846
    %848 = vrot.lane.b32.xlu0 %v714, 8
    %v849 = vpop.permute.xlu0 %848
    %850 = vrot.lane.b32.xlu0 %v716, 8
    %v851 = vpop.permute.xlu0 %850
    %852 = vrot.lane.b32.xlu0 %v719, 8
    %v853 = vpop.permute.xlu0 %852
    %854 = vrot.lane.b32.xlu0 %v721, 8
    %v855 = vpop.permute.xlu0 %854
    %856 = vrot.lane.b32.xlu0 %v724, 8
    %v857 = vpop.permute.xlu0 %856
    %858 = vrot.lane.b32.xlu0 %v726, 8
    %v859 = vpop.permute.xlu0 %858
    %860 = vrot.lane.b32.xlu0 %v729, 8
    %v861 = vpop.permute.xlu0 %860
    %862 = vrot.lane.b32.xlu0 %v731, 8
    %v863 = vpop.permute.xlu0 %862
    %864 = vrot.lane.b32.xlu0 %v734, 8
    %v865 = vpop.permute.xlu0 %864
    %866 = vrot.lane.b32.xlu0 %v736, 8
    %v867 = vpop.permute.xlu0 %866
    %868 = vrot.lane.b32.xlu0 %v739, 8
    %v869 = vpop.permute.xlu0 %868
    %870 = vrot.lane.b32.xlu0 %v741, 8
    %v871 = vpop.permute.xlu0 %870
    %872 = vrot.lane.b32.xlu0 %v744, 8
    %v873 = vpop.permute.xlu0 %872
    %874 = vrot.lane.b32.xlu0 %v746, 8
    %v875 = vpop.permute.xlu0 %874
    %876 = vrot.lane.b32.xlu0 %v749, 8
    %v877 = vpop.permute.xlu0 %876
    %878 = vrot.lane.b32.xlu0 %v751, 8
    %v879 = vpop.permute.xlu0 %878
    %948 = vrot.lane.b32.xlu0 %v37, 12
    %v949 = vpop.permute.xlu0 %948
    %950 = vrot.lane.b32.xlu0 %v38, 12
    %v951 = vpop.permute.xlu0 %950
    %952 = vrot.lane.b32.xlu0 %v40, 12
    %v953 = vpop.permute.xlu0 %952
    %954 = vrot.lane.b32.xlu0 %v41, 12
    %v955 = vpop.permute.xlu0 %954
    %956 = vrot.lane.b32.xlu0 %v43, 12
    %v957 = vpop.permute.xlu0 %956
    %958 = vrot.lane.b32.xlu0 %v44, 12
    %v959 = vpop.permute.xlu0 %958
    %960 = vrot.lane.b32.xlu0 %v46, 12
    %v961 = vpop.permute.xlu0 %960
    %962 = vrot.lane.b32.xlu0 %v47, 12
    %v963 = vpop.permute.xlu0 %962
    %964 = vrot.lane.b32.xlu0 %v49, 12
    %v965 = vpop.permute.xlu0 %964
    %966 = vrot.lane.b32.xlu0 %v50, 12
    %v967 = vpop.permute.xlu0 %966
    %968 = vrot.lane.b32.xlu0 %v52, 12
    %v969 = vpop.permute.xlu0 %968
    %970 = vrot.lane.b32.xlu0 %v53, 12
    %v971 = vpop.permute.xlu0 %970
    %972 = vrot.lane.b32.xlu0 %v55, 12
    %v973 = vpop.permute.xlu0 %972
    %974 = vrot.lane.b32.xlu0 %v56, 12
    %v975 = vpop.permute.xlu0 %974
    %976 = vrot.lane.b32.xlu0 %v58, 12
    %v977 = vpop.permute.xlu0 %976
    %978 = vrot.lane.b32.xlu0 %v59, 12
    %v979 = vpop.permute.xlu0 %978
    %980 = vrot.lane.b32.xlu0 %v61, 12
    %v981 = vpop.permute.xlu0 %980
    %982 = vrot.lane.b32.xlu0 %v62, 12
    %v983 = vpop.permute.xlu0 %982
    %984 = vrot.lane.b32.xlu0 %v64, 12
    %v985 = vpop.permute.xlu0 %984
    %986 = vrot.lane.b32.xlu0 %v65, 12
    %v987 = vpop.permute.xlu0 %986
    %988 = vrot.lane.b32.xlu0 %v67, 12
    %v989 = vpop.permute.xlu0 %988
    %990 = vrot.lane.b32.xlu0 %v68, 12
    %v991 = vpop.permute.xlu0 %990
    %992 = vrot.lane.b32.xlu0 %v70, 12
    %v993 = vpop.permute.xlu0 %992
    %994 = vrot.lane.b32.xlu0 %v71, 12
    %v995 = vpop.permute.xlu0 %994
    %996 = vrot.lane.b32.xlu0 %v73, 12
    %v997 = vpop.permute.xlu0 %996
    %998 = vrot.lane.b32.xlu0 %v74, 12
    %v999 = vpop.permute.xlu0 %998
    %1000 = vrot.lane.b32.xlu0 %v76, 12
    %v1001 = vpop.permute.xlu0 %1000
    %1002 = vrot.lane.b32.xlu0 %v77, 12
    %v1003 = vpop.permute.xlu0 %1002
    %1004 = vrot.lane.b32.xlu0 %v79, 12
    %v1005 = vpop.permute.xlu0 %1004
    %1006 = vrot.lane.b32.xlu0 %v80, 12
    %v1007 = vpop.permute.xlu0 %1006
    %1008 = vrot.lane.b32.xlu0 %v82, 12
    %v1009 = vpop.permute.xlu0 %1008
    %1010 = vrot.lane.b32.xlu0 %v83, 12
    %v1011 = vpop.permute.xlu0 %1010
    %1012 = vrot.lane.b32.xlu0 %v91, 12
    %v1013 = vpop.permute.xlu0 %1012
    %1014 = vrot.lane.b32.xlu0 %v92, 12
    %v1015 = vpop.permute.xlu0 %1014
    %1016 = vrot.lane.b32.xlu0 %v94, 12
    %v1017 = vpop.permute.xlu0 %1016
    %1018 = vrot.lane.b32.xlu0 %v95, 12
    %v1019 = vpop.permute.xlu0 %1018
    %1020 = vrot.lane.b32.xlu0 %v97, 12
    %v1021 = vpop.permute.xlu0 %1020
    %1022 = vrot.lane.b32.xlu0 %v98, 12
    %v1023 = vpop.permute.xlu0 %1022
    %1024 = vrot.lane.b32.xlu0 %v100, 12
    %v1025 = vpop.permute.xlu0 %1024
    %1026 = vrot.lane.b32.xlu0 %v101, 12
    %v1027 = vpop.permute.xlu0 %1026
    %1028 = vrot.lane.b32.xlu0 %v103, 12
    %v1029 = vpop.permute.xlu0 %1028
    %1030 = vrot.lane.b32.xlu0 %v104, 12
    %v1031 = vpop.permute.xlu0 %1030
    %1032 = vrot.lane.b32.xlu0 %v106, 12
    %v1033 = vpop.permute.xlu0 %1032
    %1034 = vrot.lane.b32.xlu0 %v107, 12
    %v1035 = vpop.permute.xlu0 %1034
    %1036 = vrot.lane.b32.xlu0 %v109, 12
    %v1037 = vpop.permute.xlu0 %1036
    %1038 = vrot.lane.b32.xlu0 %v110, 12
    %v1039 = vpop.permute.xlu0 %1038
    %1040 = vrot.lane.b32.xlu0 %v112, 12
    %v1041 = vpop.permute.xlu0 %1040
    %1042 = vrot.lane.b32.xlu0 %v113, 12
    %v1043 = vpop.permute.xlu0 %1042
    %1044 = vrot.lane.b32.xlu0 %v115, 12
    %v1045 = vpop.permute.xlu0 %1044
    %1046 = vrot.lane.b32.xlu0 %v116, 12
    %v1047 = vpop.permute.xlu0 %1046
    %1048 = vrot.lane.b32.xlu0 %v118, 12
    %v1049 = vpop.permute.xlu0 %1048
    %1050 = vrot.lane.b32.xlu0 %v119, 12
    %v1051 = vpop.permute.xlu0 %1050
    %1052 = vrot.lane.b32.xlu0 %v121, 12
    %v1053 = vpop.permute.xlu0 %1052
    %1054 = vrot.lane.b32.xlu0 %v122, 12
    %v1055 = vpop.permute.xlu0 %1054
    %1056 = vrot.lane.b32.xlu0 %v124, 12
    %v1057 = vpop.permute.xlu0 %1056
    %1058 = vrot.lane.b32.xlu0 %v125, 12
    %v1059 = vpop.permute.xlu0 %1058
    %1060 = vrot.lane.b32.xlu0 %v127, 12
    %v1061 = vpop.permute.xlu0 %1060
    %1062 = vrot.lane.b32.xlu0 %v128, 12
    %v1063 = vpop.permute.xlu0 %1062
    %1064 = vrot.lane.b32.xlu0 %v130, 12
    %v1065 = vpop.permute.xlu0 %1064
    %1066 = vrot.lane.b32.xlu0 %v131, 12
    %v1067 = vpop.permute.xlu0 %1066
    %1068 = vrot.lane.b32.xlu0 %v133, 12
    %v1069 = vpop.permute.xlu0 %1068
    %1070 = vrot.lane.b32.xlu0 %v134, 12
    %v1071 = vpop.permute.xlu0 %1070
    %1072 = vrot.lane.b32.xlu0 %v136, 12
    %v1073 = vpop.permute.xlu0 %1072
    %1074 = vrot.lane.b32.xlu0 %v137, 12
    %v1075 = vpop.permute.xlu0 %1074
    %v1142 = vrot.slane %v82, 1
    %v1143 = vrot.slane %v83, 1
    %v1144 = vsel %vm238, %v1142, %v1143
    %v1145 = vrot.slane %v84, 1
    %v1146 = vsel %vm238, %v1143, %v1145
    %v1147 = vrot.slane %v136, 1
    %v1148 = vrot.slane %v137, 1
    %v1149 = vsel %vm238, %v1147, %v1148
    %v1150 = vrot.slane %v138, 1
    %v1151 = vsel %vm238, %v1148, %v1150
    %1152 = vrot.lane.b32.xlu0 %v246, 16
    %v1153 = vpop.permute.xlu0 %1152
    %1154 = vrot.lane.b32.xlu0 %v248, 16
    %v1155 = vpop.permute.xlu0 %1154
    %1156 = vrot.lane.b32.xlu0 %v251, 16
    %v1157 = vpop.permute.xlu0 %1156
    %1158 = vrot.lane.b32.xlu0 %v253, 16
    %v1159 = vpop.permute.xlu0 %1158
    %1160 = vrot.lane.b32.xlu0 %v256, 16
    %v1161 = vpop.permute.xlu0 %1160
    %1162 = vrot.lane.b32.xlu0 %v258, 16
    %v1163 = vpop.permute.xlu0 %1162
    %1164 = vrot.lane.b32.xlu0 %v261, 16
    %v1165 = vpop.permute.xlu0 %1164
    %1166 = vrot.lane.b32.xlu0 %v263, 16
    %v1167 = vpop.permute.xlu0 %1166
    %1168 = vrot.lane.b32.xlu0 %v266, 16
    %v1169 = vpop.permute.xlu0 %1168
    %1170 = vrot.lane.b32.xlu0 %v268, 16
    %v1171 = vpop.permute.xlu0 %1170
    %1172 = vrot.lane.b32.xlu0 %v271, 16
    %v1173 = vpop.permute.xlu0 %1172
    %1174 = vrot.lane.b32.xlu0 %v273, 16
    %v1175 = vpop.permute.xlu0 %1174
    %1176 = vrot.lane.b32.xlu0 %v276, 16
    %v1177 = vpop.permute.xlu0 %1176
    %1178 = vrot.lane.b32.xlu0 %v278, 16
    %v1179 = vpop.permute.xlu0 %1178
    %1180 = vrot.lane.b32.xlu0 %v281, 16
    %v1181 = vpop.permute.xlu0 %1180
    %1182 = vrot.lane.b32.xlu0 %v283, 16
    %v1183 = vpop.permute.xlu0 %1182
    %1184 = vrot.lane.b32.xlu0 %v286, 16
    %v1185 = vpop.permute.xlu0 %1184
    %1186 = vrot.lane.b32.xlu0 %v288, 16
    %v1187 = vpop.permute.xlu0 %1186
    %1188 = vrot.lane.b32.xlu0 %v291, 16
    %v1189 = vpop.permute.xlu0 %1188
    %1190 = vrot.lane.b32.xlu0 %v293, 16
    %v1191 = vpop.permute.xlu0 %1190
    %1192 = vrot.lane.b32.xlu0 %v296, 16
    %v1193 = vpop.permute.xlu0 %1192
    %1194 = vrot.lane.b32.xlu0 %v298, 16
    %v1195 = vpop.permute.xlu0 %1194
    %1196 = vrot.lane.b32.xlu0 %v301, 16
    %v1197 = vpop.permute.xlu0 %1196
    %1198 = vrot.lane.b32.xlu0 %v303, 16
    %v1199 = vpop.permute.xlu0 %1198
    %1200 = vrot.lane.b32.xlu0 %v306, 16
    %v1201 = vpop.permute.xlu0 %1200
    %1202 = vrot.lane.b32.xlu0 %v308, 16
    %v1203 = vpop.permute.xlu0 %1202
    %1204 = vrot.lane.b32.xlu0 %v311, 16
    %v1205 = vpop.permute.xlu0 %1204
    %1206 = vrot.lane.b32.xlu0 %v313, 16
    %v1207 = vpop.permute.xlu0 %1206
    %1208 = vrot.lane.b32.xlu0 %v316, 16
    %v1209 = vpop.permute.xlu0 %1208
    %1210 = vrot.lane.b32.xlu0 %v318, 16
    %v1211 = vpop.permute.xlu0 %1210
    %1212 = vrot.lane.b32.xlu0 %v1144, 16
    %v1213 = vpop.permute.xlu0 %1212
    %1214 = vrot.lane.b32.xlu0 %v1146, 16
    %v1215 = vpop.permute.xlu0 %1214
    %1216 = vrot.lane.b32.xlu0 %v326, 16
    %v1217 = vpop.permute.xlu0 %1216
    %1218 = vrot.lane.b32.xlu0 %v328, 16
    %v1219 = vpop.permute.xlu0 %1218
    %1220 = vrot.lane.b32.xlu0 %v331, 16
    %v1221 = vpop.permute.xlu0 %1220
    %1222 = vrot.lane.b32.xlu0 %v333, 16
    %v1223 = vpop.permute.xlu0 %1222
    %1224 = vrot.lane.b32.xlu0 %v336, 16
    %v1225 = vpop.permute.xlu0 %1224
    %1226 = vrot.lane.b32.xlu0 %v338, 16
    %v1227 = vpop.permute.xlu0 %1226
    %1228 = vrot.lane.b32.xlu0 %v341, 16
    %v1229 = vpop.permute.xlu0 %1228
    %1230 = vrot.lane.b32.xlu0 %v343, 16
    %v1231 = vpop.permute.xlu0 %1230
    %1232 = vrot.lane.b32.xlu0 %v346, 16
    %v1233 = vpop.permute.xlu0 %1232
    %1234 = vrot.lane.b32.xlu0 %v348, 16
    %v1235 = vpop.permute.xlu0 %1234
    %1236 = vrot.lane.b32.xlu0 %v351, 16
    %v1237 = vpop.permute.xlu0 %1236
    %1238 = vrot.lane.b32.xlu0 %v353, 16
    %v1239 = vpop.permute.xlu0 %1238
    %1240 = vrot.lane.b32.xlu0 %v356, 16
    %v1241 = vpop.permute.xlu0 %1240
    %1242 = vrot.lane.b32.xlu0 %v358, 16
    %v1243 = vpop.permute.xlu0 %1242
    %1244 = vrot.lane.b32.xlu0 %v361, 16
    %v1245 = vpop.permute.xlu0 %1244
    %1246 = vrot.lane.b32.xlu0 %v363, 16
    %v1247 = vpop.permute.xlu0 %1246
    %1248 = vrot.lane.b32.xlu0 %v366, 16
    %v1249 = vpop.permute.xlu0 %1248
    %1250 = vrot.lane.b32.xlu0 %v368, 16
    %v1251 = vpop.permute.xlu0 %1250
    %1252 = vrot.lane.b32.xlu0 %v371, 16
    %v1253 = vpop.permute.xlu0 %1252
    %1254 = vrot.lane.b32.xlu0 %v373, 16
    %v1255 = vpop.permute.xlu0 %1254
    %1256 = vrot.lane.b32.xlu0 %v376, 16
    %v1257 = vpop.permute.xlu0 %1256
    %1258 = vrot.lane.b32.xlu0 %v378, 16
    %v1259 = vpop.permute.xlu0 %1258
    %1260 = vrot.lane.b32.xlu0 %v381, 16
    %v1261 = vpop.permute.xlu0 %1260
    %1262 = vrot.lane.b32.xlu0 %v383, 16
    %v1263 = vpop.permute.xlu0 %1262
    %1264 = vrot.lane.b32.xlu0 %v386, 16
    %v1265 = vpop.permute.xlu0 %1264
    %1266 = vrot.lane.b32.xlu0 %v388, 16
    %v1267 = vpop.permute.xlu0 %1266
    %1268 = vrot.lane.b32.xlu0 %v391, 16
    %v1269 = vpop.permute.xlu0 %1268
    %1270 = vrot.lane.b32.xlu0 %v393, 16
    %v1271 = vpop.permute.xlu0 %1270
    %1272 = vrot.lane.b32.xlu0 %v396, 16
    %v1273 = vpop.permute.xlu0 %1272
    %1274 = vrot.lane.b32.xlu0 %v398, 16
    %v1275 = vpop.permute.xlu0 %1274
    %1276 = vrot.lane.b32.xlu0 %v1149, 16
    %v1277 = vpop.permute.xlu0 %1276
    %1278 = vrot.lane.b32.xlu0 %v1151, 16
    %v1279 = vpop.permute.xlu0 %1278
    %v1344 = vrot.slane %v82, 2
    %v1345 = vrot.slane %v83, 2
    %v1346 = vsel %vm591, %v1344, %v1345
    %v1347 = vrot.slane %v84, 2
    %v1348 = vsel %vm591, %v1345, %v1347
    %v1349 = vrot.slane %v136, 2
    %v1350 = vrot.slane %v137, 2
    %v1351 = vsel %vm591, %v1349, %v1350
    %v1352 = vrot.slane %v138, 2
    %v1353 = vsel %vm591, %v1350, %v1352
    %1354 = vrot.lane.b32.xlu0 %v599, 20
    %v1355 = vpop.permute.xlu0 %1354
    %1356 = vrot.lane.b32.xlu0 %v601, 20
    %v1357 = vpop.permute.xlu0 %1356
    %1358 = vrot.lane.b32.xlu0 %v604, 20
    %v1359 = vpop.permute.xlu0 %1358
    %1360 = vrot.lane.b32.xlu0 %v606, 20
    %v1361 = vpop.permute.xlu0 %1360
    %1362 = vrot.lane.b32.xlu0 %v609, 20
    %v1363 = vpop.permute.xlu0 %1362
    %1364 = vrot.lane.b32.xlu0 %v611, 20
    %v1365 = vpop.permute.xlu0 %1364
    %1366 = vrot.lane.b32.xlu0 %v614, 20
    %v1367 = vpop.permute.xlu0 %1366
    %1368 = vrot.lane.b32.xlu0 %v616, 20
    %v1369 = vpop.permute.xlu0 %1368
    %1370 = vrot.lane.b32.xlu0 %v619, 20
    %v1371 = vpop.permute.xlu0 %1370
    %1372 = vrot.lane.b32.xlu0 %v621, 20
    %v1373 = vpop.permute.xlu0 %1372
    %1374 = vrot.lane.b32.xlu0 %v624, 20
    %v1375 = vpop.permute.xlu0 %1374
    %1376 = vrot.lane.b32.xlu0 %v626, 20
    %v1377 = vpop.permute.xlu0 %1376
    %1378 = vrot.lane.b32.xlu0 %v629, 20
    %v1379 = vpop.permute.xlu0 %1378
    %1380 = vrot.lane.b32.xlu0 %v631, 20
    %v1381 = vpop.permute.xlu0 %1380
    %1382 = vrot.lane.b32.xlu0 %v634, 20
    %v1383 = vpop.permute.xlu0 %1382
    %1384 = vrot.lane.b32.xlu0 %v636, 20
    %v1385 = vpop.permute.xlu0 %1384
    %1386 = vrot.lane.b32.xlu0 %v639, 20
    %v1387 = vpop.permute.xlu0 %1386
    %1388 = vrot.lane.b32.xlu0 %v641, 20
    %v1389 = vpop.permute.xlu0 %1388
    %1390 = vrot.lane.b32.xlu0 %v644, 20
    %v1391 = vpop.permute.xlu0 %1390
    %1392 = vrot.lane.b32.xlu0 %v646, 20
    %v1393 = vpop.permute.xlu0 %1392
    %1394 = vrot.lane.b32.xlu0 %v649, 20
    %v1395 = vpop.permute.xlu0 %1394
    %1396 = vrot.lane.b32.xlu0 %v651, 20
    %v1397 = vpop.permute.xlu0 %1396
    %1398 = vrot.lane.b32.xlu0 %v654, 20
    %v1399 = vpop.permute.xlu0 %1398
    %1400 = vrot.lane.b32.xlu0 %v656, 20
    %v1401 = vpop.permute.xlu0 %1400
    %1402 = vrot.lane.b32.xlu0 %v659, 20
    %v1403 = vpop.permute.xlu0 %1402
    %1404 = vrot.lane.b32.xlu0 %v661, 20
    %v1405 = vpop.permute.xlu0 %1404
    %1406 = vrot.lane.b32.xlu0 %v664, 20
    %v1407 = vpop.permute.xlu0 %1406
    %1408 = vrot.lane.b32.xlu0 %v666, 20
    %v1409 = vpop.permute.xlu0 %1408
    %1410 = vrot.lane.b32.xlu0 %v669, 20
    %v1411 = vpop.permute.xlu0 %1410
    %1412 = vrot.lane.b32.xlu0 %v671, 20
    %v1413 = vpop.permute.xlu0 %1412
    %1414 = vrot.lane.b32.xlu0 %v1346, 20
    %v1415 = vpop.permute.xlu0 %1414
    %1416 = vrot.lane.b32.xlu0 %v1348, 20
    %v1417 = vpop.permute.xlu0 %1416
    %1418 = vrot.lane.b32.xlu0 %v679, 20
    %v1419 = vpop.permute.xlu0 %1418
    %1420 = vrot.lane.b32.xlu0 %v681, 20
    %v1421 = vpop.permute.xlu0 %1420
    %1422 = vrot.lane.b32.xlu0 %v684, 20
    %v1423 = vpop.permute.xlu0 %1422
    %1424 = vrot.lane.b32.xlu0 %v686, 20
    %v1425 = vpop.permute.xlu0 %1424
    %1426 = vrot.lane.b32.xlu0 %v689, 20
    %v1427 = vpop.permute.xlu0 %1426
    %1428 = vrot.lane.b32.xlu0 %v691, 20
    %v1429 = vpop.permute.xlu0 %1428
    %1430 = vrot.lane.b32.xlu0 %v694, 20
    %v1431 = vpop.permute.xlu0 %1430
    %1432 = vrot.lane.b32.xlu0 %v696, 20
    %v1433 = vpop.permute.xlu0 %1432
    %1434 = vrot.lane.b32.xlu0 %v699, 20
    %v1435 = vpop.permute.xlu0 %1434
    %1436 = vrot.lane.b32.xlu0 %v701, 20
    %v1437 = vpop.permute.xlu0 %1436
    %1438 = vrot.lane.b32.xlu0 %v704, 20
    %v1439 = vpop.permute.xlu0 %1438
    %1440 = vrot.lane.b32.xlu0 %v706, 20
    %v1441 = vpop.permute.xlu0 %1440
    %1442 = vrot.lane.b32.xlu0 %v709, 20
    %v1443 = vpop.permute.xlu0 %1442
    %1444 = vrot.lane.b32.xlu0 %v711, 20
    %v1445 = vpop.permute.xlu0 %1444
    %1446 = vrot.lane.b32.xlu0 %v714, 20
    %v1447 = vpop.permute.xlu0 %1446
    %1448 = vrot.lane.b32.xlu0 %v716, 20
    %v1449 = vpop.permute.xlu0 %1448
    %1450 = vrot.lane.b32.xlu0 %v719, 20
    %v1451 = vpop.permute.xlu0 %1450
    %1452 = vrot.lane.b32.xlu0 %v721, 20
    %v1453 = vpop.permute.xlu0 %1452
    %1454 = vrot.lane.b32.xlu0 %v724, 20
    %v1455 = vpop.permute.xlu0 %1454
    %1456 = vrot.lane.b32.xlu0 %v726, 20
    %v1457 = vpop.permute.xlu0 %1456
    %1458 = vrot.lane.b32.xlu0 %v729, 20
    %v1459 = vpop.permute.xlu0 %1458
    %1460 = vrot.lane.b32.xlu0 %v731, 20
    %v1461 = vpop.permute.xlu0 %1460
    %1462 = vrot.lane.b32.xlu0 %v734, 20
    %v1463 = vpop.permute.xlu0 %1462
    %1464 = vrot.lane.b32.xlu0 %v736, 20
    %v1465 = vpop.permute.xlu0 %1464
    %1466 = vrot.lane.b32.xlu0 %v739, 20
    %v1467 = vpop.permute.xlu0 %1466
    %1468 = vrot.lane.b32.xlu0 %v741, 20
    %v1469 = vpop.permute.xlu0 %1468
    %1470 = vrot.lane.b32.xlu0 %v744, 20
    %v1471 = vpop.permute.xlu0 %1470
    %1472 = vrot.lane.b32.xlu0 %v746, 20
    %v1473 = vpop.permute.xlu0 %1472
    %1474 = vrot.lane.b32.xlu0 %v749, 20
    %v1475 = vpop.permute.xlu0 %1474
    %1476 = vrot.lane.b32.xlu0 %v751, 20
    %v1477 = vpop.permute.xlu0 %1476
    %1478 = vrot.lane.b32.xlu0 %v1351, 20
    %v1479 = vpop.permute.xlu0 %1478
    %1480 = vrot.lane.b32.xlu0 %v1353, 20
    %v1481 = vpop.permute.xlu0 %1480
    %1550 = vrot.lane.b32.xlu0 %v40, 24
    %v1551 = vpop.permute.xlu0 %1550
    %1552 = vrot.lane.b32.xlu0 %v41, 24
    %v1553 = vpop.permute.xlu0 %1552
    %1554 = vrot.lane.b32.xlu0 %v43, 24
    %v1555 = vpop.permute.xlu0 %1554
    %1556 = vrot.lane.b32.xlu0 %v44, 24
    %v1557 = vpop.permute.xlu0 %1556
    %1558 = vrot.lane.b32.xlu0 %v46, 24
    %v1559 = vpop.permute.xlu0 %1558
    %1560 = vrot.lane.b32.xlu0 %v47, 24
    %v1561 = vpop.permute.xlu0 %1560
    %1562 = vrot.lane.b32.xlu0 %v49, 24
    %v1563 = vpop.permute.xlu0 %1562
    %1564 = vrot.lane.b32.xlu0 %v50, 24
    %v1565 = vpop.permute.xlu0 %1564
    %1566 = vrot.lane.b32.xlu0 %v52, 24
    %v1567 = vpop.permute.xlu0 %1566
    %1568 = vrot.lane.b32.xlu0 %v53, 24
    %v1569 = vpop.permute.xlu0 %1568
    %1570 = vrot.lane.b32.xlu0 %v55, 24
    %v1571 = vpop.permute.xlu0 %1570
    %1572 = vrot.lane.b32.xlu0 %v56, 24
    %v1573 = vpop.permute.xlu0 %1572
    %1574 = vrot.lane.b32.xlu0 %v58, 24
    %v1575 = vpop.permute.xlu0 %1574
    %1576 = vrot.lane.b32.xlu0 %v59, 24
    %v1577 = vpop.permute.xlu0 %1576
    %1578 = vrot.lane.b32.xlu0 %v61, 24
    %v1579 = vpop.permute.xlu0 %1578
    %1580 = vrot.lane.b32.xlu0 %v62, 24
    %v1581 = vpop.permute.xlu0 %1580
    %1582 = vrot.lane.b32.xlu0 %v64, 24
    %v1583 = vpop.permute.xlu0 %1582
    %1584 = vrot.lane.b32.xlu0 %v65, 24
    %v1585 = vpop.permute.xlu0 %1584
    %1586 = vrot.lane.b32.xlu0 %v67, 24
    %v1587 = vpop.permute.xlu0 %1586
    %1588 = vrot.lane.b32.xlu0 %v68, 24
    %v1589 = vpop.permute.xlu0 %1588
    %1590 = vrot.lane.b32.xlu0 %v70, 24
    %v1591 = vpop.permute.xlu0 %1590
    %1592 = vrot.lane.b32.xlu0 %v71, 24
    %v1593 = vpop.permute.xlu0 %1592
    %1594 = vrot.lane.b32.xlu0 %v73, 24
    %v1595 = vpop.permute.xlu0 %1594
    %1596 = vrot.lane.b32.xlu0 %v74, 24
    %v1597 = vpop.permute.xlu0 %1596
    %1598 = vrot.lane.b32.xlu0 %v76, 24
    %v1599 = vpop.permute.xlu0 %1598
    %1600 = vrot.lane.b32.xlu0 %v77, 24
    %v1601 = vpop.permute.xlu0 %1600
    %1602 = vrot.lane.b32.xlu0 %v79, 24
    %v1603 = vpop.permute.xlu0 %1602
    %1604 = vrot.lane.b32.xlu0 %v80, 24
    %v1605 = vpop.permute.xlu0 %1604
    %1606 = vrot.lane.b32.xlu0 %v82, 24
    %v1607 = vpop.permute.xlu0 %1606
    %1608 = vrot.lane.b32.xlu0 %v83, 24
    %v1609 = vpop.permute.xlu0 %1608
    %1610 = vrot.lane.b32.xlu0 %v85, 24
    %v1611 = vpop.permute.xlu0 %1610
    %1612 = vrot.lane.b32.xlu0 %v86, 24
    %v1613 = vpop.permute.xlu0 %1612
    %1614 = vrot.lane.b32.xlu0 %v94, 24
    %v1615 = vpop.permute.xlu0 %1614
    %1616 = vrot.lane.b32.xlu0 %v95, 24
    %v1617 = vpop.permute.xlu0 %1616
    %1618 = vrot.lane.b32.xlu0 %v97, 24
    %v1619 = vpop.permute.xlu0 %1618
    %1620 = vrot.lane.b32.xlu0 %v98, 24
    %v1621 = vpop.permute.xlu0 %1620
    %1622 = vrot.lane.b32.xlu0 %v100, 24
    %v1623 = vpop.permute.xlu0 %1622
    %1624 = vrot.lane.b32.xlu0 %v101, 24
    %v1625 = vpop.permute.xlu0 %1624
    %1626 = vrot.lane.b32.xlu0 %v103, 24
    %v1627 = vpop.permute.xlu0 %1626
    %1628 = vrot.lane.b32.xlu0 %v104, 24
    %v1629 = vpop.permute.xlu0 %1628
    %1630 = vrot.lane.b32.xlu0 %v106, 24
    %v1631 = vpop.permute.xlu0 %1630
    %1632 = vrot.lane.b32.xlu0 %v107, 24
    %v1633 = vpop.permute.xlu0 %1632
    %1634 = vrot.lane.b32.xlu0 %v109, 24
    %v1635 = vpop.permute.xlu0 %1634
    %1636 = vrot.lane.b32.xlu0 %v110, 24
    %v1637 = vpop.permute.xlu0 %1636
    %1638 = vrot.lane.b32.xlu0 %v112, 24
    %v1639 = vpop.permute.xlu0 %1638
    %1640 = vrot.lane.b32.xlu0 %v113, 24
    %v1641 = vpop.permute.xlu0 %1640
    %1642 = vrot.lane.b32.xlu0 %v115, 24
    %v1643 = vpop.permute.xlu0 %1642
    %1644 = vrot.lane.b32.xlu0 %v116, 24
    %v1645 = vpop.permute.xlu0 %1644
    %1646 = vrot.lane.b32.xlu0 %v118, 24
    %v1647 = vpop.permute.xlu0 %1646
    %1648 = vrot.lane.b32.xlu0 %v119, 24
    %v1649 = vpop.permute.xlu0 %1648
    %1650 = vrot.lane.b32.xlu0 %v121, 24
    %v1651 = vpop.permute.xlu0 %1650
    %1652 = vrot.lane.b32.xlu0 %v122, 24
    %v1653 = vpop.permute.xlu0 %1652
    %1654 = vrot.lane.b32.xlu0 %v124, 24
    %v1655 = vpop.permute.xlu0 %1654
    %1656 = vrot.lane.b32.xlu0 %v125, 24
    %v1657 = vpop.permute.xlu0 %1656
    %1658 = vrot.lane.b32.xlu0 %v127, 24
    %v1659 = vpop.permute.xlu0 %1658
    %1660 = vrot.lane.b32.xlu0 %v128, 24
    %v1661 = vpop.permute.xlu0 %1660
    %1662 = vrot.lane.b32.xlu0 %v130, 24
    %v1663 = vpop.permute.xlu0 %1662
    %1664 = vrot.lane.b32.xlu0 %v131, 24
    %v1665 = vpop.permute.xlu0 %1664
    %1666 = vrot.lane.b32.xlu0 %v133, 24
    %v1667 = vpop.permute.xlu0 %1666
    %1668 = vrot.lane.b32.xlu0 %v134, 24
    %v1669 = vpop.permute.xlu0 %1668
    %1670 = vrot.lane.b32.xlu0 %v136, 24
    %v1671 = vpop.permute.xlu0 %1670
    %1672 = vrot.lane.b32.xlu0 %v137, 24
    %v1673 = vpop.permute.xlu0 %1672
    %1674 = vrot.lane.b32.xlu0 %v139, 24
    %v1675 = vpop.permute.xlu0 %1674
    %1676 = vrot.lane.b32.xlu0 %v140, 24
    %v1677 = vpop.permute.xlu0 %1676
    %v1744 = vrot.slane %v85, 1
    %v1745 = vrot.slane %v86, 1
    %v1746 = vsel %vm238, %v1744, %v1745
    %v1747 = vrot.slane %v87, 1
    %v1748 = vsel %vm238, %v1745, %v1747
    %v1749 = vrot.slane %v139, 1
    %v1750 = vrot.slane %v140, 1
    %v1751 = vsel %vm238, %v1749, %v1750
    %v1752 = vrot.slane %v141, 1
    %v1753 = vsel %vm238, %v1750, %v1752
    %1754 = vrot.lane.b32.xlu0 %v251, 28
    %v1755 = vpop.permute.xlu0 %1754
    %1756 = vrot.lane.b32.xlu0 %v253, 28
    %v1757 = vpop.permute.xlu0 %1756
    %1758 = vrot.lane.b32.xlu0 %v256, 28
    %v1759 = vpop.permute.xlu0 %1758
    %1760 = vrot.lane.b32.xlu0 %v258, 28
    %v1761 = vpop.permute.xlu0 %1760
    %1762 = vrot.lane.b32.xlu0 %v261, 28
    %v1763 = vpop.permute.xlu0 %1762
    %1764 = vrot.lane.b32.xlu0 %v263, 28
    %v1765 = vpop.permute.xlu0 %1764
    %1766 = vrot.lane.b32.xlu0 %v266, 28
    %v1767 = vpop.permute.xlu0 %1766
    %1768 = vrot.lane.b32.xlu0 %v268, 28
    %v1769 = vpop.permute.xlu0 %1768
    %1770 = vrot.lane.b32.xlu0 %v271, 28
    %v1771 = vpop.permute.xlu0 %1770
    %1772 = vrot.lane.b32.xlu0 %v273, 28
    %v1773 = vpop.permute.xlu0 %1772
    %1774 = vrot.lane.b32.xlu0 %v276, 28
    %v1775 = vpop.permute.xlu0 %1774
    %1776 = vrot.lane.b32.xlu0 %v278, 28
    %v1777 = vpop.permute.xlu0 %1776
    %1778 = vrot.lane.b32.xlu0 %v281, 28
    %v1779 = vpop.permute.xlu0 %1778
    %1780 = vrot.lane.b32.xlu0 %v283, 28
    %v1781 = vpop.permute.xlu0 %1780
    %1782 = vrot.lane.b32.xlu0 %v286, 28
    %v1783 = vpop.permute.xlu0 %1782
    %1784 = vrot.lane.b32.xlu0 %v288, 28
    %v1785 = vpop.permute.xlu0 %1784
    %1786 = vrot.lane.b32.xlu0 %v291, 28
    %v1787 = vpop.permute.xlu0 %1786
    %1788 = vrot.lane.b32.xlu0 %v293, 28
    %v1789 = vpop.permute.xlu0 %1788
    %1790 = vrot.lane.b32.xlu0 %v296, 28
    %v1791 = vpop.permute.xlu0 %1790
    %1792 = vrot.lane.b32.xlu0 %v298, 28
    %v1793 = vpop.permute.xlu0 %1792
    %1794 = vrot.lane.b32.xlu0 %v301, 28
    %v1795 = vpop.permute.xlu0 %1794
    %1796 = vrot.lane.b32.xlu0 %v303, 28
    %v1797 = vpop.permute.xlu0 %1796
    %1798 = vrot.lane.b32.xlu0 %v306, 28
    %v1799 = vpop.permute.xlu0 %1798
    %1800 = vrot.lane.b32.xlu0 %v308, 28
    %v1801 = vpop.permute.xlu0 %1800
    %1802 = vrot.lane.b32.xlu0 %v311, 28
    %v1803 = vpop.permute.xlu0 %1802
    %1804 = vrot.lane.b32.xlu0 %v313, 28
    %v1805 = vpop.permute.xlu0 %1804
    %1806 = vrot.lane.b32.xlu0 %v316, 28
    %v1807 = vpop.permute.xlu0 %1806
    %1808 = vrot.lane.b32.xlu0 %v318, 28
    %v1809 = vpop.permute.xlu0 %1808
    %1810 = vrot.lane.b32.xlu0 %v1144, 28
    %v1811 = vpop.permute.xlu0 %1810
    %1812 = vrot.lane.b32.xlu0 %v1146, 28
    %v1813 = vpop.permute.xlu0 %1812
    %1814 = vrot.lane.b32.xlu0 %v1746, 28
    %v1815 = vpop.permute.xlu0 %1814
    %1816 = vrot.lane.b32.xlu0 %v1748, 28
    %v1817 = vpop.permute.xlu0 %1816
    %1818 = vrot.lane.b32.xlu0 %v331, 28
    %v1819 = vpop.permute.xlu0 %1818
    %1820 = vrot.lane.b32.xlu0 %v333, 28
    %v1821 = vpop.permute.xlu0 %1820
    %1822 = vrot.lane.b32.xlu0 %v336, 28
    %v1823 = vpop.permute.xlu0 %1822
    %1824 = vrot.lane.b32.xlu0 %v338, 28
    %v1825 = vpop.permute.xlu0 %1824
    %1826 = vrot.lane.b32.xlu0 %v341, 28
    %v1827 = vpop.permute.xlu0 %1826
    %1828 = vrot.lane.b32.xlu0 %v343, 28
    %v1829 = vpop.permute.xlu0 %1828
    %1830 = vrot.lane.b32.xlu0 %v346, 28
    %v1831 = vpop.permute.xlu0 %1830
    %1832 = vrot.lane.b32.xlu0 %v348, 28
    %v1833 = vpop.permute.xlu0 %1832
    %1834 = vrot.lane.b32.xlu0 %v351, 28
    %v1835 = vpop.permute.xlu0 %1834
    %1836 = vrot.lane.b32.xlu0 %v353, 28
    %v1837 = vpop.permute.xlu0 %1836
    %1838 = vrot.lane.b32.xlu0 %v356, 28
    %v1839 = vpop.permute.xlu0 %1838
    %1840 = vrot.lane.b32.xlu0 %v358, 28
    %v1841 = vpop.permute.xlu0 %1840
    %1842 = vrot.lane.b32.xlu0 %v361, 28
    %v1843 = vpop.permute.xlu0 %1842
    %1844 = vrot.lane.b32.xlu0 %v363, 28
    %v1845 = vpop.permute.xlu0 %1844
    %1846 = vrot.lane.b32.xlu0 %v366, 28
    %v1847 = vpop.permute.xlu0 %1846
    %1848 = vrot.lane.b32.xlu0 %v368, 28
    %v1849 = vpop.permute.xlu0 %1848
    %1850 = vrot.lane.b32.xlu0 %v371, 28
    %v1851 = vpop.permute.xlu0 %1850
    %1852 = vrot.lane.b32.xlu0 %v373, 28
    %v1853 = vpop.permute.xlu0 %1852
    %1854 = vrot.lane.b32.xlu0 %v376, 28
    %v1855 = vpop.permute.xlu0 %1854
    %1856 = vrot.lane.b32.xlu0 %v378, 28
    %v1857 = vpop.permute.xlu0 %1856
    %1858 = vrot.lane.b32.xlu0 %v381, 28
    %v1859 = vpop.permute.xlu0 %1858
    %1860 = vrot.lane.b32.xlu0 %v383, 28
    %v1861 = vpop.permute.xlu0 %1860
    %1862 = vrot.lane.b32.xlu0 %v386, 28
    %v1863 = vpop.permute.xlu0 %1862
    %1864 = vrot.lane.b32.xlu0 %v388, 28
    %v1865 = vpop.permute.xlu0 %1864
    %1866 = vrot.lane.b32.xlu0 %v391, 28
    %v1867 = vpop.permute.xlu0 %1866
    %1868 = vrot.lane.b32.xlu0 %v393, 28
    %v1869 = vpop.permute.xlu0 %1868
    %1870 = vrot.lane.b32.xlu0 %v396, 28
    %v1871 = vpop.permute.xlu0 %1870
    %1872 = vrot.lane.b32.xlu0 %v398, 28
    %v1873 = vpop.permute.xlu0 %1872
    %1874 = vrot.lane.b32.xlu0 %v1149, 28
    %v1875 = vpop.permute.xlu0 %1874
    %1876 = vrot.lane.b32.xlu0 %v1151, 28
    %v1877 = vpop.permute.xlu0 %1876
    %1878 = vrot.lane.b32.xlu0 %v1751, 28
    %v1879 = vpop.permute.xlu0 %1878
    %1880 = vrot.lane.b32.xlu0 %v1753, 28
    %v1881 = vpop.permute.xlu0 %1880
    %v1946 = vrot.slane %v85, 2
    %v1947 = vrot.slane %v86, 2
    %v1948 = vsel %vm591, %v1946, %v1947
    %v1949 = vrot.slane %v87, 2
    %v1950 = vsel %vm591, %v1947, %v1949
    %v1951 = vrot.slane %v139, 2
    %v1952 = vrot.slane %v140, 2
    %v1953 = vsel %vm591, %v1951, %v1952
    %v1954 = vrot.slane %v141, 2
    %v1955 = vsel %vm591, %v1952, %v1954
    %1956 = vrot.lane.b32.xlu0 %v604, 32
    %v1957 = vpop.permute.xlu0 %1956
    %1958 = vrot.lane.b32.xlu0 %v606, 32
    %v1959 = vpop.permute.xlu0 %1958
    %1960 = vrot.lane.b32.xlu0 %v609, 32
    %v1961 = vpop.permute.xlu0 %1960
    %1962 = vrot.lane.b32.xlu0 %v611, 32
    %v1963 = vpop.permute.xlu0 %1962
    %1964 = vrot.lane.b32.xlu0 %v614, 32
    %v1965 = vpop.permute.xlu0 %1964
    %1966 = vrot.lane.b32.xlu0 %v616, 32
    %v1967 = vpop.permute.xlu0 %1966
    %1968 = vrot.lane.b32.xlu0 %v619, 32
    %v1969 = vpop.permute.xlu0 %1968
    %1970 = vrot.lane.b32.xlu0 %v621, 32
    %v1971 = vpop.permute.xlu0 %1970
    %1972 = vrot.lane.b32.xlu0 %v624, 32
    %v1973 = vpop.permute.xlu0 %1972
    %1974 = vrot.lane.b32.xlu0 %v626, 32
    %v1975 = vpop.permute.xlu0 %1974
    %1976 = vrot.lane.b32.xlu0 %v629, 32
    %v1977 = vpop.permute.xlu0 %1976
    %1978 = vrot.lane.b32.xlu0 %v631, 32
    %v1979 = vpop.permute.xlu0 %1978
    %1980 = vrot.lane.b32.xlu0 %v634, 32
    %v1981 = vpop.permute.xlu0 %1980
    %1982 = vrot.lane.b32.xlu0 %v636, 32
    %v1983 = vpop.permute.xlu0 %1982
    %1984 = vrot.lane.b32.xlu0 %v639, 32
    %v1985 = vpop.permute.xlu0 %1984
    %1986 = vrot.lane.b32.xlu0 %v641, 32
    %v1987 = vpop.permute.xlu0 %1986
    %1988 = vrot.lane.b32.xlu0 %v644, 32
    %v1989 = vpop.permute.xlu0 %1988
    %1990 = vrot.lane.b32.xlu0 %v646, 32
    %v1991 = vpop.permute.xlu0 %1990
    %1992 = vrot.lane.b32.xlu0 %v649, 32
    %v1993 = vpop.permute.xlu0 %1992
    %1994 = vrot.lane.b32.xlu0 %v651, 32
    %v1995 = vpop.permute.xlu0 %1994
    %1996 = vrot.lane.b32.xlu0 %v654, 32
    %v1997 = vpop.permute.xlu0 %1996
    %1998 = vrot.lane.b32.xlu0 %v656, 32
    %v1999 = vpop.permute.xlu0 %1998
    %2000 = vrot.lane.b32.xlu0 %v659, 32
    %v2001 = vpop.permute.xlu0 %2000
    %2002 = vrot.lane.b32.xlu0 %v661, 32
    %v2003 = vpop.permute.xlu0 %2002
    %2004 = vrot.lane.b32.xlu0 %v664, 32
    %v2005 = vpop.permute.xlu0 %2004
    %2006 = vrot.lane.b32.xlu0 %v666, 32
    %v2007 = vpop.permute.xlu0 %2006
    %2008 = vrot.lane.b32.xlu0 %v669, 32
    %v2009 = vpop.permute.xlu0 %2008
    %2010 = vrot.lane.b32.xlu0 %v671, 32
    %v2011 = vpop.permute.xlu0 %2010
    %2012 = vrot.lane.b32.xlu0 %v1346, 32
    %v2013 = vpop.permute.xlu0 %2012
    %2014 = vrot.lane.b32.xlu0 %v1348, 32
    %v2015 = vpop.permute.xlu0 %2014
    %2016 = vrot.lane.b32.xlu0 %v1948, 32
    %v2017 = vpop.permute.xlu0 %2016
    %2018 = vrot.lane.b32.xlu0 %v1950, 32
    %v2019 = vpop.permute.xlu0 %2018
    %2020 = vrot.lane.b32.xlu0 %v684, 32
    %v2021 = vpop.permute.xlu0 %2020
    %2022 = vrot.lane.b32.xlu0 %v686, 32
    %v2023 = vpop.permute.xlu0 %2022
    %2024 = vrot.lane.b32.xlu0 %v689, 32
    %v2025 = vpop.permute.xlu0 %2024
    %2026 = vrot.lane.b32.xlu0 %v691, 32
    %v2027 = vpop.permute.xlu0 %2026
    %2028 = vrot.lane.b32.xlu0 %v694, 32
    %v2029 = vpop.permute.xlu0 %2028
    %2030 = vrot.lane.b32.xlu0 %v696, 32
    %v2031 = vpop.permute.xlu0 %2030
    %2032 = vrot.lane.b32.xlu0 %v699, 32
    %v2033 = vpop.permute.xlu0 %2032
    %2034 = vrot.lane.b32.xlu0 %v701, 32
    %v2035 = vpop.permute.xlu0 %2034
    %2036 = vrot.lane.b32.xlu0 %v704, 32
    %v2037 = vpop.permute.xlu0 %2036
    %2038 = vrot.lane.b32.xlu0 %v706, 32
    %v2039 = vpop.permute.xlu0 %2038
    %2040 = vrot.lane.b32.xlu0 %v709, 32
    %v2041 = vpop.permute.xlu0 %2040
    %2042 = vrot.lane.b32.xlu0 %v711, 32
    %v2043 = vpop.permute.xlu0 %2042
    %2044 = vrot.lane.b32.xlu0 %v714, 32
    %v2045 = vpop.permute.xlu0 %2044
    %2046 = vrot.lane.b32.xlu0 %v716, 32
    %v2047 = vpop.permute.xlu0 %2046
    %2048 = vrot.lane.b32.xlu0 %v719, 32
    %v2049 = vpop.permute.xlu0 %2048
    %2050 = vrot.lane.b32.xlu0 %v721, 32
    %v2051 = vpop.permute.xlu0 %2050
    %2052 = vrot.lane.b32.xlu0 %v724, 32
    %v2053 = vpop.permute.xlu0 %2052
    %2054 = vrot.lane.b32.xlu0 %v726, 32
    %v2055 = vpop.permute.xlu0 %2054
    %2056 = vrot.lane.b32.xlu0 %v729, 32
    %v2057 = vpop.permute.xlu0 %2056
    %2058 = vrot.lane.b32.xlu0 %v731, 32
    %v2059 = vpop.permute.xlu0 %2058
    %2060 = vrot.lane.b32.xlu0 %v734, 32
    %v2061 = vpop.permute.xlu0 %2060
    %2062 = vrot.lane.b32.xlu0 %v736, 32
    %v2063 = vpop.permute.xlu0 %2062
    %2064 = vrot.lane.b32.xlu0 %v739, 32
    %v2065 = vpop.permute.xlu0 %2064
    %2066 = vrot.lane.b32.xlu0 %v741, 32
    %v2067 = vpop.permute.xlu0 %2066
    %2068 = vrot.lane.b32.xlu0 %v744, 32
    %v2069 = vpop.permute.xlu0 %2068
    %2070 = vrot.lane.b32.xlu0 %v746, 32
    %v2071 = vpop.permute.xlu0 %2070
    %2072 = vrot.lane.b32.xlu0 %v749, 32
    %v2073 = vpop.permute.xlu0 %2072
    %2074 = vrot.lane.b32.xlu0 %v751, 32
    %v2075 = vpop.permute.xlu0 %2074
    %2076 = vrot.lane.b32.xlu0 %v1351, 32
    %v2077 = vpop.permute.xlu0 %2076
    %2078 = vrot.lane.b32.xlu0 %v1353, 32
    %v2079 = vpop.permute.xlu0 %2078
    %2080 = vrot.lane.b32.xlu0 %v1953, 32
    %v2081 = vpop.permute.xlu0 %2080
    %2082 = vrot.lane.b32.xlu0 %v1955, 32
    %v2083 = vpop.permute.xlu0 %2082
    %vm2148 = vcmask 31744
    %v2149 = vsel %vm2148, %v34, %v400
    %v2150 = vsel %vm2148, %v35, %v402
    %v2151 = vsel %vm2148, %v37, %v404
    %v2152 = vsel %vm2148, %v38, %v406
    %v2153 = vsel %vm2148, %v40, %v408
    %v2154 = vsel %vm2148, %v41, %v410
    %v2155 = vsel %vm2148, %v43, %v412
    %v2156 = vsel %vm2148, %v44, %v414
    %v2157 = vsel %vm2148, %v46, %v416
    %v2158 = vsel %vm2148, %v47, %v418
    %v2159 = vsel %vm2148, %v49, %v420
    %v2160 = vsel %vm2148, %v50, %v422
    %v2161 = vsel %vm2148, %v52, %v424
    %v2162 = vsel %vm2148, %v53, %v426
    %v2163 = vsel %vm2148, %v55, %v428
    %v2164 = vsel %vm2148, %v56, %v430
    %v2165 = vsel %vm2148, %v58, %v432
    %v2166 = vsel %vm2148, %v59, %v434
    %v2167 = vsel %vm2148, %v61, %v436
    %v2168 = vsel %vm2148, %v62, %v438
    %v2169 = vsel %vm2148, %v64, %v440
    %v2170 = vsel %vm2148, %v65, %v442
    %v2171 = vsel %vm2148, %v67, %v444
    %v2172 = vsel %vm2148, %v68, %v446
    %v2173 = vsel %vm2148, %v70, %v448
    %v2174 = vsel %vm2148, %v71, %v450
    %v2175 = vsel %vm2148, %v73, %v452
    %v2176 = vsel %vm2148, %v74, %v454
    %v2177 = vsel %vm2148, %v76, %v456
    %v2178 = vsel %vm2148, %v77, %v458
    %v2179 = vsel %vm2148, %v79, %v460
    %v2180 = vsel %vm2148, %v80, %v462
    %v2181 = vsel %vm2148, %v88, %v464
    %v2182 = vsel %vm2148, %v89, %v466
    %v2183 = vsel %vm2148, %v91, %v468
    %v2184 = vsel %vm2148, %v92, %v470
    %v2185 = vsel %vm2148, %v94, %v472
    %v2186 = vsel %vm2148, %v95, %v474
    %v2187 = vsel %vm2148, %v97, %v476
    %v2188 = vsel %vm2148, %v98, %v478
    %v2189 = vsel %vm2148, %v100, %v480
    %v2190 = vsel %vm2148, %v101, %v482
    %v2191 = vsel %vm2148, %v103, %v484
    %v2192 = vsel %vm2148, %v104, %v486
    %v2193 = vsel %vm2148, %v106, %v488
    %v2194 = vsel %vm2148, %v107, %v490
    %v2195 = vsel %vm2148, %v109, %v492
    %v2196 = vsel %vm2148, %v110, %v494
    %v2197 = vsel %vm2148, %v112, %v496
    %v2198 = vsel %vm2148, %v113, %v498
    %v2199 = vsel %vm2148, %v115, %v500
    %v2200 = vsel %vm2148, %v116, %v502
    %v2201 = vsel %vm2148, %v118, %v504
    %v2202 = vsel %vm2148, %v119, %v506
    %v2203 = vsel %vm2148, %v121, %v508
    %v2204 = vsel %vm2148, %v122, %v510
    %v2205 = vsel %vm2148, %v124, %v512
    %v2206 = vsel %vm2148, %v125, %v514
    %v2207 = vsel %vm2148, %v127, %v516
    %v2208 = vsel %vm2148, %v128, %v518
    %v2209 = vsel %vm2148, %v130, %v520
    %v2210 = vsel %vm2148, %v131, %v522
    %v2211 = vsel %vm2148, %v133, %v524
    %v2212 = vsel %vm2148, %v134, %v526
    %vm2213 = vcmask 64512
    %v2214 = vsel %vm2213, %v2149, %v753
    %v2215 = vsel %vm2213, %v2150, %v755
    %v2216 = vsel %vm2213, %v2151, %v757
    %v2217 = vsel %vm2213, %v2152, %v759
    %v2218 = vsel %vm2213, %v2153, %v761
    %v2219 = vsel %vm2213, %v2154, %v763
    %v2220 = vsel %vm2213, %v2155, %v765
    %v2221 = vsel %vm2213, %v2156, %v767
    %v2222 = vsel %vm2213, %v2157, %v769
    %v2223 = vsel %vm2213, %v2158, %v771
    %v2224 = vsel %vm2213, %v2159, %v773
    %v2225 = vsel %vm2213, %v2160, %v775
    %v2226 = vsel %vm2213, %v2161, %v777
    %v2227 = vsel %vm2213, %v2162, %v779
    %v2228 = vsel %vm2213, %v2163, %v781
    %v2229 = vsel %vm2213, %v2164, %v783
    %v2230 = vsel %vm2213, %v2165, %v785
    %v2231 = vsel %vm2213, %v2166, %v787
    %v2232 = vsel %vm2213, %v2167, %v789
    %v2233 = vsel %vm2213, %v2168, %v791
    %v2234 = vsel %vm2213, %v2169, %v793
    %v2235 = vsel %vm2213, %v2170, %v795
    %v2236 = vsel %vm2213, %v2171, %v797
    %v2237 = vsel %vm2213, %v2172, %v799
    %v2238 = vsel %vm2213, %v2173, %v801
    %v2239 = vsel %vm2213, %v2174, %v803
    %v2240 = vsel %vm2213, %v2175, %v805
    %v2241 = vsel %vm2213, %v2176, %v807
    %v2242 = vsel %vm2213, %v2177, %v809
    %v2243 = vsel %vm2213, %v2178, %v811
    %v2244 = vsel %vm2213, %v2179, %v813
    %v2245 = vsel %vm2213, %v2180, %v815
    %v2246 = vsel %vm2213, %v2181, %v817
    %v2247 = vsel %vm2213, %v2182, %v819
    %v2248 = vsel %vm2213, %v2183, %v821
    %v2249 = vsel %vm2213, %v2184, %v823
    %v2250 = vsel %vm2213, %v2185, %v825
    %v2251 = vsel %vm2213, %v2186, %v827
    %v2252 = vsel %vm2213, %v2187, %v829
    %v2253 = vsel %vm2213, %v2188, %v831
    %v2254 = vsel %vm2213, %v2189, %v833
    %v2255 = vsel %vm2213, %v2190, %v835
    %v2256 = vsel %vm2213, %v2191, %v837
    %v2257 = vsel %vm2213, %v2192, %v839
    %v2258 = vsel %vm2213, %v2193, %v841
    %v2259 = vsel %vm2213, %v2194, %v843
    %v2260 = vsel %vm2213, %v2195, %v845
    %v2261 = vsel %vm2213, %v2196, %v847
    %v2262 = vsel %vm2213, %v2197, %v849
    %v2263 = vsel %vm2213, %v2198, %v851
    %v2264 = vsel %vm2213, %v2199, %v853
    %v2265 = vsel %vm2213, %v2200, %v855
    %v2266 = vsel %vm2213, %v2201, %v857
    %v2267 = vsel %vm2213, %v2202, %v859
    %v2268 = vsel %vm2213, %v2203, %v861
    %v2269 = vsel %vm2213, %v2204, %v863
    %v2270 = vsel %vm2213, %v2205, %v865
    %v2271 = vsel %vm2213, %v2206, %v867
    %v2272 = vsel %vm2213, %v2207, %v869
    %v2273 = vsel %vm2213, %v2208, %v871
    %v2274 = vsel %vm2213, %v2209, %v873
    %v2275 = vsel %vm2213, %v2210, %v875
    %v2276 = vsel %vm2213, %v2211, %v877
    %v2277 = vsel %vm2213, %v2212, %v879
    %vm2278 = vcmask 97280
    %v2279 = vsel %vm2278, %v2214, %v949
    %v2280 = vsel %vm2278, %v2215, %v951
    %v2281 = vsel %vm2278, %v2216, %v953
    %v2282 = vsel %vm2278, %v2217, %v955
    %v2283 = vsel %vm2278, %v2218, %v957
    %v2284 = vsel %vm2278, %v2219, %v959
    %v2285 = vsel %vm2278, %v2220, %v961
    %v2286 = vsel %vm2278, %v2221, %v963
    %v2287 = vsel %vm2278, %v2222, %v965
    %v2288 = vsel %vm2278, %v2223, %v967
    %v2289 = vsel %vm2278, %v2224, %v969
    %v2290 = vsel %vm2278, %v2225, %v971
    %v2291 = vsel %vm2278, %v2226, %v973
    %v2292 = vsel %vm2278, %v2227, %v975
    %v2293 = vsel %vm2278, %v2228, %v977
    %v2294 = vsel %vm2278, %v2229, %v979
    %v2295 = vsel %vm2278, %v2230, %v981
    %v2296 = vsel %vm2278, %v2231, %v983
    %v2297 = vsel %vm2278, %v2232, %v985
    %v2298 = vsel %vm2278, %v2233, %v987
    %v2299 = vsel %vm2278, %v2234, %v989
    %v2300 = vsel %vm2278, %v2235, %v991
    %v2301 = vsel %vm2278, %v2236, %v993
    %v2302 = vsel %vm2278, %v2237, %v995
    %v2303 = vsel %vm2278, %v2238, %v997
    %v2304 = vsel %vm2278, %v2239, %v999
    %v2305 = vsel %vm2278, %v2240, %v1001
    %v2306 = vsel %vm2278, %v2241, %v1003
    %v2307 = vsel %vm2278, %v2242, %v1005
    %v2308 = vsel %vm2278, %v2243, %v1007
    %v2309 = vsel %vm2278, %v2244, %v1009
    %v2310 = vsel %vm2278, %v2245, %v1011
    %v2311 = vsel %vm2278, %v2246, %v1013
    %v2312 = vsel %vm2278, %v2247, %v1015
    %v2313 = vsel %vm2278, %v2248, %v1017
    %v2314 = vsel %vm2278, %v2249, %v1019
    %v2315 = vsel %vm2278, %v2250, %v1021
    %v2316 = vsel %vm2278, %v2251, %v1023
    %v2317 = vsel %vm2278, %v2252, %v1025
    %v2318 = vsel %vm2278, %v2253, %v1027
    %v2319 = vsel %vm2278, %v2254, %v1029
    %v2320 = vsel %vm2278, %v2255, %v1031
    %v2321 = vsel %vm2278, %v2256, %v1033
    %v2322 = vsel %vm2278, %v2257, %v1035
    %v2323 = vsel %vm2278, %v2258, %v1037
    %v2324 = vsel %vm2278, %v2259, %v1039
    %v2325 = vsel %vm2278, %v2260, %v1041
    %v2326 = vsel %vm2278, %v2261, %v1043
    %v2327 = vsel %vm2278, %v2262, %v1045
    %v2328 = vsel %vm2278, %v2263, %v1047
    %v2329 = vsel %vm2278, %v2264, %v1049
    %v2330 = vsel %vm2278, %v2265, %v1051
    %v2331 = vsel %vm2278, %v2266, %v1053
    %v2332 = vsel %vm2278, %v2267, %v1055
    %v2333 = vsel %vm2278, %v2268, %v1057
    %v2334 = vsel %vm2278, %v2269, %v1059
    %v2335 = vsel %vm2278, %v2270, %v1061
    %v2336 = vsel %vm2278, %v2271, %v1063
    %v2337 = vsel %vm2278, %v2272, %v1065
    %v2338 = vsel %vm2278, %v2273, %v1067
    %v2339 = vsel %vm2278, %v2274, %v1069
    %v2340 = vsel %vm2278, %v2275, %v1071
    %v2341 = vsel %vm2278, %v2276, %v1073
    %v2342 = vsel %vm2278, %v2277, %v1075
    %vm2343 = vcmask 130048
    %v2344 = vsel %vm2343, %v2279, %v1153
    %v2345 = vsel %vm2343, %v2280, %v1155
    %v2346 = vsel %vm2343, %v2281, %v1157
    %v2347 = vsel %vm2343, %v2282, %v1159
    %v2348 = vsel %vm2343, %v2283, %v1161
    %v2349 = vsel %vm2343, %v2284, %v1163
    %v2350 = vsel %vm2343, %v2285, %v1165
    %v2351 = vsel %vm2343, %v2286, %v1167
    %v2352 = vsel %vm2343, %v2287, %v1169
    %v2353 = vsel %vm2343, %v2288, %v1171
    %v2354 = vsel %vm2343, %v2289, %v1173
    %v2355 = vsel %vm2343, %v2290, %v1175
    %v2356 = vsel %vm2343, %v2291, %v1177
    %v2357 = vsel %vm2343, %v2292, %v1179
    %v2358 = vsel %vm2343, %v2293, %v1181
    %v2359 = vsel %vm2343, %v2294, %v1183
    %v2360 = vsel %vm2343, %v2295, %v1185
    %v2361 = vsel %vm2343, %v2296, %v1187
    %v2362 = vsel %vm2343, %v2297, %v1189
    %v2363 = vsel %vm2343, %v2298, %v1191
    %v2364 = vsel %vm2343, %v2299, %v1193
    %v2365 = vsel %vm2343, %v2300, %v1195
    %v2366 = vsel %vm2343, %v2301, %v1197
    %v2367 = vsel %vm2343, %v2302, %v1199
    %v2368 = vsel %vm2343, %v2303, %v1201
    %v2369 = vsel %vm2343, %v2304, %v1203
    %v2370 = vsel %vm2343, %v2305, %v1205
    %v2371 = vsel %vm2343, %v2306, %v1207
    %v2372 = vsel %vm2343, %v2307, %v1209
    %v2373 = vsel %vm2343, %v2308, %v1211
    %v2374 = vsel %vm2343, %v2309, %v1213
    %v2375 = vsel %vm2343, %v2310, %v1215
    %v2376 = vsel %vm2343, %v2311, %v1217
    %v2377 = vsel %vm2343, %v2312, %v1219
    %v2378 = vsel %vm2343, %v2313, %v1221
    %v2379 = vsel %vm2343, %v2314, %v1223
    %v2380 = vsel %vm2343, %v2315, %v1225
    %v2381 = vsel %vm2343, %v2316, %v1227
    %v2382 = vsel %vm2343, %v2317, %v1229
    %v2383 = vsel %vm2343, %v2318, %v1231
    %v2384 = vsel %vm2343, %v2319, %v1233
    %v2385 = vsel %vm2343, %v2320, %v1235
    %v2386 = vsel %vm2343, %v2321, %v1237
    %v2387 = vsel %vm2343, %v2322, %v1239
    %v2388 = vsel %vm2343, %v2323, %v1241
    %v2389 = vsel %vm2343, %v2324, %v1243
    %v2390 = vsel %vm2343, %v2325, %v1245
    %v2391 = vsel %vm2343, %v2326, %v1247
    %v2392 = vsel %vm2343, %v2327, %v1249
    %v2393 = vsel %vm2343, %v2328, %v1251
    %v2394 = vsel %vm2343, %v2329, %v1253
    %v2395 = vsel %vm2343, %v2330, %v1255
    %v2396 = vsel %vm2343, %v2331, %v1257
    %v2397 = vsel %vm2343, %v2332, %v1259
    %v2398 = vsel %vm2343, %v2333, %v1261
    %v2399 = vsel %vm2343, %v2334, %v1263
    %v2400 = vsel %vm2343, %v2335, %v1265
    %v2401 = vsel %vm2343, %v2336, %v1267
    %v2402 = vsel %vm2343, %v2337, %v1269
    %v2403 = vsel %vm2343, %v2338, %v1271
    %v2404 = vsel %vm2343, %v2339, %v1273
    %v2405 = vsel %vm2343, %v2340, %v1275
    %v2406 = vsel %vm2343, %v2341, %v1277
    %v2407 = vsel %vm2343, %v2342, %v1279
    %vm2408 = vcmask 162816
    %v2409 = vsel %vm2408, %v2344, %v1355
    %v2410 = vsel %vm2408, %v2345, %v1357
    %v2411 = vsel %vm2408, %v2346, %v1359
    %v2412 = vsel %vm2408, %v2347, %v1361
    %v2413 = vsel %vm2408, %v2348, %v1363
    %v2414 = vsel %vm2408, %v2349, %v1365
    %v2415 = vsel %vm2408, %v2350, %v1367
    %v2416 = vsel %vm2408, %v2351, %v1369
    %v2417 = vsel %vm2408, %v2352, %v1371
    %v2418 = vsel %vm2408, %v2353, %v1373
    %v2419 = vsel %vm2408, %v2354, %v1375
    %v2420 = vsel %vm2408, %v2355, %v1377
    %v2421 = vsel %vm2408, %v2356, %v1379
    %v2422 = vsel %vm2408, %v2357, %v1381
    %v2423 = vsel %vm2408, %v2358, %v1383
    %v2424 = vsel %vm2408, %v2359, %v1385
    %v2425 = vsel %vm2408, %v2360, %v1387
    %v2426 = vsel %vm2408, %v2361, %v1389
    %v2427 = vsel %vm2408, %v2362, %v1391
    %v2428 = vsel %vm2408, %v2363, %v1393
    %v2429 = vsel %vm2408, %v2364, %v1395
    %v2430 = vsel %vm2408, %v2365, %v1397
    %v2431 = vsel %vm2408, %v2366, %v1399
    %v2432 = vsel %vm2408, %v2367, %v1401
    %v2433 = vsel %vm2408, %v2368, %v1403
    %v2434 = vsel %vm2408, %v2369, %v1405
    %v2435 = vsel %vm2408, %v2370, %v1407
    %v2436 = vsel %vm2408, %v2371, %v1409
    %v2437 = vsel %vm2408, %v2372, %v1411
    %v2438 = vsel %vm2408, %v2373, %v1413
    %v2439 = vsel %vm2408, %v2374, %v1415
    %v2440 = vsel %vm2408, %v2375, %v1417
    %v2441 = vsel %vm2408, %v2376, %v1419
    %v2442 = vsel %vm2408, %v2377, %v1421
    %v2443 = vsel %vm2408, %v2378, %v1423
    %v2444 = vsel %vm2408, %v2379, %v1425
    %v2445 = vsel %vm2408, %v2380, %v1427
    %v2446 = vsel %vm2408, %v2381, %v1429
    %v2447 = vsel %vm2408, %v2382, %v1431
    %v2448 = vsel %vm2408, %v2383, %v1433
    %v2449 = vsel %vm2408, %v2384, %v1435
    %v2450 = vsel %vm2408, %v2385, %v1437
    %v2451 = vsel %vm2408, %v2386, %v1439
    %v2452 = vsel %vm2408, %v2387, %v1441
    %v2453 = vsel %vm2408, %v2388, %v1443
    %v2454 = vsel %vm2408, %v2389, %v1445
    %v2455 = vsel %vm2408, %v2390, %v1447
    %v2456 = vsel %vm2408, %v2391, %v1449
    %v2457 = vsel %vm2408, %v2392, %v1451
    %v2458 = vsel %vm2408, %v2393, %v1453
    %v2459 = vsel %vm2408, %v2394, %v1455
    %v2460 = vsel %vm2408, %v2395, %v1457
    %v2461 = vsel %vm2408, %v2396, %v1459
    %v2462 = vsel %vm2408, %v2397, %v1461
    %v2463 = vsel %vm2408, %v2398, %v1463
    %v2464 = vsel %vm2408, %v2399, %v1465
    %v2465 = vsel %vm2408, %v2400, %v1467
    %v2466 = vsel %vm2408, %v2401, %v1469
    %v2467 = vsel %vm2408, %v2402, %v1471
    %v2468 = vsel %vm2408, %v2403, %v1473
    %v2469 = vsel %vm2408, %v2404, %v1475
    %v2470 = vsel %vm2408, %v2405, %v1477
    %v2471 = vsel %vm2408, %v2406, %v1479
    %v2472 = vsel %vm2408, %v2407, %v1481
    %vm2473 = vcmask 195584
    %v2474 = vsel %vm2473, %v2409, %v1551
    %v2475 = vsel %vm2473, %v2410, %v1553
    %v2476 = vsel %vm2473, %v2411, %v1555
    %v2477 = vsel %vm2473, %v2412, %v1557
    %v2478 = vsel %vm2473, %v2413, %v1559
    %v2479 = vsel %vm2473, %v2414, %v1561
    %v2480 = vsel %vm2473, %v2415, %v1563
    %v2481 = vsel %vm2473, %v2416, %v1565
    %v2482 = vsel %vm2473, %v2417, %v1567
    %v2483 = vsel %vm2473, %v2418, %v1569
    %v2484 = vsel %vm2473, %v2419, %v1571
    %v2485 = vsel %vm2473, %v2420, %v1573
    %v2486 = vsel %vm2473, %v2421, %v1575
    %v2487 = vsel %vm2473, %v2422, %v1577
    %v2488 = vsel %vm2473, %v2423, %v1579
    %v2489 = vsel %vm2473, %v2424, %v1581
    %v2490 = vsel %vm2473, %v2425, %v1583
    %v2491 = vsel %vm2473, %v2426, %v1585
    %v2492 = vsel %vm2473, %v2427, %v1587
    %v2493 = vsel %vm2473, %v2428, %v1589
    %v2494 = vsel %vm2473, %v2429, %v1591
    %v2495 = vsel %vm2473, %v2430, %v1593
    %v2496 = vsel %vm2473, %v2431, %v1595
    %v2497 = vsel %vm2473, %v2432, %v1597
    %v2498 = vsel %vm2473, %v2433, %v1599
    %v2499 = vsel %vm2473, %v2434, %v1601
    %v2500 = vsel %vm2473, %v2435, %v1603
    %v2501 = vsel %vm2473, %v2436, %v1605
    %v2502 = vsel %vm2473, %v2437, %v1607
    %v2503 = vsel %vm2473, %v2438, %v1609
    %v2504 = vsel %vm2473, %v2439, %v1611
    %v2505 = vsel %vm2473, %v2440, %v1613
    %v2506 = vsel %vm2473, %v2441, %v1615
    %v2507 = vsel %vm2473, %v2442, %v1617
    %v2508 = vsel %vm2473, %v2443, %v1619
    %v2509 = vsel %vm2473, %v2444, %v1621
    %v2510 = vsel %vm2473, %v2445, %v1623
    %v2511 = vsel %vm2473, %v2446, %v1625
    %v2512 = vsel %vm2473, %v2447, %v1627
    %v2513 = vsel %vm2473, %v2448, %v1629
    %v2514 = vsel %vm2473, %v2449, %v1631
    %v2515 = vsel %vm2473, %v2450, %v1633
    %v2516 = vsel %vm2473, %v2451, %v1635
    %v2517 = vsel %vm2473, %v2452, %v1637
    %v2518 = vsel %vm2473, %v2453, %v1639
    %v2519 = vsel %vm2473, %v2454, %v1641
    %v2520 = vsel %vm2473, %v2455, %v1643
    %v2521 = vsel %vm2473, %v2456, %v1645
    %v2522 = vsel %vm2473, %v2457, %v1647
    %v2523 = vsel %vm2473, %v2458, %v1649
    %v2524 = vsel %vm2473, %v2459, %v1651
    %v2525 = vsel %vm2473, %v2460, %v1653
    %v2526 = vsel %vm2473, %v2461, %v1655
    %v2527 = vsel %vm2473, %v2462, %v1657
    %v2528 = vsel %vm2473, %v2463, %v1659
    %v2529 = vsel %vm2473, %v2464, %v1661
    %v2530 = vsel %vm2473, %v2465, %v1663
    %v2531 = vsel %vm2473, %v2466, %v1665
    %v2532 = vsel %vm2473, %v2467, %v1667
    %v2533 = vsel %vm2473, %v2468, %v1669
    %v2534 = vsel %vm2473, %v2469, %v1671
    %v2535 = vsel %vm2473, %v2470, %v1673
    %v2536 = vsel %vm2473, %v2471, %v1675
    %v2537 = vsel %vm2473, %v2472, %v1677
    %vm2538 = vcmask 228352
    %v2539 = vsel %vm2538, %v2474, %v1755
    %v2540 = vsel %vm2538, %v2475, %v1757
    %v2541 = vsel %vm2538, %v2476, %v1759
    %v2542 = vsel %vm2538, %v2477, %v1761
    %v2543 = vsel %vm2538, %v2478, %v1763
    %v2544 = vsel %vm2538, %v2479, %v1765
    %v2545 = vsel %vm2538, %v2480, %v1767
    %v2546 = vsel %vm2538, %v2481, %v1769
    %v2547 = vsel %vm2538, %v2482, %v1771
    %v2548 = vsel %vm2538, %v2483, %v1773
    %v2549 = vsel %vm2538, %v2484, %v1775
    %v2550 = vsel %vm2538, %v2485, %v1777
    %v2551 = vsel %vm2538, %v2486, %v1779
    %v2552 = vsel %vm2538, %v2487, %v1781
    %v2553 = vsel %vm2538, %v2488, %v1783
    %v2554 = vsel %vm2538, %v2489, %v1785
    %v2555 = vsel %vm2538, %v2490, %v1787
    %v2556 = vsel %vm2538, %v2491, %v1789
    %v2557 = vsel %vm2538, %v2492, %v1791
    %v2558 = vsel %vm2538, %v2493, %v1793
    %v2559 = vsel %vm2538, %v2494, %v1795
    %v2560 = vsel %vm2538, %v2495, %v1797
    %v2561 = vsel %vm2538, %v2496, %v1799
    %v2562 = vsel %vm2538, %v2497, %v1801
    %v2563 = vsel %vm2538, %v2498, %v1803
    %v2564 = vsel %vm2538, %v2499, %v1805
    %v2565 = vsel %vm2538, %v2500, %v1807
    %v2566 = vsel %vm2538, %v2501, %v1809
    %v2567 = vsel %vm2538, %v2502, %v1811
    %v2568 = vsel %vm2538, %v2503, %v1813
    %v2569 = vsel %vm2538, %v2504, %v1815
    %v2570 = vsel %vm2538, %v2505, %v1817
    %v2571 = vsel %vm2538, %v2506, %v1819
    %v2572 = vsel %vm2538, %v2507, %v1821
    %v2573 = vsel %vm2538, %v2508, %v1823
    %v2574 = vsel %vm2538, %v2509, %v1825
    %v2575 = vsel %vm2538, %v2510, %v1827
    %v2576 = vsel %vm2538, %v2511, %v1829
    %v2577 = vsel %vm2538, %v2512, %v1831
    %v2578 = vsel %vm2538, %v2513, %v1833
    %v2579 = vsel %vm2538, %v2514, %v1835
    %v2580 = vsel %vm2538, %v2515, %v1837
    %v2581 = vsel %vm2538, %v2516, %v1839
    %v2582 = vsel %vm2538, %v2517, %v1841
    %v2583 = vsel %vm2538, %v2518, %v1843
    %v2584 = vsel %vm2538, %v2519, %v1845
    %v2585 = vsel %vm2538, %v2520, %v1847
    %v2586 = vsel %vm2538, %v2521, %v1849
    %v2587 = vsel %vm2538, %v2522, %v1851
    %v2588 = vsel %vm2538, %v2523, %v1853
    %v2589 = vsel %vm2538, %v2524, %v1855
    %v2590 = vsel %vm2538, %v2525, %v1857
    %v2591 = vsel %vm2538, %v2526, %v1859
    %v2592 = vsel %vm2538, %v2527, %v1861
    %v2593 = vsel %vm2538, %v2528, %v1863
    %v2594 = vsel %vm2538, %v2529, %v1865
    %v2595 = vsel %vm2538, %v2530, %v1867
    %v2596 = vsel %vm2538, %v2531, %v1869
    %v2597 = vsel %vm2538, %v2532, %v1871
    %v2598 = vsel %vm2538, %v2533, %v1873
    %v2599 = vsel %vm2538, %v2534, %v1875
    %v2600 = vsel %vm2538, %v2535, %v1877
    %v2601 = vsel %vm2538, %v2536, %v1879
    %v2602 = vsel %vm2538, %v2537, %v1881
    %vm2603 = vcmask 261120
    %v2604 = vsel %vm2603, %v2539, %v1957
    %v2605 = vsel %vm2603, %v2540, %v1959
    %v2606 = vsel %vm2603, %v2541, %v1961
    %v2607 = vsel %vm2603, %v2542, %v1963
    %v2608 = vsel %vm2603, %v2543, %v1965
    %v2609 = vsel %vm2603, %v2544, %v1967
    %v2610 = vsel %vm2603, %v2545, %v1969
    %v2611 = vsel %vm2603, %v2546, %v1971
    %v2612 = vsel %vm2603, %v2547, %v1973
    %v2613 = vsel %vm2603, %v2548, %v1975
    %v2614 = vsel %vm2603, %v2549, %v1977
    %v2615 = vsel %vm2603, %v2550, %v1979
    %v2616 = vsel %vm2603, %v2551, %v1981
    %v2617 = vsel %vm2603, %v2552, %v1983
    %v2618 = vsel %vm2603, %v2553, %v1985
    %v2619 = vsel %vm2603, %v2554, %v1987
    %v2620 = vsel %vm2603, %v2555, %v1989
    %v2621 = vsel %vm2603, %v2556, %v1991
    %v2622 = vsel %vm2603, %v2557, %v1993
    %v2623 = vsel %vm2603, %v2558, %v1995
    %v2624 = vsel %vm2603, %v2559, %v1997
    %v2625 = vsel %vm2603, %v2560, %v1999
    %v2626 = vsel %vm2603, %v2561, %v2001
    %v2627 = vsel %vm2603, %v2562, %v2003
    %v2628 = vsel %vm2603, %v2563, %v2005
    %v2629 = vsel %vm2603, %v2564, %v2007
    %v2630 = vsel %vm2603, %v2565, %v2009
    %v2631 = vsel %vm2603, %v2566, %v2011
    %v2632 = vsel %vm2603, %v2567, %v2013
    %v2633 = vsel %vm2603, %v2568, %v2015
    %v2634 = vsel %vm2603, %v2569, %v2017
    %v2635 = vsel %vm2603, %v2570, %v2019
    %v2636 = vsel %vm2603, %v2571, %v2021
    %v2637 = vsel %vm2603, %v2572, %v2023
    %v2638 = vsel %vm2603, %v2573, %v2025
    %v2639 = vsel %vm2603, %v2574, %v2027
    %v2640 = vsel %vm2603, %v2575, %v2029
    %v2641 = vsel %vm2603, %v2576, %v2031
    %v2642 = vsel %vm2603, %v2577, %v2033
    %v2643 = vsel %vm2603, %v2578, %v2035
    %v2644 = vsel %vm2603, %v2579, %v2037
    %v2645 = vsel %vm2603, %v2580, %v2039
    %v2646 = vsel %vm2603, %v2581, %v2041
    %v2647 = vsel %vm2603, %v2582, %v2043
    %v2648 = vsel %vm2603, %v2583, %v2045
    %v2649 = vsel %vm2603, %v2584, %v2047
    %v2650 = vsel %vm2603, %v2585, %v2049
    %v2651 = vsel %vm2603, %v2586, %v2051
    %v2652 = vsel %vm2603, %v2587, %v2053
    %v2653 = vsel %vm2603, %v2588, %v2055
    %v2654 = vsel %vm2603, %v2589, %v2057
    %v2655 = vsel %vm2603, %v2590, %v2059
    %v2656 = vsel %vm2603, %v2591, %v2061
    %v2657 = vsel %vm2603, %v2592, %v2063
    %v2658 = vsel %vm2603, %v2593, %v2065
    %v2659 = vsel %vm2603, %v2594, %v2067
    %v2660 = vsel %vm2603, %v2595, %v2069
    %v2661 = vsel %vm2603, %v2596, %v2071
    %v2662 = vsel %vm2603, %v2597, %v2073
    %v2663 = vsel %vm2603, %v2598, %v2075
    %v2664 = vsel %vm2603, %v2599, %v2077
    %v2665 = vsel %vm2603, %v2600, %v2079
    %v2666 = vsel %vm2603, %v2601, %v2081
    %v2667 = vsel %vm2603, %v2602, %v2083
    %v2668 = vpack.c.bf16 %v2605, %v2604
    %v2669 = vpack.c.bf16 %v2607, %v2606
    %v2670 = vpack.c.bf16 %v2609, %v2608
    %v2671 = vpack.c.bf16 %v2611, %v2610
    %v2672 = vpack.c.bf16 %v2613, %v2612
    %v2673 = vpack.c.bf16 %v2615, %v2614
    %v2674 = vpack.c.bf16 %v2617, %v2616
    %v2675 = vpack.c.bf16 %v2619, %v2618
    %v2676 = vpack.c.bf16 %v2621, %v2620
    %v2677 = vpack.c.bf16 %v2623, %v2622
    %v2678 = vpack.c.bf16 %v2625, %v2624
    %v2679 = vpack.c.bf16 %v2627, %v2626
    %v2680 = vpack.c.bf16 %v2629, %v2628
    %v2681 = vpack.c.bf16 %v2631, %v2630
    %v2682 = vpack.c.bf16 %v2633, %v2632
    %v2683 = vpack.c.bf16 %v2635, %v2634
    %v2684 = vpack.c.bf16 %v2637, %v2636
    %v2685 = vpack.c.bf16 %v2639, %v2638
    %v2686 = vpack.c.bf16 %v2641, %v2640
    %v2687 = vpack.c.bf16 %v2643, %v2642
    %v2688 = vpack.c.bf16 %v2645, %v2644
    %v2689 = vpack.c.bf16 %v2647, %v2646
    %v2690 = vpack.c.bf16 %v2649, %v2648
    %v2691 = vpack.c.bf16 %v2651, %v2650
    %v2692 = vpack.c.bf16 %v2653, %v2652
    %v2693 = vpack.c.bf16 %v2655, %v2654
    %v2694 = vpack.c.bf16 %v2657, %v2656
    %v2695 = vpack.c.bf16 %v2659, %v2658
    %v2696 = vpack.c.bf16 %v2661, %v2660
    %v2697 = vpack.c.bf16 %v2663, %v2662
    %v2698 = vpack.c.bf16 %v2665, %v2664
    %v2699 = vpack.c.bf16 %v2667, %v2666
    %v2700 = vld [vmem:[%s1] sm:$0xf]
    %v2701 = vld [vmem:[%s1 + $0x4] sm:$0xf]
    %v2702 = vld [vmem:[%s1 + $0x8] sm:$0xf]
    %v2703 = vld [vmem:[%s1 + $0xc] sm:$0xf]
    %v2704 = vld [vmem:[%s1 + $0x10] sm:$0x3]
    %v2705 = vld [vmem:[%s2] sm:$0x1]
    %v2707 = vlaneseq
    %v2708 = vshrl.u32 %v2707, 7
    %v2709 = vsub.s32 0, %v2708
    %v2710 = vrot.slane %v2705, %v2709
    %v2717 = vunpack.c.l.b16 %v2700
    %v2718 = vunpack.c.l.b16 %v2701
    %v2719 = vunpack.c.l.b16 %v2702
    %v2720 = vunpack.c.l.b16 %v2703
    %v2721 = vunpack.c.l.b16 %v2704
    %v2722 = vpack.c.b16 %v2718, %v2717
    %v2723 = vpack.c.b16 %v2720, %v2719
    %v2724 = vpack.c.b16 %v2721, %v2721
    %vm2727 = vcmask 293888
    %v2729 = vsel %vm2727, %v2668, 0
    %v2732 = vsel %vm2727, %v2669, 0
    %v2735 = vsel %vm2727, %v2670, 0
    %v2738 = vsel %vm2727, %v2671, 0
    %v2741 = vsel %vm2727, %v2672, 0
    %v2744 = vsel %vm2727, %v2673, 0
    %v2747 = vsel %vm2727, %v2674, 0
    %v2750 = vsel %vm2727, %v2675, 0
    %v2753 = vsel %vm2727, %v2676, 0
    %v2756 = vsel %vm2727, %v2677, 0
    %v2759 = vsel %vm2727, %v2678, 0
    %v2762 = vsel %vm2727, %v2679, 0
    %v2765 = vsel %vm2727, %v2680, 0
    %v2768 = vsel %vm2727, %v2681, 0
    %v2771 = vsel %vm2727, %v2682, 0
    %v2774 = vsel %vm2727, %v2683, 0
    %v2777 = vsel %vm2727, %v2684, 0
    %v2780 = vsel %vm2727, %v2685, 0
    %v2783 = vsel %vm2727, %v2686, 0
    %v2786 = vsel %vm2727, %v2687, 0
    %v2789 = vsel %vm2727, %v2688, 0
    %v2792 = vsel %vm2727, %v2689, 0
    %v2795 = vsel %vm2727, %v2690, 0
    %v2798 = vsel %vm2727, %v2691, 0
    %v2801 = vsel %vm2727, %v2692, 0
    %v2804 = vsel %vm2727, %v2693, 0
    %v2807 = vsel %vm2727, %v2694, 0
    %v2810 = vsel %vm2727, %v2695, 0
    %v2813 = vsel %vm2727, %v2696, 0
    %v2816 = vsel %vm2727, %v2697, 0
    %v2819 = vsel %vm2727, %v2698, 0
    %v2822 = vsel %vm2727, %v2699, 0
    %vm2824 = vcmask 1041408
    %v2826 = vsel %vm2824, %v2724, 0
    %2828 = vmatprep.subr.bf16.mxu0 0
    %2829 = vmatpush1.bf16.msra.mxu0 %v2722
    %2830 = vmatprep.subr.bf16.mxu0 0
    %2831 = vmatpush1.bf16.msra.mxu0 %v2723
    %2832 = vmatprep.subr.bf16.mxu0 0
    %2833 = vmatpush1.bf16.msra.mxu0 %v2826
    %2834 = vmatprep.subr.bf16.mxu0 0
    %2835 = vmatpush1.bf16.msra.mxu0 0
    %2836 = vmatprep.subr.bf16.mxu0 0
    %2837 = vmatpush1.bf16.msra.mxu0 0
    %2838 = vmatprep.subr.bf16.mxu0 0
    %2839 = vmatpush1.bf16.msra.mxu0 0
    %2840 = vmatprep.subr.bf16.mxu0 0
    %2841 = vmatpush1.bf16.msra.mxu0 0
    %2842 = vmatprep.subr.bf16.mxu0 0
    %2843 = vmatpush1.bf16.msra.mxu0 0
    %2844 = vmatprep.subr.bf16.mxu0 0
    %2845 = vmatpush1.bf16.msra.mxu0 0
    %2846 = vmatprep.subr.bf16.mxu0 0
    %2847 = vmatpush1.bf16.msra.mxu0 0
    %2848 = vmatprep.subr.bf16.mxu0 0
    %2849 = vmatpush1.bf16.msra.mxu0 0
    %2850 = vmatprep.subr.bf16.mxu0 0
    %2851 = vmatpush1.bf16.msra.mxu0 0
    %2852 = vmatprep.subr.bf16.mxu0 0
    %2853 = vmatpush1.bf16.msra.mxu0 0
    %2854 = vmatprep.subr.bf16.mxu0 0
    %2855 = vmatpush1.bf16.msra.mxu0 0
    %2856 = vmatprep.subr.bf16.mxu0 0
    %2857 = vmatpush1.bf16.msra.mxu0 0
    %2858 = vmatprep.subr.bf16.mxu0 0
    %2859 = vmatpush1.bf16.msra.mxu0 0
    %2860 = vmatprep.mubr.bf16.mxu0 0
    %2861 = vmatmul.mubr.bf16.gmra.mrb[0].mxu0 %v2729
    %v2862 = vpop.f32.mrb[0].mxu0
    %v2863 = vadd.f32 %v2710, %v2862
    %v2864 = vpop.f32.mrb[0].mxu0
    %v2865 = vpop.f32.mrb[0].mxu0
    %v2866 = vadd.f32 %v2710, %v2865
    %v2867 = vpop.f32.mrb[0].mxu0
    %2868 = vmatprep.mubr.bf16.mxu0 0
    %2869 = vmatmul.mubr.bf16.gmra.mrb[0].mxu0 %v2732
    %v2870 = vpop.f32.mrb[0].mxu0
    %v2871 = vadd.f32 %v2710, %v2870
    %v2872 = vpop.f32.mrb[0].mxu0
    %v2873 = vpop.f32.mrb[0].mxu0
    %v2874 = vadd.f32 %v2710, %v2873
    %v2875 = vpop.f32.mrb[0].mxu0
    %2876 = vmatprep.mubr.bf16.mxu0 0
    %2877 = vmatmul.mubr.bf16.gmra.mrb[0].mxu0 %v2735
    %v2878 = vpop.f32.mrb[0].mxu0
    %v2879 = vadd.f32 %v2710, %v2878
    %v2880 = vpop.f32.mrb[0].mxu0
    %v2881 = vpop.f32.mrb[0].mxu0
    %v2882 = vadd.f32 %v2710, %v2881
    %v2883 = vpop.f32.mrb[0].mxu0
    %2884 = vmatprep.mubr.bf16.mxu0 0
    %2885 = vmatmul.mubr.bf16.gmra.mrb[0].mxu0 %v2738
    %v2886 = vpop.f32.mrb[0].mxu0
    %v2887 = vadd.f32 %v2710, %v2886
    %v2888 = vpop.f32.mrb[0].mxu0
    %v2889 = vpop.f32.mrb[0].mxu0
    %v2890 = vadd.f32 %v2710, %v2889
    %v2891 = vpop.f32.mrb[0].mxu0
    %2892 = vmatprep.mubr.bf16.mxu0 0
    %2893 = vmatmul.mubr.bf16.gmra.mrb[0].mxu0 %v2741
    %v2894 = vpop.f32.mrb[0].mxu0
    %v2895 = vadd.f32 %v2710, %v2894
    %v2896 = vpop.f32.mrb[0].mxu0
    %v2897 = vpop.f32.mrb[0].mxu0
    %v2898 = vadd.f32 %v2710, %v2897
    %v2899 = vpop.f32.mrb[0].mxu0
    %2900 = vmatprep.mubr.bf16.mxu0 0
    %2901 = vmatmul.mubr.bf16.gmra.mrb[0].mxu0 %v2744
    %v2902 = vpop.f32.mrb[0].mxu0
    %v2903 = vadd.f32 %v2710, %v2902
    %v2904 = vpop.f32.mrb[0].mxu0
    %v2905 = vpop.f32.mrb[0].mxu0
    %v2906 = vadd.f32 %v2710, %v2905
    %v2907 = vpop.f32.mrb[0].mxu0
    %2908 = vmatprep.mubr.bf16.mxu0 0
    %2909 = vmatmul.mubr.bf16.gmra.mrb[0].mxu0 %v2747
    %v2910 = vpop.f32.mrb[0].mxu0
    %v2911 = vadd.f32 %v2710, %v2910
    %v2912 = vpop.f32.mrb[0].mxu0
    %v2913 = vpop.f32.mrb[0].mxu0
    %v2914 = vadd.f32 %v2710, %v2913
    %v2915 = vpop.f32.mrb[0].mxu0
    %2916 = vmatprep.mubr.bf16.mxu0 0
    %2917 = vmatmul.mubr.bf16.gmra.mrb[0].mxu0 %v2750
    %v2918 = vpop.f32.mrb[0].mxu0
    %v2919 = vadd.f32 %v2710, %v2918
    %v2920 = vpop.f32.mrb[0].mxu0
    %v2921 = vpop.f32.mrb[0].mxu0
    %v2922 = vadd.f32 %v2710, %v2921
    %v2923 = vpop.f32.mrb[0].mxu0
    %2924 = vmatprep.mubr.bf16.mxu0 0
    %2925 = vmatmul.mubr.bf16.gmra.mrb[0].mxu0 %v2753
    %v2926 = vpop.f32.mrb[0].mxu0
    %v2927 = vadd.f32 %v2710, %v2926
    %v2928 = vpop.f32.mrb[0].mxu0
    %v2929 = vpop.f32.mrb[0].mxu0
    %v2930 = vadd.f32 %v2710, %v2929
    %v2931 = vpop.f32.mrb[0].mxu0
    %2932 = vmatprep.mubr.bf16.mxu0 0
    %2933 = vmatmul.mubr.bf16.gmra.mrb[0].mxu0 %v2756
    %v2934 = vpop.f32.mrb[0].mxu0
    %v2935 = vadd.f32 %v2710, %v2934
    %v2936 = vpop.f32.mrb[0].mxu0
    %v2937 = vpop.f32.mrb[0].mxu0
    %v2938 = vadd.f32 %v2710, %v2937
    %v2939 = vpop.f32.mrb[0].mxu0
    %2940 = vmatprep.mubr.bf16.mxu0 0
    %2941 = vmatmul.mubr.bf16.gmra.mrb[0].mxu0 %v2759
    %v2942 = vpop.f32.mrb[0].mxu0
    %v2943 = vadd.f32 %v2710, %v2942
    %v2944 = vpop.f32.mrb[0].mxu0
    %v2945 = vpop.f32.mrb[0].mxu0
    %v2946 = vadd.f32 %v2710, %v2945
    %v2947 = vpop.f32.mrb[0].mxu0
    %2948 = vmatprep.mubr.bf16.mxu0 0
    %2949 = vmatmul.mubr.bf16.gmra.mrb[0].mxu0 %v2762
    %v2950 = vpop.f32.mrb[0].mxu0
    %v2951 = vadd.f32 %v2710, %v2950
    %v2952 = vpop.f32.mrb[0].mxu0
    %v2953 = vpop.f32.mrb[0].mxu0
    %v2954 = vadd.f32 %v2710, %v2953
    %v2955 = vpop.f32.mrb[0].mxu0
    %2956 = vmatprep.mubr.bf16.mxu0 0
    %2957 = vmatmul.mubr.bf16.gmra.mrb[0].mxu0 %v2765
    %v2958 = vpop.f32.mrb[0].mxu0
    %v2959 = vadd.f32 %v2710, %v2958
    %v2960 = vpop.f32.mrb[0].mxu0
    %v2961 = vpop.f32.mrb[0].mxu0
    %v2962 = vadd.f32 %v2710, %v2961
    %v2963 = vpop.f32.mrb[0].mxu0
    %2964 = vmatprep.mubr.bf16.mxu0 0
    %2965 = vmatmul.mubr.bf16.gmra.mrb[0].mxu0 %v2768
    %v2966 = vpop.f32.mrb[0].mxu0
    %v2967 = vadd.f32 %v2710, %v2966
    %v2968 = vpop.f32.mrb[0].mxu0
    %v2969 = vpop.f32.mrb[0].mxu0
    %v2970 = vadd.f32 %v2710, %v2969
    %v2971 = vpop.f32.mrb[0].mxu0
    %2972 = vmatprep.mubr.bf16.mxu0 0
    %2973 = vmatmul.mubr.bf16.gmra.mrb[0].mxu0 %v2771
    %v2974 = vpop.f32.mrb[0].mxu0
    %v2975 = vadd.f32 %v2710, %v2974
    %v2976 = vpop.f32.mrb[0].mxu0
    %v2977 = vpop.f32.mrb[0].mxu0
    %v2978 = vadd.f32 %v2710, %v2977
    %v2979 = vpop.f32.mrb[0].mxu0
    %2980 = vmatprep.mubr.bf16.mxu0 0
    %2981 = vmatmul.mubr.bf16.gmra.mrb[0].mxu0 %v2774
    %v2982 = vpop.f32.mrb[0].mxu0
    %v2983 = vadd.f32 %v2710, %v2982
    %v2984 = vpop.f32.mrb[0].mxu0
    %v2985 = vpop.f32.mrb[0].mxu0
    %v2986 = vadd.f32 %v2710, %v2985
    %v2987 = vpop.f32.mrb[0].mxu0
    %2988 = vmatprep.mubr.bf16.mxu0 0
    %2989 = vmatmul.mubr.bf16.gmra.mrb[0].mxu0 %v2777
    %v2990 = vpop.f32.mrb[0].mxu0
    %v2991 = vadd.f32 %v2710, %v2990
    %v2992 = vpop.f32.mrb[0].mxu0
    %v2993 = vpop.f32.mrb[0].mxu0
    %v2994 = vadd.f32 %v2710, %v2993
    %v2995 = vpop.f32.mrb[0].mxu0
    %2996 = vmatprep.mubr.bf16.mxu0 0
    %2997 = vmatmul.mubr.bf16.gmra.mrb[0].mxu0 %v2780
    %v2998 = vpop.f32.mrb[0].mxu0
    %v2999 = vadd.f32 %v2710, %v2998
    %v3000 = vpop.f32.mrb[0].mxu0
    %v3001 = vpop.f32.mrb[0].mxu0
    %v3002 = vadd.f32 %v2710, %v3001
    %v3003 = vpop.f32.mrb[0].mxu0
    %3004 = vmatprep.mubr.bf16.mxu0 0
    %3005 = vmatmul.mubr.bf16.gmra.mrb[0].mxu0 %v2783
    %v3006 = vpop.f32.mrb[0].mxu0
    %v3007 = vadd.f32 %v2710, %v3006
    %v3008 = vpop.f32.mrb[0].mxu0
    %v3009 = vpop.f32.mrb[0].mxu0
    %v3010 = vadd.f32 %v2710, %v3009
    %v3011 = vpop.f32.mrb[0].mxu0
    %3012 = vmatprep.mubr.bf16.mxu0 0
    %3013 = vmatmul.mubr.bf16.gmra.mrb[0].mxu0 %v2786
    %v3014 = vpop.f32.mrb[0].mxu0
    %v3015 = vadd.f32 %v2710, %v3014
    %v3016 = vpop.f32.mrb[0].mxu0
    %v3017 = vpop.f32.mrb[0].mxu0
    %v3018 = vadd.f32 %v2710, %v3017
    %v3019 = vpop.f32.mrb[0].mxu0
    %3020 = vmatprep.mubr.bf16.mxu0 0
    %3021 = vmatmul.mubr.bf16.gmra.mrb[0].mxu0 %v2789
    %v3022 = vpop.f32.mrb[0].mxu0
    %v3023 = vadd.f32 %v2710, %v3022
    %v3024 = vpop.f32.mrb[0].mxu0
    %v3025 = vpop.f32.mrb[0].mxu0
    %v3026 = vadd.f32 %v2710, %v3025
    %v3027 = vpop.f32.mrb[0].mxu0
    %3028 = vmatprep.mubr.bf16.mxu0 0
    %3029 = vmatmul.mubr.bf16.gmra.mrb[0].mxu0 %v2792
    %v3030 = vpop.f32.mrb[0].mxu0
    %v3031 = vadd.f32 %v2710, %v3030
    %v3032 = vpop.f32.mrb[0].mxu0
    %v3033 = vpop.f32.mrb[0].mxu0
    %v3034 = vadd.f32 %v2710, %v3033
    %v3035 = vpop.f32.mrb[0].mxu0
    %3036 = vmatprep.mubr.bf16.mxu0 0
    %3037 = vmatmul.mubr.bf16.gmra.mrb[0].mxu0 %v2795
    %v3038 = vpop.f32.mrb[0].mxu0
    %v3039 = vadd.f32 %v2710, %v3038
    %v3040 = vpop.f32.mrb[0].mxu0
    %v3041 = vpop.f32.mrb[0].mxu0
    %v3042 = vadd.f32 %v2710, %v3041
    %v3043 = vpop.f32.mrb[0].mxu0
    %3044 = vmatprep.mubr.bf16.mxu0 0
    %3045 = vmatmul.mubr.bf16.gmra.mrb[0].mxu0 %v2798
    %v3046 = vpop.f32.mrb[0].mxu0
    %v3047 = vadd.f32 %v2710, %v3046
    %v3048 = vpop.f32.mrb[0].mxu0
    %v3049 = vpop.f32.mrb[0].mxu0
    %v3050 = vadd.f32 %v2710, %v3049
    %v3051 = vpop.f32.mrb[0].mxu0
    %3052 = vmatprep.mubr.bf16.mxu0 0
    %3053 = vmatmul.mubr.bf16.gmra.mrb[0].mxu0 %v2801
    %v3054 = vpop.f32.mrb[0].mxu0
    %v3055 = vadd.f32 %v2710, %v3054
    %v3056 = vpop.f32.mrb[0].mxu0
    %v3057 = vpop.f32.mrb[0].mxu0
    %v3058 = vadd.f32 %v2710, %v3057
    %v3059 = vpop.f32.mrb[0].mxu0
    %3060 = vmatprep.mubr.bf16.mxu0 0
    %3061 = vmatmul.mubr.bf16.gmra.mrb[0].mxu0 %v2804
    %v3062 = vpop.f32.mrb[0].mxu0
    %v3063 = vadd.f32 %v2710, %v3062
    %v3064 = vpop.f32.mrb[0].mxu0
    %v3065 = vpop.f32.mrb[0].mxu0
    %v3066 = vadd.f32 %v2710, %v3065
    %v3067 = vpop.f32.mrb[0].mxu0
    %3068 = vmatprep.mubr.bf16.mxu0 0
    %3069 = vmatmul.mubr.bf16.gmra.mrb[0].mxu0 %v2807
    %v3070 = vpop.f32.mrb[0].mxu0
    %v3071 = vadd.f32 %v2710, %v3070
    %v3072 = vpop.f32.mrb[0].mxu0
    %v3073 = vpop.f32.mrb[0].mxu0
    %v3074 = vadd.f32 %v2710, %v3073
    %v3075 = vpop.f32.mrb[0].mxu0
    %3076 = vmatprep.mubr.bf16.mxu0 0
    %3077 = vmatmul.mubr.bf16.gmra.mrb[0].mxu0 %v2810
    %v3078 = vpop.f32.mrb[0].mxu0
    %v3079 = vadd.f32 %v2710, %v3078
    %v3080 = vpop.f32.mrb[0].mxu0
    %v3081 = vpop.f32.mrb[0].mxu0
    %v3082 = vadd.f32 %v2710, %v3081
    %v3083 = vpop.f32.mrb[0].mxu0
    %3084 = vmatprep.mubr.bf16.mxu0 0
    %3085 = vmatmul.mubr.bf16.gmra.mrb[0].mxu0 %v2813
    %v3086 = vpop.f32.mrb[0].mxu0
    %v3087 = vadd.f32 %v2710, %v3086
    %v3088 = vpop.f32.mrb[0].mxu0
    %v3089 = vpop.f32.mrb[0].mxu0
    %v3090 = vadd.f32 %v2710, %v3089
    %v3091 = vpop.f32.mrb[0].mxu0
    %3092 = vmatprep.mubr.bf16.mxu0 0
    %3093 = vmatmul.mubr.bf16.gmra.mrb[0].mxu0 %v2816
    %v3094 = vpop.f32.mrb[0].mxu0
    %v3095 = vadd.f32 %v2710, %v3094
    %v3096 = vpop.f32.mrb[0].mxu0
    %v3097 = vpop.f32.mrb[0].mxu0
    %v3098 = vadd.f32 %v2710, %v3097
    %v3099 = vpop.f32.mrb[0].mxu0
    %3100 = vmatprep.mubr.bf16.mxu0 0
    %3101 = vmatmul.mubr.bf16.gmra.mrb[0].mxu0 %v2819
    %v3102 = vpop.f32.mrb[0].mxu0
    %v3103 = vadd.f32 %v2710, %v3102
    %v3104 = vpop.f32.mrb[0].mxu0
    %v3105 = vpop.f32.mrb[0].mxu0
    %v3106 = vadd.f32 %v2710, %v3105
    %v3107 = vpop.f32.mrb[0].mxu0
    %3108 = vmatprep.mubr.bf16.mxu0 0
    %3109 = vmatmul.mubr.bf16.gmra.mrb[0].mxu0 %v2822
    %v3110 = vpop.f32.mrb[0].mxu0
    %v3111 = vadd.f32 %v2710, %v3110
    %v3112 = vpop.f32.mrb[0].mxu0
    %v3113 = vpop.f32.mrb[0].mxu0
    %v3114 = vadd.f32 %v2710, %v3113
    %v3115 = vpop.f32.mrb[0].mxu0
    %3116 = vdwg.mxu0
    %v3117 = vmax.f32 %v2863, 0.0
    %v3118 = vmax.f32 %v2866, 0.0
    %v3119 = vmax.f32 %v2871, 0.0
    %v3120 = vmax.f32 %v2874, 0.0
    %v3121 = vmax.f32 %v2879, 0.0
    %v3122 = vmax.f32 %v2882, 0.0
    %v3123 = vmax.f32 %v2887, 0.0
    %v3124 = vmax.f32 %v2890, 0.0
    %v3125 = vmax.f32 %v2895, 0.0
    %v3126 = vmax.f32 %v2898, 0.0
    %v3127 = vmax.f32 %v2903, 0.0
    %v3128 = vmax.f32 %v2906, 0.0
    %v3129 = vmax.f32 %v2911, 0.0
    %v3130 = vmax.f32 %v2914, 0.0
    %v3131 = vmax.f32 %v2919, 0.0
    %v3132 = vmax.f32 %v2922, 0.0
    %v3133 = vmax.f32 %v2927, 0.0
    %v3134 = vmax.f32 %v2930, 0.0
    %v3135 = vmax.f32 %v2935, 0.0
    %v3136 = vmax.f32 %v2938, 0.0
    %v3137 = vmax.f32 %v2943, 0.0
    %v3138 = vmax.f32 %v2946, 0.0
    %v3139 = vmax.f32 %v2951, 0.0
    %v3140 = vmax.f32 %v2954, 0.0
    %v3141 = vmax.f32 %v2959, 0.0
    %v3142 = vmax.f32 %v2962, 0.0
    %v3143 = vmax.f32 %v2967, 0.0
    %v3144 = vmax.f32 %v2970, 0.0
    %v3145 = vmax.f32 %v2975, 0.0
    %v3146 = vmax.f32 %v2978, 0.0
    %v3147 = vmax.f32 %v2983, 0.0
    %v3148 = vmax.f32 %v2986, 0.0
    %v3149 = vmax.f32 %v2991, 0.0
    %v3150 = vmax.f32 %v2994, 0.0
    %v3151 = vmax.f32 %v2999, 0.0
    %v3152 = vmax.f32 %v3002, 0.0
    %v3153 = vmax.f32 %v3007, 0.0
    %v3154 = vmax.f32 %v3010, 0.0
    %v3155 = vmax.f32 %v3015, 0.0
    %v3156 = vmax.f32 %v3018, 0.0
    %v3157 = vmax.f32 %v3023, 0.0
    %v3158 = vmax.f32 %v3026, 0.0
    %v3159 = vmax.f32 %v3031, 0.0
    %v3160 = vmax.f32 %v3034, 0.0
    %v3161 = vmax.f32 %v3039, 0.0
    %v3162 = vmax.f32 %v3042, 0.0
    %v3163 = vmax.f32 %v3047, 0.0
    %v3164 = vmax.f32 %v3050, 0.0
    %v3165 = vmax.f32 %v3055, 0.0
    %v3166 = vmax.f32 %v3058, 0.0
    %v3167 = vmax.f32 %v3063, 0.0
    %v3168 = vmax.f32 %v3066, 0.0
    %v3169 = vmax.f32 %v3071, 0.0
    %v3170 = vmax.f32 %v3074, 0.0
    %v3171 = vmax.f32 %v3079, 0.0
    %v3172 = vmax.f32 %v3082, 0.0
    %v3173 = vmax.f32 %v3087, 0.0
    %v3174 = vmax.f32 %v3090, 0.0
    %v3175 = vmax.f32 %v3095, 0.0
    %v3176 = vmax.f32 %v3098, 0.0
    %v3177 = vmax.f32 %v3103, 0.0
    %v3178 = vmax.f32 %v3106, 0.0
    %v3179 = vmax.f32 %v3111, 0.0
    %v3180 = vmax.f32 %v3114, 0.0
    %3181 = vst.msk [vmem:[#allocation2] sm:$0xff] %vm2213, 0.0
    %3182 = vst.msk [vmem:[#allocation2 + $0x8] sm:$0xff] %vm2213, 0.0
    %vm3183 = vcmask 58368
    %3184 = vst.msk [vmem:[#allocation2 + $0x10] sm:$0x3] %vm3183, 0.0
    %3185 = vst.msk [vmem:[#allocation2 + $0x1b0] sm:$0xff] %vm2213, 0.0
    %3186 = vst.msk [vmem:[#allocation2 + $0x1b8] sm:$0xff] %vm2213, 0.0
    %3187 = vst.msk [vmem:[#allocation2 + $0x1c0] sm:$0x3] %vm3183, 0.0
    %s3188 = scalar_lea.vmem [#allocation2], 408
    %3189 = vst.msk [vmem:[%s3188] sm:$0xff] %vm2213, 0.0
    %3190 = vst.msk [vmem:[%s3188 + $0x8] sm:$0xff] %vm2213, 0.0
    %3191 = vst.msk [vmem:[%s3188 + $0x10] sm:$0x3] %vm3183, 0.0
    %3192 = vst.msk [vmem:[%s3188 + $0x1b0] sm:$0xff] %vm2213, 0.0
    %3193 = vst.msk [vmem:[%s3188 + $0x1b8] sm:$0xff] %vm2213, 0.0
    %3194 = vst.msk [vmem:[%s3188 + $0x1c0] sm:$0x3] %vm3183, 0.0
    %vm3195 = vcmask 57344
    %3196 = vst.msk [vmem:[#allocation2] sm:$0x1] %vm3195, 0.0
    %3197 = vst.msk [vmem:[#allocation2 + $0x18] sm:$0x1] %vm3195, 0.0
    %3198 = vst.msk [vmem:[#allocation2 + $0x30] sm:$0x1] %vm3195, 0.0
    %3199 = vst.msk [vmem:[#allocation2 + $0x48] sm:$0x1] %vm3195, 0.0
    %3200 = vst.msk [vmem:[#allocation2 + $0x60] sm:$0x1] %vm3195, 0.0
    %3201 = vst.msk [vmem:[#allocation2 + $0x78] sm:$0x1] %vm3195, 0.0
    %3202 = vst.msk [vmem:[#allocation2 + $0x90] sm:$0x1] %vm3195, 0.0
    %3203 = vst.msk [vmem:[#allocation2 + $0xa8] sm:$0x1] %vm3195, 0.0
    %3204 = vst.msk [vmem:[#allocation2 + $0xc0] sm:$0x1] %vm3195, 0.0
    %3205 = vst.msk [vmem:[#allocation2 + $0xd8] sm:$0x1] %vm3195, 0.0
    %3206 = vst.msk [vmem:[#allocation2 + $0xf0] sm:$0x1] %vm3195, 0.0
    %3207 = vst.msk [vmem:[#allocation2 + $0x108] sm:$0x1] %vm3195, 0.0
    %3208 = vst.msk [vmem:[#allocation2 + $0x120] sm:$0x1] %vm3195, 0.0
    %3209 = vst.msk [vmem:[#allocation2 + $0x138] sm:$0x1] %vm3195, 0.0
    %3210 = vst.msk [vmem:[#allocation2 + $0x150] sm:$0x1] %vm3195, 0.0
    %3211 = vst.msk [vmem:[#allocation2 + $0x168] sm:$0x1] %vm3195, 0.0
    %3212 = vst.msk [vmem:[#allocation2 + $0x180] sm:$0x1] %vm3195, 0.0
    %3213 = vst.msk [vmem:[#allocation2 + $0x198] sm:$0x1] %vm3195, 0.0
    %3214 = vst.msk [vmem:[#allocation2 + $0x1b0] sm:$0x1] %vm3195, 0.0
    %3215 = vst.msk [vmem:[#allocation2 + $0x1c8] sm:$0x1] %vm3195, 0.0
    %3216 = vst.msk [vmem:[#allocation2 + $0x1e0] sm:$0x1] %vm3195, 0.0
    %3217 = vst.msk [vmem:[#allocation2 + $0x1f8] sm:$0x1] %vm3195, 0.0
    %3218 = vst.msk [vmem:[#allocation2 + $0x210] sm:$0x1] %vm3195, 0.0
    %3219 = vst.msk [vmem:[#allocation2 + $0x228] sm:$0x1] %vm3195, 0.0
    %3220 = vst.msk [vmem:[#allocation2 + $0x240] sm:$0x1] %vm3195, 0.0
    %3221 = vst.msk [vmem:[#allocation2 + $0x258] sm:$0x1] %vm3195, 0.0
    %3222 = vst.msk [vmem:[#allocation2 + $0x270] sm:$0x1] %vm3195, 0.0
    %3223 = vst.msk [vmem:[#allocation2 + $0x288] sm:$0x1] %vm3195, 0.0
    %3224 = vst.msk [vmem:[#allocation2 + $0x2a0] sm:$0x1] %vm3195, 0.0
    %3225 = vst.msk [vmem:[#allocation2 + $0x2b8] sm:$0x1] %vm3195, 0.0
    %3226 = vst.msk [vmem:[#allocation2 + $0x2d0] sm:$0x1] %vm3195, 0.0
    %3227 = vst.msk [vmem:[#allocation2 + $0x2e8] sm:$0x1] %vm3195, 0.0
    %3228 = vst.msk [vmem:[#allocation2 + $0x300] sm:$0x1] %vm3195, 0.0
    %3229 = vst.msk [vmem:[#allocation2 + $0x318] sm:$0x1] %vm3195, 0.0
    %3230 = vst.msk [vmem:[#allocation2 + $0x330] sm:$0x1] %vm3195, 0.0
    %3231 = vst.msk [vmem:[#allocation2 + $0x348] sm:$0x1] %vm3195, 0.0
    %3232 = vst.msk [vmem:[#allocation2 + $0x11] sm:$0x1] %vm3195, 0.0
    %3233 = vst.msk [vmem:[#allocation2 + $0x29] sm:$0x1] %vm3195, 0.0
    %3234 = vst.msk [vmem:[#allocation2 + $0x41] sm:$0x1] %vm3195, 0.0
    %3235 = vst.msk [vmem:[#allocation2 + $0x59] sm:$0x1] %vm3195, 0.0
    %3236 = vst.msk [vmem:[#allocation2 + $0x71] sm:$0x1] %vm3195, 0.0
    %3237 = vst.msk [vmem:[#allocation2 + $0x89] sm:$0x1] %vm3195, 0.0
    %3238 = vst.msk [vmem:[#allocation2 + $0xa1] sm:$0x1] %vm3195, 0.0
    %3239 = vst.msk [vmem:[#allocation2 + $0xb9] sm:$0x1] %vm3195, 0.0
    %3240 = vst.msk [vmem:[#allocation2 + $0xd1] sm:$0x1] %vm3195, 0.0
    %3241 = vst.msk [vmem:[#allocation2 + $0xe9] sm:$0x1] %vm3195, 0.0
    %3242 = vst.msk [vmem:[#allocation2 + $0x101] sm:$0x1] %vm3195, 0.0
    %3243 = vst.msk [vmem:[#allocation2 + $0x119] sm:$0x1] %vm3195, 0.0
    %3244 = vst.msk [vmem:[#allocation2 + $0x131] sm:$0x1] %vm3195, 0.0
    %3245 = vst.msk [vmem:[#allocation2 + $0x149] sm:$0x1] %vm3195, 0.0
    %3246 = vst.msk [vmem:[#allocation2 + $0x161] sm:$0x1] %vm3195, 0.0
    %3247 = vst.msk [vmem:[#allocation2 + $0x179] sm:$0x1] %vm3195, 0.0
    %3248 = vst.msk [vmem:[#allocation2 + $0x191] sm:$0x1] %vm3195, 0.0
    %3249 = vst.msk [vmem:[#allocation2 + $0x1a9] sm:$0x1] %vm3195, 0.0
    %3250 = vst.msk [vmem:[#allocation2 + $0x1c1] sm:$0x1] %vm3195, 0.0
    %3251 = vst.msk [vmem:[#allocation2 + $0x1d9] sm:$0x1] %vm3195, 0.0
    %3252 = vst.msk [vmem:[#allocation2 + $0x1f1] sm:$0x1] %vm3195, 0.0
    %3253 = vst.msk [vmem:[#allocation2 + $0x209] sm:$0x1] %vm3195, 0.0
    %3254 = vst.msk [vmem:[#allocation2 + $0x221] sm:$0x1] %vm3195, 0.0
    %3255 = vst.msk [vmem:[#allocation2 + $0x239] sm:$0x1] %vm3195, 0.0
    %3256 = vst.msk [vmem:[#allocation2 + $0x251] sm:$0x1] %vm3195, 0.0
    %3257 = vst.msk [vmem:[#allocation2 + $0x269] sm:$0x1] %vm3195, 0.0
    %3258 = vst.msk [vmem:[#allocation2 + $0x281] sm:$0x1] %vm3195, 0.0
    %3259 = vst.msk [vmem:[#allocation2 + $0x299] sm:$0x1] %vm3195, 0.0
    %3260 = vst.msk [vmem:[#allocation2 + $0x2b1] sm:$0x1] %vm3195, 0.0
    %3261 = vst.msk [vmem:[#allocation2 + $0x2c9] sm:$0x1] %vm3195, 0.0
    %3262 = vst.msk [vmem:[#allocation2 + $0x2e1] sm:$0x1] %vm3195, 0.0
    %3263 = vst.msk [vmem:[#allocation2 + $0x2f9] sm:$0x1] %vm3195, 0.0
    %3264 = vst.msk [vmem:[#allocation2 + $0x311] sm:$0x1] %vm3195, 0.0
    %3265 = vst.msk [vmem:[#allocation2 + $0x329] sm:$0x1] %vm3195, 0.0
    %3266 = vst.msk [vmem:[#allocation2 + $0x341] sm:$0x1] %vm3195, 0.0
    %3267 = vst.msk [vmem:[#allocation2 + $0x359] sm:$0x1] %vm3195, 0.0
    %s3268 = scalar_lea.vmem [#allocation2], 24
    %3269 = vst.msk [vmem:[%s3268 + $0x1] sm:$0xff] %vm2213, %v3117
    %3270 = vst.msk [vmem:[%s3268 + $0x9] sm:$0xff] %vm2213, %v3118
    %3271 = vst.msk [vmem:[%s3268 + $0x19] sm:$0xff] %vm2213, %v3119
    %3272 = vst.msk [vmem:[%s3268 + $0x21] sm:$0xff] %vm2213, %v3120
    %3273 = vst.msk [vmem:[%s3268 + $0x31] sm:$0xff] %vm2213, %v3121
    %3274 = vst.msk [vmem:[%s3268 + $0x39] sm:$0xff] %vm2213, %v3122
    %3275 = vst.msk [vmem:[%s3268 + $0x49] sm:$0xff] %vm2213, %v3123
    %3276 = vst.msk [vmem:[%s3268 + $0x51] sm:$0xff] %vm2213, %v3124
    %3277 = vst.msk [vmem:[%s3268 + $0x61] sm:$0xff] %vm2213, %v3125
    %3278 = vst.msk [vmem:[%s3268 + $0x69] sm:$0xff] %vm2213, %v3126
    %3279 = vst.msk [vmem:[%s3268 + $0x79] sm:$0xff] %vm2213, %v3127
    %3280 = vst.msk [vmem:[%s3268 + $0x81] sm:$0xff] %vm2213, %v3128
    %3281 = vst.msk [vmem:[%s3268 + $0x91] sm:$0xff] %vm2213, %v3129
    %3282 = vst.msk [vmem:[%s3268 + $0x99] sm:$0xff] %vm2213, %v3130
    %3283 = vst.msk [vmem:[%s3268 + $0xa9] sm:$0xff] %vm2213, %v3131
    %3284 = vst.msk [vmem:[%s3268 + $0xb1] sm:$0xff] %vm2213, %v3132
    %3285 = vst.msk [vmem:[%s3268 + $0xc1] sm:$0xff] %vm2213, %v3133
    %3286 = vst.msk [vmem:[%s3268 + $0xc9] sm:$0xff] %vm2213, %v3134
    %3287 = vst.msk [vmem:[%s3268 + $0xd9] sm:$0xff] %vm2213, %v3135
    %3288 = vst.msk [vmem:[%s3268 + $0xe1] sm:$0xff] %vm2213, %v3136
    %3289 = vst.msk [vmem:[%s3268 + $0xf1] sm:$0xff] %vm2213, %v3137
    %3290 = vst.msk [vmem:[%s3268 + $0xf9] sm:$0xff] %vm2213, %v3138
    %3291 = vst.msk [vmem:[%s3268 + $0x109] sm:$0xff] %vm2213, %v3139
    %3292 = vst.msk [vmem:[%s3268 + $0x111] sm:$0xff] %vm2213, %v3140
    %3293 = vst.msk [vmem:[%s3268 + $0x121] sm:$0xff] %vm2213, %v3141
    %3294 = vst.msk [vmem:[%s3268 + $0x129] sm:$0xff] %vm2213, %v3142
    %3295 = vst.msk [vmem:[%s3268 + $0x139] sm:$0xff] %vm2213, %v3143
    %3296 = vst.msk [vmem:[%s3268 + $0x141] sm:$0xff] %vm2213, %v3144
    %3297 = vst.msk [vmem:[%s3268 + $0x151] sm:$0xff] %vm2213, %v3145
    %3298 = vst.msk [vmem:[%s3268 + $0x159] sm:$0xff] %vm2213, %v3146
    %3299 = vst.msk [vmem:[%s3268 + $0x169] sm:$0xff] %vm2213, %v3147
    %3300 = vst.msk [vmem:[%s3268 + $0x171] sm:$0xff] %vm2213, %v3148
    %3301 = vst.msk [vmem:[%s3268 + $0x1b1] sm:$0xff] %vm2213, %v3149
    %3302 = vst.msk [vmem:[%s3268 + $0x1b9] sm:$0xff] %vm2213, %v3150
    %3303 = vst.msk [vmem:[%s3268 + $0x1c9] sm:$0xff] %vm2213, %v3151
    %3304 = vst.msk [vmem:[%s3268 + $0x1d1] sm:$0xff] %vm2213, %v3152
    %3305 = vst.msk [vmem:[%s3268 + $0x1e1] sm:$0xff] %vm2213, %v3153
    %3306 = vst.msk [vmem:[%s3268 + $0x1e9] sm:$0xff] %vm2213, %v3154
    %3307 = vst.msk [vmem:[%s3268 + $0x1f9] sm:$0xff] %vm2213, %v3155
    %3308 = vst.msk [vmem:[%s3268 + $0x201] sm:$0xff] %vm2213, %v3156
    %3309 = vst.msk [vmem:[%s3268 + $0x211] sm:$0xff] %vm2213, %v3157
    %3310 = vst.msk [vmem:[%s3268 + $0x219] sm:$0xff] %vm2213, %v3158
    %3311 = vst.msk [vmem:[%s3268 + $0x229] sm:$0xff] %vm2213, %v3159
    %3312 = vst.msk [vmem:[%s3268 + $0x231] sm:$0xff] %vm2213, %v3160
    %3313 = vst.msk [vmem:[%s3268 + $0x241] sm:$0xff] %vm2213, %v3161
    %3314 = vst.msk [vmem:[%s3268 + $0x249] sm:$0xff] %vm2213, %v3162
    %3315 = vst.msk [vmem:[%s3268 + $0x259] sm:$0xff] %vm2213, %v3163
    %3316 = vst.msk [vmem:[%s3268 + $0x261] sm:$0xff] %vm2213, %v3164
    %3317 = vst.msk [vmem:[%s3268 + $0x271] sm:$0xff] %vm2213, %v3165
    %3318 = vst.msk [vmem:[%s3268 + $0x279] sm:$0xff] %vm2213, %v3166
    %3319 = vst.msk [vmem:[%s3268 + $0x289] sm:$0xff] %vm2213, %v3167
    %3320 = vst.msk [vmem:[%s3268 + $0x291] sm:$0xff] %vm2213, %v3168
    %3321 = vst.msk [vmem:[%s3268 + $0x2a1] sm:$0xff] %vm2213, %v3169
    %3322 = vst.msk [vmem:[%s3268 + $0x2a9] sm:$0xff] %vm2213, %v3170
    %3323 = vst.msk [vmem:[%s3268 + $0x2b9] sm:$0xff] %vm2213, %v3171
    %3324 = vst.msk [vmem:[%s3268 + $0x2c1] sm:$0xff] %vm2213, %v3172
    %3325 = vst.msk [vmem:[%s3268 + $0x2d1] sm:$0xff] %vm2213, %v3173
    %3326 = vst.msk [vmem:[%s3268 + $0x2d9] sm:$0xff] %vm2213, %v3174
    %3327 = vst.msk [vmem:[%s3268 + $0x2e9] sm:$0xff] %vm2213, %v3175
    %3328 = vst.msk [vmem:[%s3268 + $0x2f1] sm:$0xff] %vm2213, %v3176
    %3329 = vst.msk [vmem:[%s3268 + $0x301] sm:$0xff] %vm2213, %v3177
    %3330 = vst.msk [vmem:[%s3268 + $0x309] sm:$0xff] %vm2213, %v3178
    %3331 = vst.msk [vmem:[%s3268 + $0x319] sm:$0xff] %vm2213, %v3179
    %3332 = vst.msk [vmem:[%s3268 + $0x321] sm:$0xff] %vm2213, %v3180
    %v3333 = vld [vmem:[#allocation2] sm:$0xff]
    %v3334 = vld [vmem:[#allocation2 + $0x8] sm:$0xff]
    %v3335 = vld [vmem:[#allocation2 + $0x10] sm:$0x3]
    %v3336 = vld [vmem:[#allocation2 + $0x18] sm:$0xff]
    %v3337 = vld [vmem:[#allocation2 + $0x20] sm:$0xff]
    %v3338 = vld [vmem:[#allocation2 + $0x28] sm:$0x3]
    %v3339 = vld [vmem:[#allocation2 + $0x30] sm:$0xff]
    %v3340 = vld [vmem:[#allocation2 + $0x38] sm:$0xff]
    %v3341 = vld [vmem:[#allocation2 + $0x40] sm:$0x3]
    %v3342 = vld [vmem:[#allocation2 + $0x48] sm:$0xff]
    %v3343 = vld [vmem:[#allocation2 + $0x50] sm:$0xff]
    %v3344 = vld [vmem:[#allocation2 + $0x58] sm:$0x3]
    %v3345 = vld [vmem:[#allocation2 + $0x60] sm:$0xff]
    %v3346 = vld [vmem:[#allocation2 + $0x68] sm:$0xff]
    %v3347 = vld [vmem:[#allocation2 + $0x70] sm:$0x3]
    %v3348 = vld [vmem:[#allocation2 + $0x78] sm:$0xff]
    %v3349 = vld [vmem:[#allocation2 + $0x80] sm:$0xff]
    %v3350 = vld [vmem:[#allocation2 + $0x88] sm:$0x3]
    %v3351 = vld [vmem:[#allocation2 + $0x90] sm:$0xff]
    %v3352 = vld [vmem:[#allocation2 + $0x98] sm:$0xff]
    %v3353 = vld [vmem:[#allocation2 + $0xa0] sm:$0x3]
    %v3354 = vld [vmem:[#allocation2 + $0xa8] sm:$0xff]
    %v3355 = vld [vmem:[#allocation2 + $0xb0] sm:$0xff]
    %v3356 = vld [vmem:[#allocation2 + $0xb8] sm:$0x3]
    %v3357 = vld [vmem:[#allocation2 + $0xc0] sm:$0xff]
    %v3358 = vld [vmem:[#allocation2 + $0xc8] sm:$0xff]
    %v3359 = vld [vmem:[#allocation2 + $0xd0] sm:$0x3]
    %v3360 = vld [vmem:[#allocation2 + $0xd8] sm:$0xff]
    %v3361 = vld [vmem:[#allocation2 + $0xe0] sm:$0xff]
    %v3362 = vld [vmem:[#allocation2 + $0xe8] sm:$0x3]
    %v3363 = vld [vmem:[#allocation2 + $0xf0] sm:$0xff]
    %v3364 = vld [vmem:[#allocation2 + $0xf8] sm:$0xff]
    %v3365 = vld [vmem:[#allocation2 + $0x100] sm:$0x3]
    %v3366 = vld [vmem:[#allocation2 + $0x108] sm:$0xff]
    %v3367 = vld [vmem:[#allocation2 + $0x110] sm:$0xff]
    %v3368 = vld [vmem:[#allocation2 + $0x118] sm:$0x3]
    %v3369 = vld [vmem:[#allocation2 + $0x120] sm:$0xff]
    %v3370 = vld [vmem:[#allocation2 + $0x128] sm:$0xff]
    %v3371 = vld [vmem:[#allocation2 + $0x130] sm:$0x3]
    %v3372 = vld [vmem:[#allocation2 + $0x138] sm:$0xff]
    %v3373 = vld [vmem:[#allocation2 + $0x140] sm:$0xff]
    %v3374 = vld [vmem:[#allocation2 + $0x148] sm:$0x3]
    %v3375 = vld [vmem:[#allocation2 + $0x150] sm:$0xff]
    %v3376 = vld [vmem:[#allocation2 + $0x158] sm:$0xff]
    %v3377 = vld [vmem:[#allocation2 + $0x160] sm:$0x3]
    %v3378 = vld [vmem:[#allocation2 + $0x168] sm:$0xff]
    %v3379 = vld [vmem:[#allocation2 + $0x170] sm:$0xff]
    %v3380 = vld [vmem:[#allocation2 + $0x178] sm:$0x3]
    %v3381 = vld [vmem:[#allocation2 + $0x180] sm:$0xff]
    %v3382 = vld [vmem:[#allocation2 + $0x188] sm:$0xff]
    %v3383 = vld [vmem:[#allocation2 + $0x190] sm:$0x3]
    %v3384 = vld [vmem:[#allocation2 + $0x198] sm:$0xff]
    %v3385 = vld [vmem:[#allocation2 + $0x1a0] sm:$0xff]
    %v3386 = vld [vmem:[#allocation2 + $0x1a8] sm:$0x3]
    %v3387 = vld [vmem:[#allocation2 + $0x1b0] sm:$0xff]
    %v3388 = vld [vmem:[#allocation2 + $0x1b8] sm:$0xff]
    %v3389 = vld [vmem:[#allocation2 + $0x1c0] sm:$0x3]
    %v3390 = vld [vmem:[#allocation2 + $0x1c8] sm:$0xff]
    %v3391 = vld [vmem:[#allocation2 + $0x1d0] sm:$0xff]
    %v3392 = vld [vmem:[#allocation2 + $0x1d8] sm:$0x3]
    %v3393 = vld [vmem:[#allocation2 + $0x1e0] sm:$0xff]
    %v3394 = vld [vmem:[#allocation2 + $0x1e8] sm:$0xff]
    %v3395 = vld [vmem:[#allocation2 + $0x1f0] sm:$0x3]
    %v3396 = vld [vmem:[#allocation2 + $0x1f8] sm:$0xff]
    %v3397 = vld [vmem:[#allocation2 + $0x200] sm:$0xff]
    %v3398 = vld [vmem:[#allocation2 + $0x208] sm:$0x3]
    %v3399 = vld [vmem:[#allocation2 + $0x210] sm:$0xff]
    %v3400 = vld [vmem:[#allocation2 + $0x218] sm:$0xff]
    %v3401 = vld [vmem:[#allocation2 + $0x220] sm:$0x3]
    %v3402 = vld [vmem:[#allocation2 + $0x228] sm:$0xff]
    %v3403 = vld [vmem:[#allocation2 + $0x230] sm:$0xff]
    %v3404 = vld [vmem:[#allocation2 + $0x238] sm:$0x3]
    %v3405 = vld [vmem:[#allocation2 + $0x240] sm:$0xff]
    %v3406 = vld [vmem:[#allocation2 + $0x248] sm:$0xff]
    %v3407 = vld [vmem:[#allocation2 + $0x250] sm:$0x3]
    %v3408 = vld [vmem:[#allocation2 + $0x258] sm:$0xff]
    %v3409 = vld [vmem:[#allocation2 + $0x260] sm:$0xff]
    %v3410 = vld [vmem:[#allocation2 + $0x268] sm:$0x3]
    %v3411 = vld [vmem:[#allocation2 + $0x270] sm:$0xff]
    %v3412 = vld [vmem:[#allocation2 + $0x278] sm:$0xff]
    %v3413 = vld [vmem:[#allocation2 + $0x280] sm:$0x3]
    %v3414 = vld [vmem:[#allocation2 + $0x288] sm:$0xff]
    %v3415 = vld [vmem:[#allocation2 + $0x290] sm:$0xff]
    %v3416 = vld [vmem:[#allocation2 + $0x298] sm:$0x3]
    %v3417 = vld [vmem:[#allocation2 + $0x2a0] sm:$0xff]
    %v3418 = vld [vmem:[#allocation2 + $0x2a8] sm:$0xff]
    %v3419 = vld [vmem:[#allocation2 + $0x2b0] sm:$0x3]
    %v3420 = vld [vmem:[#allocation2 + $0x2b8] sm:$0xff]
    %v3421 = vld [vmem:[#allocation2 + $0x2c0] sm:$0xff]
    %v3422 = vld [vmem:[#allocation2 + $0x2c8] sm:$0x3]
    %v3423 = vld [vmem:[#allocation2 + $0x2d0] sm:$0xff]
    %v3424 = vld [vmem:[#allocation2 + $0x2d8] sm:$0xff]
    %v3425 = vld [vmem:[#allocation2 + $0x2e0] sm:$0x3]
    %v3426 = vld [vmem:[#allocation2 + $0x2e8] sm:$0xff]
    %v3427 = vld [vmem:[#allocation2 + $0x2f0] sm:$0xff]
    %v3428 = vld [vmem:[#allocation2 + $0x2f8] sm:$0x3]
    %v3429 = vld [vmem:[#allocation2 + $0x300] sm:$0xff]
    %v3430 = vld [vmem:[#allocation2 + $0x308] sm:$0xff]
    %v3431 = vld [vmem:[#allocation2 + $0x310] sm:$0x3]
    %v3432 = vld [vmem:[#allocation2 + $0x318] sm:$0xff]
    %v3433 = vld [vmem:[#allocation2 + $0x320] sm:$0xff]
    %v3434 = vld [vmem:[#allocation2 + $0x328] sm:$0x3]
    %v3435 = vld [vmem:[#allocation2 + $0x330] sm:$0xff]
    %v3436 = vld [vmem:[#allocation2 + $0x338] sm:$0xff]
    %v3437 = vld [vmem:[#allocation2 + $0x340] sm:$0x3]
    %v3438 = vld [vmem:[#allocation2 + $0x348] sm:$0xff]
    %v3439 = vld [vmem:[#allocation2 + $0x350] sm:$0xff]
    %v3440 = vld [vmem:[#allocation2 + $0x358] sm:$0x3]
    %v3537 = vrot.slane %v3333, 1
    %v3538 = vrot.slane %v3334, 1
    %v3539 = vsel %vm238, %v3537, %v3538
    %v3540 = vrot.slane %v3335, 1
    %v3541 = vsel %vm238, %v3538, %v3540
    %v3542 = vrot.slane %v3336, 1
    %v3543 = vrot.slane %v3337, 1
    %v3544 = vsel %vm238, %v3542, %v3543
    %v3545 = vrot.slane %v3338, 1
    %v3546 = vsel %vm238, %v3543, %v3545
    %v3547 = vrot.slane %v3339, 1
    %v3548 = vrot.slane %v3340, 1
    %v3549 = vsel %vm238, %v3547, %v3548
    %v3550 = vrot.slane %v3341, 1
    %v3551 = vsel %vm238, %v3548, %v3550
    %v3552 = vrot.slane %v3342, 1
    %v3553 = vrot.slane %v3343, 1
    %v3554 = vsel %vm238, %v3552, %v3553
    %v3555 = vrot.slane %v3344, 1
    %v3556 = vsel %vm238, %v3553, %v3555
    %v3557 = vrot.slane %v3345, 1
    %v3558 = vrot.slane %v3346, 1
    %v3559 = vsel %vm238, %v3557, %v3558
    %v3560 = vrot.slane %v3347, 1
    %v3561 = vsel %vm238, %v3558, %v3560
    %v3562 = vrot.slane %v3348, 1
    %v3563 = vrot.slane %v3349, 1
    %v3564 = vsel %vm238, %v3562, %v3563
    %v3565 = vrot.slane %v3350, 1
    %v3566 = vsel %vm238, %v3563, %v3565
    %v3567 = vrot.slane %v3351, 1
    %v3568 = vrot.slane %v3352, 1
    %v3569 = vsel %vm238, %v3567, %v3568
    %v3570 = vrot.slane %v3353, 1
    %v3571 = vsel %vm238, %v3568, %v3570
    %v3572 = vrot.slane %v3354, 1
    %v3573 = vrot.slane %v3355, 1
    %v3574 = vsel %vm238, %v3572, %v3573
    %v3575 = vrot.slane %v3356, 1
    %v3576 = vsel %vm238, %v3573, %v3575
    %v3577 = vrot.slane %v3357, 1
    %v3578 = vrot.slane %v3358, 1
    %v3579 = vsel %vm238, %v3577, %v3578
    %v3580 = vrot.slane %v3359, 1
    %v3581 = vsel %vm238, %v3578, %v3580
    %v3582 = vrot.slane %v3360, 1
    %v3583 = vrot.slane %v3361, 1
    %v3584 = vsel %vm238, %v3582, %v3583
    %v3585 = vrot.slane %v3362, 1
    %v3586 = vsel %vm238, %v3583, %v3585
    %v3587 = vrot.slane %v3363, 1
    %v3588 = vrot.slane %v3364, 1
    %v3589 = vsel %vm238, %v3587, %v3588
    %v3590 = vrot.slane %v3365, 1
    %v3591 = vsel %vm238, %v3588, %v3590
    %v3592 = vrot.slane %v3366, 1
    %v3593 = vrot.slane %v3367, 1
    %v3594 = vsel %vm238, %v3592, %v3593
    %v3595 = vrot.slane %v3368, 1
    %v3596 = vsel %vm238, %v3593, %v3595
    %v3597 = vrot.slane %v3369, 1
    %v3598 = vrot.slane %v3370, 1
    %v3599 = vsel %vm238, %v3597, %v3598
    %v3600 = vrot.slane %v3371, 1
    %v3601 = vsel %vm238, %v3598, %v3600
    %v3602 = vrot.slane %v3372, 1
    %v3603 = vrot.slane %v3373, 1
    %v3604 = vsel %vm238, %v3602, %v3603
    %v3605 = vrot.slane %v3374, 1
    %v3606 = vsel %vm238, %v3603, %v3605
    %v3607 = vrot.slane %v3375, 1
    %v3608 = vrot.slane %v3376, 1
    %v3609 = vsel %vm238, %v3607, %v3608
    %v3610 = vrot.slane %v3377, 1
    %v3611 = vsel %vm238, %v3608, %v3610
    %v3612 = vrot.slane %v3378, 1
    %v3613 = vrot.slane %v3379, 1
    %v3614 = vsel %vm238, %v3612, %v3613
    %v3615 = vrot.slane %v3380, 1
    %v3616 = vsel %vm238, %v3613, %v3615
    %v3617 = vrot.slane %v3387, 1
    %v3618 = vrot.slane %v3388, 1
    %v3619 = vsel %vm238, %v3617, %v3618
    %v3620 = vrot.slane %v3389, 1
    %v3621 = vsel %vm238, %v3618, %v3620
    %v3622 = vrot.slane %v3390, 1
    %v3623 = vrot.slane %v3391, 1
    %v3624 = vsel %vm238, %v3622, %v3623
    %v3625 = vrot.slane %v3392, 1
    %v3626 = vsel %vm238, %v3623, %v3625
    %v3627 = vrot.slane %v3393, 1
    %v3628 = vrot.slane %v3394, 1
    %v3629 = vsel %vm238, %v3627, %v3628
    %v3630 = vrot.slane %v3395, 1
    %v3631 = vsel %vm238, %v3628, %v3630
    %v3632 = vrot.slane %v3396, 1
    %v3633 = vrot.slane %v3397, 1
    %v3634 = vsel %vm238, %v3632, %v3633
    %v3635 = vrot.slane %v3398, 1
    %v3636 = vsel %vm238, %v3633, %v3635
    %v3637 = vrot.slane %v3399, 1
    %v3638 = vrot.slane %v3400, 1
    %v3639 = vsel %vm238, %v3637, %v3638
    %v3640 = vrot.slane %v3401, 1
    %v3641 = vsel %vm238, %v3638, %v3640
    %v3642 = vrot.slane %v3402, 1
    %v3643 = vrot.slane %v3403, 1
    %v3644 = vsel %vm238, %v3642, %v3643
    %v3645 = vrot.slane %v3404, 1
    %v3646 = vsel %vm238, %v3643, %v3645
    %v3647 = vrot.slane %v3405, 1
    %v3648 = vrot.slane %v3406, 1
    %v3649 = vsel %vm238, %v3647, %v3648
    %v3650 = vrot.slane %v3407, 1
    %v3651 = vsel %vm238, %v3648, %v3650
    %v3652 = vrot.slane %v3408, 1
    %v3653 = vrot.slane %v3409, 1
    %v3654 = vsel %vm238, %v3652, %v3653
    %v3655 = vrot.slane %v3410, 1
    %v3656 = vsel %vm238, %v3653, %v3655
    %v3657 = vrot.slane %v3411, 1
    %v3658 = vrot.slane %v3412, 1
    %v3659 = vsel %vm238, %v3657, %v3658
    %v3660 = vrot.slane %v3413, 1
    %v3661 = vsel %vm238, %v3658, %v3660
    %v3662 = vrot.slane %v3414, 1
    %v3663 = vrot.slane %v3415, 1
    %v3664 = vsel %vm238, %v3662, %v3663
    %v3665 = vrot.slane %v3416, 1
    %v3666 = vsel %vm238, %v3663, %v3665
    %v3667 = vrot.slane %v3417, 1
    %v3668 = vrot.slane %v3418, 1
    %v3669 = vsel %vm238, %v3667, %v3668
    %v3670 = vrot.slane %v3419, 1
    %v3671 = vsel %vm238, %v3668, %v3670
    %v3672 = vrot.slane %v3420, 1
    %v3673 = vrot.slane %v3421, 1
    %v3674 = vsel %vm238, %v3672, %v3673
    %v3675 = vrot.slane %v3422, 1
    %v3676 = vsel %vm238, %v3673, %v3675
    %v3677 = vrot.slane %v3423, 1
    %v3678 = vrot.slane %v3424, 1
    %v3679 = vsel %vm238, %v3677, %v3678
    %v3680 = vrot.slane %v3425, 1
    %v3681 = vsel %vm238, %v3678, %v3680
    %v3682 = vrot.slane %v3426, 1
    %v3683 = vrot.slane %v3427, 1
    %v3684 = vsel %vm238, %v3682, %v3683
    %v3685 = vrot.slane %v3428, 1
    %v3686 = vsel %vm238, %v3683, %v3685
    %v3687 = vrot.slane %v3429, 1
    %v3688 = vrot.slane %v3430, 1
    %v3689 = vsel %vm238, %v3687, %v3688
    %v3690 = vrot.slane %v3431, 1
    %v3691 = vsel %vm238, %v3688, %v3690
    %v3692 = vrot.slane %v3432, 1
    %v3693 = vrot.slane %v3433, 1
    %v3694 = vsel %vm238, %v3692, %v3693
    %v3695 = vrot.slane %v3434, 1
    %v3696 = vsel %vm238, %v3693, %v3695
    %3697 = vrot.lane.b32.xlu0 %v3539, 8
    %v3698 = vpop.permute.xlu0 %3697
    %3699 = vrot.lane.b32.xlu0 %v3541, 8
    %v3700 = vpop.permute.xlu0 %3699
    %3701 = vrot.lane.b32.xlu0 %v3544, 8
    %v3702 = vpop.permute.xlu0 %3701
    %3703 = vrot.lane.b32.xlu0 %v3546, 8
    %v3704 = vpop.permute.xlu0 %3703
    %3705 = vrot.lane.b32.xlu0 %v3549, 8
    %v3706 = vpop.permute.xlu0 %3705
    %3707 = vrot.lane.b32.xlu0 %v3551, 8
    %v3708 = vpop.permute.xlu0 %3707
    %3709 = vrot.lane.b32.xlu0 %v3554, 8
    %v3710 = vpop.permute.xlu0 %3709
    %3711 = vrot.lane.b32.xlu0 %v3556, 8
    %v3712 = vpop.permute.xlu0 %3711
    %3713 = vrot.lane.b32.xlu0 %v3559, 8
    %v3714 = vpop.permute.xlu0 %3713
    %3715 = vrot.lane.b32.xlu0 %v3561, 8
    %v3716 = vpop.permute.xlu0 %3715
    %3717 = vrot.lane.b32.xlu0 %v3564, 8
    %v3718 = vpop.permute.xlu0 %3717
    %3719 = vrot.lane.b32.xlu0 %v3566, 8
    %v3720 = vpop.permute.xlu0 %3719
    %3721 = vrot.lane.b32.xlu0 %v3569, 8
    %v3722 = vpop.permute.xlu0 %3721
    %3723 = vrot.lane.b32.xlu0 %v3571, 8
    %v3724 = vpop.permute.xlu0 %3723
    %3725 = vrot.lane.b32.xlu0 %v3574, 8
    %v3726 = vpop.permute.xlu0 %3725
    %3727 = vrot.lane.b32.xlu0 %v3576, 8
    %v3728 = vpop.permute.xlu0 %3727
    %3729 = vrot.lane.b32.xlu0 %v3579, 8
    %v3730 = vpop.permute.xlu0 %3729
    %3731 = vrot.lane.b32.xlu0 %v3581, 8
    %v3732 = vpop.permute.xlu0 %3731
    %3733 = vrot.lane.b32.xlu0 %v3584, 8
    %v3734 = vpop.permute.xlu0 %3733
    %3735 = vrot.lane.b32.xlu0 %v3586, 8
    %v3736 = vpop.permute.xlu0 %3735
    %3737 = vrot.lane.b32.xlu0 %v3589, 8
    %v3738 = vpop.permute.xlu0 %3737
    %3739 = vrot.lane.b32.xlu0 %v3591, 8
    %v3740 = vpop.permute.xlu0 %3739
    %3741 = vrot.lane.b32.xlu0 %v3594, 8
    %v3742 = vpop.permute.xlu0 %3741
    %3743 = vrot.lane.b32.xlu0 %v3596, 8
    %v3744 = vpop.permute.xlu0 %3743
    %3745 = vrot.lane.b32.xlu0 %v3599, 8
    %v3746 = vpop.permute.xlu0 %3745
    %3747 = vrot.lane.b32.xlu0 %v3601, 8
    %v3748 = vpop.permute.xlu0 %3747
    %3749 = vrot.lane.b32.xlu0 %v3604, 8
    %v3750 = vpop.permute.xlu0 %3749
    %3751 = vrot.lane.b32.xlu0 %v3606, 8
    %v3752 = vpop.permute.xlu0 %3751
    %3753 = vrot.lane.b32.xlu0 %v3609, 8
    %v3754 = vpop.permute.xlu0 %3753
    %3755 = vrot.lane.b32.xlu0 %v3611, 8
    %v3756 = vpop.permute.xlu0 %3755
    %3757 = vrot.lane.b32.xlu0 %v3614, 8
    %v3758 = vpop.permute.xlu0 %3757
    %3759 = vrot.lane.b32.xlu0 %v3616, 8
    %v3760 = vpop.permute.xlu0 %3759
    %3761 = vrot.lane.b32.xlu0 %v3619, 8
    %v3762 = vpop.permute.xlu0 %3761
    %3763 = vrot.lane.b32.xlu0 %v3621, 8
    %v3764 = vpop.permute.xlu0 %3763
    %3765 = vrot.lane.b32.xlu0 %v3624, 8
    %v3766 = vpop.permute.xlu0 %3765
    %3767 = vrot.lane.b32.xlu0 %v3626, 8
    %v3768 = vpop.permute.xlu0 %3767
    %3769 = vrot.lane.b32.xlu0 %v3629, 8
    %v3770 = vpop.permute.xlu0 %3769
    %3771 = vrot.lane.b32.xlu0 %v3631, 8
    %v3772 = vpop.permute.xlu0 %3771
    %3773 = vrot.lane.b32.xlu0 %v3634, 8
    %v3774 = vpop.permute.xlu0 %3773
    %3775 = vrot.lane.b32.xlu0 %v3636, 8
    %v3776 = vpop.permute.xlu0 %3775
    %3777 = vrot.lane.b32.xlu0 %v3639, 8
    %v3778 = vpop.permute.xlu0 %3777
    %3779 = vrot.lane.b32.xlu0 %v3641, 8
    %v3780 = vpop.permute.xlu0 %3779
    %3781 = vrot.lane.b32.xlu0 %v3644, 8
    %v3782 = vpop.permute.xlu0 %3781
    %3783 = vrot.lane.b32.xlu0 %v3646, 8
    %v3784 = vpop.permute.xlu0 %3783
    %3785 = vrot.lane.b32.xlu0 %v3649, 8
    %v3786 = vpop.permute.xlu0 %3785
    %3787 = vrot.lane.b32.xlu0 %v3651, 8
    %v3788 = vpop.permute.xlu0 %3787
    %3789 = vrot.lane.b32.xlu0 %v3654, 8
    %v3790 = vpop.permute.xlu0 %3789
    %3791 = vrot.lane.b32.xlu0 %v3656, 8
    %v3792 = vpop.permute.xlu0 %3791
    %3793 = vrot.lane.b32.xlu0 %v3659, 8
    %v3794 = vpop.permute.xlu0 %3793
    %3795 = vrot.lane.b32.xlu0 %v3661, 8
    %v3796 = vpop.permute.xlu0 %3795
    %3797 = vrot.lane.b32.xlu0 %v3664, 8
    %v3798 = vpop.permute.xlu0 %3797
    %3799 = vrot.lane.b32.xlu0 %v3666, 8
    %v3800 = vpop.permute.xlu0 %3799
    %3801 = vrot.lane.b32.xlu0 %v3669, 8
    %v3802 = vpop.permute.xlu0 %3801
    %3803 = vrot.lane.b32.xlu0 %v3671, 8
    %v3804 = vpop.permute.xlu0 %3803
    %3805 = vrot.lane.b32.xlu0 %v3674, 8
    %v3806 = vpop.permute.xlu0 %3805
    %3807 = vrot.lane.b32.xlu0 %v3676, 8
    %v3808 = vpop.permute.xlu0 %3807
    %3809 = vrot.lane.b32.xlu0 %v3679, 8
    %v3810 = vpop.permute.xlu0 %3809
    %3811 = vrot.lane.b32.xlu0 %v3681, 8
    %v3812 = vpop.permute.xlu0 %3811
    %3813 = vrot.lane.b32.xlu0 %v3684, 8
    %v3814 = vpop.permute.xlu0 %3813
    %3815 = vrot.lane.b32.xlu0 %v3686, 8
    %v3816 = vpop.permute.xlu0 %3815
    %3817 = vrot.lane.b32.xlu0 %v3689, 8
    %v3818 = vpop.permute.xlu0 %3817
    %3819 = vrot.lane.b32.xlu0 %v3691, 8
    %v3820 = vpop.permute.xlu0 %3819
    %3821 = vrot.lane.b32.xlu0 %v3694, 8
    %v3822 = vpop.permute.xlu0 %3821
    %3823 = vrot.lane.b32.xlu0 %v3696, 8
    %v3824 = vpop.permute.xlu0 %3823
    %v3889 = vrot.slane %v3333, 2
    %v3890 = vrot.slane %v3334, 2
    %v3891 = vsel %vm591, %v3889, %v3890
    %v3892 = vrot.slane %v3335, 2
    %v3893 = vsel %vm591, %v3890, %v3892
    %v3894 = vrot.slane %v3336, 2
    %v3895 = vrot.slane %v3337, 2
    %v3896 = vsel %vm591, %v3894, %v3895
    %v3897 = vrot.slane %v3338, 2
    %v3898 = vsel %vm591, %v3895, %v3897
    %v3899 = vrot.slane %v3339, 2
    %v3900 = vrot.slane %v3340, 2
    %v3901 = vsel %vm591, %v3899, %v3900
    %v3902 = vrot.slane %v3341, 2
    %v3903 = vsel %vm591, %v3900, %v3902
    %v3904 = vrot.slane %v3342, 2
    %v3905 = vrot.slane %v3343, 2
    %v3906 = vsel %vm591, %v3904, %v3905
    %v3907 = vrot.slane %v3344, 2
    %v3908 = vsel %vm591, %v3905, %v3907
    %v3909 = vrot.slane %v3345, 2
    %v3910 = vrot.slane %v3346, 2
    %v3911 = vsel %vm591, %v3909, %v3910
    %v3912 = vrot.slane %v3347, 2
    %v3913 = vsel %vm591, %v3910, %v3912
    %v3914 = vrot.slane %v3348, 2
    %v3915 = vrot.slane %v3349, 2
    %v3916 = vsel %vm591, %v3914, %v3915
    %v3917 = vrot.slane %v3350, 2
    %v3918 = vsel %vm591, %v3915, %v3917
    %v3919 = vrot.slane %v3351, 2
    %v3920 = vrot.slane %v3352, 2
    %v3921 = vsel %vm591, %v3919, %v3920
    %v3922 = vrot.slane %v3353, 2
    %v3923 = vsel %vm591, %v3920, %v3922
    %v3924 = vrot.slane %v3354, 2
    %v3925 = vrot.slane %v3355, 2
    %v3926 = vsel %vm591, %v3924, %v3925
    %v3927 = vrot.slane %v3356, 2
    %v3928 = vsel %vm591, %v3925, %v3927
    %v3929 = vrot.slane %v3357, 2
    %v3930 = vrot.slane %v3358, 2
    %v3931 = vsel %vm591, %v3929, %v3930
    %v3932 = vrot.slane %v3359, 2
    %v3933 = vsel %vm591, %v3930, %v3932
    %v3934 = vrot.slane %v3360, 2
    %v3935 = vrot.slane %v3361, 2
    %v3936 = vsel %vm591, %v3934, %v3935
    %v3937 = vrot.slane %v3362, 2
    %v3938 = vsel %vm591, %v3935, %v3937
    %v3939 = vrot.slane %v3363, 2
    %v3940 = vrot.slane %v3364, 2
    %v3941 = vsel %vm591, %v3939, %v3940
    %v3942 = vrot.slane %v3365, 2
    %v3943 = vsel %vm591, %v3940, %v3942
    %v3944 = vrot.slane %v3366, 2
    %v3945 = vrot.slane %v3367, 2
    %v3946 = vsel %vm591, %v3944, %v3945
    %v3947 = vrot.slane %v3368, 2
    %v3948 = vsel %vm591, %v3945, %v3947
    %v3949 = vrot.slane %v3369, 2
    %v3950 = vrot.slane %v3370, 2
    %v3951 = vsel %vm591, %v3949, %v3950
    %v3952 = vrot.slane %v3371, 2
    %v3953 = vsel %vm591, %v3950, %v3952
    %v3954 = vrot.slane %v3372, 2
    %v3955 = vrot.slane %v3373, 2
    %v3956 = vsel %vm591, %v3954, %v3955
    %v3957 = vrot.slane %v3374, 2
    %v3958 = vsel %vm591, %v3955, %v3957
    %v3959 = vrot.slane %v3375, 2
    %v3960 = vrot.slane %v3376, 2
    %v3961 = vsel %vm591, %v3959, %v3960
    %v3962 = vrot.slane %v3377, 2
    %v3963 = vsel %vm591, %v3960, %v3962
    %v3964 = vrot.slane %v3378, 2
    %v3965 = vrot.slane %v3379, 2
    %v3966 = vsel %vm591, %v3964, %v3965
    %v3967 = vrot.slane %v3380, 2
    %v3968 = vsel %vm591, %v3965, %v3967
    %v3969 = vrot.slane %v3387, 2
    %v3970 = vrot.slane %v3388, 2
    %v3971 = vsel %vm591, %v3969, %v3970
    %v3972 = vrot.slane %v3389, 2
    %v3973 = vsel %vm591, %v3970, %v3972
    %v3974 = vrot.slane %v3390, 2
    %v3975 = vrot.slane %v3391, 2
    %v3976 = vsel %vm591, %v3974, %v3975
    %v3977 = vrot.slane %v3392, 2
    %v3978 = vsel %vm591, %v3975, %v3977
    %v3979 = vrot.slane %v3393, 2
    %v3980 = vrot.slane %v3394, 2
    %v3981 = vsel %vm591, %v3979, %v3980
    %v3982 = vrot.slane %v3395, 2
    %v3983 = vsel %vm591, %v3980, %v3982
    %v3984 = vrot.slane %v3396, 2
    %v3985 = vrot.slane %v3397, 2
    %v3986 = vsel %vm591, %v3984, %v3985
    %v3987 = vrot.slane %v3398, 2
    %v3988 = vsel %vm591, %v3985, %v3987
    %v3989 = vrot.slane %v3399, 2
    %v3990 = vrot.slane %v3400, 2
    %v3991 = vsel %vm591, %v3989, %v3990
    %v3992 = vrot.slane %v3401, 2
    %v3993 = vsel %vm591, %v3990, %v3992
    %v3994 = vrot.slane %v3402, 2
    %v3995 = vrot.slane %v3403, 2
    %v3996 = vsel %vm591, %v3994, %v3995
    %v3997 = vrot.slane %v3404, 2
    %v3998 = vsel %vm591, %v3995, %v3997
    %v3999 = vrot.slane %v3405, 2
    %v4000 = vrot.slane %v3406, 2
    %v4001 = vsel %vm591, %v3999, %v4000
    %v4002 = vrot.slane %v3407, 2
    %v4003 = vsel %vm591, %v4000, %v4002
    %v4004 = vrot.slane %v3408, 2
    %v4005 = vrot.slane %v3409, 2
    %v4006 = vsel %vm591, %v4004, %v4005
    %v4007 = vrot.slane %v3410, 2
    %v4008 = vsel %vm591, %v4005, %v4007
    %v4009 = vrot.slane %v3411, 2
    %v4010 = vrot.slane %v3412, 2
    %v4011 = vsel %vm591, %v4009, %v4010
    %v4012 = vrot.slane %v3413, 2
    %v4013 = vsel %vm591, %v4010, %v4012
    %v4014 = vrot.slane %v3414, 2
    %v4015 = vrot.slane %v3415, 2
    %v4016 = vsel %vm591, %v4014, %v4015
    %v4017 = vrot.slane %v3416, 2
    %v4018 = vsel %vm591, %v4015, %v4017
    %v4019 = vrot.slane %v3417, 2
    %v4020 = vrot.slane %v3418, 2
    %v4021 = vsel %vm591, %v4019, %v4020
    %v4022 = vrot.slane %v3419, 2
    %v4023 = vsel %vm591, %v4020, %v4022
    %v4024 = vrot.slane %v3420, 2
    %v4025 = vrot.slane %v3421, 2
    %v4026 = vsel %vm591, %v4024, %v4025
    %v4027 = vrot.slane %v3422, 2
    %v4028 = vsel %vm591, %v4025, %v4027
    %v4029 = vrot.slane %v3423, 2
    %v4030 = vrot.slane %v3424, 2
    %v4031 = vsel %vm591, %v4029, %v4030
    %v4032 = vrot.slane %v3425, 2
    %v4033 = vsel %vm591, %v4030, %v4032
    %v4034 = vrot.slane %v3426, 2
    %v4035 = vrot.slane %v3427, 2
    %v4036 = vsel %vm591, %v4034, %v4035
    %v4037 = vrot.slane %v3428, 2
    %v4038 = vsel %vm591, %v4035, %v4037
    %v4039 = vrot.slane %v3429, 2
    %v4040 = vrot.slane %v3430, 2
    %v4041 = vsel %vm591, %v4039, %v4040
    %v4042 = vrot.slane %v3431, 2
    %v4043 = vsel %vm591, %v4040, %v4042
    %v4044 = vrot.slane %v3432, 2
    %v4045 = vrot.slane %v3433, 2
    %v4046 = vsel %vm591, %v4044, %v4045
    %v4047 = vrot.slane %v3434, 2
    %v4048 = vsel %vm591, %v4045, %v4047
    %4049 = vrot.lane.b32.xlu0 %v3891, 16
    %v4050 = vpop.permute.xlu0 %4049
    %4051 = vrot.lane.b32.xlu0 %v3893, 16
    %v4052 = vpop.permute.xlu0 %4051
    %4053 = vrot.lane.b32.xlu0 %v3896, 16
    %v4054 = vpop.permute.xlu0 %4053
    %4055 = vrot.lane.b32.xlu0 %v3898, 16
    %v4056 = vpop.permute.xlu0 %4055
    %4057 = vrot.lane.b32.xlu0 %v3901, 16
    %v4058 = vpop.permute.xlu0 %4057
    %4059 = vrot.lane.b32.xlu0 %v3903, 16
    %v4060 = vpop.permute.xlu0 %4059
    %4061 = vrot.lane.b32.xlu0 %v3906, 16
    %v4062 = vpop.permute.xlu0 %4061
    %4063 = vrot.lane.b32.xlu0 %v3908, 16
    %v4064 = vpop.permute.xlu0 %4063
    %4065 = vrot.lane.b32.xlu0 %v3911, 16
    %v4066 = vpop.permute.xlu0 %4065
    %4067 = vrot.lane.b32.xlu0 %v3913, 16
    %v4068 = vpop.permute.xlu0 %4067
    %4069 = vrot.lane.b32.xlu0 %v3916, 16
    %v4070 = vpop.permute.xlu0 %4069
    %4071 = vrot.lane.b32.xlu0 %v3918, 16
    %v4072 = vpop.permute.xlu0 %4071
    %4073 = vrot.lane.b32.xlu0 %v3921, 16
    %v4074 = vpop.permute.xlu0 %4073
    %4075 = vrot.lane.b32.xlu0 %v3923, 16
    %v4076 = vpop.permute.xlu0 %4075
    %4077 = vrot.lane.b32.xlu0 %v3926, 16
    %v4078 = vpop.permute.xlu0 %4077
    %4079 = vrot.lane.b32.xlu0 %v3928, 16
    %v4080 = vpop.permute.xlu0 %4079
    %4081 = vrot.lane.b32.xlu0 %v3931, 16
    %v4082 = vpop.permute.xlu0 %4081
    %4083 = vrot.lane.b32.xlu0 %v3933, 16
    %v4084 = vpop.permute.xlu0 %4083
    %4085 = vrot.lane.b32.xlu0 %v3936, 16
    %v4086 = vpop.permute.xlu0 %4085
    %4087 = vrot.lane.b32.xlu0 %v3938, 16
    %v4088 = vpop.permute.xlu0 %4087
    %4089 = vrot.lane.b32.xlu0 %v3941, 16
    %v4090 = vpop.permute.xlu0 %4089
    %4091 = vrot.lane.b32.xlu0 %v3943, 16
    %v4092 = vpop.permute.xlu0 %4091
    %4093 = vrot.lane.b32.xlu0 %v3946, 16
    %v4094 = vpop.permute.xlu0 %4093
    %4095 = vrot.lane.b32.xlu0 %v3948, 16
    %v4096 = vpop.permute.xlu0 %4095
    %4097 = vrot.lane.b32.xlu0 %v3951, 16
    %v4098 = vpop.permute.xlu0 %4097
    %4099 = vrot.lane.b32.xlu0 %v3953, 16
    %v4100 = vpop.permute.xlu0 %4099
    %4101 = vrot.lane.b32.xlu0 %v3956, 16
    %v4102 = vpop.permute.xlu0 %4101
    %4103 = vrot.lane.b32.xlu0 %v3958, 16
    %v4104 = vpop.permute.xlu0 %4103
    %4105 = vrot.lane.b32.xlu0 %v3961, 16
    %v4106 = vpop.permute.xlu0 %4105
    %4107 = vrot.lane.b32.xlu0 %v3963, 16
    %v4108 = vpop.permute.xlu0 %4107
    %4109 = vrot.lane.b32.xlu0 %v3966, 16
    %v4110 = vpop.permute.xlu0 %4109
    %4111 = vrot.lane.b32.xlu0 %v3968, 16
    %v4112 = vpop.permute.xlu0 %4111
    %4113 = vrot.lane.b32.xlu0 %v3971, 16
    %v4114 = vpop.permute.xlu0 %4113
    %4115 = vrot.lane.b32.xlu0 %v3973, 16
    %v4116 = vpop.permute.xlu0 %4115
    %4117 = vrot.lane.b32.xlu0 %v3976, 16
    %v4118 = vpop.permute.xlu0 %4117
    %4119 = vrot.lane.b32.xlu0 %v3978, 16
    %v4120 = vpop.permute.xlu0 %4119
    %4121 = vrot.lane.b32.xlu0 %v3981, 16
    %v4122 = vpop.permute.xlu0 %4121
    %4123 = vrot.lane.b32.xlu0 %v3983, 16
    %v4124 = vpop.permute.xlu0 %4123
    %4125 = vrot.lane.b32.xlu0 %v3986, 16
    %v4126 = vpop.permute.xlu0 %4125
    %4127 = vrot.lane.b32.xlu0 %v3988, 16
    %v4128 = vpop.permute.xlu0 %4127
    %4129 = vrot.lane.b32.xlu0 %v3991, 16
    %v4130 = vpop.permute.xlu0 %4129
    %4131 = vrot.lane.b32.xlu0 %v3993, 16
    %v4132 = vpop.permute.xlu0 %4131
    %4133 = vrot.lane.b32.xlu0 %v3996, 16
    %v4134 = vpop.permute.xlu0 %4133
    %4135 = vrot.lane.b32.xlu0 %v3998, 16
    %v4136 = vpop.permute.xlu0 %4135
    %4137 = vrot.lane.b32.xlu0 %v4001, 16
    %v4138 = vpop.permute.xlu0 %4137
    %4139 = vrot.lane.b32.xlu0 %v4003, 16
    %v4140 = vpop.permute.xlu0 %4139
    %4141 = vrot.lane.b32.xlu0 %v4006, 16
    %v4142 = vpop.permute.xlu0 %4141
    %4143 = vrot.lane.b32.xlu0 %v4008, 16
    %v4144 = vpop.permute.xlu0 %4143
    %4145 = vrot.lane.b32.xlu0 %v4011, 16
    %v4146 = vpop.permute.xlu0 %4145
    %4147 = vrot.lane.b32.xlu0 %v4013, 16
    %v4148 = vpop.permute.xlu0 %4147
    %4149 = vrot.lane.b32.xlu0 %v4016, 16
    %v4150 = vpop.permute.xlu0 %4149
    %4151 = vrot.lane.b32.xlu0 %v4018, 16
    %v4152 = vpop.permute.xlu0 %4151
    %4153 = vrot.lane.b32.xlu0 %v4021, 16
    %v4154 = vpop.permute.xlu0 %4153
    %4155 = vrot.lane.b32.xlu0 %v4023, 16
    %v4156 = vpop.permute.xlu0 %4155
    %4157 = vrot.lane.b32.xlu0 %v4026, 16
    %v4158 = vpop.permute.xlu0 %4157
    %4159 = vrot.lane.b32.xlu0 %v4028, 16
    %v4160 = vpop.permute.xlu0 %4159
    %4161 = vrot.lane.b32.xlu0 %v4031, 16
    %v4162 = vpop.permute.xlu0 %4161
    %4163 = vrot.lane.b32.xlu0 %v4033, 16
    %v4164 = vpop.permute.xlu0 %4163
    %4165 = vrot.lane.b32.xlu0 %v4036, 16
    %v4166 = vpop.permute.xlu0 %4165
    %4167 = vrot.lane.b32.xlu0 %v4038, 16
    %v4168 = vpop.permute.xlu0 %4167
    %4169 = vrot.lane.b32.xlu0 %v4041, 16
    %v4170 = vpop.permute.xlu0 %4169
    %4171 = vrot.lane.b32.xlu0 %v4043, 16
    %v4172 = vpop.permute.xlu0 %4171
    %4173 = vrot.lane.b32.xlu0 %v4046, 16
    %v4174 = vpop.permute.xlu0 %4173
    %4175 = vrot.lane.b32.xlu0 %v4048, 16
    %v4176 = vpop.permute.xlu0 %4175
    %4245 = vrot.lane.b32.xlu0 %v3336, 24
    %v4246 = vpop.permute.xlu0 %4245
    %4247 = vrot.lane.b32.xlu0 %v3337, 24
    %v4248 = vpop.permute.xlu0 %4247
    %4249 = vrot.lane.b32.xlu0 %v3339, 24
    %v4250 = vpop.permute.xlu0 %4249
    %4251 = vrot.lane.b32.xlu0 %v3340, 24
    %v4252 = vpop.permute.xlu0 %4251
    %4253 = vrot.lane.b32.xlu0 %v3342, 24
    %v4254 = vpop.permute.xlu0 %4253
    %4255 = vrot.lane.b32.xlu0 %v3343, 24
    %v4256 = vpop.permute.xlu0 %4255
    %4257 = vrot.lane.b32.xlu0 %v3345, 24
    %v4258 = vpop.permute.xlu0 %4257
    %4259 = vrot.lane.b32.xlu0 %v3346, 24
    %v4260 = vpop.permute.xlu0 %4259
    %4261 = vrot.lane.b32.xlu0 %v3348, 24
    %v4262 = vpop.permute.xlu0 %4261
    %4263 = vrot.lane.b32.xlu0 %v3349, 24
    %v4264 = vpop.permute.xlu0 %4263
    %4265 = vrot.lane.b32.xlu0 %v3351, 24
    %v4266 = vpop.permute.xlu0 %4265
    %4267 = vrot.lane.b32.xlu0 %v3352, 24
    %v4268 = vpop.permute.xlu0 %4267
    %4269 = vrot.lane.b32.xlu0 %v3354, 24
    %v4270 = vpop.permute.xlu0 %4269
    %4271 = vrot.lane.b32.xlu0 %v3355, 24
    %v4272 = vpop.permute.xlu0 %4271
    %4273 = vrot.lane.b32.xlu0 %v3357, 24
    %v4274 = vpop.permute.xlu0 %4273
    %4275 = vrot.lane.b32.xlu0 %v3358, 24
    %v4276 = vpop.permute.xlu0 %4275
    %4277 = vrot.lane.b32.xlu0 %v3360, 24
    %v4278 = vpop.permute.xlu0 %4277
    %4279 = vrot.lane.b32.xlu0 %v3361, 24
    %v4280 = vpop.permute.xlu0 %4279
    %4281 = vrot.lane.b32.xlu0 %v3363, 24
    %v4282 = vpop.permute.xlu0 %4281
    %4283 = vrot.lane.b32.xlu0 %v3364, 24
    %v4284 = vpop.permute.xlu0 %4283
    %4285 = vrot.lane.b32.xlu0 %v3366, 24
    %v4286 = vpop.permute.xlu0 %4285
    %4287 = vrot.lane.b32.xlu0 %v3367, 24
    %v4288 = vpop.permute.xlu0 %4287
    %4289 = vrot.lane.b32.xlu0 %v3369, 24
    %v4290 = vpop.permute.xlu0 %4289
    %4291 = vrot.lane.b32.xlu0 %v3370, 24
    %v4292 = vpop.permute.xlu0 %4291
    %4293 = vrot.lane.b32.xlu0 %v3372, 24
    %v4294 = vpop.permute.xlu0 %4293
    %4295 = vrot.lane.b32.xlu0 %v3373, 24
    %v4296 = vpop.permute.xlu0 %4295
    %4297 = vrot.lane.b32.xlu0 %v3375, 24
    %v4298 = vpop.permute.xlu0 %4297
    %4299 = vrot.lane.b32.xlu0 %v3376, 24
    %v4300 = vpop.permute.xlu0 %4299
    %4301 = vrot.lane.b32.xlu0 %v3378, 24
    %v4302 = vpop.permute.xlu0 %4301
    %4303 = vrot.lane.b32.xlu0 %v3379, 24
    %v4304 = vpop.permute.xlu0 %4303
    %4305 = vrot.lane.b32.xlu0 %v3381, 24
    %v4306 = vpop.permute.xlu0 %4305
    %4307 = vrot.lane.b32.xlu0 %v3382, 24
    %v4308 = vpop.permute.xlu0 %4307
    %4309 = vrot.lane.b32.xlu0 %v3390, 24
    %v4310 = vpop.permute.xlu0 %4309
    %4311 = vrot.lane.b32.xlu0 %v3391, 24
    %v4312 = vpop.permute.xlu0 %4311
    %4313 = vrot.lane.b32.xlu0 %v3393, 24
    %v4314 = vpop.permute.xlu0 %4313
    %4315 = vrot.lane.b32.xlu0 %v3394, 24
    %v4316 = vpop.permute.xlu0 %4315
    %4317 = vrot.lane.b32.xlu0 %v3396, 24
    %v4318 = vpop.permute.xlu0 %4317
    %4319 = vrot.lane.b32.xlu0 %v3397, 24
    %v4320 = vpop.permute.xlu0 %4319
    %4321 = vrot.lane.b32.xlu0 %v3399, 24
    %v4322 = vpop.permute.xlu0 %4321
    %4323 = vrot.lane.b32.xlu0 %v3400, 24
    %v4324 = vpop.permute.xlu0 %4323
    %4325 = vrot.lane.b32.xlu0 %v3402, 24
    %v4326 = vpop.permute.xlu0 %4325
    %4327 = vrot.lane.b32.xlu0 %v3403, 24
    %v4328 = vpop.permute.xlu0 %4327
    %4329 = vrot.lane.b32.xlu0 %v3405, 24
    %v4330 = vpop.permute.xlu0 %4329
    %4331 = vrot.lane.b32.xlu0 %v3406, 24
    %v4332 = vpop.permute.xlu0 %4331
    %4333 = vrot.lane.b32.xlu0 %v3408, 24
    %v4334 = vpop.permute.xlu0 %4333
    %4335 = vrot.lane.b32.xlu0 %v3409, 24
    %v4336 = vpop.permute.xlu0 %4335
    %4337 = vrot.lane.b32.xlu0 %v3411, 24
    %v4338 = vpop.permute.xlu0 %4337
    %4339 = vrot.lane.b32.xlu0 %v3412, 24
    %v4340 = vpop.permute.xlu0 %4339
    %4341 = vrot.lane.b32.xlu0 %v3414, 24
    %v4342 = vpop.permute.xlu0 %4341
    %4343 = vrot.lane.b32.xlu0 %v3415, 24
    %v4344 = vpop.permute.xlu0 %4343
    %4345 = vrot.lane.b32.xlu0 %v3417, 24
    %v4346 = vpop.permute.xlu0 %4345
    %4347 = vrot.lane.b32.xlu0 %v3418, 24
    %v4348 = vpop.permute.xlu0 %4347
    %4349 = vrot.lane.b32.xlu0 %v3420, 24
    %v4350 = vpop.permute.xlu0 %4349
    %4351 = vrot.lane.b32.xlu0 %v3421, 24
    %v4352 = vpop.permute.xlu0 %4351
    %4353 = vrot.lane.b32.xlu0 %v3423, 24
    %v4354 = vpop.permute.xlu0 %4353
    %4355 = vrot.lane.b32.xlu0 %v3424, 24
    %v4356 = vpop.permute.xlu0 %4355
    %4357 = vrot.lane.b32.xlu0 %v3426, 24
    %v4358 = vpop.permute.xlu0 %4357
    %4359 = vrot.lane.b32.xlu0 %v3427, 24
    %v4360 = vpop.permute.xlu0 %4359
    %4361 = vrot.lane.b32.xlu0 %v3429, 24
    %v4362 = vpop.permute.xlu0 %4361
    %4363 = vrot.lane.b32.xlu0 %v3430, 24
    %v4364 = vpop.permute.xlu0 %4363
    %4365 = vrot.lane.b32.xlu0 %v3432, 24
    %v4366 = vpop.permute.xlu0 %4365
    %4367 = vrot.lane.b32.xlu0 %v3433, 24
    %v4368 = vpop.permute.xlu0 %4367
    %4369 = vrot.lane.b32.xlu0 %v3435, 24
    %v4370 = vpop.permute.xlu0 %4369
    %4371 = vrot.lane.b32.xlu0 %v3436, 24
    %v4372 = vpop.permute.xlu0 %4371
    %v4439 = vrot.slane %v3381, 1
    %v4440 = vrot.slane %v3382, 1
    %v4441 = vsel %vm238, %v4439, %v4440
    %v4442 = vrot.slane %v3383, 1
    %v4443 = vsel %vm238, %v4440, %v4442
    %v4444 = vrot.slane %v3435, 1
    %v4445 = vrot.slane %v3436, 1
    %v4446 = vsel %vm238, %v4444, %v4445
    %v4447 = vrot.slane %v3437, 1
    %v4448 = vsel %vm238, %v4445, %v4447
    %4449 = vrot.lane.b32.xlu0 %v3544, 32
    %v4450 = vpop.permute.xlu0 %4449
    %4451 = vrot.lane.b32.xlu0 %v3546, 32
    %v4452 = vpop.permute.xlu0 %4451
    %4453 = vrot.lane.b32.xlu0 %v3549, 32
    %v4454 = vpop.permute.xlu0 %4453
    %4455 = vrot.lane.b32.xlu0 %v3551, 32
    %v4456 = vpop.permute.xlu0 %4455
    %4457 = vrot.lane.b32.xlu0 %v3554, 32
    %v4458 = vpop.permute.xlu0 %4457
    %4459 = vrot.lane.b32.xlu0 %v3556, 32
    %v4460 = vpop.permute.xlu0 %4459
    %4461 = vrot.lane.b32.xlu0 %v3559, 32
    %v4462 = vpop.permute.xlu0 %4461
    %4463 = vrot.lane.b32.xlu0 %v3561, 32
    %v4464 = vpop.permute.xlu0 %4463
    %4465 = vrot.lane.b32.xlu0 %v3564, 32
    %v4466 = vpop.permute.xlu0 %4465
    %4467 = vrot.lane.b32.xlu0 %v3566, 32
    %v4468 = vpop.permute.xlu0 %4467
    %4469 = vrot.lane.b32.xlu0 %v3569, 32
    %v4470 = vpop.permute.xlu0 %4469
    %4471 = vrot.lane.b32.xlu0 %v3571, 32
    %v4472 = vpop.permute.xlu0 %4471
    %4473 = vrot.lane.b32.xlu0 %v3574, 32
    %v4474 = vpop.permute.xlu0 %4473
    %4475 = vrot.lane.b32.xlu0 %v3576, 32
    %v4476 = vpop.permute.xlu0 %4475
    %4477 = vrot.lane.b32.xlu0 %v3579, 32
    %v4478 = vpop.permute.xlu0 %4477
    %4479 = vrot.lane.b32.xlu0 %v3581, 32
    %v4480 = vpop.permute.xlu0 %4479
    %4481 = vrot.lane.b32.xlu0 %v3584, 32
    %v4482 = vpop.permute.xlu0 %4481
    %4483 = vrot.lane.b32.xlu0 %v3586, 32
    %v4484 = vpop.permute.xlu0 %4483
    %4485 = vrot.lane.b32.xlu0 %v3589, 32
    %v4486 = vpop.permute.xlu0 %4485
    %4487 = vrot.lane.b32.xlu0 %v3591, 32
    %v4488 = vpop.permute.xlu0 %4487
    %4489 = vrot.lane.b32.xlu0 %v3594, 32
    %v4490 = vpop.permute.xlu0 %4489
    %4491 = vrot.lane.b32.xlu0 %v3596, 32
    %v4492 = vpop.permute.xlu0 %4491
    %4493 = vrot.lane.b32.xlu0 %v3599, 32
    %v4494 = vpop.permute.xlu0 %4493
    %4495 = vrot.lane.b32.xlu0 %v3601, 32
    %v4496 = vpop.permute.xlu0 %4495
    %4497 = vrot.lane.b32.xlu0 %v3604, 32
    %v4498 = vpop.permute.xlu0 %4497
    %4499 = vrot.lane.b32.xlu0 %v3606, 32
    %v4500 = vpop.permute.xlu0 %4499
    %4501 = vrot.lane.b32.xlu0 %v3609, 32
    %v4502 = vpop.permute.xlu0 %4501
    %4503 = vrot.lane.b32.xlu0 %v3611, 32
    %v4504 = vpop.permute.xlu0 %4503
    %4505 = vrot.lane.b32.xlu0 %v3614, 32
    %v4506 = vpop.permute.xlu0 %4505
    %4507 = vrot.lane.b32.xlu0 %v3616, 32
    %v4508 = vpop.permute.xlu0 %4507
    %4509 = vrot.lane.b32.xlu0 %v4441, 32
    %v4510 = vpop.permute.xlu0 %4509
    %4511 = vrot.lane.b32.xlu0 %v4443, 32
    %v4512 = vpop.permute.xlu0 %4511
    %4513 = vrot.lane.b32.xlu0 %v3624, 32
    %v4514 = vpop.permute.xlu0 %4513
    %4515 = vrot.lane.b32.xlu0 %v3626, 32
    %v4516 = vpop.permute.xlu0 %4515
    %4517 = vrot.lane.b32.xlu0 %v3629, 32
    %v4518 = vpop.permute.xlu0 %4517
    %4519 = vrot.lane.b32.xlu0 %v3631, 32
    %v4520 = vpop.permute.xlu0 %4519
    %4521 = vrot.lane.b32.xlu0 %v3634, 32
    %v4522 = vpop.permute.xlu0 %4521
    %4523 = vrot.lane.b32.xlu0 %v3636, 32
    %v4524 = vpop.permute.xlu0 %4523
    %4525 = vrot.lane.b32.xlu0 %v3639, 32
    %v4526 = vpop.permute.xlu0 %4525
    %4527 = vrot.lane.b32.xlu0 %v3641, 32
    %v4528 = vpop.permute.xlu0 %4527
    %4529 = vrot.lane.b32.xlu0 %v3644, 32
    %v4530 = vpop.permute.xlu0 %4529
    %4531 = vrot.lane.b32.xlu0 %v3646, 32
    %v4532 = vpop.permute.xlu0 %4531
    %4533 = vrot.lane.b32.xlu0 %v3649, 32
    %v4534 = vpop.permute.xlu0 %4533
    %4535 = vrot.lane.b32.xlu0 %v3651, 32
    %v4536 = vpop.permute.xlu0 %4535
    %4537 = vrot.lane.b32.xlu0 %v3654, 32
    %v4538 = vpop.permute.xlu0 %4537
    %4539 = vrot.lane.b32.xlu0 %v3656, 32
    %v4540 = vpop.permute.xlu0 %4539
    %4541 = vrot.lane.b32.xlu0 %v3659, 32
    %v4542 = vpop.permute.xlu0 %4541
    %4543 = vrot.lane.b32.xlu0 %v3661, 32
    %v4544 = vpop.permute.xlu0 %4543
    %4545 = vrot.lane.b32.xlu0 %v3664, 32
    %v4546 = vpop.permute.xlu0 %4545
    %4547 = vrot.lane.b32.xlu0 %v3666, 32
    %v4548 = vpop.permute.xlu0 %4547
    %4549 = vrot.lane.b32.xlu0 %v3669, 32
    %v4550 = vpop.permute.xlu0 %4549
    %4551 = vrot.lane.b32.xlu0 %v3671, 32
    %v4552 = vpop.permute.xlu0 %4551
    %4553 = vrot.lane.b32.xlu0 %v3674, 32
    %v4554 = vpop.permute.xlu0 %4553
    %4555 = vrot.lane.b32.xlu0 %v3676, 32
    %v4556 = vpop.permute.xlu0 %4555
    %4557 = vrot.lane.b32.xlu0 %v3679, 32
    %v4558 = vpop.permute.xlu0 %4557
    %4559 = vrot.lane.b32.xlu0 %v3681, 32
    %v4560 = vpop.permute.xlu0 %4559
    %4561 = vrot.lane.b32.xlu0 %v3684, 32
    %v4562 = vpop.permute.xlu0 %4561
    %4563 = vrot.lane.b32.xlu0 %v3686, 32
    %v4564 = vpop.permute.xlu0 %4563
    %4565 = vrot.lane.b32.xlu0 %v3689, 32
    %v4566 = vpop.permute.xlu0 %4565
    %4567 = vrot.lane.b32.xlu0 %v3691, 32
    %v4568 = vpop.permute.xlu0 %4567
    %4569 = vrot.lane.b32.xlu0 %v3694, 32
    %v4570 = vpop.permute.xlu0 %4569
    %4571 = vrot.lane.b32.xlu0 %v3696, 32
    %v4572 = vpop.permute.xlu0 %4571
    %4573 = vrot.lane.b32.xlu0 %v4446, 32
    %v4574 = vpop.permute.xlu0 %4573
    %4575 = vrot.lane.b32.xlu0 %v4448, 32
    %v4576 = vpop.permute.xlu0 %4575
    %v4641 = vrot.slane %v3381, 2
    %v4642 = vrot.slane %v3382, 2
    %v4643 = vsel %vm591, %v4641, %v4642
    %v4644 = vrot.slane %v3383, 2
    %v4645 = vsel %vm591, %v4642, %v4644
    %v4646 = vrot.slane %v3435, 2
    %v4647 = vrot.slane %v3436, 2
    %v4648 = vsel %vm591, %v4646, %v4647
    %v4649 = vrot.slane %v3437, 2
    %v4650 = vsel %vm591, %v4647, %v4649
    %4651 = vrot.lane.b32.xlu0 %v3896, 40
    %v4652 = vpop.permute.xlu0 %4651
    %4653 = vrot.lane.b32.xlu0 %v3898, 40
    %v4654 = vpop.permute.xlu0 %4653
    %4655 = vrot.lane.b32.xlu0 %v3901, 40
    %v4656 = vpop.permute.xlu0 %4655
    %4657 = vrot.lane.b32.xlu0 %v3903, 40
    %v4658 = vpop.permute.xlu0 %4657
    %4659 = vrot.lane.b32.xlu0 %v3906, 40
    %v4660 = vpop.permute.xlu0 %4659
    %4661 = vrot.lane.b32.xlu0 %v3908, 40
    %v4662 = vpop.permute.xlu0 %4661
    %4663 = vrot.lane.b32.xlu0 %v3911, 40
    %v4664 = vpop.permute.xlu0 %4663
    %4665 = vrot.lane.b32.xlu0 %v3913, 40
    %v4666 = vpop.permute.xlu0 %4665
    %4667 = vrot.lane.b32.xlu0 %v3916, 40
    %v4668 = vpop.permute.xlu0 %4667
    %4669 = vrot.lane.b32.xlu0 %v3918, 40
    %v4670 = vpop.permute.xlu0 %4669
    %4671 = vrot.lane.b32.xlu0 %v3921, 40
    %v4672 = vpop.permute.xlu0 %4671
    %4673 = vrot.lane.b32.xlu0 %v3923, 40
    %v4674 = vpop.permute.xlu0 %4673
    %4675 = vrot.lane.b32.xlu0 %v3926, 40
    %v4676 = vpop.permute.xlu0 %4675
    %4677 = vrot.lane.b32.xlu0 %v3928, 40
    %v4678 = vpop.permute.xlu0 %4677
    %4679 = vrot.lane.b32.xlu0 %v3931, 40
    %v4680 = vpop.permute.xlu0 %4679
    %4681 = vrot.lane.b32.xlu0 %v3933, 40
    %v4682 = vpop.permute.xlu0 %4681
    %4683 = vrot.lane.b32.xlu0 %v3936, 40
    %v4684 = vpop.permute.xlu0 %4683
    %4685 = vrot.lane.b32.xlu0 %v3938, 40
    %v4686 = vpop.permute.xlu0 %4685
    %4687 = vrot.lane.b32.xlu0 %v3941, 40
    %v4688 = vpop.permute.xlu0 %4687
    %4689 = vrot.lane.b32.xlu0 %v3943, 40
    %v4690 = vpop.permute.xlu0 %4689
    %4691 = vrot.lane.b32.xlu0 %v3946, 40
    %v4692 = vpop.permute.xlu0 %4691
    %4693 = vrot.lane.b32.xlu0 %v3948, 40
    %v4694 = vpop.permute.xlu0 %4693
    %4695 = vrot.lane.b32.xlu0 %v3951, 40
    %v4696 = vpop.permute.xlu0 %4695
    %4697 = vrot.lane.b32.xlu0 %v3953, 40
    %v4698 = vpop.permute.xlu0 %4697
    %4699 = vrot.lane.b32.xlu0 %v3956, 40
    %v4700 = vpop.permute.xlu0 %4699
    %4701 = vrot.lane.b32.xlu0 %v3958, 40
    %v4702 = vpop.permute.xlu0 %4701
    %4703 = vrot.lane.b32.xlu0 %v3961, 40
    %v4704 = vpop.permute.xlu0 %4703
    %4705 = vrot.lane.b32.xlu0 %v3963, 40
    %v4706 = vpop.permute.xlu0 %4705
    %4707 = vrot.lane.b32.xlu0 %v3966, 40
    %v4708 = vpop.permute.xlu0 %4707
    %4709 = vrot.lane.b32.xlu0 %v3968, 40
    %v4710 = vpop.permute.xlu0 %4709
    %4711 = vrot.lane.b32.xlu0 %v4643, 40
    %v4712 = vpop.permute.xlu0 %4711
    %4713 = vrot.lane.b32.xlu0 %v4645, 40
    %v4714 = vpop.permute.xlu0 %4713
    %4715 = vrot.lane.b32.xlu0 %v3976, 40
    %v4716 = vpop.permute.xlu0 %4715
    %4717 = vrot.lane.b32.xlu0 %v3978, 40
    %v4718 = vpop.permute.xlu0 %4717
    %4719 = vrot.lane.b32.xlu0 %v3981, 40
    %v4720 = vpop.permute.xlu0 %4719
    %4721 = vrot.lane.b32.xlu0 %v3983, 40
    %v4722 = vpop.permute.xlu0 %4721
    %4723 = vrot.lane.b32.xlu0 %v3986, 40
    %v4724 = vpop.permute.xlu0 %4723
    %4725 = vrot.lane.b32.xlu0 %v3988, 40
    %v4726 = vpop.permute.xlu0 %4725
    %4727 = vrot.lane.b32.xlu0 %v3991, 40
    %v4728 = vpop.permute.xlu0 %4727
    %4729 = vrot.lane.b32.xlu0 %v3993, 40
    %v4730 = vpop.permute.xlu0 %4729
    %4731 = vrot.lane.b32.xlu0 %v3996, 40
    %v4732 = vpop.permute.xlu0 %4731
    %4733 = vrot.lane.b32.xlu0 %v3998, 40
    %v4734 = vpop.permute.xlu0 %4733
    %4735 = vrot.lane.b32.xlu0 %v4001, 40
    %v4736 = vpop.permute.xlu0 %4735
    %4737 = vrot.lane.b32.xlu0 %v4003, 40
    %v4738 = vpop.permute.xlu0 %4737
    %4739 = vrot.lane.b32.xlu0 %v4006, 40
    %v4740 = vpop.permute.xlu0 %4739
    %4741 = vrot.lane.b32.xlu0 %v4008, 40
    %v4742 = vpop.permute.xlu0 %4741
    %4743 = vrot.lane.b32.xlu0 %v4011, 40
    %v4744 = vpop.permute.xlu0 %4743
    %4745 = vrot.lane.b32.xlu0 %v4013, 40
    %v4746 = vpop.permute.xlu0 %4745
    %4747 = vrot.lane.b32.xlu0 %v4016, 40
    %v4748 = vpop.permute.xlu0 %4747
    %4749 = vrot.lane.b32.xlu0 %v4018, 40
    %v4750 = vpop.permute.xlu0 %4749
    %4751 = vrot.lane.b32.xlu0 %v4021, 40
    %v4752 = vpop.permute.xlu0 %4751
    %4753 = vrot.lane.b32.xlu0 %v4023, 40
    %v4754 = vpop.permute.xlu0 %4753
    %4755 = vrot.lane.b32.xlu0 %v4026, 40
    %v4756 = vpop.permute.xlu0 %4755
    %4757 = vrot.lane.b32.xlu0 %v4028, 40
    %v4758 = vpop.permute.xlu0 %4757
    %4759 = vrot.lane.b32.xlu0 %v4031, 40
    %v4760 = vpop.permute.xlu0 %4759
    %4761 = vrot.lane.b32.xlu0 %v4033, 40
    %v4762 = vpop.permute.xlu0 %4761
    %4763 = vrot.lane.b32.xlu0 %v4036, 40
    %v4764 = vpop.permute.xlu0 %4763
    %4765 = vrot.lane.b32.xlu0 %v4038, 40
    %v4766 = vpop.permute.xlu0 %4765
    %4767 = vrot.lane.b32.xlu0 %v4041, 40
    %v4768 = vpop.permute.xlu0 %4767
    %4769 = vrot.lane.b32.xlu0 %v4043, 40
    %v4770 = vpop.permute.xlu0 %4769
    %4771 = vrot.lane.b32.xlu0 %v4046, 40
    %v4772 = vpop.permute.xlu0 %4771
    %4773 = vrot.lane.b32.xlu0 %v4048, 40
    %v4774 = vpop.permute.xlu0 %4773
    %4775 = vrot.lane.b32.xlu0 %v4648, 40
    %v4776 = vpop.permute.xlu0 %4775
    %4777 = vrot.lane.b32.xlu0 %v4650, 40
    %v4778 = vpop.permute.xlu0 %4777
    %4847 = vrot.lane.b32.xlu0 %v3339, 48
    %v4848 = vpop.permute.xlu0 %4847
    %4849 = vrot.lane.b32.xlu0 %v3340, 48
    %v4850 = vpop.permute.xlu0 %4849
    %4851 = vrot.lane.b32.xlu0 %v3342, 48
    %v4852 = vpop.permute.xlu0 %4851
    %4853 = vrot.lane.b32.xlu0 %v3343, 48
    %v4854 = vpop.permute.xlu0 %4853
    %4855 = vrot.lane.b32.xlu0 %v3345, 48
    %v4856 = vpop.permute.xlu0 %4855
    %4857 = vrot.lane.b32.xlu0 %v3346, 48
    %v4858 = vpop.permute.xlu0 %4857
    %4859 = vrot.lane.b32.xlu0 %v3348, 48
    %v4860 = vpop.permute.xlu0 %4859
    %4861 = vrot.lane.b32.xlu0 %v3349, 48
    %v4862 = vpop.permute.xlu0 %4861
    %4863 = vrot.lane.b32.xlu0 %v3351, 48
    %v4864 = vpop.permute.xlu0 %4863
    %4865 = vrot.lane.b32.xlu0 %v3352, 48
    %v4866 = vpop.permute.xlu0 %4865
    %4867 = vrot.lane.b32.xlu0 %v3354, 48
    %v4868 = vpop.permute.xlu0 %4867
    %4869 = vrot.lane.b32.xlu0 %v3355, 48
    %v4870 = vpop.permute.xlu0 %4869
    %4871 = vrot.lane.b32.xlu0 %v3357, 48
    %v4872 = vpop.permute.xlu0 %4871
    %4873 = vrot.lane.b32.xlu0 %v3358, 48
    %v4874 = vpop.permute.xlu0 %4873
    %4875 = vrot.lane.b32.xlu0 %v3360, 48
    %v4876 = vpop.permute.xlu0 %4875
    %4877 = vrot.lane.b32.xlu0 %v3361, 48
    %v4878 = vpop.permute.xlu0 %4877
    %4879 = vrot.lane.b32.xlu0 %v3363, 48
    %v4880 = vpop.permute.xlu0 %4879
    %4881 = vrot.lane.b32.xlu0 %v3364, 48
    %v4882 = vpop.permute.xlu0 %4881
    %4883 = vrot.lane.b32.xlu0 %v3366, 48
    %v4884 = vpop.permute.xlu0 %4883
    %4885 = vrot.lane.b32.xlu0 %v3367, 48
    %v4886 = vpop.permute.xlu0 %4885
    %4887 = vrot.lane.b32.xlu0 %v3369, 48
    %v4888 = vpop.permute.xlu0 %4887
    %4889 = vrot.lane.b32.xlu0 %v3370, 48
    %v4890 = vpop.permute.xlu0 %4889
    %4891 = vrot.lane.b32.xlu0 %v3372, 48
    %v4892 = vpop.permute.xlu0 %4891
    %4893 = vrot.lane.b32.xlu0 %v3373, 48
    %v4894 = vpop.permute.xlu0 %4893
    %4895 = vrot.lane.b32.xlu0 %v3375, 48
    %v4896 = vpop.permute.xlu0 %4895
    %4897 = vrot.lane.b32.xlu0 %v3376, 48
    %v4898 = vpop.permute.xlu0 %4897
    %4899 = vrot.lane.b32.xlu0 %v3378, 48
    %v4900 = vpop.permute.xlu0 %4899
    %4901 = vrot.lane.b32.xlu0 %v3379, 48
    %v4902 = vpop.permute.xlu0 %4901
    %4903 = vrot.lane.b32.xlu0 %v3381, 48
    %v4904 = vpop.permute.xlu0 %4903
    %4905 = vrot.lane.b32.xlu0 %v3382, 48
    %v4906 = vpop.permute.xlu0 %4905
    %4907 = vrot.lane.b32.xlu0 %v3384, 48
    %v4908 = vpop.permute.xlu0 %4907
    %4909 = vrot.lane.b32.xlu0 %v3385, 48
    %v4910 = vpop.permute.xlu0 %4909
    %4911 = vrot.lane.b32.xlu0 %v3393, 48
    %v4912 = vpop.permute.xlu0 %4911
    %4913 = vrot.lane.b32.xlu0 %v3394, 48
    %v4914 = vpop.permute.xlu0 %4913
    %4915 = vrot.lane.b32.xlu0 %v3396, 48
    %v4916 = vpop.permute.xlu0 %4915
    %4917 = vrot.lane.b32.xlu0 %v3397, 48
    %v4918 = vpop.permute.xlu0 %4917
    %4919 = vrot.lane.b32.xlu0 %v3399, 48
    %v4920 = vpop.permute.xlu0 %4919
    %4921 = vrot.lane.b32.xlu0 %v3400, 48
    %v4922 = vpop.permute.xlu0 %4921
    %4923 = vrot.lane.b32.xlu0 %v3402, 48
    %v4924 = vpop.permute.xlu0 %4923
    %4925 = vrot.lane.b32.xlu0 %v3403, 48
    %v4926 = vpop.permute.xlu0 %4925
    %4927 = vrot.lane.b32.xlu0 %v3405, 48
    %v4928 = vpop.permute.xlu0 %4927
    %4929 = vrot.lane.b32.xlu0 %v3406, 48
    %v4930 = vpop.permute.xlu0 %4929
    %4931 = vrot.lane.b32.xlu0 %v3408, 48
    %v4932 = vpop.permute.xlu0 %4931
    %4933 = vrot.lane.b32.xlu0 %v3409, 48
    %v4934 = vpop.permute.xlu0 %4933
    %4935 = vrot.lane.b32.xlu0 %v3411, 48
    %v4936 = vpop.permute.xlu0 %4935
    %4937 = vrot.lane.b32.xlu0 %v3412, 48
    %v4938 = vpop.permute.xlu0 %4937
    %4939 = vrot.lane.b32.xlu0 %v3414, 48
    %v4940 = vpop.permute.xlu0 %4939
    %4941 = vrot.lane.b32.xlu0 %v3415, 48
    %v4942 = vpop.permute.xlu0 %4941
    %4943 = vrot.lane.b32.xlu0 %v3417, 48
    %v4944 = vpop.permute.xlu0 %4943
    %4945 = vrot.lane.b32.xlu0 %v3418, 48
    %v4946 = vpop.permute.xlu0 %4945
    %4947 = vrot.lane.b32.xlu0 %v3420, 48
    %v4948 = vpop.permute.xlu0 %4947
    %4949 = vrot.lane.b32.xlu0 %v3421, 48
    %v4950 = vpop.permute.xlu0 %4949
    %4951 = vrot.lane.b32.xlu0 %v3423, 48
    %v4952 = vpop.permute.xlu0 %4951
    %4953 = vrot.lane.b32.xlu0 %v3424, 48
    %v4954 = vpop.permute.xlu0 %4953
    %4955 = vrot.lane.b32.xlu0 %v3426, 48
    %v4956 = vpop.permute.xlu0 %4955
    %4957 = vrot.lane.b32.xlu0 %v3427, 48
    %v4958 = vpop.permute.xlu0 %4957
    %4959 = vrot.lane.b32.xlu0 %v3429, 48
    %v4960 = vpop.permute.xlu0 %4959
    %4961 = vrot.lane.b32.xlu0 %v3430, 48
    %v4962 = vpop.permute.xlu0 %4961
    %4963 = vrot.lane.b32.xlu0 %v3432, 48
    %v4964 = vpop.permute.xlu0 %4963
    %4965 = vrot.lane.b32.xlu0 %v3433, 48
    %v4966 = vpop.permute.xlu0 %4965
    %4967 = vrot.lane.b32.xlu0 %v3435, 48
    %v4968 = vpop.permute.xlu0 %4967
    %4969 = vrot.lane.b32.xlu0 %v3436, 48
    %v4970 = vpop.permute.xlu0 %4969
    %4971 = vrot.lane.b32.xlu0 %v3438, 48
    %v4972 = vpop.permute.xlu0 %4971
    %4973 = vrot.lane.b32.xlu0 %v3439, 48
    %v4974 = vpop.permute.xlu0 %4973
    %v5041 = vrot.slane %v3384, 1
    %v5042 = vrot.slane %v3385, 1
    %v5043 = vsel %vm238, %v5041, %v5042
    %v5044 = vrot.slane %v3386, 1
    %v5045 = vsel %vm238, %v5042, %v5044
    %v5046 = vrot.slane %v3438, 1
    %v5047 = vrot.slane %v3439, 1
    %v5048 = vsel %vm238, %v5046, %v5047
    %v5049 = vrot.slane %v3440, 1
    %v5050 = vsel %vm238, %v5047, %v5049
    %5051 = vrot.lane.b32.xlu0 %v3549, 56
    %v5052 = vpop.permute.xlu0 %5051
    %5053 = vrot.lane.b32.xlu0 %v3551, 56
    %v5054 = vpop.permute.xlu0 %5053
    %5055 = vrot.lane.b32.xlu0 %v3554, 56
    %v5056 = vpop.permute.xlu0 %5055
    %5057 = vrot.lane.b32.xlu0 %v3556, 56
    %v5058 = vpop.permute.xlu0 %5057
    %5059 = vrot.lane.b32.xlu0 %v3559, 56
    %v5060 = vpop.permute.xlu0 %5059
    %5061 = vrot.lane.b32.xlu0 %v3561, 56
    %v5062 = vpop.permute.xlu0 %5061
    %5063 = vrot.lane.b32.xlu0 %v3564, 56
    %v5064 = vpop.permute.xlu0 %5063
    %5065 = vrot.lane.b32.xlu0 %v3566, 56
    %v5066 = vpop.permute.xlu0 %5065
    %5067 = vrot.lane.b32.xlu0 %v3569, 56
    %v5068 = vpop.permute.xlu0 %5067
    %5069 = vrot.lane.b32.xlu0 %v3571, 56
    %v5070 = vpop.permute.xlu0 %5069
    %5071 = vrot.lane.b32.xlu0 %v3574, 56
    %v5072 = vpop.permute.xlu0 %5071
    %5073 = vrot.lane.b32.xlu0 %v3576, 56
    %v5074 = vpop.permute.xlu0 %5073
    %5075 = vrot.lane.b32.xlu0 %v3579, 56
    %v5076 = vpop.permute.xlu0 %5075
    %5077 = vrot.lane.b32.xlu0 %v3581, 56
    %v5078 = vpop.permute.xlu0 %5077
    %5079 = vrot.lane.b32.xlu0 %v3584, 56
    %v5080 = vpop.permute.xlu0 %5079
    %5081 = vrot.lane.b32.xlu0 %v3586, 56
    %v5082 = vpop.permute.xlu0 %5081
    %5083 = vrot.lane.b32.xlu0 %v3589, 56
    %v5084 = vpop.permute.xlu0 %5083
    %5085 = vrot.lane.b32.xlu0 %v3591, 56
    %v5086 = vpop.permute.xlu0 %5085
    %5087 = vrot.lane.b32.xlu0 %v3594, 56
    %v5088 = vpop.permute.xlu0 %5087
    %5089 = vrot.lane.b32.xlu0 %v3596, 56
    %v5090 = vpop.permute.xlu0 %5089
    %5091 = vrot.lane.b32.xlu0 %v3599, 56
    %v5092 = vpop.permute.xlu0 %5091
    %5093 = vrot.lane.b32.xlu0 %v3601, 56
    %v5094 = vpop.permute.xlu0 %5093
    %5095 = vrot.lane.b32.xlu0 %v3604, 56
    %v5096 = vpop.permute.xlu0 %5095
    %5097 = vrot.lane.b32.xlu0 %v3606, 56
    %v5098 = vpop.permute.xlu0 %5097
    %5099 = vrot.lane.b32.xlu0 %v3609, 56
    %v5100 = vpop.permute.xlu0 %5099
    %5101 = vrot.lane.b32.xlu0 %v3611, 56
    %v5102 = vpop.permute.xlu0 %5101
    %5103 = vrot.lane.b32.xlu0 %v3614, 56
    %v5104 = vpop.permute.xlu0 %5103
    %5105 = vrot.lane.b32.xlu0 %v3616, 56
    %v5106 = vpop.permute.xlu0 %5105
    %5107 = vrot.lane.b32.xlu0 %v4441, 56
    %v5108 = vpop.permute.xlu0 %5107
    %5109 = vrot.lane.b32.xlu0 %v4443, 56
    %v5110 = vpop.permute.xlu0 %5109
    %5111 = vrot.lane.b32.xlu0 %v5043, 56
    %v5112 = vpop.permute.xlu0 %5111
    %5113 = vrot.lane.b32.xlu0 %v5045, 56
    %v5114 = vpop.permute.xlu0 %5113
    %5115 = vrot.lane.b32.xlu0 %v3629, 56
    %v5116 = vpop.permute.xlu0 %5115
    %5117 = vrot.lane.b32.xlu0 %v3631, 56
    %v5118 = vpop.permute.xlu0 %5117
    %5119 = vrot.lane.b32.xlu0 %v3634, 56
    %v5120 = vpop.permute.xlu0 %5119
    %5121 = vrot.lane.b32.xlu0 %v3636, 56
    %v5122 = vpop.permute.xlu0 %5121
    %5123 = vrot.lane.b32.xlu0 %v3639, 56
    %v5124 = vpop.permute.xlu0 %5123
    %5125 = vrot.lane.b32.xlu0 %v3641, 56
    %v5126 = vpop.permute.xlu0 %5125
    %5127 = vrot.lane.b32.xlu0 %v3644, 56
    %v5128 = vpop.permute.xlu0 %5127
    %5129 = vrot.lane.b32.xlu0 %v3646, 56
    %v5130 = vpop.permute.xlu0 %5129
    %5131 = vrot.lane.b32.xlu0 %v3649, 56
    %v5132 = vpop.permute.xlu0 %5131
    %5133 = vrot.lane.b32.xlu0 %v3651, 56
    %v5134 = vpop.permute.xlu0 %5133
    %5135 = vrot.lane.b32.xlu0 %v3654, 56
    %v5136 = vpop.permute.xlu0 %5135
    %5137 = vrot.lane.b32.xlu0 %v3656, 56
    %v5138 = vpop.permute.xlu0 %5137
    %5139 = vrot.lane.b32.xlu0 %v3659, 56
    %v5140 = vpop.permute.xlu0 %5139
    %5141 = vrot.lane.b32.xlu0 %v3661, 56
    %v5142 = vpop.permute.xlu0 %5141
    %5143 = vrot.lane.b32.xlu0 %v3664, 56
    %v5144 = vpop.permute.xlu0 %5143
    %5145 = vrot.lane.b32.xlu0 %v3666, 56
    %v5146 = vpop.permute.xlu0 %5145
    %5147 = vrot.lane.b32.xlu0 %v3669, 56
    %v5148 = vpop.permute.xlu0 %5147
    %5149 = vrot.lane.b32.xlu0 %v3671, 56
    %v5150 = vpop.permute.xlu0 %5149
    %5151 = vrot.lane.b32.xlu0 %v3674, 56
    %v5152 = vpop.permute.xlu0 %5151
    %5153 = vrot.lane.b32.xlu0 %v3676, 56
    %v5154 = vpop.permute.xlu0 %5153
    %5155 = vrot.lane.b32.xlu0 %v3679, 56
    %v5156 = vpop.permute.xlu0 %5155
    %5157 = vrot.lane.b32.xlu0 %v3681, 56
    %v5158 = vpop.permute.xlu0 %5157
    %5159 = vrot.lane.b32.xlu0 %v3684, 56
    %v5160 = vpop.permute.xlu0 %5159
    %5161 = vrot.lane.b32.xlu0 %v3686, 56
    %v5162 = vpop.permute.xlu0 %5161
    %5163 = vrot.lane.b32.xlu0 %v3689, 56
    %v5164 = vpop.permute.xlu0 %5163
    %5165 = vrot.lane.b32.xlu0 %v3691, 56
    %v5166 = vpop.permute.xlu0 %5165
    %5167 = vrot.lane.b32.xlu0 %v3694, 56
    %v5168 = vpop.permute.xlu0 %5167
    %5169 = vrot.lane.b32.xlu0 %v3696, 56
    %v5170 = vpop.permute.xlu0 %5169
    %5171 = vrot.lane.b32.xlu0 %v4446, 56
    %v5172 = vpop.permute.xlu0 %5171
    %5173 = vrot.lane.b32.xlu0 %v4448, 56
    %v5174 = vpop.permute.xlu0 %5173
    %5175 = vrot.lane.b32.xlu0 %v5048, 56
    %v5176 = vpop.permute.xlu0 %5175
    %5177 = vrot.lane.b32.xlu0 %v5050, 56
    %v5178 = vpop.permute.xlu0 %5177
    %v5243 = vrot.slane %v3384, 2
    %v5244 = vrot.slane %v3385, 2
    %v5245 = vsel %vm591, %v5243, %v5244
    %v5246 = vrot.slane %v3386, 2
    %v5247 = vsel %vm591, %v5244, %v5246
    %v5248 = vrot.slane %v3438, 2
    %v5249 = vrot.slane %v3439, 2
    %v5250 = vsel %vm591, %v5248, %v5249
    %v5251 = vrot.slane %v3440, 2
    %v5252 = vsel %vm591, %v5249, %v5251
    %5253 = vrot.lane.b32.xlu0 %v3901, 64
    %v5254 = vpop.permute.xlu0 %5253
    %5255 = vrot.lane.b32.xlu0 %v3903, 64
    %v5256 = vpop.permute.xlu0 %5255
    %5257 = vrot.lane.b32.xlu0 %v3906, 64
    %v5258 = vpop.permute.xlu0 %5257
    %5259 = vrot.lane.b32.xlu0 %v3908, 64
    %v5260 = vpop.permute.xlu0 %5259
    %5261 = vrot.lane.b32.xlu0 %v3911, 64
    %v5262 = vpop.permute.xlu0 %5261
    %5263 = vrot.lane.b32.xlu0 %v3913, 64
    %v5264 = vpop.permute.xlu0 %5263
    %5265 = vrot.lane.b32.xlu0 %v3916, 64
    %v5266 = vpop.permute.xlu0 %5265
    %5267 = vrot.lane.b32.xlu0 %v3918, 64
    %v5268 = vpop.permute.xlu0 %5267
    %5269 = vrot.lane.b32.xlu0 %v3921, 64
    %v5270 = vpop.permute.xlu0 %5269
    %5271 = vrot.lane.b32.xlu0 %v3923, 64
    %v5272 = vpop.permute.xlu0 %5271
    %5273 = vrot.lane.b32.xlu0 %v3926, 64
    %v5274 = vpop.permute.xlu0 %5273
    %5275 = vrot.lane.b32.xlu0 %v3928, 64
    %v5276 = vpop.permute.xlu0 %5275
    %5277 = vrot.lane.b32.xlu0 %v3931, 64
    %v5278 = vpop.permute.xlu0 %5277
    %5279 = vrot.lane.b32.xlu0 %v3933, 64
    %v5280 = vpop.permute.xlu0 %5279
    %5281 = vrot.lane.b32.xlu0 %v3936, 64
    %v5282 = vpop.permute.xlu0 %5281
    %5283 = vrot.lane.b32.xlu0 %v3938, 64
    %v5284 = vpop.permute.xlu0 %5283
    %5285 = vrot.lane.b32.xlu0 %v3941, 64
    %v5286 = vpop.permute.xlu0 %5285
    %5287 = vrot.lane.b32.xlu0 %v3943, 64
    %v5288 = vpop.permute.xlu0 %5287
    %5289 = vrot.lane.b32.xlu0 %v3946, 64
    %v5290 = vpop.permute.xlu0 %5289
    %5291 = vrot.lane.b32.xlu0 %v3948, 64
    %v5292 = vpop.permute.xlu0 %5291
    %5293 = vrot.lane.b32.xlu0 %v3951, 64
    %v5294 = vpop.permute.xlu0 %5293
    %5295 = vrot.lane.b32.xlu0 %v3953, 64
    %v5296 = vpop.permute.xlu0 %5295
    %5297 = vrot.lane.b32.xlu0 %v3956, 64
    %v5298 = vpop.permute.xlu0 %5297
    %5299 = vrot.lane.b32.xlu0 %v3958, 64
    %v5300 = vpop.permute.xlu0 %5299
    %5301 = vrot.lane.b32.xlu0 %v3961, 64
    %v5302 = vpop.permute.xlu0 %5301
    %5303 = vrot.lane.b32.xlu0 %v3963, 64
    %v5304 = vpop.permute.xlu0 %5303
    %5305 = vrot.lane.b32.xlu0 %v3966, 64
    %v5306 = vpop.permute.xlu0 %5305
    %5307 = vrot.lane.b32.xlu0 %v3968, 64
    %v5308 = vpop.permute.xlu0 %5307
    %5309 = vrot.lane.b32.xlu0 %v4643, 64
    %v5310 = vpop.permute.xlu0 %5309
    %5311 = vrot.lane.b32.xlu0 %v4645, 64
    %v5312 = vpop.permute.xlu0 %5311
    %5313 = vrot.lane.b32.xlu0 %v5245, 64
    %v5314 = vpop.permute.xlu0 %5313
    %5315 = vrot.lane.b32.xlu0 %v5247, 64
    %v5316 = vpop.permute.xlu0 %5315
    %5317 = vrot.lane.b32.xlu0 %v3981, 64
    %v5318 = vpop.permute.xlu0 %5317
    %5319 = vrot.lane.b32.xlu0 %v3983, 64
    %v5320 = vpop.permute.xlu0 %5319
    %5321 = vrot.lane.b32.xlu0 %v3986, 64
    %v5322 = vpop.permute.xlu0 %5321
    %5323 = vrot.lane.b32.xlu0 %v3988, 64
    %v5324 = vpop.permute.xlu0 %5323
    %5325 = vrot.lane.b32.xlu0 %v3991, 64
    %v5326 = vpop.permute.xlu0 %5325
    %5327 = vrot.lane.b32.xlu0 %v3993, 64
    %v5328 = vpop.permute.xlu0 %5327
    %5329 = vrot.lane.b32.xlu0 %v3996, 64
    %v5330 = vpop.permute.xlu0 %5329
    %5331 = vrot.lane.b32.xlu0 %v3998, 64
    %v5332 = vpop.permute.xlu0 %5331
    %5333 = vrot.lane.b32.xlu0 %v4001, 64
    %v5334 = vpop.permute.xlu0 %5333
    %5335 = vrot.lane.b32.xlu0 %v4003, 64
    %v5336 = vpop.permute.xlu0 %5335
    %5337 = vrot.lane.b32.xlu0 %v4006, 64
    %v5338 = vpop.permute.xlu0 %5337
    %5339 = vrot.lane.b32.xlu0 %v4008, 64
    %v5340 = vpop.permute.xlu0 %5339
    %5341 = vrot.lane.b32.xlu0 %v4011, 64
    %v5342 = vpop.permute.xlu0 %5341
    %5343 = vrot.lane.b32.xlu0 %v4013, 64
    %v5344 = vpop.permute.xlu0 %5343
    %5345 = vrot.lane.b32.xlu0 %v4016, 64
    %v5346 = vpop.permute.xlu0 %5345
    %5347 = vrot.lane.b32.xlu0 %v4018, 64
    %v5348 = vpop.permute.xlu0 %5347
    %5349 = vrot.lane.b32.xlu0 %v4021, 64
    %v5350 = vpop.permute.xlu0 %5349
    %5351 = vrot.lane.b32.xlu0 %v4023, 64
    %v5352 = vpop.permute.xlu0 %5351
    %5353 = vrot.lane.b32.xlu0 %v4026, 64
    %v5354 = vpop.permute.xlu0 %5353
    %5355 = vrot.lane.b32.xlu0 %v4028, 64
    %v5356 = vpop.permute.xlu0 %5355
    %5357 = vrot.lane.b32.xlu0 %v4031, 64
    %v5358 = vpop.permute.xlu0 %5357
    %5359 = vrot.lane.b32.xlu0 %v4033, 64
    %v5360 = vpop.permute.xlu0 %5359
    %5361 = vrot.lane.b32.xlu0 %v4036, 64
    %v5362 = vpop.permute.xlu0 %5361
    %5363 = vrot.lane.b32.xlu0 %v4038, 64
    %v5364 = vpop.permute.xlu0 %5363
    %5365 = vrot.lane.b32.xlu0 %v4041, 64
    %v5366 = vpop.permute.xlu0 %5365
    %5367 = vrot.lane.b32.xlu0 %v4043, 64
    %v5368 = vpop.permute.xlu0 %5367
    %5369 = vrot.lane.b32.xlu0 %v4046, 64
    %v5370 = vpop.permute.xlu0 %5369
    %5371 = vrot.lane.b32.xlu0 %v4048, 64
    %v5372 = vpop.permute.xlu0 %5371
    %5373 = vrot.lane.b32.xlu0 %v4648, 64
    %v5374 = vpop.permute.xlu0 %5373
    %5375 = vrot.lane.b32.xlu0 %v4650, 64
    %v5376 = vpop.permute.xlu0 %5375
    %5377 = vrot.lane.b32.xlu0 %v5250, 64
    %v5378 = vpop.permute.xlu0 %5377
    %5379 = vrot.lane.b32.xlu0 %v5252, 64
    %v5380 = vpop.permute.xlu0 %5379
    %v5445 = vsel %vm2213, %v3333, %v3698
    %v5446 = vsel %vm2213, %v3334, %v3700
    %v5447 = vsel %vm2213, %v3336, %v3702
    %v5448 = vsel %vm2213, %v3337, %v3704
    %v5449 = vsel %vm2213, %v3339, %v3706
    %v5450 = vsel %vm2213, %v3340, %v3708
    %v5451 = vsel %vm2213, %v3342, %v3710
    %v5452 = vsel %vm2213, %v3343, %v3712
    %v5453 = vsel %vm2213, %v3345, %v3714
    %v5454 = vsel %vm2213, %v3346, %v3716
    %v5455 = vsel %vm2213, %v3348, %v3718
    %v5456 = vsel %vm2213, %v3349, %v3720
    %v5457 = vsel %vm2213, %v3351, %v3722
    %v5458 = vsel %vm2213, %v3352, %v3724
    %v5459 = vsel %vm2213, %v3354, %v3726
    %v5460 = vsel %vm2213, %v3355, %v3728
    %v5461 = vsel %vm2213, %v3357, %v3730
    %v5462 = vsel %vm2213, %v3358, %v3732
    %v5463 = vsel %vm2213, %v3360, %v3734
    %v5464 = vsel %vm2213, %v3361, %v3736
    %v5465 = vsel %vm2213, %v3363, %v3738
    %v5466 = vsel %vm2213, %v3364, %v3740
    %v5467 = vsel %vm2213, %v3366, %v3742
    %v5468 = vsel %vm2213, %v3367, %v3744
    %v5469 = vsel %vm2213, %v3369, %v3746
    %v5470 = vsel %vm2213, %v3370, %v3748
    %v5471 = vsel %vm2213, %v3372, %v3750
    %v5472 = vsel %vm2213, %v3373, %v3752
    %v5473 = vsel %vm2213, %v3375, %v3754
    %v5474 = vsel %vm2213, %v3376, %v3756
    %v5475 = vsel %vm2213, %v3378, %v3758
    %v5476 = vsel %vm2213, %v3379, %v3760
    %v5477 = vsel %vm2213, %v3387, %v3762
    %v5478 = vsel %vm2213, %v3388, %v3764
    %v5479 = vsel %vm2213, %v3390, %v3766
    %v5480 = vsel %vm2213, %v3391, %v3768
    %v5481 = vsel %vm2213, %v3393, %v3770
    %v5482 = vsel %vm2213, %v3394, %v3772
    %v5483 = vsel %vm2213, %v3396, %v3774
    %v5484 = vsel %vm2213, %v3397, %v3776
    %v5485 = vsel %vm2213, %v3399, %v3778
    %v5486 = vsel %vm2213, %v3400, %v3780
    %v5487 = vsel %vm2213, %v3402, %v3782
    %v5488 = vsel %vm2213, %v3403, %v3784
    %v5489 = vsel %vm2213, %v3405, %v3786
    %v5490 = vsel %vm2213, %v3406, %v3788
    %v5491 = vsel %vm2213, %v3408, %v3790
    %v5492 = vsel %vm2213, %v3409, %v3792
    %v5493 = vsel %vm2213, %v3411, %v3794
    %v5494 = vsel %vm2213, %v3412, %v3796
    %v5495 = vsel %vm2213, %v3414, %v3798
    %v5496 = vsel %vm2213, %v3415, %v3800
    %v5497 = vsel %vm2213, %v3417, %v3802
    %v5498 = vsel %vm2213, %v3418, %v3804
    %v5499 = vsel %vm2213, %v3420, %v3806
    %v5500 = vsel %vm2213, %v3421, %v3808
    %v5501 = vsel %vm2213, %v3423, %v3810
    %v5502 = vsel %vm2213, %v3424, %v3812
    %v5503 = vsel %vm2213, %v3426, %v3814
    %v5504 = vsel %vm2213, %v3427, %v3816
    %v5505 = vsel %vm2213, %v3429, %v3818
    %v5506 = vsel %vm2213, %v3430, %v3820
    %v5507 = vsel %vm2213, %v3432, %v3822
    %v5508 = vsel %vm2213, %v3433, %v3824
    %v5509 = vsel %vm2343, %v5445, %v4050
    %v5510 = vsel %vm2343, %v5446, %v4052
    %v5511 = vsel %vm2343, %v5447, %v4054
    %v5512 = vsel %vm2343, %v5448, %v4056
    %v5513 = vsel %vm2343, %v5449, %v4058
    %v5514 = vsel %vm2343, %v5450, %v4060
    %v5515 = vsel %vm2343, %v5451, %v4062
    %v5516 = vsel %vm2343, %v5452, %v4064
    %v5517 = vsel %vm2343, %v5453, %v4066
    %v5518 = vsel %vm2343, %v5454, %v4068
    %v5519 = vsel %vm2343, %v5455, %v4070
    %v5520 = vsel %vm2343, %v5456, %v4072
    %v5521 = vsel %vm2343, %v5457, %v4074
    %v5522 = vsel %vm2343, %v5458, %v4076
    %v5523 = vsel %vm2343, %v5459, %v4078
    %v5524 = vsel %vm2343, %v5460, %v4080
    %v5525 = vsel %vm2343, %v5461, %v4082
    %v5526 = vsel %vm2343, %v5462, %v4084
    %v5527 = vsel %vm2343, %v5463, %v4086
    %v5528 = vsel %vm2343, %v5464, %v4088
    %v5529 = vsel %vm2343, %v5465, %v4090
    %v5530 = vsel %vm2343, %v5466, %v4092
    %v5531 = vsel %vm2343, %v5467, %v4094
    %v5532 = vsel %vm2343, %v5468, %v4096
    %v5533 = vsel %vm2343, %v5469, %v4098
    %v5534 = vsel %vm2343, %v5470, %v4100
    %v5535 = vsel %vm2343, %v5471, %v4102
    %v5536 = vsel %vm2343, %v5472, %v4104
    %v5537 = vsel %vm2343, %v5473, %v4106
    %v5538 = vsel %vm2343, %v5474, %v4108
    %v5539 = vsel %vm2343, %v5475, %v4110
    %v5540 = vsel %vm2343, %v5476, %v4112
    %v5541 = vsel %vm2343, %v5477, %v4114
    %v5542 = vsel %vm2343, %v5478, %v4116
    %v5543 = vsel %vm2343, %v5479, %v4118
    %v5544 = vsel %vm2343, %v5480, %v4120
    %v5545 = vsel %vm2343, %v5481, %v4122
    %v5546 = vsel %vm2343, %v5482, %v4124
    %v5547 = vsel %vm2343, %v5483, %v4126
    %v5548 = vsel %vm2343, %v5484, %v4128
    %v5549 = vsel %vm2343, %v5485, %v4130
    %v5550 = vsel %vm2343, %v5486, %v4132
    %v5551 = vsel %vm2343, %v5487, %v4134
    %v5552 = vsel %vm2343, %v5488, %v4136
    %v5553 = vsel %vm2343, %v5489, %v4138
    %v5554 = vsel %vm2343, %v5490, %v4140
    %v5555 = vsel %vm2343, %v5491, %v4142
    %v5556 = vsel %vm2343, %v5492, %v4144
    %v5557 = vsel %vm2343, %v5493, %v4146
    %v5558 = vsel %vm2343, %v5494, %v4148
    %v5559 = vsel %vm2343, %v5495, %v4150
    %v5560 = vsel %vm2343, %v5496, %v4152
    %v5561 = vsel %vm2343, %v5497, %v4154
    %v5562 = vsel %vm2343, %v5498, %v4156
    %v5563 = vsel %vm2343, %v5499, %v4158
    %v5564 = vsel %vm2343, %v5500, %v4160
    %v5565 = vsel %vm2343, %v5501, %v4162
    %v5566 = vsel %vm2343, %v5502, %v4164
    %v5567 = vsel %vm2343, %v5503, %v4166
    %v5568 = vsel %vm2343, %v5504, %v4168
    %v5569 = vsel %vm2343, %v5505, %v4170
    %v5570 = vsel %vm2343, %v5506, %v4172
    %v5571 = vsel %vm2343, %v5507, %v4174
    %v5572 = vsel %vm2343, %v5508, %v4176
    %v5573 = vsel %vm2473, %v5509, %v4246
    %v5574 = vsel %vm2473, %v5510, %v4248
    %v5575 = vsel %vm2473, %v5511, %v4250
    %v5576 = vsel %vm2473, %v5512, %v4252
    %v5577 = vsel %vm2473, %v5513, %v4254
    %v5578 = vsel %vm2473, %v5514, %v4256
    %v5579 = vsel %vm2473, %v5515, %v4258
    %v5580 = vsel %vm2473, %v5516, %v4260
    %v5581 = vsel %vm2473, %v5517, %v4262
    %v5582 = vsel %vm2473, %v5518, %v4264
    %v5583 = vsel %vm2473, %v5519, %v4266
    %v5584 = vsel %vm2473, %v5520, %v4268
    %v5585 = vsel %vm2473, %v5521, %v4270
    %v5586 = vsel %vm2473, %v5522, %v4272
    %v5587 = vsel %vm2473, %v5523, %v4274
    %v5588 = vsel %vm2473, %v5524, %v4276
    %v5589 = vsel %vm2473, %v5525, %v4278
    %v5590 = vsel %vm2473, %v5526, %v4280
    %v5591 = vsel %vm2473, %v5527, %v4282
    %v5592 = vsel %vm2473, %v5528, %v4284
    %v5593 = vsel %vm2473, %v5529, %v4286
    %v5594 = vsel %vm2473, %v5530, %v4288
    %v5595 = vsel %vm2473, %v5531, %v4290
    %v5596 = vsel %vm2473, %v5532, %v4292
    %v5597 = vsel %vm2473, %v5533, %v4294
    %v5598 = vsel %vm2473, %v5534, %v4296
    %v5599 = vsel %vm2473, %v5535, %v4298
    %v5600 = vsel %vm2473, %v5536, %v4300
    %v5601 = vsel %vm2473, %v5537, %v4302
    %v5602 = vsel %vm2473, %v5538, %v4304
    %v5603 = vsel %vm2473, %v5539, %v4306
    %v5604 = vsel %vm2473, %v5540, %v4308
    %v5605 = vsel %vm2473, %v5541, %v4310
    %v5606 = vsel %vm2473, %v5542, %v4312
    %v5607 = vsel %vm2473, %v5543, %v4314
    %v5608 = vsel %vm2473, %v5544, %v4316
    %v5609 = vsel %vm2473, %v5545, %v4318
    %v5610 = vsel %vm2473, %v5546, %v4320
    %v5611 = vsel %vm2473, %v5547, %v4322
    %v5612 = vsel %vm2473, %v5548, %v4324
    %v5613 = vsel %vm2473, %v5549, %v4326
    %v5614 = vsel %vm2473, %v5550, %v4328
    %v5615 = vsel %vm2473, %v5551, %v4330
    %v5616 = vsel %vm2473, %v5552, %v4332
    %v5617 = vsel %vm2473, %v5553, %v4334
    %v5618 = vsel %vm2473, %v5554, %v4336
    %v5619 = vsel %vm2473, %v5555, %v4338
    %v5620 = vsel %vm2473, %v5556, %v4340
    %v5621 = vsel %vm2473, %v5557, %v4342
    %v5622 = vsel %vm2473, %v5558, %v4344
    %v5623 = vsel %vm2473, %v5559, %v4346
    %v5624 = vsel %vm2473, %v5560, %v4348
    %v5625 = vsel %vm2473, %v5561, %v4350
    %v5626 = vsel %vm2473, %v5562, %v4352
    %v5627 = vsel %vm2473, %v5563, %v4354
    %v5628 = vsel %vm2473, %v5564, %v4356
    %v5629 = vsel %vm2473, %v5565, %v4358
    %v5630 = vsel %vm2473, %v5566, %v4360
    %v5631 = vsel %vm2473, %v5567, %v4362
    %v5632 = vsel %vm2473, %v5568, %v4364
    %v5633 = vsel %vm2473, %v5569, %v4366
    %v5634 = vsel %vm2473, %v5570, %v4368
    %v5635 = vsel %vm2473, %v5571, %v4370
    %v5636 = vsel %vm2473, %v5572, %v4372
    %v5637 = vsel %vm2603, %v5573, %v4450
    %v5638 = vsel %vm2603, %v5574, %v4452
    %v5639 = vsel %vm2603, %v5575, %v4454
    %v5640 = vsel %vm2603, %v5576, %v4456
    %v5641 = vsel %vm2603, %v5577, %v4458
    %v5642 = vsel %vm2603, %v5578, %v4460
    %v5643 = vsel %vm2603, %v5579, %v4462
    %v5644 = vsel %vm2603, %v5580, %v4464
    %v5645 = vsel %vm2603, %v5581, %v4466
    %v5646 = vsel %vm2603, %v5582, %v4468
    %v5647 = vsel %vm2603, %v5583, %v4470
    %v5648 = vsel %vm2603, %v5584, %v4472
    %v5649 = vsel %vm2603, %v5585, %v4474
    %v5650 = vsel %vm2603, %v5586, %v4476
    %v5651 = vsel %vm2603, %v5587, %v4478
    %v5652 = vsel %vm2603, %v5588, %v4480
    %v5653 = vsel %vm2603, %v5589, %v4482
    %v5654 = vsel %vm2603, %v5590, %v4484
    %v5655 = vsel %vm2603, %v5591, %v4486
    %v5656 = vsel %vm2603, %v5592, %v4488
    %v5657 = vsel %vm2603, %v5593, %v4490
    %v5658 = vsel %vm2603, %v5594, %v4492
    %v5659 = vsel %vm2603, %v5595, %v4494
    %v5660 = vsel %vm2603, %v5596, %v4496
    %v5661 = vsel %vm2603, %v5597, %v4498
    %v5662 = vsel %vm2603, %v5598, %v4500
    %v5663 = vsel %vm2603, %v5599, %v4502
    %v5664 = vsel %vm2603, %v5600, %v4504
    %v5665 = vsel %vm2603, %v5601, %v4506
    %v5666 = vsel %vm2603, %v5602, %v4508
    %v5667 = vsel %vm2603, %v5603, %v4510
    %v5668 = vsel %vm2603, %v5604, %v4512
    %v5669 = vsel %vm2603, %v5605, %v4514
    %v5670 = vsel %vm2603, %v5606, %v4516
    %v5671 = vsel %vm2603, %v5607, %v4518
    %v5672 = vsel %vm2603, %v5608, %v4520
    %v5673 = vsel %vm2603, %v5609, %v4522
    %v5674 = vsel %vm2603, %v5610, %v4524
    %v5675 = vsel %vm2603, %v5611, %v4526
    %v5676 = vsel %vm2603, %v5612, %v4528
    %v5677 = vsel %vm2603, %v5613, %v4530
    %v5678 = vsel %vm2603, %v5614, %v4532
    %v5679 = vsel %vm2603, %v5615, %v4534
    %v5680 = vsel %vm2603, %v5616, %v4536
    %v5681 = vsel %vm2603, %v5617, %v4538
    %v5682 = vsel %vm2603, %v5618, %v4540
    %v5683 = vsel %vm2603, %v5619, %v4542
    %v5684 = vsel %vm2603, %v5620, %v4544
    %v5685 = vsel %vm2603, %v5621, %v4546
    %v5686 = vsel %vm2603, %v5622, %v4548
    %v5687 = vsel %vm2603, %v5623, %v4550
    %v5688 = vsel %vm2603, %v5624, %v4552
    %v5689 = vsel %vm2603, %v5625, %v4554
    %v5690 = vsel %vm2603, %v5626, %v4556
    %v5691 = vsel %vm2603, %v5627, %v4558
    %v5692 = vsel %vm2603, %v5628, %v4560
    %v5693 = vsel %vm2603, %v5629, %v4562
    %v5694 = vsel %vm2603, %v5630, %v4564
    %v5695 = vsel %vm2603, %v5631, %v4566
    %v5696 = vsel %vm2603, %v5632, %v4568
    %v5697 = vsel %vm2603, %v5633, %v4570
    %v5698 = vsel %vm2603, %v5634, %v4572
    %v5699 = vsel %vm2603, %v5635, %v4574
    %v5700 = vsel %vm2603, %v5636, %v4576
    %vm5701 = vcmask 326656
    %v5702 = vsel %vm5701, %v5637, %v4652
    %v5703 = vsel %vm5701, %v5638, %v4654
    %v5704 = vsel %vm5701, %v5639, %v4656
    %v5705 = vsel %vm5701, %v5640, %v4658
    %v5706 = vsel %vm5701, %v5641, %v4660
    %v5707 = vsel %vm5701, %v5642, %v4662
    %v5708 = vsel %vm5701, %v5643, %v4664
    %v5709 = vsel %vm5701, %v5644, %v4666
    %v5710 = vsel %vm5701, %v5645, %v4668
    %v5711 = vsel %vm5701, %v5646, %v4670
    %v5712 = vsel %vm5701, %v5647, %v4672
    %v5713 = vsel %vm5701, %v5648, %v4674
    %v5714 = vsel %vm5701, %v5649, %v4676
    %v5715 = vsel %vm5701, %v5650, %v4678
    %v5716 = vsel %vm5701, %v5651, %v4680
    %v5717 = vsel %vm5701, %v5652, %v4682
    %v5718 = vsel %vm5701, %v5653, %v4684
    %v5719 = vsel %vm5701, %v5654, %v4686
    %v5720 = vsel %vm5701, %v5655, %v4688
    %v5721 = vsel %vm5701, %v5656, %v4690
    %v5722 = vsel %vm5701, %v5657, %v4692
    %v5723 = vsel %vm5701, %v5658, %v4694
    %v5724 = vsel %vm5701, %v5659, %v4696
    %v5725 = vsel %vm5701, %v5660, %v4698
    %v5726 = vsel %vm5701, %v5661, %v4700
    %v5727 = vsel %vm5701, %v5662, %v4702
    %v5728 = vsel %vm5701, %v5663, %v4704
    %v5729 = vsel %vm5701, %v5664, %v4706
    %v5730 = vsel %vm5701, %v5665, %v4708
    %v5731 = vsel %vm5701, %v5666, %v4710
    %v5732 = vsel %vm5701, %v5667, %v4712
    %v5733 = vsel %vm5701, %v5668, %v4714
    %v5734 = vsel %vm5701, %v5669, %v4716
    %v5735 = vsel %vm5701, %v5670, %v4718
    %v5736 = vsel %vm5701, %v5671, %v4720
    %v5737 = vsel %vm5701, %v5672, %v4722
    %v5738 = vsel %vm5701, %v5673, %v4724
    %v5739 = vsel %vm5701, %v5674, %v4726
    %v5740 = vsel %vm5701, %v5675, %v4728
    %v5741 = vsel %vm5701, %v5676, %v4730
    %v5742 = vsel %vm5701, %v5677, %v4732
    %v5743 = vsel %vm5701, %v5678, %v4734
    %v5744 = vsel %vm5701, %v5679, %v4736
    %v5745 = vsel %vm5701, %v5680, %v4738
    %v5746 = vsel %vm5701, %v5681, %v4740
    %v5747 = vsel %vm5701, %v5682, %v4742
    %v5748 = vsel %vm5701, %v5683, %v4744
    %v5749 = vsel %vm5701, %v5684, %v4746
    %v5750 = vsel %vm5701, %v5685, %v4748
    %v5751 = vsel %vm5701, %v5686, %v4750
    %v5752 = vsel %vm5701, %v5687, %v4752
    %v5753 = vsel %vm5701, %v5688, %v4754
    %v5754 = vsel %vm5701, %v5689, %v4756
    %v5755 = vsel %vm5701, %v5690, %v4758
    %v5756 = vsel %vm5701, %v5691, %v4760
    %v5757 = vsel %vm5701, %v5692, %v4762
    %v5758 = vsel %vm5701, %v5693, %v4764
    %v5759 = vsel %vm5701, %v5694, %v4766
    %v5760 = vsel %vm5701, %v5695, %v4768
    %v5761 = vsel %vm5701, %v5696, %v4770
    %v5762 = vsel %vm5701, %v5697, %v4772
    %v5763 = vsel %vm5701, %v5698, %v4774
    %v5764 = vsel %vm5701, %v5699, %v4776
    %v5765 = vsel %vm5701, %v5700, %v4778
    %vm5766 = vcmask 392192
    %v5767 = vsel %vm5766, %v5702, %v4848
    %v5768 = vsel %vm5766, %v5703, %v4850
    %v5769 = vsel %vm5766, %v5704, %v4852
    %v5770 = vsel %vm5766, %v5705, %v4854
    %v5771 = vsel %vm5766, %v5706, %v4856
    %v5772 = vsel %vm5766, %v5707, %v4858
    %v5773 = vsel %vm5766, %v5708, %v4860
    %v5774 = vsel %vm5766, %v5709, %v4862
    %v5775 = vsel %vm5766, %v5710, %v4864
    %v5776 = vsel %vm5766, %v5711, %v4866
    %v5777 = vsel %vm5766, %v5712, %v4868
    %v5778 = vsel %vm5766, %v5713, %v4870
    %v5779 = vsel %vm5766, %v5714, %v4872
    %v5780 = vsel %vm5766, %v5715, %v4874
    %v5781 = vsel %vm5766, %v5716, %v4876
    %v5782 = vsel %vm5766, %v5717, %v4878
    %v5783 = vsel %vm5766, %v5718, %v4880
    %v5784 = vsel %vm5766, %v5719, %v4882
    %v5785 = vsel %vm5766, %v5720, %v4884
    %v5786 = vsel %vm5766, %v5721, %v4886
    %v5787 = vsel %vm5766, %v5722, %v4888
    %v5788 = vsel %vm5766, %v5723, %v4890
    %v5789 = vsel %vm5766, %v5724, %v4892
    %v5790 = vsel %vm5766, %v5725, %v4894
    %v5791 = vsel %vm5766, %v5726, %v4896
    %v5792 = vsel %vm5766, %v5727, %v4898
    %v5793 = vsel %vm5766, %v5728, %v4900
    %v5794 = vsel %vm5766, %v5729, %v4902
    %v5795 = vsel %vm5766, %v5730, %v4904
    %v5796 = vsel %vm5766, %v5731, %v4906
    %v5797 = vsel %vm5766, %v5732, %v4908
    %v5798 = vsel %vm5766, %v5733, %v4910
    %v5799 = vsel %vm5766, %v5734, %v4912
    %v5800 = vsel %vm5766, %v5735, %v4914
    %v5801 = vsel %vm5766, %v5736, %v4916
    %v5802 = vsel %vm5766, %v5737, %v4918
    %v5803 = vsel %vm5766, %v5738, %v4920
    %v5804 = vsel %vm5766, %v5739, %v4922
    %v5805 = vsel %vm5766, %v5740, %v4924
    %v5806 = vsel %vm5766, %v5741, %v4926
    %v5807 = vsel %vm5766, %v5742, %v4928
    %v5808 = vsel %vm5766, %v5743, %v4930
    %v5809 = vsel %vm5766, %v5744, %v4932
    %v5810 = vsel %vm5766, %v5745, %v4934
    %v5811 = vsel %vm5766, %v5746, %v4936
    %v5812 = vsel %vm5766, %v5747, %v4938
    %v5813 = vsel %vm5766, %v5748, %v4940
    %v5814 = vsel %vm5766, %v5749, %v4942
    %v5815 = vsel %vm5766, %v5750, %v4944
    %v5816 = vsel %vm5766, %v5751, %v4946
    %v5817 = vsel %vm5766, %v5752, %v4948
    %v5818 = vsel %vm5766, %v5753, %v4950
    %v5819 = vsel %vm5766, %v5754, %v4952
    %v5820 = vsel %vm5766, %v5755, %v4954
    %v5821 = vsel %vm5766, %v5756, %v4956
    %v5822 = vsel %vm5766, %v5757, %v4958
    %v5823 = vsel %vm5766, %v5758, %v4960
    %v5824 = vsel %vm5766, %v5759, %v4962
    %v5825 = vsel %vm5766, %v5760, %v4964
    %v5826 = vsel %vm5766, %v5761, %v4966
    %v5827 = vsel %vm5766, %v5762, %v4968
    %v5828 = vsel %vm5766, %v5763, %v4970
    %v5829 = vsel %vm5766, %v5764, %v4972
    %v5830 = vsel %vm5766, %v5765, %v4974
    %vm5831 = vcmask 457728
    %v5832 = vsel %vm5831, %v5767, %v5052
    %v5833 = vsel %vm5831, %v5768, %v5054
    %v5834 = vsel %vm5831, %v5769, %v5056
    %v5835 = vsel %vm5831, %v5770, %v5058
    %v5836 = vsel %vm5831, %v5771, %v5060
    %v5837 = vsel %vm5831, %v5772, %v5062
    %v5838 = vsel %vm5831, %v5773, %v5064
    %v5839 = vsel %vm5831, %v5774, %v5066
    %v5840 = vsel %vm5831, %v5775, %v5068
    %v5841 = vsel %vm5831, %v5776, %v5070
    %v5842 = vsel %vm5831, %v5777, %v5072
    %v5843 = vsel %vm5831, %v5778, %v5074
    %v5844 = vsel %vm5831, %v5779, %v5076
    %v5845 = vsel %vm5831, %v5780, %v5078
    %v5846 = vsel %vm5831, %v5781, %v5080
    %v5847 = vsel %vm5831, %v5782, %v5082
    %v5848 = vsel %vm5831, %v5783, %v5084
    %v5849 = vsel %vm5831, %v5784, %v5086
    %v5850 = vsel %vm5831, %v5785, %v5088
    %v5851 = vsel %vm5831, %v5786, %v5090
    %v5852 = vsel %vm5831, %v5787, %v5092
    %v5853 = vsel %vm5831, %v5788, %v5094
    %v5854 = vsel %vm5831, %v5789, %v5096
    %v5855 = vsel %vm5831, %v5790, %v5098
    %v5856 = vsel %vm5831, %v5791, %v5100
    %v5857 = vsel %vm5831, %v5792, %v5102
    %v5858 = vsel %vm5831, %v5793, %v5104
    %v5859 = vsel %vm5831, %v5794, %v5106
    %v5860 = vsel %vm5831, %v5795, %v5108
    %v5861 = vsel %vm5831, %v5796, %v5110
    %v5862 = vsel %vm5831, %v5797, %v5112
    %v5863 = vsel %vm5831, %v5798, %v5114
    %v5864 = vsel %vm5831, %v5799, %v5116
    %v5865 = vsel %vm5831, %v5800, %v5118
    %v5866 = vsel %vm5831, %v5801, %v5120
    %v5867 = vsel %vm5831, %v5802, %v5122
    %v5868 = vsel %vm5831, %v5803, %v5124
    %v5869 = vsel %vm5831, %v5804, %v5126
    %v5870 = vsel %vm5831, %v5805, %v5128
    %v5871 = vsel %vm5831, %v5806, %v5130
    %v5872 = vsel %vm5831, %v5807, %v5132
    %v5873 = vsel %vm5831, %v5808, %v5134
    %v5874 = vsel %vm5831, %v5809, %v5136
    %v5875 = vsel %vm5831, %v5810, %v5138
    %v5876 = vsel %vm5831, %v5811, %v5140
    %v5877 = vsel %vm5831, %v5812, %v5142
    %v5878 = vsel %vm5831, %v5813, %v5144
    %v5879 = vsel %vm5831, %v5814, %v5146
    %v5880 = vsel %vm5831, %v5815, %v5148
    %v5881 = vsel %vm5831, %v5816, %v5150
    %v5882 = vsel %vm5831, %v5817, %v5152
    %v5883 = vsel %vm5831, %v5818, %v5154
    %v5884 = vsel %vm5831, %v5819, %v5156
    %v5885 = vsel %vm5831, %v5820, %v5158
    %v5886 = vsel %vm5831, %v5821, %v5160
    %v5887 = vsel %vm5831, %v5822, %v5162
    %v5888 = vsel %vm5831, %v5823, %v5164
    %v5889 = vsel %vm5831, %v5824, %v5166
    %v5890 = vsel %vm5831, %v5825, %v5168
    %v5891 = vsel %vm5831, %v5826, %v5170
    %v5892 = vsel %vm5831, %v5827, %v5172
    %v5893 = vsel %vm5831, %v5828, %v5174
    %v5894 = vsel %vm5831, %v5829, %v5176
    %v5895 = vsel %vm5831, %v5830, %v5178
    %vm5896 = vcmask 523264
    %v5897 = vsel %vm5896, %v5832, %v5254
    %v5898 = vsel %vm5896, %v5833, %v5256
    %v5899 = vsel %vm5896, %v5834, %v5258
    %v5900 = vsel %vm5896, %v5835, %v5260
    %v5901 = vsel %vm5896, %v5836, %v5262
    %v5902 = vsel %vm5896, %v5837, %v5264
    %v5903 = vsel %vm5896, %v5838, %v5266
    %v5904 = vsel %vm5896, %v5839, %v5268
    %v5905 = vsel %vm5896, %v5840, %v5270
    %v5906 = vsel %vm5896, %v5841, %v5272
    %v5907 = vsel %vm5896, %v5842, %v5274
    %v5908 = vsel %vm5896, %v5843, %v5276
    %v5909 = vsel %vm5896, %v5844, %v5278
    %v5910 = vsel %vm5896, %v5845, %v5280
    %v5911 = vsel %vm5896, %v5846, %v5282
    %v5912 = vsel %vm5896, %v5847, %v5284
    %v5913 = vsel %vm5896, %v5848, %v5286
    %v5914 = vsel %vm5896, %v5849, %v5288
    %v5915 = vsel %vm5896, %v5850, %v5290
    %v5916 = vsel %vm5896, %v5851, %v5292
    %v5917 = vsel %vm5896, %v5852, %v5294
    %v5918 = vsel %vm5896, %v5853, %v5296
    %v5919 = vsel %vm5896, %v5854, %v5298
    %v5920 = vsel %vm5896, %v5855, %v5300
    %v5921 = vsel %vm5896, %v5856, %v5302
    %v5922 = vsel %vm5896, %v5857, %v5304
    %v5923 = vsel %vm5896, %v5858, %v5306
    %v5924 = vsel %vm5896, %v5859, %v5308
    %v5925 = vsel %vm5896, %v5860, %v5310
    %v5926 = vsel %vm5896, %v5861, %v5312
    %v5927 = vsel %vm5896, %v5862, %v5314
    %v5928 = vsel %vm5896, %v5863, %v5316
    %v5929 = vsel %vm5896, %v5864, %v5318
    %v5930 = vsel %vm5896, %v5865, %v5320
    %v5931 = vsel %vm5896, %v5866, %v5322
    %v5932 = vsel %vm5896, %v5867, %v5324
    %v5933 = vsel %vm5896, %v5868, %v5326
    %v5934 = vsel %vm5896, %v5869, %v5328
    %v5935 = vsel %vm5896, %v5870, %v5330
    %v5936 = vsel %vm5896, %v5871, %v5332
    %v5937 = vsel %vm5896, %v5872, %v5334
    %v5938 = vsel %vm5896, %v5873, %v5336
    %v5939 = vsel %vm5896, %v5874, %v5338
    %v5940 = vsel %vm5896, %v5875, %v5340
    %v5941 = vsel %vm5896, %v5876, %v5342
    %v5942 = vsel %vm5896, %v5877, %v5344
    %v5943 = vsel %vm5896, %v5878, %v5346
    %v5944 = vsel %vm5896, %v5879, %v5348
    %v5945 = vsel %vm5896, %v5880, %v5350
    %v5946 = vsel %vm5896, %v5881, %v5352
    %v5947 = vsel %vm5896, %v5882, %v5354
    %v5948 = vsel %vm5896, %v5883, %v5356
    %v5949 = vsel %vm5896, %v5884, %v5358
    %v5950 = vsel %vm5896, %v5885, %v5360
    %v5951 = vsel %vm5896, %v5886, %v5362
    %v5952 = vsel %vm5896, %v5887, %v5364
    %v5953 = vsel %vm5896, %v5888, %v5366
    %v5954 = vsel %vm5896, %v5889, %v5368
    %v5955 = vsel %vm5896, %v5890, %v5370
    %v5956 = vsel %vm5896, %v5891, %v5372
    %v5957 = vsel %vm5896, %v5892, %v5374
    %v5958 = vsel %vm5896, %v5893, %v5376
    %v5959 = vsel %vm5896, %v5894, %v5378
    %v5960 = vsel %vm5896, %v5895, %v5380
    %v5961 = vpack.c.bf16 %v5898, %v5897
    %v5962 = vpack.c.bf16 %v5900, %v5899
    %v5963 = vpack.c.bf16 %v5902, %v5901
    %v5964 = vpack.c.bf16 %v5904, %v5903
    %v5965 = vpack.c.bf16 %v5906, %v5905
    %v5966 = vpack.c.bf16 %v5908, %v5907
    %v5967 = vpack.c.bf16 %v5910, %v5909
    %v5968 = vpack.c.bf16 %v5912, %v5911
    %v5969 = vpack.c.bf16 %v5914, %v5913
    %v5970 = vpack.c.bf16 %v5916, %v5915
    %v5971 = vpack.c.bf16 %v5918, %v5917
    %v5972 = vpack.c.bf16 %v5920, %v5919
    %v5973 = vpack.c.bf16 %v5922, %v5921
    %v5974 = vpack.c.bf16 %v5924, %v5923
    %v5975 = vpack.c.bf16 %v5926, %v5925
    %v5976 = vpack.c.bf16 %v5928, %v5927
    %v5977 = vpack.c.bf16 %v5930, %v5929
    %v5978 = vpack.c.bf16 %v5932, %v5931
    %v5979 = vpack.c.bf16 %v5934, %v5933
    %v5980 = vpack.c.bf16 %v5936, %v5935
    %v5981 = vpack.c.bf16 %v5938, %v5937
    %v5982 = vpack.c.bf16 %v5940, %v5939
    %v5983 = vpack.c.bf16 %v5942, %v5941
    %v5984 = vpack.c.bf16 %v5944, %v5943
    %v5985 = vpack.c.bf16 %v5946, %v5945
    %v5986 = vpack.c.bf16 %v5948, %v5947
    %v5987 = vpack.c.bf16 %v5950, %v5949
    %v5988 = vpack.c.bf16 %v5952, %v5951
    %v5989 = vpack.c.bf16 %v5954, %v5953
    %v5990 = vpack.c.bf16 %v5956, %v5955
    %v5991 = vpack.c.bf16 %v5958, %v5957
    %v5992 = vpack.c.bf16 %v5960, %v5959
    %v5993 = vld [vmem:[%s3] sm:$0xf]
    %v5994 = vld [vmem:[%s3 + $0x4] sm:$0xf]
    %v5995 = vld [vmem:[%s3 + $0x8] sm:$0xf]
    %v5996 = vld [vmem:[%s3 + $0xc] sm:$0xf]
    %v5997 = vld [vmem:[%s3 + $0x10] sm:$0xf]
    %v5998 = vld [vmem:[%s3 + $0x14] sm:$0xf]
    %v5999 = vld [vmem:[%s3 + $0x18] sm:$0xf]
    %v6000 = vld [vmem:[%s3 + $0x1c] sm:$0xf]
    %v6001 = vld [vmem:[%s3 + $0x20] sm:$0xf]
    %v6002 = vld [vmem:[%s4] sm:$0x1]
    %v6004 = vlaneseq
    %v6005 = vshrl.u32 %v6004, 7
    %v6006 = vsub.s32 0, %v6005
    %v6007 = vrot.slane %v6002, %v6006
    %v6018 = vunpack.c.l.b16 %v5993
    %v6019 = vunpack.c.l.b16 %v5994
    %v6020 = vunpack.c.l.b16 %v5995
    %v6021 = vunpack.c.l.b16 %v5996
    %v6022 = vunpack.c.l.b16 %v5997
    %v6023 = vunpack.c.l.b16 %v5998
    %v6024 = vunpack.c.l.b16 %v5999
    %v6025 = vunpack.c.l.b16 %v6000
    %v6026 = vunpack.c.l.b16 %v6001
    %v6027 = vpack.c.b16 %v6019, %v6018
    %v6028 = vpack.c.b16 %v6021, %v6020
    %v6029 = vpack.c.b16 %v6023, %v6022
    %v6030 = vpack.c.b16 %v6025, %v6024
    %v6031 = vpack.c.b16 %v6026, %v6026
    %vm6036 = vcmask 588800
    %v6038 = vsel %vm6036, %v5961, 0
    %v6041 = vsel %vm6036, %v5962, 0
    %v6044 = vsel %vm6036, %v5963, 0
    %v6047 = vsel %vm6036, %v5964, 0
    %v6050 = vsel %vm6036, %v5965, 0
    %v6053 = vsel %vm6036, %v5966, 0
    %v6056 = vsel %vm6036, %v5967, 0
    %v6059 = vsel %vm6036, %v5968, 0
    %v6062 = vsel %vm6036, %v5969, 0
    %v6065 = vsel %vm6036, %v5970, 0
    %v6068 = vsel %vm6036, %v5971, 0
    %v6071 = vsel %vm6036, %v5972, 0
    %v6074 = vsel %vm6036, %v5973, 0
    %v6077 = vsel %vm6036, %v5974, 0
    %v6080 = vsel %vm6036, %v5975, 0
    %v6083 = vsel %vm6036, %v5976, 0
    %v6086 = vsel %vm6036, %v5977, 0
    %v6089 = vsel %vm6036, %v5978, 0
    %v6092 = vsel %vm6036, %v5979, 0
    %v6095 = vsel %vm6036, %v5980, 0
    %v6098 = vsel %vm6036, %v5981, 0
    %v6101 = vsel %vm6036, %v5982, 0
    %v6104 = vsel %vm6036, %v5983, 0
    %v6107 = vsel %vm6036, %v5984, 0
    %v6110 = vsel %vm6036, %v5985, 0
    %v6113 = vsel %vm6036, %v5986, 0
    %v6116 = vsel %vm6036, %v5987, 0
    %v6119 = vsel %vm6036, %v5988, 0
    %v6122 = vsel %vm6036, %v5989, 0
    %v6125 = vsel %vm6036, %v5990, 0
    %v6128 = vsel %vm6036, %v5991, 0
    %v6131 = vsel %vm6036, %v5992, 0
    %vm6133 = vcmask 1043456
    %v6135 = vsel %vm6133, %v6031, 0
    %6137 = vmatprep.subr.bf16.mxu0 0
    %6138 = vmatpush1.bf16.msra.mxu0 %v6027
    %6139 = vmatprep.subr.bf16.mxu0 0
    %6140 = vmatpush1.bf16.msra.mxu0 %v6028
    %6141 = vmatprep.subr.bf16.mxu0 0
    %6142 = vmatpush1.bf16.msra.mxu0 %v6029
    %6143 = vmatprep.subr.bf16.mxu0 0
    %6144 = vmatpush1.bf16.msra.mxu0 %v6030
    %6145 = vmatprep.subr.bf16.mxu0 0
    %6146 = vmatpush1.bf16.msra.mxu0 %v6135
    %6147 = vmatprep.subr.bf16.mxu0 0
    %6148 = vmatpush1.bf16.msra.mxu0 0
    %6149 = vmatprep.subr.bf16.mxu0 0
    %6150 = vmatpush1.bf16.msra.mxu0 0
    %6151 = vmatprep.subr.bf16.mxu0 0
    %6152 = vmatpush1.bf16.msra.mxu0 0
    %6153 = vmatprep.subr.bf16.mxu0 0
    %6154 = vmatpush1.bf16.msra.mxu0 0
    %6155 = vmatprep.subr.bf16.mxu0 0
    %6156 = vmatpush1.bf16.msra.mxu0 0
    %6157 = vmatprep.subr.bf16.mxu0 0
    %6158 = vmatpush1.bf16.msra.mxu0 0
    %6159 = vmatprep.subr.bf16.mxu0 0
    %6160 = vmatpush1.bf16.msra.mxu0 0
    %6161 = vmatprep.subr.bf16.mxu0 0
    %6162 = vmatpush1.bf16.msra.mxu0 0
    %6163 = vmatprep.subr.bf16.mxu0 0
    %6164 = vmatpush1.bf16.msra.mxu0 0
    %6165 = vmatprep.subr.bf16.mxu0 0
    %6166 = vmatpush1.bf16.msra.mxu0 0
    %6167 = vmatprep.subr.bf16.mxu0 0
    %6168 = vmatpush1.bf16.msra.mxu0 0
    %6169 = vmatprep.mubr.bf16.mxu0 0
    %6170 = vmatmul.mubr.bf16.gmra.mrb[0].mxu0 %v6038
    %v6171 = vpop.f32.mrb[0].mxu0
    %v6172 = vadd.f32 %v6007, %v6171
    %v6173 = vpop.f32.mrb[0].mxu0
    %v6174 = vpop.f32.mrb[0].mxu0
    %v6175 = vadd.f32 %v6007, %v6174
    %v6176 = vpop.f32.mrb[0].mxu0
    %6177 = vmatprep.mubr.bf16.mxu0 0
    %6178 = vmatmul.mubr.bf16.gmra.mrb[0].mxu0 %v6041
    %v6179 = vpop.f32.mrb[0].mxu0
    %v6180 = vadd.f32 %v6007, %v6179
    %v6181 = vpop.f32.mrb[0].mxu0
    %v6182 = vpop.f32.mrb[0].mxu0
    %v6183 = vadd.f32 %v6007, %v6182
    %v6184 = vpop.f32.mrb[0].mxu0
    %6185 = vmatprep.mubr.bf16.mxu0 0
    %6186 = vmatmul.mubr.bf16.gmra.mrb[0].mxu0 %v6044
    %v6187 = vpop.f32.mrb[0].mxu0
    %v6188 = vadd.f32 %v6007, %v6187
    %v6189 = vpop.f32.mrb[0].mxu0
    %v6190 = vpop.f32.mrb[0].mxu0
    %v6191 = vadd.f32 %v6007, %v6190
    %v6192 = vpop.f32.mrb[0].mxu0
    %6193 = vmatprep.mubr.bf16.mxu0 0
    %6194 = vmatmul.mubr.bf16.gmra.mrb[0].mxu0 %v6047
    %v6195 = vpop.f32.mrb[0].mxu0
    %v6196 = vadd.f32 %v6007, %v6195
    %v6197 = vpop.f32.mrb[0].mxu0
    %v6198 = vpop.f32.mrb[0].mxu0
    %v6199 = vadd.f32 %v6007, %v6198
    %v6200 = vpop.f32.mrb[0].mxu0
    %6201 = vmatprep.mubr.bf16.mxu0 0
    %6202 = vmatmul.mubr.bf16.gmra.mrb[0].mxu0 %v6050
    %v6203 = vpop.f32.mrb[0].mxu0
    %v6204 = vadd.f32 %v6007, %v6203
    %v6205 = vpop.f32.mrb[0].mxu0
    %v6206 = vpop.f32.mrb[0].mxu0
    %v6207 = vadd.f32 %v6007, %v6206
    %v6208 = vpop.f32.mrb[0].mxu0
    %6209 = vmatprep.mubr.bf16.mxu0 0
    %6210 = vmatmul.mubr.bf16.gmra.mrb[0].mxu0 %v6053
    %v6211 = vpop.f32.mrb[0].mxu0
    %v6212 = vadd.f32 %v6007, %v6211
    %v6213 = vpop.f32.mrb[0].mxu0
    %v6214 = vpop.f32.mrb[0].mxu0
    %v6215 = vadd.f32 %v6007, %v6214
    %v6216 = vpop.f32.mrb[0].mxu0
    %6217 = vmatprep.mubr.bf16.mxu0 0
    %6218 = vmatmul.mubr.bf16.gmra.mrb[0].mxu0 %v6056
    %v6219 = vpop.f32.mrb[0].mxu0
    %v6220 = vadd.f32 %v6007, %v6219
    %v6221 = vpop.f32.mrb[0].mxu0
    %v6222 = vpop.f32.mrb[0].mxu0
    %v6223 = vadd.f32 %v6007, %v6222
    %v6224 = vpop.f32.mrb[0].mxu0
    %6225 = vmatprep.mubr.bf16.mxu0 0
    %6226 = vmatmul.mubr.bf16.gmra.mrb[0].mxu0 %v6059
    %v6227 = vpop.f32.mrb[0].mxu0
    %v6228 = vadd.f32 %v6007, %v6227
    %v6229 = vpop.f32.mrb[0].mxu0
    %v6230 = vpop.f32.mrb[0].mxu0
    %v6231 = vadd.f32 %v6007, %v6230
    %v6232 = vpop.f32.mrb[0].mxu0
    %6233 = vmatprep.mubr.bf16.mxu0 0
    %6234 = vmatmul.mubr.bf16.gmra.mrb[0].mxu0 %v6062
    %v6235 = vpop.f32.mrb[0].mxu0
    %v6236 = vadd.f32 %v6007, %v6235
    %v6237 = vpop.f32.mrb[0].mxu0
    %v6238 = vpop.f32.mrb[0].mxu0
    %v6239 = vadd.f32 %v6007, %v6238
    %v6240 = vpop.f32.mrb[0].mxu0
    %6241 = vmatprep.mubr.bf16.mxu0 0
    %6242 = vmatmul.mubr.bf16.gmra.mrb[0].mxu0 %v6065
    %v6243 = vpop.f32.mrb[0].mxu0
    %v6244 = vadd.f32 %v6007, %v6243
    %v6245 = vpop.f32.mrb[0].mxu0
    %v6246 = vpop.f32.mrb[0].mxu0
    %v6247 = vadd.f32 %v6007, %v6246
    %v6248 = vpop.f32.mrb[0].mxu0
    %6249 = vmatprep.mubr.bf16.mxu0 0
    %6250 = vmatmul.mubr.bf16.gmra.mrb[0].mxu0 %v6068
    %v6251 = vpop.f32.mrb[0].mxu0
    %v6252 = vadd.f32 %v6007, %v6251
    %v6253 = vpop.f32.mrb[0].mxu0
    %v6254 = vpop.f32.mrb[0].mxu0
    %v6255 = vadd.f32 %v6007, %v6254
    %v6256 = vpop.f32.mrb[0].mxu0
    %6257 = vmatprep.mubr.bf16.mxu0 0
    %6258 = vmatmul.mubr.bf16.gmra.mrb[0].mxu0 %v6071
    %v6259 = vpop.f32.mrb[0].mxu0
    %v6260 = vadd.f32 %v6007, %v6259
    %v6261 = vpop.f32.mrb[0].mxu0
    %v6262 = vpop.f32.mrb[0].mxu0
    %v6263 = vadd.f32 %v6007, %v6262
    %v6264 = vpop.f32.mrb[0].mxu0
    %6265 = vmatprep.mubr.bf16.mxu0 0
    %6266 = vmatmul.mubr.bf16.gmra.mrb[0].mxu0 %v6074
    %v6267 = vpop.f32.mrb[0].mxu0
    %v6268 = vadd.f32 %v6007, %v6267
    %v6269 = vpop.f32.mrb[0].mxu0
    %v6270 = vpop.f32.mrb[0].mxu0
    %v6271 = vadd.f32 %v6007, %v6270
    %v6272 = vpop.f32.mrb[0].mxu0
    %6273 = vmatprep.mubr.bf16.mxu0 0
    %6274 = vmatmul.mubr.bf16.gmra.mrb[0].mxu0 %v6077
    %v6275 = vpop.f32.mrb[0].mxu0
    %v6276 = vadd.f32 %v6007, %v6275
    %v6277 = vpop.f32.mrb[0].mxu0
    %v6278 = vpop.f32.mrb[0].mxu0
    %v6279 = vadd.f32 %v6007, %v6278
    %v6280 = vpop.f32.mrb[0].mxu0
    %6281 = vmatprep.mubr.bf16.mxu0 0
    %6282 = vmatmul.mubr.bf16.gmra.mrb[0].mxu0 %v6080
    %v6283 = vpop.f32.mrb[0].mxu0
    %v6284 = vadd.f32 %v6007, %v6283
    %v6285 = vpop.f32.mrb[0].mxu0
    %v6286 = vpop.f32.mrb[0].mxu0
    %v6287 = vadd.f32 %v6007, %v6286
    %v6288 = vpop.f32.mrb[0].mxu0
    %6289 = vmatprep.mubr.bf16.mxu0 0
    %6290 = vmatmul.mubr.bf16.gmra.mrb[0].mxu0 %v6083
    %v6291 = vpop.f32.mrb[0].mxu0
    %v6292 = vadd.f32 %v6007, %v6291
    %v6293 = vpop.f32.mrb[0].mxu0
    %v6294 = vpop.f32.mrb[0].mxu0
    %v6295 = vadd.f32 %v6007, %v6294
    %v6296 = vpop.f32.mrb[0].mxu0
    %6297 = vmatprep.mubr.bf16.mxu0 0
    %6298 = vmatmul.mubr.bf16.gmra.mrb[0].mxu0 %v6086
    %v6299 = vpop.f32.mrb[0].mxu0
    %v6300 = vadd.f32 %v6007, %v6299
    %v6301 = vpop.f32.mrb[0].mxu0
    %v6302 = vpop.f32.mrb[0].mxu0
    %v6303 = vadd.f32 %v6007, %v6302
    %v6304 = vpop.f32.mrb[0].mxu0
    %6305 = vmatprep.mubr.bf16.mxu0 0
    %6306 = vmatmul.mubr.bf16.gmra.mrb[0].mxu0 %v6089
    %v6307 = vpop.f32.mrb[0].mxu0
    %v6308 = vadd.f32 %v6007, %v6307
    %v6309 = vpop.f32.mrb[0].mxu0
    %v6310 = vpop.f32.mrb[0].mxu0
    %v6311 = vadd.f32 %v6007, %v6310
    %v6312 = vpop.f32.mrb[0].mxu0
    %6313 = vmatprep.mubr.bf16.mxu0 0
    %6314 = vmatmul.mubr.bf16.gmra.mrb[0].mxu0 %v6092
    %v6315 = vpop.f32.mrb[0].mxu0
    %v6316 = vadd.f32 %v6007, %v6315
    %v6317 = vpop.f32.mrb[0].mxu0
    %v6318 = vpop.f32.mrb[0].mxu0
    %v6319 = vadd.f32 %v6007, %v6318
    %v6320 = vpop.f32.mrb[0].mxu0
    %6321 = vmatprep.mubr.bf16.mxu0 0
    %6322 = vmatmul.mubr.bf16.gmra.mrb[0].mxu0 %v6095
    %v6323 = vpop.f32.mrb[0].mxu0
    %v6324 = vadd.f32 %v6007, %v6323
    %v6325 = vpop.f32.mrb[0].mxu0
    %v6326 = vpop.f32.mrb[0].mxu0
    %v6327 = vadd.f32 %v6007, %v6326
    %v6328 = vpop.f32.mrb[0].mxu0
    %6329 = vmatprep.mubr.bf16.mxu0 0
    %6330 = vmatmul.mubr.bf16.gmra.mrb[0].mxu0 %v6098
    %v6331 = vpop.f32.mrb[0].mxu0
    %v6332 = vadd.f32 %v6007, %v6331
    %v6333 = vpop.f32.mrb[0].mxu0
    %v6334 = vpop.f32.mrb[0].mxu0
    %v6335 = vadd.f32 %v6007, %v6334
    %v6336 = vpop.f32.mrb[0].mxu0
    %6337 = vmatprep.mubr.bf16.mxu0 0
    %6338 = vmatmul.mubr.bf16.gmra.mrb[0].mxu0 %v6101
    %v6339 = vpop.f32.mrb[0].mxu0
    %v6340 = vadd.f32 %v6007, %v6339
    %v6341 = vpop.f32.mrb[0].mxu0
    %v6342 = vpop.f32.mrb[0].mxu0
    %v6343 = vadd.f32 %v6007, %v6342
    %v6344 = vpop.f32.mrb[0].mxu0
    %6345 = vmatprep.mubr.bf16.mxu0 0
    %6346 = vmatmul.mubr.bf16.gmra.mrb[0].mxu0 %v6104
    %v6347 = vpop.f32.mrb[0].mxu0
    %v6348 = vadd.f32 %v6007, %v6347
    %v6349 = vpop.f32.mrb[0].mxu0
    %v6350 = vpop.f32.mrb[0].mxu0
    %v6351 = vadd.f32 %v6007, %v6350
    %v6352 = vpop.f32.mrb[0].mxu0
    %6353 = vmatprep.mubr.bf16.mxu0 0
    %6354 = vmatmul.mubr.bf16.gmra.mrb[0].mxu0 %v6107
    %v6355 = vpop.f32.mrb[0].mxu0
    %v6356 = vadd.f32 %v6007, %v6355
    %v6357 = vpop.f32.mrb[0].mxu0
    %v6358 = vpop.f32.mrb[0].mxu0
    %v6359 = vadd.f32 %v6007, %v6358
    %v6360 = vpop.f32.mrb[0].mxu0
    %6361 = vmatprep.mubr.bf16.mxu0 0
    %6362 = vmatmul.mubr.bf16.gmra.mrb[0].mxu0 %v6110
    %v6363 = vpop.f32.mrb[0].mxu0
    %v6364 = vadd.f32 %v6007, %v6363
    %v6365 = vpop.f32.mrb[0].mxu0
    %v6366 = vpop.f32.mrb[0].mxu0
    %v6367 = vadd.f32 %v6007, %v6366
    %v6368 = vpop.f32.mrb[0].mxu0
    %6369 = vmatprep.mubr.bf16.mxu0 0
    %6370 = vmatmul.mubr.bf16.gmra.mrb[0].mxu0 %v6113
    %v6371 = vpop.f32.mrb[0].mxu0
    %v6372 = vadd.f32 %v6007, %v6371
    %v6373 = vpop.f32.mrb[0].mxu0
    %v6374 = vpop.f32.mrb[0].mxu0
    %v6375 = vadd.f32 %v6007, %v6374
    %v6376 = vpop.f32.mrb[0].mxu0
    %6377 = vmatprep.mubr.bf16.mxu0 0
    %6378 = vmatmul.mubr.bf16.gmra.mrb[0].mxu0 %v6116
    %v6379 = vpop.f32.mrb[0].mxu0
    %v6380 = vadd.f32 %v6007, %v6379
    %v6381 = vpop.f32.mrb[0].mxu0
    %v6382 = vpop.f32.mrb[0].mxu0
    %v6383 = vadd.f32 %v6007, %v6382
    %v6384 = vpop.f32.mrb[0].mxu0
    %6385 = vmatprep.mubr.bf16.mxu0 0
    %6386 = vmatmul.mubr.bf16.gmra.mrb[0].mxu0 %v6119
    %v6387 = vpop.f32.mrb[0].mxu0
    %v6388 = vadd.f32 %v6007, %v6387
    %v6389 = vpop.f32.mrb[0].mxu0
    %v6390 = vpop.f32.mrb[0].mxu0
    %v6391 = vadd.f32 %v6007, %v6390
    %v6392 = vpop.f32.mrb[0].mxu0
    %6393 = vmatprep.mubr.bf16.mxu0 0
    %6394 = vmatmul.mubr.bf16.gmra.mrb[0].mxu0 %v6122
    %v6395 = vpop.f32.mrb[0].mxu0
    %v6396 = vadd.f32 %v6007, %v6395
    %v6397 = vpop.f32.mrb[0].mxu0
    %v6398 = vpop.f32.mrb[0].mxu0
    %v6399 = vadd.f32 %v6007, %v6398
    %v6400 = vpop.f32.mrb[0].mxu0
    %6401 = vmatprep.mubr.bf16.mxu0 0
    %6402 = vmatmul.mubr.bf16.gmra.mrb[0].mxu0 %v6125
    %v6403 = vpop.f32.mrb[0].mxu0
    %v6404 = vadd.f32 %v6007, %v6403
    %v6405 = vpop.f32.mrb[0].mxu0
    %v6406 = vpop.f32.mrb[0].mxu0
    %v6407 = vadd.f32 %v6007, %v6406
    %v6408 = vpop.f32.mrb[0].mxu0
    %6409 = vmatprep.mubr.bf16.mxu0 0
    %6410 = vmatmul.mubr.bf16.gmra.mrb[0].mxu0 %v6128
    %v6411 = vpop.f32.mrb[0].mxu0
    %v6412 = vadd.f32 %v6007, %v6411
    %v6413 = vpop.f32.mrb[0].mxu0
    %v6414 = vpop.f32.mrb[0].mxu0
    %v6415 = vadd.f32 %v6007, %v6414
    %v6416 = vpop.f32.mrb[0].mxu0
    %6417 = vmatprep.mubr.bf16.mxu0 0
    %6418 = vmatmul.mubr.bf16.gmra.mrb[0].mxu0 %v6131
    %v6419 = vpop.f32.mrb[0].mxu0
    %v6420 = vadd.f32 %v6007, %v6419
    %v6421 = vpop.f32.mrb[0].mxu0
    %v6422 = vpop.f32.mrb[0].mxu0
    %v6423 = vadd.f32 %v6007, %v6422
    %v6424 = vpop.f32.mrb[0].mxu0
    %6425 = vdwg.mxu0
    %v6426 = vmax.f32 %v6172, 0.0
    %v6427 = vmax.f32 %v6175, 0.0
    %v6428 = vmax.f32 %v6180, 0.0
    %v6429 = vmax.f32 %v6183, 0.0
    %v6430 = vmax.f32 %v6188, 0.0
    %v6431 = vmax.f32 %v6191, 0.0
    %v6432 = vmax.f32 %v6196, 0.0
    %v6433 = vmax.f32 %v6199, 0.0
    %v6434 = vmax.f32 %v6204, 0.0
    %v6435 = vmax.f32 %v6207, 0.0
    %v6436 = vmax.f32 %v6212, 0.0
    %v6437 = vmax.f32 %v6215, 0.0
    %v6438 = vmax.f32 %v6220, 0.0
    %v6439 = vmax.f32 %v6223, 0.0
    %v6440 = vmax.f32 %v6228, 0.0
    %v6441 = vmax.f32 %v6231, 0.0
    %v6442 = vmax.f32 %v6236, 0.0
    %v6443 = vmax.f32 %v6239, 0.0
    %v6444 = vmax.f32 %v6244, 0.0
    %v6445 = vmax.f32 %v6247, 0.0
    %v6446 = vmax.f32 %v6252, 0.0
    %v6447 = vmax.f32 %v6255, 0.0
    %v6448 = vmax.f32 %v6260, 0.0
    %v6449 = vmax.f32 %v6263, 0.0
    %v6450 = vmax.f32 %v6268, 0.0
    %v6451 = vmax.f32 %v6271, 0.0
    %v6452 = vmax.f32 %v6276, 0.0
    %v6453 = vmax.f32 %v6279, 0.0
    %v6454 = vmax.f32 %v6284, 0.0
    %v6455 = vmax.f32 %v6287, 0.0
    %v6456 = vmax.f32 %v6292, 0.0
    %v6457 = vmax.f32 %v6295, 0.0
    %v6458 = vmax.f32 %v6300, 0.0
    %v6459 = vmax.f32 %v6303, 0.0
    %v6460 = vmax.f32 %v6308, 0.0
    %v6461 = vmax.f32 %v6311, 0.0
    %v6462 = vmax.f32 %v6316, 0.0
    %v6463 = vmax.f32 %v6319, 0.0
    %v6464 = vmax.f32 %v6324, 0.0
    %v6465 = vmax.f32 %v6327, 0.0
    %v6466 = vmax.f32 %v6332, 0.0
    %v6467 = vmax.f32 %v6335, 0.0
    %v6468 = vmax.f32 %v6340, 0.0
    %v6469 = vmax.f32 %v6343, 0.0
    %v6470 = vmax.f32 %v6348, 0.0
    %v6471 = vmax.f32 %v6351, 0.0
    %v6472 = vmax.f32 %v6356, 0.0
    %v6473 = vmax.f32 %v6359, 0.0
    %v6474 = vmax.f32 %v6364, 0.0
    %v6475 = vmax.f32 %v6367, 0.0
    %v6476 = vmax.f32 %v6372, 0.0
    %v6477 = vmax.f32 %v6375, 0.0
    %v6478 = vmax.f32 %v6380, 0.0
    %v6479 = vmax.f32 %v6383, 0.0
    %v6480 = vmax.f32 %v6388, 0.0
    %v6481 = vmax.f32 %v6391, 0.0
    %v6482 = vmax.f32 %v6396, 0.0
    %v6483 = vmax.f32 %v6399, 0.0
    %v6484 = vmax.f32 %v6404, 0.0
    %v6485 = vmax.f32 %v6407, 0.0
    %v6486 = vmax.f32 %v6412, 0.0
    %v6487 = vmax.f32 %v6415, 0.0
    %v6488 = vmax.f32 %v6420, 0.0
    %v6489 = vmax.f32 %v6423, 0.0
    %v6554 = vcombine.high %v6426, %v6426
    %v6556 = vunpack.c.l.s4 1983009808
    %v6557 = vunpack.c.0.s8 %v6556
    %v6558 = vlaneseq
    %v6559 = vshrl.u32 %v6558, 7
    %v6560 = vsub.s32 %v6557, %v6559
    %v6561 = vrot.slane %v6426, %v6560
    %v6563 = vunpack.c.l.s4 1983009808
    %v6564 = vunpack.c.0.s8 %v6563
    %v6565 = vlaneseq
    %v6566 = vshrl.u32 %v6565, 7
    %v6567 = vsub.s32 %v6564, %v6566
    %v6568 = vrot.slane %v6554, %v6567
    %v6569 = vcombine.high %v6561, %v6561
    %v6570 = vcombine.high %v6568, %v6568
    %v6571 = vcombine.high %v6427, %v6427
    %v6573 = vunpack.c.l.s4 1983009808
    %v6574 = vunpack.c.0.s8 %v6573
    %v6575 = vlaneseq
    %v6576 = vshrl.u32 %v6575, 7
    %v6577 = vsub.s32 %v6574, %v6576
    %v6578 = vrot.slane %v6427, %v6577
    %v6580 = vunpack.c.l.s4 1983009808
    %v6581 = vunpack.c.0.s8 %v6580
    %v6582 = vlaneseq
    %v6583 = vshrl.u32 %v6582, 7
    %v6584 = vsub.s32 %v6581, %v6583
    %v6585 = vrot.slane %v6571, %v6584
    %v6586 = vcombine.high %v6578, %v6578
    %v6587 = vcombine.high %v6585, %v6585
    %v6588 = vcombine.high %v6428, %v6428
    %v6590 = vunpack.c.l.s4 1983009808
    %v6591 = vunpack.c.0.s8 %v6590
    %v6592 = vlaneseq
    %v6593 = vshrl.u32 %v6592, 7
    %v6594 = vsub.s32 %v6591, %v6593
    %v6595 = vrot.slane %v6428, %v6594
    %v6597 = vunpack.c.l.s4 1983009808
    %v6598 = vunpack.c.0.s8 %v6597
    %v6599 = vlaneseq
    %v6600 = vshrl.u32 %v6599, 7
    %v6601 = vsub.s32 %v6598, %v6600
    %v6602 = vrot.slane %v6588, %v6601
    %v6603 = vcombine.high %v6595, %v6595
    %v6604 = vcombine.high %v6602, %v6602
    %v6605 = vcombine.high %v6429, %v6429
    %v6607 = vunpack.c.l.s4 1983009808
    %v6608 = vunpack.c.0.s8 %v6607
    %v6609 = vlaneseq
    %v6610 = vshrl.u32 %v6609, 7
    %v6611 = vsub.s32 %v6608, %v6610
    %v6612 = vrot.slane %v6429, %v6611
    %v6614 = vunpack.c.l.s4 1983009808
    %v6615 = vunpack.c.0.s8 %v6614
    %v6616 = vlaneseq
    %v6617 = vshrl.u32 %v6616, 7
    %v6618 = vsub.s32 %v6615, %v6617
    %v6619 = vrot.slane %v6605, %v6618
    %v6620 = vcombine.high %v6612, %v6612
    %v6621 = vcombine.high %v6619, %v6619
    %v6622 = vcombine.high %v6430, %v6430
    %v6624 = vunpack.c.l.s4 1983009808
    %v6625 = vunpack.c.0.s8 %v6624
    %v6626 = vlaneseq
    %v6627 = vshrl.u32 %v6626, 7
    %v6628 = vsub.s32 %v6625, %v6627
    %v6629 = vrot.slane %v6430, %v6628
    %v6631 = vunpack.c.l.s4 1983009808
    %v6632 = vunpack.c.0.s8 %v6631
    %v6633 = vlaneseq
    %v6634 = vshrl.u32 %v6633, 7
    %v6635 = vsub.s32 %v6632, %v6634
    %v6636 = vrot.slane %v6622, %v6635
    %v6637 = vcombine.high %v6629, %v6629
    %v6638 = vcombine.high %v6636, %v6636
    %v6639 = vcombine.high %v6431, %v6431
    %v6641 = vunpack.c.l.s4 1983009808
    %v6642 = vunpack.c.0.s8 %v6641
    %v6643 = vlaneseq
    %v6644 = vshrl.u32 %v6643, 7
    %v6645 = vsub.s32 %v6642, %v6644
    %v6646 = vrot.slane %v6431, %v6645
    %v6648 = vunpack.c.l.s4 1983009808
    %v6649 = vunpack.c.0.s8 %v6648
    %v6650 = vlaneseq
    %v6651 = vshrl.u32 %v6650, 7
    %v6652 = vsub.s32 %v6649, %v6651
    %v6653 = vrot.slane %v6639, %v6652
    %v6654 = vcombine.high %v6646, %v6646
    %v6655 = vcombine.high %v6653, %v6653
    %v6656 = vcombine.high %v6432, %v6432
    %v6658 = vunpack.c.l.s4 1983009808
    %v6659 = vunpack.c.0.s8 %v6658
    %v6660 = vlaneseq
    %v6661 = vshrl.u32 %v6660, 7
    %v6662 = vsub.s32 %v6659, %v6661
    %v6663 = vrot.slane %v6432, %v6662
    %v6665 = vunpack.c.l.s4 1983009808
    %v6666 = vunpack.c.0.s8 %v6665
    %v6667 = vlaneseq
    %v6668 = vshrl.u32 %v6667, 7
    %v6669 = vsub.s32 %v6666, %v6668
    %v6670 = vrot.slane %v6656, %v6669
    %v6671 = vcombine.high %v6663, %v6663
    %v6672 = vcombine.high %v6670, %v6670
    %v6673 = vcombine.high %v6433, %v6433
    %v6675 = vunpack.c.l.s4 1983009808
    %v6676 = vunpack.c.0.s8 %v6675
    %v6677 = vlaneseq
    %v6678 = vshrl.u32 %v6677, 7
    %v6679 = vsub.s32 %v6676, %v6678
    %v6680 = vrot.slane %v6433, %v6679
    %v6682 = vunpack.c.l.s4 1983009808
    %v6683 = vunpack.c.0.s8 %v6682
    %v6684 = vlaneseq
    %v6685 = vshrl.u32 %v6684, 7
    %v6686 = vsub.s32 %v6683, %v6685
    %v6687 = vrot.slane %v6673, %v6686
    %v6688 = vcombine.high %v6680, %v6680
    %v6689 = vcombine.high %v6687, %v6687
    %v6690 = vcombine.high %v6434, %v6434
    %v6692 = vunpack.c.l.s4 1983009808
    %v6693 = vunpack.c.0.s8 %v6692
    %v6694 = vlaneseq
    %v6695 = vshrl.u32 %v6694, 7
    %v6696 = vsub.s32 %v6693, %v6695
    %v6697 = vrot.slane %v6434, %v6696
    %v6699 = vunpack.c.l.s4 1983009808
    %v6700 = vunpack.c.0.s8 %v6699
    %v6701 = vlaneseq
    %v6702 = vshrl.u32 %v6701, 7
    %v6703 = vsub.s32 %v6700, %v6702
    %v6704 = vrot.slane %v6690, %v6703
    %v6705 = vcombine.high %v6697, %v6697
    %v6706 = vcombine.high %v6704, %v6704
    %v6707 = vcombine.high %v6435, %v6435
    %v6709 = vunpack.c.l.s4 1983009808
    %v6710 = vunpack.c.0.s8 %v6709
    %v6711 = vlaneseq
    %v6712 = vshrl.u32 %v6711, 7
    %v6713 = vsub.s32 %v6710, %v6712
    %v6714 = vrot.slane %v6435, %v6713
    %v6716 = vunpack.c.l.s4 1983009808
    %v6717 = vunpack.c.0.s8 %v6716
    %v6718 = vlaneseq
    %v6719 = vshrl.u32 %v6718, 7
    %v6720 = vsub.s32 %v6717, %v6719
    %v6721 = vrot.slane %v6707, %v6720
    %v6722 = vcombine.high %v6714, %v6714
    %v6723 = vcombine.high %v6721, %v6721
    %v6724 = vcombine.high %v6436, %v6436
    %v6726 = vunpack.c.l.s4 1983009808
    %v6727 = vunpack.c.0.s8 %v6726
    %v6728 = vlaneseq
    %v6729 = vshrl.u32 %v6728, 7
    %v6730 = vsub.s32 %v6727, %v6729
    %v6731 = vrot.slane %v6436, %v6730
    %v6733 = vunpack.c.l.s4 1983009808
    %v6734 = vunpack.c.0.s8 %v6733
    %v6735 = vlaneseq
    %v6736 = vshrl.u32 %v6735, 7
    %v6737 = vsub.s32 %v6734, %v6736
    %v6738 = vrot.slane %v6724, %v6737
    %v6739 = vcombine.high %v6731, %v6731
    %v6740 = vcombine.high %v6738, %v6738
    %v6741 = vcombine.high %v6437, %v6437
    %v6743 = vunpack.c.l.s4 1983009808
    %v6744 = vunpack.c.0.s8 %v6743
    %v6745 = vlaneseq
    %v6746 = vshrl.u32 %v6745, 7
    %v6747 = vsub.s32 %v6744, %v6746
    %v6748 = vrot.slane %v6437, %v6747
    %v6750 = vunpack.c.l.s4 1983009808
    %v6751 = vunpack.c.0.s8 %v6750
    %v6752 = vlaneseq
    %v6753 = vshrl.u32 %v6752, 7
    %v6754 = vsub.s32 %v6751, %v6753
    %v6755 = vrot.slane %v6741, %v6754
    %v6756 = vcombine.high %v6748, %v6748
    %v6757 = vcombine.high %v6755, %v6755
    %v6758 = vcombine.high %v6438, %v6438
    %v6760 = vunpack.c.l.s4 1983009808
    %v6761 = vunpack.c.0.s8 %v6760
    %v6762 = vlaneseq
    %v6763 = vshrl.u32 %v6762, 7
    %v6764 = vsub.s32 %v6761, %v6763
    %v6765 = vrot.slane %v6438, %v6764
    %v6767 = vunpack.c.l.s4 1983009808
    %v6768 = vunpack.c.0.s8 %v6767
    %v6769 = vlaneseq
    %v6770 = vshrl.u32 %v6769, 7
    %v6771 = vsub.s32 %v6768, %v6770
    %v6772 = vrot.slane %v6758, %v6771
    %v6773 = vcombine.high %v6765, %v6765
    %v6774 = vcombine.high %v6772, %v6772
    %v6775 = vcombine.high %v6439, %v6439
    %v6777 = vunpack.c.l.s4 1983009808
    %v6778 = vunpack.c.0.s8 %v6777
    %v6779 = vlaneseq
    %v6780 = vshrl.u32 %v6779, 7
    %v6781 = vsub.s32 %v6778, %v6780
    %v6782 = vrot.slane %v6439, %v6781
    %v6784 = vunpack.c.l.s4 1983009808
    %v6785 = vunpack.c.0.s8 %v6784
    %v6786 = vlaneseq
    %v6787 = vshrl.u32 %v6786, 7
    %v6788 = vsub.s32 %v6785, %v6787
    %v6789 = vrot.slane %v6775, %v6788
    %v6790 = vcombine.high %v6782, %v6782
    %v6791 = vcombine.high %v6789, %v6789
    %v6792 = vcombine.high %v6440, %v6440
    %v6794 = vunpack.c.l.s4 1983009808
    %v6795 = vunpack.c.0.s8 %v6794
    %v6796 = vlaneseq
    %v6797 = vshrl.u32 %v6796, 7
    %v6798 = vsub.s32 %v6795, %v6797
    %v6799 = vrot.slane %v6440, %v6798
    %v6801 = vunpack.c.l.s4 1983009808
    %v6802 = vunpack.c.0.s8 %v6801
    %v6803 = vlaneseq
    %v6804 = vshrl.u32 %v6803, 7
    %v6805 = vsub.s32 %v6802, %v6804
    %v6806 = vrot.slane %v6792, %v6805
    %v6807 = vcombine.high %v6799, %v6799
    %v6808 = vcombine.high %v6806, %v6806
    %v6809 = vcombine.high %v6441, %v6441
    %v6811 = vunpack.c.l.s4 1983009808
    %v6812 = vunpack.c.0.s8 %v6811
    %v6813 = vlaneseq
    %v6814 = vshrl.u32 %v6813, 7
    %v6815 = vsub.s32 %v6812, %v6814
    %v6816 = vrot.slane %v6441, %v6815
    %v6818 = vunpack.c.l.s4 1983009808
    %v6819 = vunpack.c.0.s8 %v6818
    %v6820 = vlaneseq
    %v6821 = vshrl.u32 %v6820, 7
    %v6822 = vsub.s32 %v6819, %v6821
    %v6823 = vrot.slane %v6809, %v6822
    %v6824 = vcombine.high %v6816, %v6816
    %v6825 = vcombine.high %v6823, %v6823
    %v6826 = vcombine.high %v6442, %v6442
    %v6828 = vunpack.c.l.s4 1983009808
    %v6829 = vunpack.c.0.s8 %v6828
    %v6830 = vlaneseq
    %v6831 = vshrl.u32 %v6830, 7
    %v6832 = vsub.s32 %v6829, %v6831
    %v6833 = vrot.slane %v6442, %v6832
    %v6835 = vunpack.c.l.s4 1983009808
    %v6836 = vunpack.c.0.s8 %v6835
    %v6837 = vlaneseq
    %v6838 = vshrl.u32 %v6837, 7
    %v6839 = vsub.s32 %v6836, %v6838
    %v6840 = vrot.slane %v6826, %v6839
    %v6841 = vcombine.high %v6833, %v6833
    %v6842 = vcombine.high %v6840, %v6840
    %v6843 = vcombine.high %v6443, %v6443
    %v6845 = vunpack.c.l.s4 1983009808
    %v6846 = vunpack.c.0.s8 %v6845
    %v6847 = vlaneseq
    %v6848 = vshrl.u32 %v6847, 7
    %v6849 = vsub.s32 %v6846, %v6848
    %v6850 = vrot.slane %v6443, %v6849
    %v6852 = vunpack.c.l.s4 1983009808
    %v6853 = vunpack.c.0.s8 %v6852
    %v6854 = vlaneseq
    %v6855 = vshrl.u32 %v6854, 7
    %v6856 = vsub.s32 %v6853, %v6855
    %v6857 = vrot.slane %v6843, %v6856
    %v6858 = vcombine.high %v6850, %v6850
    %v6859 = vcombine.high %v6857, %v6857
    %v6860 = vcombine.high %v6444, %v6444
    %v6862 = vunpack.c.l.s4 1983009808
    %v6863 = vunpack.c.0.s8 %v6862
    %v6864 = vlaneseq
    %v6865 = vshrl.u32 %v6864, 7
    %v6866 = vsub.s32 %v6863, %v6865
    %v6867 = vrot.slane %v6444, %v6866
    %v6869 = vunpack.c.l.s4 1983009808
    %v6870 = vunpack.c.0.s8 %v6869
    %v6871 = vlaneseq
    %v6872 = vshrl.u32 %v6871, 7
    %v6873 = vsub.s32 %v6870, %v6872
    %v6874 = vrot.slane %v6860, %v6873
    %v6875 = vcombine.high %v6867, %v6867
    %v6876 = vcombine.high %v6874, %v6874
    %v6877 = vcombine.high %v6445, %v6445
    %v6879 = vunpack.c.l.s4 1983009808
    %v6880 = vunpack.c.0.s8 %v6879
    %v6881 = vlaneseq
    %v6882 = vshrl.u32 %v6881, 7
    %v6883 = vsub.s32 %v6880, %v6882
    %v6884 = vrot.slane %v6445, %v6883
    %v6886 = vunpack.c.l.s4 1983009808
    %v6887 = vunpack.c.0.s8 %v6886
    %v6888 = vlaneseq
    %v6889 = vshrl.u32 %v6888, 7
    %v6890 = vsub.s32 %v6887, %v6889
    %v6891 = vrot.slane %v6877, %v6890
    %v6892 = vcombine.high %v6884, %v6884
    %v6893 = vcombine.high %v6891, %v6891
    %v6894 = vcombine.high %v6446, %v6446
    %v6896 = vunpack.c.l.s4 1983009808
    %v6897 = vunpack.c.0.s8 %v6896
    %v6898 = vlaneseq
    %v6899 = vshrl.u32 %v6898, 7
    %v6900 = vsub.s32 %v6897, %v6899
    %v6901 = vrot.slane %v6446, %v6900
    %v6903 = vunpack.c.l.s4 1983009808
    %v6904 = vunpack.c.0.s8 %v6903
    %v6905 = vlaneseq
    %v6906 = vshrl.u32 %v6905, 7
    %v6907 = vsub.s32 %v6904, %v6906
    %v6908 = vrot.slane %v6894, %v6907
    %v6909 = vcombine.high %v6901, %v6901
    %v6910 = vcombine.high %v6908, %v6908
    %v6911 = vcombine.high %v6447, %v6447
    %v6913 = vunpack.c.l.s4 1983009808
    %v6914 = vunpack.c.0.s8 %v6913
    %v6915 = vlaneseq
    %v6916 = vshrl.u32 %v6915, 7
    %v6917 = vsub.s32 %v6914, %v6916
    %v6918 = vrot.slane %v6447, %v6917
    %v6920 = vunpack.c.l.s4 1983009808
    %v6921 = vunpack.c.0.s8 %v6920
    %v6922 = vlaneseq
    %v6923 = vshrl.u32 %v6922, 7
    %v6924 = vsub.s32 %v6921, %v6923
    %v6925 = vrot.slane %v6911, %v6924
    %v6926 = vcombine.high %v6918, %v6918
    %v6927 = vcombine.high %v6925, %v6925
    %v6928 = vcombine.high %v6448, %v6448
    %v6930 = vunpack.c.l.s4 1983009808
    %v6931 = vunpack.c.0.s8 %v6930
    %v6932 = vlaneseq
    %v6933 = vshrl.u32 %v6932, 7
    %v6934 = vsub.s32 %v6931, %v6933
    %v6935 = vrot.slane %v6448, %v6934
    %v6937 = vunpack.c.l.s4 1983009808
    %v6938 = vunpack.c.0.s8 %v6937
    %v6939 = vlaneseq
    %v6940 = vshrl.u32 %v6939, 7
    %v6941 = vsub.s32 %v6938, %v6940
    %v6942 = vrot.slane %v6928, %v6941
    %v6943 = vcombine.high %v6935, %v6935
    %v6944 = vcombine.high %v6942, %v6942
    %v6945 = vcombine.high %v6449, %v6449
    %v6947 = vunpack.c.l.s4 1983009808
    %v6948 = vunpack.c.0.s8 %v6947
    %v6949 = vlaneseq
    %v6950 = vshrl.u32 %v6949, 7
    %v6951 = vsub.s32 %v6948, %v6950
    %v6952 = vrot.slane %v6449, %v6951
    %v6954 = vunpack.c.l.s4 1983009808
    %v6955 = vunpack.c.0.s8 %v6954
    %v6956 = vlaneseq
    %v6957 = vshrl.u32 %v6956, 7
    %v6958 = vsub.s32 %v6955, %v6957
    %v6959 = vrot.slane %v6945, %v6958
    %v6960 = vcombine.high %v6952, %v6952
    %v6961 = vcombine.high %v6959, %v6959
    %v6962 = vcombine.high %v6450, %v6450
    %v6964 = vunpack.c.l.s4 1983009808
    %v6965 = vunpack.c.0.s8 %v6964
    %v6966 = vlaneseq
    %v6967 = vshrl.u32 %v6966, 7
    %v6968 = vsub.s32 %v6965, %v6967
    %v6969 = vrot.slane %v6450, %v6968
    %v6971 = vunpack.c.l.s4 1983009808
    %v6972 = vunpack.c.0.s8 %v6971
    %v6973 = vlaneseq
    %v6974 = vshrl.u32 %v6973, 7
    %v6975 = vsub.s32 %v6972, %v6974
    %v6976 = vrot.slane %v6962, %v6975
    %v6977 = vcombine.high %v6969, %v6969
    %v6978 = vcombine.high %v6976, %v6976
    %v6979 = vcombine.high %v6451, %v6451
    %v6981 = vunpack.c.l.s4 1983009808
    %v6982 = vunpack.c.0.s8 %v6981
    %v6983 = vlaneseq
    %v6984 = vshrl.u32 %v6983, 7
    %v6985 = vsub.s32 %v6982, %v6984
    %v6986 = vrot.slane %v6451, %v6985
    %v6988 = vunpack.c.l.s4 1983009808
    %v6989 = vunpack.c.0.s8 %v6988
    %v6990 = vlaneseq
    %v6991 = vshrl.u32 %v6990, 7
    %v6992 = vsub.s32 %v6989, %v6991
    %v6993 = vrot.slane %v6979, %v6992
    %v6994 = vcombine.high %v6986, %v6986
    %v6995 = vcombine.high %v6993, %v6993
    %v6996 = vcombine.high %v6452, %v6452
    %v6998 = vunpack.c.l.s4 1983009808
    %v6999 = vunpack.c.0.s8 %v6998
    %v7000 = vlaneseq
    %v7001 = vshrl.u32 %v7000, 7
    %v7002 = vsub.s32 %v6999, %v7001
    %v7003 = vrot.slane %v6452, %v7002
    %v7005 = vunpack.c.l.s4 1983009808
    %v7006 = vunpack.c.0.s8 %v7005
    %v7007 = vlaneseq
    %v7008 = vshrl.u32 %v7007, 7
    %v7009 = vsub.s32 %v7006, %v7008
    %v7010 = vrot.slane %v6996, %v7009
    %v7011 = vcombine.high %v7003, %v7003
    %v7012 = vcombine.high %v7010, %v7010
    %v7013 = vcombine.high %v6453, %v6453
    %v7015 = vunpack.c.l.s4 1983009808
    %v7016 = vunpack.c.0.s8 %v7015
    %v7017 = vlaneseq
    %v7018 = vshrl.u32 %v7017, 7
    %v7019 = vsub.s32 %v7016, %v7018
    %v7020 = vrot.slane %v6453, %v7019
    %v7022 = vunpack.c.l.s4 1983009808
    %v7023 = vunpack.c.0.s8 %v7022
    %v7024 = vlaneseq
    %v7025 = vshrl.u32 %v7024, 7
    %v7026 = vsub.s32 %v7023, %v7025
    %v7027 = vrot.slane %v7013, %v7026
    %v7028 = vcombine.high %v7020, %v7020
    %v7029 = vcombine.high %v7027, %v7027
    %v7030 = vcombine.high %v6454, %v6454
    %v7032 = vunpack.c.l.s4 1983009808
    %v7033 = vunpack.c.0.s8 %v7032
    %v7034 = vlaneseq
    %v7035 = vshrl.u32 %v7034, 7
    %v7036 = vsub.s32 %v7033, %v7035
    %v7037 = vrot.slane %v6454, %v7036
    %v7039 = vunpack.c.l.s4 1983009808
    %v7040 = vunpack.c.0.s8 %v7039
    %v7041 = vlaneseq
    %v7042 = vshrl.u32 %v7041, 7
    %v7043 = vsub.s32 %v7040, %v7042
    %v7044 = vrot.slane %v7030, %v7043
    %v7045 = vcombine.high %v7037, %v7037
    %v7046 = vcombine.high %v7044, %v7044
    %v7047 = vcombine.high %v6455, %v6455
    %v7049 = vunpack.c.l.s4 1983009808
    %v7050 = vunpack.c.0.s8 %v7049
    %v7051 = vlaneseq
    %v7052 = vshrl.u32 %v7051, 7
    %v7053 = vsub.s32 %v7050, %v7052
    %v7054 = vrot.slane %v6455, %v7053
    %v7056 = vunpack.c.l.s4 1983009808
    %v7057 = vunpack.c.0.s8 %v7056
    %v7058 = vlaneseq
    %v7059 = vshrl.u32 %v7058, 7
    %v7060 = vsub.s32 %v7057, %v7059
    %v7061 = vrot.slane %v7047, %v7060
    %v7062 = vcombine.high %v7054, %v7054
    %v7063 = vcombine.high %v7061, %v7061
    %v7064 = vcombine.high %v6456, %v6456
    %v7066 = vunpack.c.l.s4 1983009808
    %v7067 = vunpack.c.0.s8 %v7066
    %v7068 = vlaneseq
    %v7069 = vshrl.u32 %v7068, 7
    %v7070 = vsub.s32 %v7067, %v7069
    %v7071 = vrot.slane %v6456, %v7070
    %v7073 = vunpack.c.l.s4 1983009808
    %v7074 = vunpack.c.0.s8 %v7073
    %v7075 = vlaneseq
    %v7076 = vshrl.u32 %v7075, 7
    %v7077 = vsub.s32 %v7074, %v7076
    %v7078 = vrot.slane %v7064, %v7077
    %v7079 = vcombine.high %v7071, %v7071
    %v7080 = vcombine.high %v7078, %v7078
    %v7081 = vcombine.high %v6457, %v6457
    %v7083 = vunpack.c.l.s4 1983009808
    %v7084 = vunpack.c.0.s8 %v7083
    %v7085 = vlaneseq
    %v7086 = vshrl.u32 %v7085, 7
    %v7087 = vsub.s32 %v7084, %v7086
    %v7088 = vrot.slane %v6457, %v7087
    %v7090 = vunpack.c.l.s4 1983009808
    %v7091 = vunpack.c.0.s8 %v7090
    %v7092 = vlaneseq
    %v7093 = vshrl.u32 %v7092, 7
    %v7094 = vsub.s32 %v7091, %v7093
    %v7095 = vrot.slane %v7081, %v7094
    %v7096 = vcombine.high %v7088, %v7088
    %v7097 = vcombine.high %v7095, %v7095
    %v7098 = vcombine.high %v6458, %v6458
    %v7100 = vunpack.c.l.s4 1983009808
    %v7101 = vunpack.c.0.s8 %v7100
    %v7102 = vlaneseq
    %v7103 = vshrl.u32 %v7102, 7
    %v7104 = vsub.s32 %v7101, %v7103
    %v7105 = vrot.slane %v6458, %v7104
    %v7107 = vunpack.c.l.s4 1983009808
    %v7108 = vunpack.c.0.s8 %v7107
    %v7109 = vlaneseq
    %v7110 = vshrl.u32 %v7109, 7
    %v7111 = vsub.s32 %v7108, %v7110
    %v7112 = vrot.slane %v7098, %v7111
    %v7113 = vcombine.high %v7105, %v7105
    %v7114 = vcombine.high %v7112, %v7112
    %v7115 = vcombine.high %v6459, %v6459
    %v7117 = vunpack.c.l.s4 1983009808
    %v7118 = vunpack.c.0.s8 %v7117
    %v7119 = vlaneseq
    %v7120 = vshrl.u32 %v7119, 7
    %v7121 = vsub.s32 %v7118, %v7120
    %v7122 = vrot.slane %v6459, %v7121
    %v7124 = vunpack.c.l.s4 1983009808
    %v7125 = vunpack.c.0.s8 %v7124
    %v7126 = vlaneseq
    %v7127 = vshrl.u32 %v7126, 7
    %v7128 = vsub.s32 %v7125, %v7127
    %v7129 = vrot.slane %v7115, %v7128
    %v7130 = vcombine.high %v7122, %v7122
    %v7131 = vcombine.high %v7129, %v7129
    %v7132 = vcombine.high %v6460, %v6460
    %v7134 = vunpack.c.l.s4 1983009808
    %v7135 = vunpack.c.0.s8 %v7134
    %v7136 = vlaneseq
    %v7137 = vshrl.u32 %v7136, 7
    %v7138 = vsub.s32 %v7135, %v7137
    %v7139 = vrot.slane %v6460, %v7138
    %v7141 = vunpack.c.l.s4 1983009808
    %v7142 = vunpack.c.0.s8 %v7141
    %v7143 = vlaneseq
    %v7144 = vshrl.u32 %v7143, 7
    %v7145 = vsub.s32 %v7142, %v7144
    %v7146 = vrot.slane %v7132, %v7145
    %v7147 = vcombine.high %v7139, %v7139
    %v7148 = vcombine.high %v7146, %v7146
    %v7149 = vcombine.high %v6461, %v6461
    %v7151 = vunpack.c.l.s4 1983009808
    %v7152 = vunpack.c.0.s8 %v7151
    %v7153 = vlaneseq
    %v7154 = vshrl.u32 %v7153, 7
    %v7155 = vsub.s32 %v7152, %v7154
    %v7156 = vrot.slane %v6461, %v7155
    %v7158 = vunpack.c.l.s4 1983009808
    %v7159 = vunpack.c.0.s8 %v7158
    %v7160 = vlaneseq
    %v7161 = vshrl.u32 %v7160, 7
    %v7162 = vsub.s32 %v7159, %v7161
    %v7163 = vrot.slane %v7149, %v7162
    %v7164 = vcombine.high %v7156, %v7156
    %v7165 = vcombine.high %v7163, %v7163
    %v7166 = vcombine.high %v6462, %v6462
    %v7168 = vunpack.c.l.s4 1983009808
    %v7169 = vunpack.c.0.s8 %v7168
    %v7170 = vlaneseq
    %v7171 = vshrl.u32 %v7170, 7
    %v7172 = vsub.s32 %v7169, %v7171
    %v7173 = vrot.slane %v6462, %v7172
    %v7175 = vunpack.c.l.s4 1983009808
    %v7176 = vunpack.c.0.s8 %v7175
    %v7177 = vlaneseq
    %v7178 = vshrl.u32 %v7177, 7
    %v7179 = vsub.s32 %v7176, %v7178
    %v7180 = vrot.slane %v7166, %v7179
    %v7181 = vcombine.high %v7173, %v7173
    %v7182 = vcombine.high %v7180, %v7180
    %v7183 = vcombine.high %v6463, %v6463
    %v7185 = vunpack.c.l.s4 1983009808
    %v7186 = vunpack.c.0.s8 %v7185
    %v7187 = vlaneseq
    %v7188 = vshrl.u32 %v7187, 7
    %v7189 = vsub.s32 %v7186, %v7188
    %v7190 = vrot.slane %v6463, %v7189
    %v7192 = vunpack.c.l.s4 1983009808
    %v7193 = vunpack.c.0.s8 %v7192
    %v7194 = vlaneseq
    %v7195 = vshrl.u32 %v7194, 7
    %v7196 = vsub.s32 %v7193, %v7195
    %v7197 = vrot.slane %v7183, %v7196
    %v7198 = vcombine.high %v7190, %v7190
    %v7199 = vcombine.high %v7197, %v7197
    %v7200 = vcombine.high %v6464, %v6464
    %v7202 = vunpack.c.l.s4 1983009808
    %v7203 = vunpack.c.0.s8 %v7202
    %v7204 = vlaneseq
    %v7205 = vshrl.u32 %v7204, 7
    %v7206 = vsub.s32 %v7203, %v7205
    %v7207 = vrot.slane %v6464, %v7206
    %v7209 = vunpack.c.l.s4 1983009808
    %v7210 = vunpack.c.0.s8 %v7209
    %v7211 = vlaneseq
    %v7212 = vshrl.u32 %v7211, 7
    %v7213 = vsub.s32 %v7210, %v7212
    %v7214 = vrot.slane %v7200, %v7213
    %v7215 = vcombine.high %v7207, %v7207
    %v7216 = vcombine.high %v7214, %v7214
    %v7217 = vcombine.high %v6465, %v6465
    %v7219 = vunpack.c.l.s4 1983009808
    %v7220 = vunpack.c.0.s8 %v7219
    %v7221 = vlaneseq
    %v7222 = vshrl.u32 %v7221, 7
    %v7223 = vsub.s32 %v7220, %v7222
    %v7224 = vrot.slane %v6465, %v7223
    %v7226 = vunpack.c.l.s4 1983009808
    %v7227 = vunpack.c.0.s8 %v7226
    %v7228 = vlaneseq
    %v7229 = vshrl.u32 %v7228, 7
    %v7230 = vsub.s32 %v7227, %v7229
    %v7231 = vrot.slane %v7217, %v7230
    %v7232 = vcombine.high %v7224, %v7224
    %v7233 = vcombine.high %v7231, %v7231
    %v7234 = vcombine.high %v6466, %v6466
    %v7236 = vunpack.c.l.s4 1983009808
    %v7237 = vunpack.c.0.s8 %v7236
    %v7238 = vlaneseq
    %v7239 = vshrl.u32 %v7238, 7
    %v7240 = vsub.s32 %v7237, %v7239
    %v7241 = vrot.slane %v6466, %v7240
    %v7243 = vunpack.c.l.s4 1983009808
    %v7244 = vunpack.c.0.s8 %v7243
    %v7245 = vlaneseq
    %v7246 = vshrl.u32 %v7245, 7
    %v7247 = vsub.s32 %v7244, %v7246
    %v7248 = vrot.slane %v7234, %v7247
    %v7249 = vcombine.high %v7241, %v7241
    %v7250 = vcombine.high %v7248, %v7248
    %v7251 = vcombine.high %v6467, %v6467
    %v7253 = vunpack.c.l.s4 1983009808
    %v7254 = vunpack.c.0.s8 %v7253
    %v7255 = vlaneseq
    %v7256 = vshrl.u32 %v7255, 7
    %v7257 = vsub.s32 %v7254, %v7256
    %v7258 = vrot.slane %v6467, %v7257
    %v7260 = vunpack.c.l.s4 1983009808
    %v7261 = vunpack.c.0.s8 %v7260
    %v7262 = vlaneseq
    %v7263 = vshrl.u32 %v7262, 7
    %v7264 = vsub.s32 %v7261, %v7263
    %v7265 = vrot.slane %v7251, %v7264
    %v7266 = vcombine.high %v7258, %v7258
    %v7267 = vcombine.high %v7265, %v7265
    %v7268 = vcombine.high %v6468, %v6468
    %v7270 = vunpack.c.l.s4 1983009808
    %v7271 = vunpack.c.0.s8 %v7270
    %v7272 = vlaneseq
    %v7273 = vshrl.u32 %v7272, 7
    %v7274 = vsub.s32 %v7271, %v7273
    %v7275 = vrot.slane %v6468, %v7274
    %v7277 = vunpack.c.l.s4 1983009808
    %v7278 = vunpack.c.0.s8 %v7277
    %v7279 = vlaneseq
    %v7280 = vshrl.u32 %v7279, 7
    %v7281 = vsub.s32 %v7278, %v7280
    %v7282 = vrot.slane %v7268, %v7281
    %v7283 = vcombine.high %v7275, %v7275
    %v7284 = vcombine.high %v7282, %v7282
    %v7285 = vcombine.high %v6469, %v6469
    %v7287 = vunpack.c.l.s4 1983009808
    %v7288 = vunpack.c.0.s8 %v7287
    %v7289 = vlaneseq
    %v7290 = vshrl.u32 %v7289, 7
    %v7291 = vsub.s32 %v7288, %v7290
    %v7292 = vrot.slane %v6469, %v7291
    %v7294 = vunpack.c.l.s4 1983009808
    %v7295 = vunpack.c.0.s8 %v7294
    %v7296 = vlaneseq
    %v7297 = vshrl.u32 %v7296, 7
    %v7298 = vsub.s32 %v7295, %v7297
    %v7299 = vrot.slane %v7285, %v7298
    %v7300 = vcombine.high %v7292, %v7292
    %v7301 = vcombine.high %v7299, %v7299
    %v7302 = vcombine.high %v6470, %v6470
    %v7304 = vunpack.c.l.s4 1983009808
    %v7305 = vunpack.c.0.s8 %v7304
    %v7306 = vlaneseq
    %v7307 = vshrl.u32 %v7306, 7
    %v7308 = vsub.s32 %v7305, %v7307
    %v7309 = vrot.slane %v6470, %v7308
    %v7311 = vunpack.c.l.s4 1983009808
    %v7312 = vunpack.c.0.s8 %v7311
    %v7313 = vlaneseq
    %v7314 = vshrl.u32 %v7313, 7
    %v7315 = vsub.s32 %v7312, %v7314
    %v7316 = vrot.slane %v7302, %v7315
    %v7317 = vcombine.high %v7309, %v7309
    %v7318 = vcombine.high %v7316, %v7316
    %v7319 = vcombine.high %v6471, %v6471
    %v7321 = vunpack.c.l.s4 1983009808
    %v7322 = vunpack.c.0.s8 %v7321
    %v7323 = vlaneseq
    %v7324 = vshrl.u32 %v7323, 7
    %v7325 = vsub.s32 %v7322, %v7324
    %v7326 = vrot.slane %v6471, %v7325
    %v7328 = vunpack.c.l.s4 1983009808
    %v7329 = vunpack.c.0.s8 %v7328
    %v7330 = vlaneseq
    %v7331 = vshrl.u32 %v7330, 7
    %v7332 = vsub.s32 %v7329, %v7331
    %v7333 = vrot.slane %v7319, %v7332
    %v7334 = vcombine.high %v7326, %v7326
    %v7335 = vcombine.high %v7333, %v7333
    %v7336 = vcombine.high %v6472, %v6472
    %v7338 = vunpack.c.l.s4 1983009808
    %v7339 = vunpack.c.0.s8 %v7338
    %v7340 = vlaneseq
    %v7341 = vshrl.u32 %v7340, 7
    %v7342 = vsub.s32 %v7339, %v7341
    %v7343 = vrot.slane %v6472, %v7342
    %v7345 = vunpack.c.l.s4 1983009808
    %v7346 = vunpack.c.0.s8 %v7345
    %v7347 = vlaneseq
    %v7348 = vshrl.u32 %v7347, 7
    %v7349 = vsub.s32 %v7346, %v7348
    %v7350 = vrot.slane %v7336, %v7349
    %v7351 = vcombine.high %v7343, %v7343
    %v7352 = vcombine.high %v7350, %v7350
    %v7353 = vcombine.high %v6473, %v6473
    %v7355 = vunpack.c.l.s4 1983009808
    %v7356 = vunpack.c.0.s8 %v7355
    %v7357 = vlaneseq
    %v7358 = vshrl.u32 %v7357, 7
    %v7359 = vsub.s32 %v7356, %v7358
    %v7360 = vrot.slane %v6473, %v7359
    %v7362 = vunpack.c.l.s4 1983009808
    %v7363 = vunpack.c.0.s8 %v7362
    %v7364 = vlaneseq
    %v7365 = vshrl.u32 %v7364, 7
    %v7366 = vsub.s32 %v7363, %v7365
    %v7367 = vrot.slane %v7353, %v7366
    %v7368 = vcombine.high %v7360, %v7360
    %v7369 = vcombine.high %v7367, %v7367
    %v7370 = vcombine.high %v6474, %v6474
    %v7372 = vunpack.c.l.s4 1983009808
    %v7373 = vunpack.c.0.s8 %v7372
    %v7374 = vlaneseq
    %v7375 = vshrl.u32 %v7374, 7
    %v7376 = vsub.s32 %v7373, %v7375
    %v7377 = vrot.slane %v6474, %v7376
    %v7379 = vunpack.c.l.s4 1983009808
    %v7380 = vunpack.c.0.s8 %v7379
    %v7381 = vlaneseq
    %v7382 = vshrl.u32 %v7381, 7
    %v7383 = vsub.s32 %v7380, %v7382
    %v7384 = vrot.slane %v7370, %v7383
    %v7385 = vcombine.high %v7377, %v7377
    %v7386 = vcombine.high %v7384, %v7384
    %v7387 = vcombine.high %v6475, %v6475
    %v7389 = vunpack.c.l.s4 1983009808
    %v7390 = vunpack.c.0.s8 %v7389
    %v7391 = vlaneseq
    %v7392 = vshrl.u32 %v7391, 7
    %v7393 = vsub.s32 %v7390, %v7392
    %v7394 = vrot.slane %v6475, %v7393
    %v7396 = vunpack.c.l.s4 1983009808
    %v7397 = vunpack.c.0.s8 %v7396
    %v7398 = vlaneseq
    %v7399 = vshrl.u32 %v7398, 7
    %v7400 = vsub.s32 %v7397, %v7399
    %v7401 = vrot.slane %v7387, %v7400
    %v7402 = vcombine.high %v7394, %v7394
    %v7403 = vcombine.high %v7401, %v7401
    %v7404 = vcombine.high %v6476, %v6476
    %v7406 = vunpack.c.l.s4 1983009808
    %v7407 = vunpack.c.0.s8 %v7406
    %v7408 = vlaneseq
    %v7409 = vshrl.u32 %v7408, 7
    %v7410 = vsub.s32 %v7407, %v7409
    %v7411 = vrot.slane %v6476, %v7410
    %v7413 = vunpack.c.l.s4 1983009808
    %v7414 = vunpack.c.0.s8 %v7413
    %v7415 = vlaneseq
    %v7416 = vshrl.u32 %v7415, 7
    %v7417 = vsub.s32 %v7414, %v7416
    %v7418 = vrot.slane %v7404, %v7417
    %v7419 = vcombine.high %v7411, %v7411
    %v7420 = vcombine.high %v7418, %v7418
    %v7421 = vcombine.high %v6477, %v6477
    %v7423 = vunpack.c.l.s4 1983009808
    %v7424 = vunpack.c.0.s8 %v7423
    %v7425 = vlaneseq
    %v7426 = vshrl.u32 %v7425, 7
    %v7427 = vsub.s32 %v7424, %v7426
    %v7428 = vrot.slane %v6477, %v7427
    %v7430 = vunpack.c.l.s4 1983009808
    %v7431 = vunpack.c.0.s8 %v7430
    %v7432 = vlaneseq
    %v7433 = vshrl.u32 %v7432, 7
    %v7434 = vsub.s32 %v7431, %v7433
    %v7435 = vrot.slane %v7421, %v7434
    %v7436 = vcombine.high %v7428, %v7428
    %v7437 = vcombine.high %v7435, %v7435
    %v7438 = vcombine.high %v6478, %v6478
    %v7440 = vunpack.c.l.s4 1983009808
    %v7441 = vunpack.c.0.s8 %v7440
    %v7442 = vlaneseq
    %v7443 = vshrl.u32 %v7442, 7
    %v7444 = vsub.s32 %v7441, %v7443
    %v7445 = vrot.slane %v6478, %v7444
    %v7447 = vunpack.c.l.s4 1983009808
    %v7448 = vunpack.c.0.s8 %v7447
    %v7449 = vlaneseq
    %v7450 = vshrl.u32 %v7449, 7
    %v7451 = vsub.s32 %v7448, %v7450
    %v7452 = vrot.slane %v7438, %v7451
    %v7453 = vcombine.high %v7445, %v7445
    %v7454 = vcombine.high %v7452, %v7452
    %v7455 = vcombine.high %v6479, %v6479
    %v7457 = vunpack.c.l.s4 1983009808
    %v7458 = vunpack.c.0.s8 %v7457
    %v7459 = vlaneseq
    %v7460 = vshrl.u32 %v7459, 7
    %v7461 = vsub.s32 %v7458, %v7460
    %v7462 = vrot.slane %v6479, %v7461
    %v7464 = vunpack.c.l.s4 1983009808
    %v7465 = vunpack.c.0.s8 %v7464
    %v7466 = vlaneseq
    %v7467 = vshrl.u32 %v7466, 7
    %v7468 = vsub.s32 %v7465, %v7467
    %v7469 = vrot.slane %v7455, %v7468
    %v7470 = vcombine.high %v7462, %v7462
    %v7471 = vcombine.high %v7469, %v7469
    %v7472 = vcombine.high %v6480, %v6480
    %v7474 = vunpack.c.l.s4 1983009808
    %v7475 = vunpack.c.0.s8 %v7474
    %v7476 = vlaneseq
    %v7477 = vshrl.u32 %v7476, 7
    %v7478 = vsub.s32 %v7475, %v7477
    %v7479 = vrot.slane %v6480, %v7478
    %v7481 = vunpack.c.l.s4 1983009808
    %v7482 = vunpack.c.0.s8 %v7481
    %v7483 = vlaneseq
    %v7484 = vshrl.u32 %v7483, 7
    %v7485 = vsub.s32 %v7482, %v7484
    %v7486 = vrot.slane %v7472, %v7485
    %v7487 = vcombine.high %v7479, %v7479
    %v7488 = vcombine.high %v7486, %v7486
    %v7489 = vcombine.high %v6481, %v6481
    %v7491 = vunpack.c.l.s4 1983009808
    %v7492 = vunpack.c.0.s8 %v7491
    %v7493 = vlaneseq
    %v7494 = vshrl.u32 %v7493, 7
    %v7495 = vsub.s32 %v7492, %v7494
    %v7496 = vrot.slane %v6481, %v7495
    %v7498 = vunpack.c.l.s4 1983009808
    %v7499 = vunpack.c.0.s8 %v7498
    %v7500 = vlaneseq
    %v7501 = vshrl.u32 %v7500, 7
    %v7502 = vsub.s32 %v7499, %v7501
    %v7503 = vrot.slane %v7489, %v7502
    %v7504 = vcombine.high %v7496, %v7496
    %v7505 = vcombine.high %v7503, %v7503
    %v7506 = vcombine.high %v6482, %v6482
    %v7508 = vunpack.c.l.s4 1983009808
    %v7509 = vunpack.c.0.s8 %v7508
    %v7510 = vlaneseq
    %v7511 = vshrl.u32 %v7510, 7
    %v7512 = vsub.s32 %v7509, %v7511
    %v7513 = vrot.slane %v6482, %v7512
    %v7515 = vunpack.c.l.s4 1983009808
    %v7516 = vunpack.c.0.s8 %v7515
    %v7517 = vlaneseq
    %v7518 = vshrl.u32 %v7517, 7
    %v7519 = vsub.s32 %v7516, %v7518
    %v7520 = vrot.slane %v7506, %v7519
    %v7521 = vcombine.high %v7513, %v7513
    %v7522 = vcombine.high %v7520, %v7520
    %v7523 = vcombine.high %v6483, %v6483
    %v7525 = vunpack.c.l.s4 1983009808
    %v7526 = vunpack.c.0.s8 %v7525
    %v7527 = vlaneseq
    %v7528 = vshrl.u32 %v7527, 7
    %v7529 = vsub.s32 %v7526, %v7528
    %v7530 = vrot.slane %v6483, %v7529
    %v7532 = vunpack.c.l.s4 1983009808
    %v7533 = vunpack.c.0.s8 %v7532
    %v7534 = vlaneseq
    %v7535 = vshrl.u32 %v7534, 7
    %v7536 = vsub.s32 %v7533, %v7535
    %v7537 = vrot.slane %v7523, %v7536
    %v7538 = vcombine.high %v7530, %v7530
    %v7539 = vcombine.high %v7537, %v7537
    %v7540 = vcombine.high %v6484, %v6484
    %v7542 = vunpack.c.l.s4 1983009808
    %v7543 = vunpack.c.0.s8 %v7542
    %v7544 = vlaneseq
    %v7545 = vshrl.u32 %v7544, 7
    %v7546 = vsub.s32 %v7543, %v7545
    %v7547 = vrot.slane %v6484, %v7546
    %v7549 = vunpack.c.l.s4 1983009808
    %v7550 = vunpack.c.0.s8 %v7549
    %v7551 = vlaneseq
    %v7552 = vshrl.u32 %v7551, 7
    %v7553 = vsub.s32 %v7550, %v7552
    %v7554 = vrot.slane %v7540, %v7553
    %v7555 = vcombine.high %v7547, %v7547
    %v7556 = vcombine.high %v7554, %v7554
    %v7557 = vcombine.high %v6485, %v6485
    %v7559 = vunpack.c.l.s4 1983009808
    %v7560 = vunpack.c.0.s8 %v7559
    %v7561 = vlaneseq
    %v7562 = vshrl.u32 %v7561, 7
    %v7563 = vsub.s32 %v7560, %v7562
    %v7564 = vrot.slane %v6485, %v7563
    %v7566 = vunpack.c.l.s4 1983009808
    %v7567 = vunpack.c.0.s8 %v7566
    %v7568 = vlaneseq
    %v7569 = vshrl.u32 %v7568, 7
    %v7570 = vsub.s32 %v7567, %v7569
    %v7571 = vrot.slane %v7557, %v7570
    %v7572 = vcombine.high %v7564, %v7564
    %v7573 = vcombine.high %v7571, %v7571
    %v7574 = vcombine.high %v6486, %v6486
    %v7576 = vunpack.c.l.s4 1983009808
    %v7577 = vunpack.c.0.s8 %v7576
    %v7578 = vlaneseq
    %v7579 = vshrl.u32 %v7578, 7
    %v7580 = vsub.s32 %v7577, %v7579
    %v7581 = vrot.slane %v6486, %v7580
    %v7583 = vunpack.c.l.s4 1983009808
    %v7584 = vunpack.c.0.s8 %v7583
    %v7585 = vlaneseq
    %v7586 = vshrl.u32 %v7585, 7
    %v7587 = vsub.s32 %v7584, %v7586
    %v7588 = vrot.slane %v7574, %v7587
    %v7589 = vcombine.high %v7581, %v7581
    %v7590 = vcombine.high %v7588, %v7588
    %v7591 = vcombine.high %v6487, %v6487
    %v7593 = vunpack.c.l.s4 1983009808
    %v7594 = vunpack.c.0.s8 %v7593
    %v7595 = vlaneseq
    %v7596 = vshrl.u32 %v7595, 7
    %v7597 = vsub.s32 %v7594, %v7596
    %v7598 = vrot.slane %v6487, %v7597
    %v7600 = vunpack.c.l.s4 1983009808
    %v7601 = vunpack.c.0.s8 %v7600
    %v7602 = vlaneseq
    %v7603 = vshrl.u32 %v7602, 7
    %v7604 = vsub.s32 %v7601, %v7603
    %v7605 = vrot.slane %v7591, %v7604
    %v7606 = vcombine.high %v7598, %v7598
    %v7607 = vcombine.high %v7605, %v7605
    %v7608 = vcombine.high %v6488, %v6488
    %v7610 = vunpack.c.l.s4 1983009808
    %v7611 = vunpack.c.0.s8 %v7610
    %v7612 = vlaneseq
    %v7613 = vshrl.u32 %v7612, 7
    %v7614 = vsub.s32 %v7611, %v7613
    %v7615 = vrot.slane %v6488, %v7614
    %v7617 = vunpack.c.l.s4 1983009808
    %v7618 = vunpack.c.0.s8 %v7617
    %v7619 = vlaneseq
    %v7620 = vshrl.u32 %v7619, 7
    %v7621 = vsub.s32 %v7618, %v7620
    %v7622 = vrot.slane %v7608, %v7621
    %v7623 = vcombine.high %v7615, %v7615
    %v7624 = vcombine.high %v7622, %v7622
    %v7625 = vcombine.high %v6489, %v6489
    %v7627 = vunpack.c.l.s4 1983009808
    %v7628 = vunpack.c.0.s8 %v7627
    %v7629 = vlaneseq
    %v7630 = vshrl.u32 %v7629, 7
    %v7631 = vsub.s32 %v7628, %v7630
    %v7632 = vrot.slane %v6489, %v7631
    %v7634 = vunpack.c.l.s4 1983009808
    %v7635 = vunpack.c.0.s8 %v7634
    %v7636 = vlaneseq
    %v7637 = vshrl.u32 %v7636, 7
    %v7638 = vsub.s32 %v7635, %v7637
    %v7639 = vrot.slane %v7625, %v7638
    %v7640 = vcombine.high %v7632, %v7632
    %v7641 = vcombine.high %v7639, %v7639
    %v7898 = vrot.slane %v6561, 7
    %v7899 = vrot.slane %v7898, 2
    %v7900 = vrot.slane %v6569, 7
    %v7901 = vrot.slane %v7900, 2
    %v7902 = vrot.slane %v6568, 7
    %v7903 = vrot.slane %v7902, 2
    %v7904 = vrot.slane %v6570, 7
    %v7905 = vrot.slane %v7904, 2
    %v7906 = vrot.slane %v6578, 7
    %v7907 = vrot.slane %v7906, 2
    %v7908 = vrot.slane %v6586, 7
    %v7909 = vrot.slane %v7908, 2
    %v7910 = vrot.slane %v6585, 7
    %v7911 = vrot.slane %v7910, 2
    %v7912 = vrot.slane %v6587, 7
    %v7913 = vrot.slane %v7912, 2
    %v7914 = vrot.slane %v6595, 7
    %v7915 = vrot.slane %v7914, 2
    %v7916 = vrot.slane %v6603, 7
    %v7917 = vrot.slane %v7916, 2
    %v7918 = vrot.slane %v6602, 7
    %v7919 = vrot.slane %v7918, 2
    %v7920 = vrot.slane %v6604, 7
    %v7921 = vrot.slane %v7920, 2
    %v7922 = vrot.slane %v6612, 7
    %v7923 = vrot.slane %v7922, 2
    %v7924 = vrot.slane %v6620, 7
    %v7925 = vrot.slane %v7924, 2
    %v7926 = vrot.slane %v6619, 7
    %v7927 = vrot.slane %v7926, 2
    %v7928 = vrot.slane %v6621, 7
    %v7929 = vrot.slane %v7928, 2
    %v7930 = vrot.slane %v6629, 7
    %v7931 = vrot.slane %v7930, 2
    %v7932 = vrot.slane %v6637, 7
    %v7933 = vrot.slane %v7932, 2
    %v7934 = vrot.slane %v6636, 7
    %v7935 = vrot.slane %v7934, 2
    %v7936 = vrot.slane %v6638, 7
    %v7937 = vrot.slane %v7936, 2
    %v7938 = vrot.slane %v6646, 7
    %v7939 = vrot.slane %v7938, 2
    %v7940 = vrot.slane %v6654, 7
    %v7941 = vrot.slane %v7940, 2
    %v7942 = vrot.slane %v6653, 7
    %v7943 = vrot.slane %v7942, 2
    %v7944 = vrot.slane %v6655, 7
    %v7945 = vrot.slane %v7944, 2
    %v7946 = vrot.slane %v6663, 7
    %v7947 = vrot.slane %v7946, 2
    %v7948 = vrot.slane %v6671, 7
    %v7949 = vrot.slane %v7948, 2
    %v7950 = vrot.slane %v6670, 7
    %v7951 = vrot.slane %v7950, 2
    %v7952 = vrot.slane %v6672, 7
    %v7953 = vrot.slane %v7952, 2
    %v7954 = vrot.slane %v6680, 7
    %v7955 = vrot.slane %v7954, 2
    %v7956 = vrot.slane %v6688, 7
    %v7957 = vrot.slane %v7956, 2
    %v7958 = vrot.slane %v6687, 7
    %v7959 = vrot.slane %v7958, 2
    %v7960 = vrot.slane %v6689, 7
    %v7961 = vrot.slane %v7960, 2
    %v7962 = vrot.slane %v6697, 7
    %v7963 = vrot.slane %v7962, 2
    %v7964 = vrot.slane %v6705, 7
    %v7965 = vrot.slane %v7964, 2
    %v7966 = vrot.slane %v6704, 7
    %v7967 = vrot.slane %v7966, 2
    %v7968 = vrot.slane %v6706, 7
    %v7969 = vrot.slane %v7968, 2
    %v7970 = vrot.slane %v6714, 7
    %v7971 = vrot.slane %v7970, 2
    %v7972 = vrot.slane %v6722, 7
    %v7973 = vrot.slane %v7972, 2
    %v7974 = vrot.slane %v6721, 7
    %v7975 = vrot.slane %v7974, 2
    %v7976 = vrot.slane %v6723, 7
    %v7977 = vrot.slane %v7976, 2
    %v7978 = vrot.slane %v6731, 7
    %v7979 = vrot.slane %v7978, 2
    %v7980 = vrot.slane %v6739, 7
    %v7981 = vrot.slane %v7980, 2
    %v7982 = vrot.slane %v6738, 7
    %v7983 = vrot.slane %v7982, 2
    %v7984 = vrot.slane %v6740, 7
    %v7985 = vrot.slane %v7984, 2
    %v7986 = vrot.slane %v6748, 7
    %v7987 = vrot.slane %v7986, 2
    %v7988 = vrot.slane %v6756, 7
    %v7989 = vrot.slane %v7988, 2
    %v7990 = vrot.slane %v6755, 7
    %v7991 = vrot.slane %v7990, 2
    %v7992 = vrot.slane %v6757, 7
    %v7993 = vrot.slane %v7992, 2
    %v7994 = vrot.slane %v6765, 7
    %v7995 = vrot.slane %v7994, 2
    %v7996 = vrot.slane %v6773, 7
    %v7997 = vrot.slane %v7996, 2
    %v7998 = vrot.slane %v6772, 7
    %v7999 = vrot.slane %v7998, 2
    %v8000 = vrot.slane %v6774, 7
    %v8001 = vrot.slane %v8000, 2
    %v8002 = vrot.slane %v6782, 7
    %v8003 = vrot.slane %v8002, 2
    %v8004 = vrot.slane %v6790, 7
    %v8005 = vrot.slane %v8004, 2
    %v8006 = vrot.slane %v6789, 7
    %v8007 = vrot.slane %v8006, 2
    %v8008 = vrot.slane %v6791, 7
    %v8009 = vrot.slane %v8008, 2
    %v8010 = vrot.slane %v6799, 7
    %v8011 = vrot.slane %v8010, 2
    %v8012 = vrot.slane %v6807, 7
    %v8013 = vrot.slane %v8012, 2
    %v8014 = vrot.slane %v6806, 7
    %v8015 = vrot.slane %v8014, 2
    %v8016 = vrot.slane %v6808, 7
    %v8017 = vrot.slane %v8016, 2
    %v8018 = vrot.slane %v6816, 7
    %v8019 = vrot.slane %v8018, 2
    %v8020 = vrot.slane %v6824, 7
    %v8021 = vrot.slane %v8020, 2
    %v8022 = vrot.slane %v6823, 7
    %v8023 = vrot.slane %v8022, 2
    %v8024 = vrot.slane %v6825, 7
    %v8025 = vrot.slane %v8024, 2
    %v8026 = vrot.slane %v6833, 7
    %v8027 = vrot.slane %v8026, 2
    %v8028 = vrot.slane %v6841, 7
    %v8029 = vrot.slane %v8028, 2
    %v8030 = vrot.slane %v6840, 7
    %v8031 = vrot.slane %v8030, 2
    %v8032 = vrot.slane %v6842, 7
    %v8033 = vrot.slane %v8032, 2
    %v8034 = vrot.slane %v6850, 7
    %v8035 = vrot.slane %v8034, 2
    %v8036 = vrot.slane %v6858, 7
    %v8037 = vrot.slane %v8036, 2
    %v8038 = vrot.slane %v6857, 7
    %v8039 = vrot.slane %v8038, 2
    %v8040 = vrot.slane %v6859, 7
    %v8041 = vrot.slane %v8040, 2
    %v8042 = vrot.slane %v6867, 7
    %v8043 = vrot.slane %v8042, 2
    %v8044 = vrot.slane %v6875, 7
    %v8045 = vrot.slane %v8044, 2
    %v8046 = vrot.slane %v6874, 7
    %v8047 = vrot.slane %v8046, 2
    %v8048 = vrot.slane %v6876, 7
    %v8049 = vrot.slane %v8048, 2
    %v8050 = vrot.slane %v6884, 7
    %v8051 = vrot.slane %v8050, 2
    %v8052 = vrot.slane %v6892, 7
    %v8053 = vrot.slane %v8052, 2
    %v8054 = vrot.slane %v6891, 7
    %v8055 = vrot.slane %v8054, 2
    %v8056 = vrot.slane %v6893, 7
    %v8057 = vrot.slane %v8056, 2
    %v8058 = vrot.slane %v6901, 7
    %v8059 = vrot.slane %v8058, 2
    %v8060 = vrot.slane %v6909, 7
    %v8061 = vrot.slane %v8060, 2
    %v8062 = vrot.slane %v6908, 7
    %v8063 = vrot.slane %v8062, 2
    %v8064 = vrot.slane %v6910, 7
    %v8065 = vrot.slane %v8064, 2
    %v8066 = vrot.slane %v6918, 7
    %v8067 = vrot.slane %v8066, 2
    %v8068 = vrot.slane %v6926, 7
    %v8069 = vrot.slane %v8068, 2
    %v8070 = vrot.slane %v6925, 7
    %v8071 = vrot.slane %v8070, 2
    %v8072 = vrot.slane %v6927, 7
    %v8073 = vrot.slane %v8072, 2
    %v8074 = vrot.slane %v6935, 7
    %v8075 = vrot.slane %v8074, 2
    %v8076 = vrot.slane %v6943, 7
    %v8077 = vrot.slane %v8076, 2
    %v8078 = vrot.slane %v6942, 7
    %v8079 = vrot.slane %v8078, 2
    %v8080 = vrot.slane %v6944, 7
    %v8081 = vrot.slane %v8080, 2
    %v8082 = vrot.slane %v6952, 7
    %v8083 = vrot.slane %v8082, 2
    %v8084 = vrot.slane %v6960, 7
    %v8085 = vrot.slane %v8084, 2
    %v8086 = vrot.slane %v6959, 7
    %v8087 = vrot.slane %v8086, 2
    %v8088 = vrot.slane %v6961, 7
    %v8089 = vrot.slane %v8088, 2
    %v8090 = vrot.slane %v6969, 7
    %v8091 = vrot.slane %v8090, 2
    %v8092 = vrot.slane %v6977, 7
    %v8093 = vrot.slane %v8092, 2
    %v8094 = vrot.slane %v6976, 7
    %v8095 = vrot.slane %v8094, 2
    %v8096 = vrot.slane %v6978, 7
    %v8097 = vrot.slane %v8096, 2
    %v8098 = vrot.slane %v6986, 7
    %v8099 = vrot.slane %v8098, 2
    %v8100 = vrot.slane %v6994, 7
    %v8101 = vrot.slane %v8100, 2
    %v8102 = vrot.slane %v6993, 7
    %v8103 = vrot.slane %v8102, 2
    %v8104 = vrot.slane %v6995, 7
    %v8105 = vrot.slane %v8104, 2
    %v8106 = vrot.slane %v7003, 7
    %v8107 = vrot.slane %v8106, 2
    %v8108 = vrot.slane %v7011, 7
    %v8109 = vrot.slane %v8108, 2
    %v8110 = vrot.slane %v7010, 7
    %v8111 = vrot.slane %v8110, 2
    %v8112 = vrot.slane %v7012, 7
    %v8113 = vrot.slane %v8112, 2
    %v8114 = vrot.slane %v7020, 7
    %v8115 = vrot.slane %v8114, 2
    %v8116 = vrot.slane %v7028, 7
    %v8117 = vrot.slane %v8116, 2
    %v8118 = vrot.slane %v7027, 7
    %v8119 = vrot.slane %v8118, 2
    %v8120 = vrot.slane %v7029, 7
    %v8121 = vrot.slane %v8120, 2
    %v8122 = vrot.slane %v7037, 7
    %v8123 = vrot.slane %v8122, 2
    %v8124 = vrot.slane %v7045, 7
    %v8125 = vrot.slane %v8124, 2
    %v8126 = vrot.slane %v7044, 7
    %v8127 = vrot.slane %v8126, 2
    %v8128 = vrot.slane %v7046, 7
    %v8129 = vrot.slane %v8128, 2
    %v8130 = vrot.slane %v7054, 7
    %v8131 = vrot.slane %v8130, 2
    %v8132 = vrot.slane %v7062, 7
    %v8133 = vrot.slane %v8132, 2
    %v8134 = vrot.slane %v7061, 7
    %v8135 = vrot.slane %v8134, 2
    %v8136 = vrot.slane %v7063, 7
    %v8137 = vrot.slane %v8136, 2
    %v8138 = vrot.slane %v7071, 7
    %v8139 = vrot.slane %v8138, 2
    %v8140 = vrot.slane %v7079, 7
    %v8141 = vrot.slane %v8140, 2
    %v8142 = vrot.slane %v7078, 7
    %v8143 = vrot.slane %v8142, 2
    %v8144 = vrot.slane %v7080, 7
    %v8145 = vrot.slane %v8144, 2
    %v8146 = vrot.slane %v7088, 7
    %v8147 = vrot.slane %v8146, 2
    %v8148 = vrot.slane %v7096, 7
    %v8149 = vrot.slane %v8148, 2
    %v8150 = vrot.slane %v7095, 7
    %v8151 = vrot.slane %v8150, 2
    %v8152 = vrot.slane %v7097, 7
    %v8153 = vrot.slane %v8152, 2
    %v8154 = vrot.slane %v7105, 7
    %v8155 = vrot.slane %v8154, 2
    %v8156 = vrot.slane %v7113, 7
    %v8157 = vrot.slane %v8156, 2
    %v8158 = vrot.slane %v7112, 7
    %v8159 = vrot.slane %v8158, 2
    %v8160 = vrot.slane %v7114, 7
    %v8161 = vrot.slane %v8160, 2
    %v8162 = vrot.slane %v7122, 7
    %v8163 = vrot.slane %v8162, 2
    %v8164 = vrot.slane %v7130, 7
    %v8165 = vrot.slane %v8164, 2
    %v8166 = vrot.slane %v7129, 7
    %v8167 = vrot.slane %v8166, 2
    %v8168 = vrot.slane %v7131, 7
    %v8169 = vrot.slane %v8168, 2
    %v8170 = vrot.slane %v7139, 7
    %v8171 = vrot.slane %v8170, 2
    %v8172 = vrot.slane %v7147, 7
    %v8173 = vrot.slane %v8172, 2
    %v8174 = vrot.slane %v7146, 7
    %v8175 = vrot.slane %v8174, 2
    %v8176 = vrot.slane %v7148, 7
    %v8177 = vrot.slane %v8176, 2
    %v8178 = vrot.slane %v7156, 7
    %v8179 = vrot.slane %v8178, 2
    %v8180 = vrot.slane %v7164, 7
    %v8181 = vrot.slane %v8180, 2
    %v8182 = vrot.slane %v7163, 7
    %v8183 = vrot.slane %v8182, 2
    %v8184 = vrot.slane %v7165, 7
    %v8185 = vrot.slane %v8184, 2
    %v8186 = vrot.slane %v7173, 7
    %v8187 = vrot.slane %v8186, 2
    %v8188 = vrot.slane %v7181, 7
    %v8189 = vrot.slane %v8188, 2
    %v8190 = vrot.slane %v7180, 7
    %v8191 = vrot.slane %v8190, 2
    %v8192 = vrot.slane %v7182, 7
    %v8193 = vrot.slane %v8192, 2
    %v8194 = vrot.slane %v7190, 7
    %v8195 = vrot.slane %v8194, 2
    %v8196 = vrot.slane %v7198, 7
    %v8197 = vrot.slane %v8196, 2
    %v8198 = vrot.slane %v7197, 7
    %v8199 = vrot.slane %v8198, 2
    %v8200 = vrot.slane %v7199, 7
    %v8201 = vrot.slane %v8200, 2
    %v8202 = vrot.slane %v7207, 7
    %v8203 = vrot.slane %v8202, 2
    %v8204 = vrot.slane %v7215, 7
    %v8205 = vrot.slane %v8204, 2
    %v8206 = vrot.slane %v7214, 7
    %v8207 = vrot.slane %v8206, 2
    %v8208 = vrot.slane %v7216, 7
    %v8209 = vrot.slane %v8208, 2
    %v8210 = vrot.slane %v7224, 7
    %v8211 = vrot.slane %v8210, 2
    %v8212 = vrot.slane %v7232, 7
    %v8213 = vrot.slane %v8212, 2
    %v8214 = vrot.slane %v7231, 7
    %v8215 = vrot.slane %v8214, 2
    %v8216 = vrot.slane %v7233, 7
    %v8217 = vrot.slane %v8216, 2
    %v8218 = vrot.slane %v7241, 7
    %v8219 = vrot.slane %v8218, 2
    %v8220 = vrot.slane %v7249, 7
    %v8221 = vrot.slane %v8220, 2
    %v8222 = vrot.slane %v7248, 7
    %v8223 = vrot.slane %v8222, 2
    %v8224 = vrot.slane %v7250, 7
    %v8225 = vrot.slane %v8224, 2
    %v8226 = vrot.slane %v7258, 7
    %v8227 = vrot.slane %v8226, 2
    %v8228 = vrot.slane %v7266, 7
    %v8229 = vrot.slane %v8228, 2
    %v8230 = vrot.slane %v7265, 7
    %v8231 = vrot.slane %v8230, 2
    %v8232 = vrot.slane %v7267, 7
    %v8233 = vrot.slane %v8232, 2
    %v8234 = vrot.slane %v7275, 7
    %v8235 = vrot.slane %v8234, 2
    %v8236 = vrot.slane %v7283, 7
    %v8237 = vrot.slane %v8236, 2
    %v8238 = vrot.slane %v7282, 7
    %v8239 = vrot.slane %v8238, 2
    %v8240 = vrot.slane %v7284, 7
    %v8241 = vrot.slane %v8240, 2
    %v8242 = vrot.slane %v7292, 7
    %v8243 = vrot.slane %v8242, 2
    %v8244 = vrot.slane %v7300, 7
    %v8245 = vrot.slane %v8244, 2
    %v8246 = vrot.slane %v7299, 7
    %v8247 = vrot.slane %v8246, 2
    %v8248 = vrot.slane %v7301, 7
    %v8249 = vrot.slane %v8248, 2
    %v8250 = vrot.slane %v7309, 7
    %v8251 = vrot.slane %v8250, 2
    %v8252 = vrot.slane %v7317, 7
    %v8253 = vrot.slane %v8252, 2
    %v8254 = vrot.slane %v7316, 7
    %v8255 = vrot.slane %v8254, 2
    %v8256 = vrot.slane %v7318, 7
    %v8257 = vrot.slane %v8256, 2
    %v8258 = vrot.slane %v7326, 7
    %v8259 = vrot.slane %v8258, 2
    %v8260 = vrot.slane %v7334, 7
    %v8261 = vrot.slane %v8260, 2
    %v8262 = vrot.slane %v7333, 7
    %v8263 = vrot.slane %v8262, 2
    %v8264 = vrot.slane %v7335, 7
    %v8265 = vrot.slane %v8264, 2
    %v8266 = vrot.slane %v7343, 7
    %v8267 = vrot.slane %v8266, 2
    %v8268 = vrot.slane %v7351, 7
    %v8269 = vrot.slane %v8268, 2
    %v8270 = vrot.slane %v7350, 7
    %v8271 = vrot.slane %v8270, 2
    %v8272 = vrot.slane %v7352, 7
    %v8273 = vrot.slane %v8272, 2
    %v8274 = vrot.slane %v7360, 7
    %v8275 = vrot.slane %v8274, 2
    %v8276 = vrot.slane %v7368, 7
    %v8277 = vrot.slane %v8276, 2
    %v8278 = vrot.slane %v7367, 7
    %v8279 = vrot.slane %v8278, 2
    %v8280 = vrot.slane %v7369, 7
    %v8281 = vrot.slane %v8280, 2
    %v8282 = vrot.slane %v7377, 7
    %v8283 = vrot.slane %v8282, 2
    %v8284 = vrot.slane %v7385, 7
    %v8285 = vrot.slane %v8284, 2
    %v8286 = vrot.slane %v7384, 7
    %v8287 = vrot.slane %v8286, 2
    %v8288 = vrot.slane %v7386, 7
    %v8289 = vrot.slane %v8288, 2
    %v8290 = vrot.slane %v7394, 7
    %v8291 = vrot.slane %v8290, 2
    %v8292 = vrot.slane %v7402, 7
    %v8293 = vrot.slane %v8292, 2
    %v8294 = vrot.slane %v7401, 7
    %v8295 = vrot.slane %v8294, 2
    %v8296 = vrot.slane %v7403, 7
    %v8297 = vrot.slane %v8296, 2
    %v8298 = vrot.slane %v7411, 7
    %v8299 = vrot.slane %v8298, 2
    %v8300 = vrot.slane %v7419, 7
    %v8301 = vrot.slane %v8300, 2
    %v8302 = vrot.slane %v7418, 7
    %v8303 = vrot.slane %v8302, 2
    %v8304 = vrot.slane %v7420, 7
    %v8305 = vrot.slane %v8304, 2
    %v8306 = vrot.slane %v7428, 7
    %v8307 = vrot.slane %v8306, 2
    %v8308 = vrot.slane %v7436, 7
    %v8309 = vrot.slane %v8308, 2
    %v8310 = vrot.slane %v7435, 7
    %v8311 = vrot.slane %v8310, 2
    %v8312 = vrot.slane %v7437, 7
    %v8313 = vrot.slane %v8312, 2
    %v8314 = vrot.slane %v7445, 7
    %v8315 = vrot.slane %v8314, 2
    %v8316 = vrot.slane %v7453, 7
    %v8317 = vrot.slane %v8316, 2
    %v8318 = vrot.slane %v7452, 7
    %v8319 = vrot.slane %v8318, 2
    %v8320 = vrot.slane %v7454, 7
    %v8321 = vrot.slane %v8320, 2
    %v8322 = vrot.slane %v7462, 7
    %v8323 = vrot.slane %v8322, 2
    %v8324 = vrot.slane %v7470, 7
    %v8325 = vrot.slane %v8324, 2
    %v8326 = vrot.slane %v7469, 7
    %v8327 = vrot.slane %v8326, 2
    %v8328 = vrot.slane %v7471, 7
    %v8329 = vrot.slane %v8328, 2
    %v8330 = vrot.slane %v7479, 7
    %v8331 = vrot.slane %v8330, 2
    %v8332 = vrot.slane %v7487, 7
    %v8333 = vrot.slane %v8332, 2
    %v8334 = vrot.slane %v7486, 7
    %v8335 = vrot.slane %v8334, 2
    %v8336 = vrot.slane %v7488, 7
    %v8337 = vrot.slane %v8336, 2
    %v8338 = vrot.slane %v7496, 7
    %v8339 = vrot.slane %v8338, 2
    %v8340 = vrot.slane %v7504, 7
    %v8341 = vrot.slane %v8340, 2
    %v8342 = vrot.slane %v7503, 7
    %v8343 = vrot.slane %v8342, 2
    %v8344 = vrot.slane %v7505, 7
    %v8345 = vrot.slane %v8344, 2
    %v8346 = vrot.slane %v7513, 7
    %v8347 = vrot.slane %v8346, 2
    %v8348 = vrot.slane %v7521, 7
    %v8349 = vrot.slane %v8348, 2
    %v8350 = vrot.slane %v7520, 7
    %v8351 = vrot.slane %v8350, 2
    %v8352 = vrot.slane %v7522, 7
    %v8353 = vrot.slane %v8352, 2
    %v8354 = vrot.slane %v7530, 7
    %v8355 = vrot.slane %v8354, 2
    %v8356 = vrot.slane %v7538, 7
    %v8357 = vrot.slane %v8356, 2
    %v8358 = vrot.slane %v7537, 7
    %v8359 = vrot.slane %v8358, 2
    %v8360 = vrot.slane %v7539, 7
    %v8361 = vrot.slane %v8360, 2
    %v8362 = vrot.slane %v7547, 7
    %v8363 = vrot.slane %v8362, 2
    %v8364 = vrot.slane %v7555, 7
    %v8365 = vrot.slane %v8364, 2
    %v8366 = vrot.slane %v7554, 7
    %v8367 = vrot.slane %v8366, 2
    %v8368 = vrot.slane %v7556, 7
    %v8369 = vrot.slane %v8368, 2
    %v8370 = vrot.slane %v7564, 7
    %v8371 = vrot.slane %v8370, 2
    %v8372 = vrot.slane %v7572, 7
    %v8373 = vrot.slane %v8372, 2
    %v8374 = vrot.slane %v7571, 7
    %v8375 = vrot.slane %v8374, 2
    %v8376 = vrot.slane %v7573, 7
    %v8377 = vrot.slane %v8376, 2
    %v8378 = vrot.slane %v7581, 7
    %v8379 = vrot.slane %v8378, 2
    %v8380 = vrot.slane %v7589, 7
    %v8381 = vrot.slane %v8380, 2
    %v8382 = vrot.slane %v7588, 7
    %v8383 = vrot.slane %v8382, 2
    %v8384 = vrot.slane %v7590, 7
    %v8385 = vrot.slane %v8384, 2
    %v8386 = vrot.slane %v7598, 7
    %v8387 = vrot.slane %v8386, 2
    %v8388 = vrot.slane %v7606, 7
    %v8389 = vrot.slane %v8388, 2
    %v8390 = vrot.slane %v7605, 7
    %v8391 = vrot.slane %v8390, 2
    %v8392 = vrot.slane %v7607, 7
    %v8393 = vrot.slane %v8392, 2
    %v8394 = vrot.slane %v7615, 7
    %v8395 = vrot.slane %v8394, 2
    %v8396 = vrot.slane %v7623, 7
    %v8397 = vrot.slane %v8396, 2
    %v8398 = vrot.slane %v7622, 7
    %v8399 = vrot.slane %v8398, 2
    %v8400 = vrot.slane %v7624, 7
    %v8401 = vrot.slane %v8400, 2
    %v8402 = vrot.slane %v7632, 7
    %v8403 = vrot.slane %v8402, 2
    %v8404 = vrot.slane %v7640, 7
    %v8405 = vrot.slane %v8404, 2
    %v8406 = vrot.slane %v7639, 7
    %v8407 = vrot.slane %v8406, 2
    %v8408 = vrot.slane %v7641, 7
    %v8409 = vrot.slane %v8408, 2
    %v8666 = vmax.f32 %v6561, %v7899
    %v8667 = vmax.f32 %v6569, %v7901
    %v8668 = vmax.f32 %v6568, %v7903
    %v8669 = vmax.f32 %v6570, %v7905
    %v8670 = vmax.f32 %v6578, %v7907
    %v8671 = vmax.f32 %v6586, %v7909
    %v8672 = vmax.f32 %v6585, %v7911
    %v8673 = vmax.f32 %v6587, %v7913
    %v8674 = vmax.f32 %v6595, %v7915
    %v8675 = vmax.f32 %v6603, %v7917
    %v8676 = vmax.f32 %v6602, %v7919
    %v8677 = vmax.f32 %v6604, %v7921
    %v8678 = vmax.f32 %v6612, %v7923
    %v8679 = vmax.f32 %v6620, %v7925
    %v8680 = vmax.f32 %v6619, %v7927
    %v8681 = vmax.f32 %v6621, %v7929
    %v8682 = vmax.f32 %v6629, %v7931
    %v8683 = vmax.f32 %v6637, %v7933
    %v8684 = vmax.f32 %v6636, %v7935
    %v8685 = vmax.f32 %v6638, %v7937
    %v8686 = vmax.f32 %v6646, %v7939
    %v8687 = vmax.f32 %v6654, %v7941
    %v8688 = vmax.f32 %v6653, %v7943
    %v8689 = vmax.f32 %v6655, %v7945
    %v8690 = vmax.f32 %v6663, %v7947
    %v8691 = vmax.f32 %v6671, %v7949
    %v8692 = vmax.f32 %v6670, %v7951
    %v8693 = vmax.f32 %v6672, %v7953
    %v8694 = vmax.f32 %v6680, %v7955
    %v8695 = vmax.f32 %v6688, %v7957
    %v8696 = vmax.f32 %v6687, %v7959
    %v8697 = vmax.f32 %v6689, %v7961
    %v8698 = vmax.f32 %v6697, %v7963
    %v8699 = vmax.f32 %v6705, %v7965
    %v8700 = vmax.f32 %v6704, %v7967
    %v8701 = vmax.f32 %v6706, %v7969
    %v8702 = vmax.f32 %v6714, %v7971
    %v8703 = vmax.f32 %v6722, %v7973
    %v8704 = vmax.f32 %v6721, %v7975
    %v8705 = vmax.f32 %v6723, %v7977
    %v8706 = vmax.f32 %v6731, %v7979
    %v8707 = vmax.f32 %v6739, %v7981
    %v8708 = vmax.f32 %v6738, %v7983
    %v8709 = vmax.f32 %v6740, %v7985
    %v8710 = vmax.f32 %v6748, %v7987
    %v8711 = vmax.f32 %v6756, %v7989
    %v8712 = vmax.f32 %v6755, %v7991
    %v8713 = vmax.f32 %v6757, %v7993
    %v8714 = vmax.f32 %v6765, %v7995
    %v8715 = vmax.f32 %v6773, %v7997
    %v8716 = vmax.f32 %v6772, %v7999
    %v8717 = vmax.f32 %v6774, %v8001
    %v8718 = vmax.f32 %v6782, %v8003
    %v8719 = vmax.f32 %v6790, %v8005
    %v8720 = vmax.f32 %v6789, %v8007
    %v8721 = vmax.f32 %v6791, %v8009
    %v8722 = vmax.f32 %v6799, %v8011
    %v8723 = vmax.f32 %v6807, %v8013
    %v8724 = vmax.f32 %v6806, %v8015
    %v8725 = vmax.f32 %v6808, %v8017
    %v8726 = vmax.f32 %v6816, %v8019
    %v8727 = vmax.f32 %v6824, %v8021
    %v8728 = vmax.f32 %v6823, %v8023
    %v8729 = vmax.f32 %v6825, %v8025
    %v8730 = vmax.f32 %v6833, %v8027
    %v8731 = vmax.f32 %v6841, %v8029
    %v8732 = vmax.f32 %v6840, %v8031
    %v8733 = vmax.f32 %v6842, %v8033
    %v8734 = vmax.f32 %v6850, %v8035
    %v8735 = vmax.f32 %v6858, %v8037
    %v8736 = vmax.f32 %v6857, %v8039
    %v8737 = vmax.f32 %v6859, %v8041
    %v8738 = vmax.f32 %v6867, %v8043
    %v8739 = vmax.f32 %v6875, %v8045
    %v8740 = vmax.f32 %v6874, %v8047
    %v8741 = vmax.f32 %v6876, %v8049
    %v8742 = vmax.f32 %v6884, %v8051
    %v8743 = vmax.f32 %v6892, %v8053
    %v8744 = vmax.f32 %v6891, %v8055
    %v8745 = vmax.f32 %v6893, %v8057
    %v8746 = vmax.f32 %v6901, %v8059
    %v8747 = vmax.f32 %v6909, %v8061
    %v8748 = vmax.f32 %v6908, %v8063
    %v8749 = vmax.f32 %v6910, %v8065
    %v8750 = vmax.f32 %v6918, %v8067
    %v8751 = vmax.f32 %v6926, %v8069
    %v8752 = vmax.f32 %v6925, %v8071
    %v8753 = vmax.f32 %v6927, %v8073
    %v8754 = vmax.f32 %v6935, %v8075
    %v8755 = vmax.f32 %v6943, %v8077
    %v8756 = vmax.f32 %v6942, %v8079
    %v8757 = vmax.f32 %v6944, %v8081
    %v8758 = vmax.f32 %v6952, %v8083
    %v8759 = vmax.f32 %v6960, %v8085
    %v8760 = vmax.f32 %v6959, %v8087
    %v8761 = vmax.f32 %v6961, %v8089
    %v8762 = vmax.f32 %v6969, %v8091
    %v8763 = vmax.f32 %v6977, %v8093
    %v8764 = vmax.f32 %v6976, %v8095
    %v8765 = vmax.f32 %v6978, %v8097
    %v8766 = vmax.f32 %v6986, %v8099
    %v8767 = vmax.f32 %v6994, %v8101
    %v8768 = vmax.f32 %v6993, %v8103
    %v8769 = vmax.f32 %v6995, %v8105
    %v8770 = vmax.f32 %v7003, %v8107
    %v8771 = vmax.f32 %v7011, %v8109
    %v8772 = vmax.f32 %v7010, %v8111
    %v8773 = vmax.f32 %v7012, %v8113
    %v8774 = vmax.f32 %v7020, %v8115
    %v8775 = vmax.f32 %v7028, %v8117
    %v8776 = vmax.f32 %v7027, %v8119
    %v8777 = vmax.f32 %v7029, %v8121
    %v8778 = vmax.f32 %v7037, %v8123
    %v8779 = vmax.f32 %v7045, %v8125
    %v8780 = vmax.f32 %v7044, %v8127
    %v8781 = vmax.f32 %v7046, %v8129
    %v8782 = vmax.f32 %v7054, %v8131
    %v8783 = vmax.f32 %v7062, %v8133
    %v8784 = vmax.f32 %v7061, %v8135
    %v8785 = vmax.f32 %v7063, %v8137
    %v8786 = vmax.f32 %v7071, %v8139
    %v8787 = vmax.f32 %v7079, %v8141
    %v8788 = vmax.f32 %v7078, %v8143
    %v8789 = vmax.f32 %v7080, %v8145
    %v8790 = vmax.f32 %v7088, %v8147
    %v8791 = vmax.f32 %v7096, %v8149
    %v8792 = vmax.f32 %v7095, %v8151
    %v8793 = vmax.f32 %v7097, %v8153
    %v8794 = vmax.f32 %v7105, %v8155
    %v8795 = vmax.f32 %v7113, %v8157
    %v8796 = vmax.f32 %v7112, %v8159
    %v8797 = vmax.f32 %v7114, %v8161
    %v8798 = vmax.f32 %v7122, %v8163
    %v8799 = vmax.f32 %v7130, %v8165
    %v8800 = vmax.f32 %v7129, %v8167
    %v8801 = vmax.f32 %v7131, %v8169
    %v8802 = vmax.f32 %v7139, %v8171
    %v8803 = vmax.f32 %v7147, %v8173
    %v8804 = vmax.f32 %v7146, %v8175
    %v8805 = vmax.f32 %v7148, %v8177
    %v8806 = vmax.f32 %v7156, %v8179
    %v8807 = vmax.f32 %v7164, %v8181
    %v8808 = vmax.f32 %v7163, %v8183
    %v8809 = vmax.f32 %v7165, %v8185
    %v8810 = vmax.f32 %v7173, %v8187
    %v8811 = vmax.f32 %v7181, %v8189
    %v8812 = vmax.f32 %v7180, %v8191
    %v8813 = vmax.f32 %v7182, %v8193
    %v8814 = vmax.f32 %v7190, %v8195
    %v8815 = vmax.f32 %v7198, %v8197
    %v8816 = vmax.f32 %v7197, %v8199
    %v8817 = vmax.f32 %v7199, %v8201
    %v8818 = vmax.f32 %v7207, %v8203
    %v8819 = vmax.f32 %v7215, %v8205
    %v8820 = vmax.f32 %v7214, %v8207
    %v8821 = vmax.f32 %v7216, %v8209
    %v8822 = vmax.f32 %v7224, %v8211
    %v8823 = vmax.f32 %v7232, %v8213
    %v8824 = vmax.f32 %v7231, %v8215
    %v8825 = vmax.f32 %v7233, %v8217
    %v8826 = vmax.f32 %v7241, %v8219
    %v8827 = vmax.f32 %v7249, %v8221
    %v8828 = vmax.f32 %v7248, %v8223
    %v8829 = vmax.f32 %v7250, %v8225
    %v8830 = vmax.f32 %v7258, %v8227
    %v8831 = vmax.f32 %v7266, %v8229
    %v8832 = vmax.f32 %v7265, %v8231
    %v8833 = vmax.f32 %v7267, %v8233
    %v8834 = vmax.f32 %v7275, %v8235
    %v8835 = vmax.f32 %v7283, %v8237
    %v8836 = vmax.f32 %v7282, %v8239
    %v8837 = vmax.f32 %v7284, %v8241
    %v8838 = vmax.f32 %v7292, %v8243
    %v8839 = vmax.f32 %v7300, %v8245
    %v8840 = vmax.f32 %v7299, %v8247
    %v8841 = vmax.f32 %v7301, %v8249
    %v8842 = vmax.f32 %v7309, %v8251
    %v8843 = vmax.f32 %v7317, %v8253
    %v8844 = vmax.f32 %v7316, %v8255
    %v8845 = vmax.f32 %v7318, %v8257
    %v8846 = vmax.f32 %v7326, %v8259
    %v8847 = vmax.f32 %v7334, %v8261
    %v8848 = vmax.f32 %v7333, %v8263
    %v8849 = vmax.f32 %v7335, %v8265
    %v8850 = vmax.f32 %v7343, %v8267
    %v8851 = vmax.f32 %v7351, %v8269
    %v8852 = vmax.f32 %v7350, %v8271
    %v8853 = vmax.f32 %v7352, %v8273
    %v8854 = vmax.f32 %v7360, %v8275
    %v8855 = vmax.f32 %v7368, %v8277
    %v8856 = vmax.f32 %v7367, %v8279
    %v8857 = vmax.f32 %v7369, %v8281
    %v8858 = vmax.f32 %v7377, %v8283
    %v8859 = vmax.f32 %v7385, %v8285
    %v8860 = vmax.f32 %v7384, %v8287
    %v8861 = vmax.f32 %v7386, %v8289
    %v8862 = vmax.f32 %v7394, %v8291
    %v8863 = vmax.f32 %v7402, %v8293
    %v8864 = vmax.f32 %v7401, %v8295
    %v8865 = vmax.f32 %v7403, %v8297
    %v8866 = vmax.f32 %v7411, %v8299
    %v8867 = vmax.f32 %v7419, %v8301
    %v8868 = vmax.f32 %v7418, %v8303
    %v8869 = vmax.f32 %v7420, %v8305
    %v8870 = vmax.f32 %v7428, %v8307
    %v8871 = vmax.f32 %v7436, %v8309
    %v8872 = vmax.f32 %v7435, %v8311
    %v8873 = vmax.f32 %v7437, %v8313
    %v8874 = vmax.f32 %v7445, %v8315
    %v8875 = vmax.f32 %v7453, %v8317
    %v8876 = vmax.f32 %v7452, %v8319
    %v8877 = vmax.f32 %v7454, %v8321
    %v8878 = vmax.f32 %v7462, %v8323
    %v8879 = vmax.f32 %v7470, %v8325
    %v8880 = vmax.f32 %v7469, %v8327
    %v8881 = vmax.f32 %v7471, %v8329
    %v8882 = vmax.f32 %v7479, %v8331
    %v8883 = vmax.f32 %v7487, %v8333
    %v8884 = vmax.f32 %v7486, %v8335
    %v8885 = vmax.f32 %v7488, %v8337
    %v8886 = vmax.f32 %v7496, %v8339
    %v8887 = vmax.f32 %v7504, %v8341
    %v8888 = vmax.f32 %v7503, %v8343
    %v8889 = vmax.f32 %v7505, %v8345
    %v8890 = vmax.f32 %v7513, %v8347
    %v8891 = vmax.f32 %v7521, %v8349
    %v8892 = vmax.f32 %v7520, %v8351
    %v8893 = vmax.f32 %v7522, %v8353
    %v8894 = vmax.f32 %v7530, %v8355
    %v8895 = vmax.f32 %v7538, %v8357
    %v8896 = vmax.f32 %v7537, %v8359
    %v8897 = vmax.f32 %v7539, %v8361
    %v8898 = vmax.f32 %v7547, %v8363
    %v8899 = vmax.f32 %v7555, %v8365
    %v8900 = vmax.f32 %v7554, %v8367
    %v8901 = vmax.f32 %v7556, %v8369
    %v8902 = vmax.f32 %v7564, %v8371
    %v8903 = vmax.f32 %v7572, %v8373
    %v8904 = vmax.f32 %v7571, %v8375
    %v8905 = vmax.f32 %v7573, %v8377
    %v8906 = vmax.f32 %v7581, %v8379
    %v8907 = vmax.f32 %v7589, %v8381
    %v8908 = vmax.f32 %v7588, %v8383
    %v8909 = vmax.f32 %v7590, %v8385
    %v8910 = vmax.f32 %v7598, %v8387
    %v8911 = vmax.f32 %v7606, %v8389
    %v8912 = vmax.f32 %v7605, %v8391
    %v8913 = vmax.f32 %v7607, %v8393
    %v8914 = vmax.f32 %v7615, %v8395
    %v8915 = vmax.f32 %v7623, %v8397
    %v8916 = vmax.f32 %v7622, %v8399
    %v8917 = vmax.f32 %v7624, %v8401
    %v8918 = vmax.f32 %v7632, %v8403
    %v8919 = vmax.f32 %v7640, %v8405
    %v8920 = vmax.f32 %v7639, %v8407
    %v8921 = vmax.f32 %v7641, %v8409
    %v8922 = vmax.f32 %v8666, %v8674
    %v8923 = vmax.f32 %v8667, %v8675
    %v8924 = vmax.f32 %v8668, %v8676
    %v8925 = vmax.f32 %v8669, %v8677
    %v8926 = vmax.f32 %v8670, %v8678
    %v8927 = vmax.f32 %v8671, %v8679
    %v8928 = vmax.f32 %v8672, %v8680
    %v8929 = vmax.f32 %v8673, %v8681
    %v8930 = vmax.f32 %v8682, %v8690
    %v8931 = vmax.f32 %v8683, %v8691
    %v8932 = vmax.f32 %v8684, %v8692
    %v8933 = vmax.f32 %v8685, %v8693
    %v8934 = vmax.f32 %v8686, %v8694
    %v8935 = vmax.f32 %v8687, %v8695
    %v8936 = vmax.f32 %v8688, %v8696
    %v8937 = vmax.f32 %v8689, %v8697
    %v8938 = vmax.f32 %v8698, %v8706
    %v8939 = vmax.f32 %v8699, %v8707
    %v8940 = vmax.f32 %v8700, %v8708
    %v8941 = vmax.f32 %v8701, %v8709
    %v8942 = vmax.f32 %v8702, %v8710
    %v8943 = vmax.f32 %v8703, %v8711
    %v8944 = vmax.f32 %v8704, %v8712
    %v8945 = vmax.f32 %v8705, %v8713
    %v8946 = vmax.f32 %v8714, %v8722
    %v8947 = vmax.f32 %v8715, %v8723
    %v8948 = vmax.f32 %v8716, %v8724
    %v8949 = vmax.f32 %v8717, %v8725
    %v8950 = vmax.f32 %v8718, %v8726
    %v8951 = vmax.f32 %v8719, %v8727
    %v8952 = vmax.f32 %v8720, %v8728
    %v8953 = vmax.f32 %v8721, %v8729
    %v8954 = vmax.f32 %v8730, %v8738
    %v8955 = vmax.f32 %v8731, %v8739
    %v8956 = vmax.f32 %v8732, %v8740
    %v8957 = vmax.f32 %v8733, %v8741
    %v8958 = vmax.f32 %v8734, %v8742
    %v8959 = vmax.f32 %v8735, %v8743
    %v8960 = vmax.f32 %v8736, %v8744
    %v8961 = vmax.f32 %v8737, %v8745
    %v8962 = vmax.f32 %v8746, %v8754
    %v8963 = vmax.f32 %v8747, %v8755
    %v8964 = vmax.f32 %v8748, %v8756
    %v8965 = vmax.f32 %v8749, %v8757
    %v8966 = vmax.f32 %v8750, %v8758
    %v8967 = vmax.f32 %v8751, %v8759
    %v8968 = vmax.f32 %v8752, %v8760
    %v8969 = vmax.f32 %v8753, %v8761
    %v8970 = vmax.f32 %v8762, %v8770
    %v8971 = vmax.f32 %v8763, %v8771
    %v8972 = vmax.f32 %v8764, %v8772
    %v8973 = vmax.f32 %v8765, %v8773
    %v8974 = vmax.f32 %v8766, %v8774
    %v8975 = vmax.f32 %v8767, %v8775
    %v8976 = vmax.f32 %v8768, %v8776
    %v8977 = vmax.f32 %v8769, %v8777
    %v8978 = vmax.f32 %v8778, %v8786
    %v8979 = vmax.f32 %v8779, %v8787
    %v8980 = vmax.f32 %v8780, %v8788
    %v8981 = vmax.f32 %v8781, %v8789
    %v8982 = vmax.f32 %v8782, %v8790
    %v8983 = vmax.f32 %v8783, %v8791
    %v8984 = vmax.f32 %v8784, %v8792
    %v8985 = vmax.f32 %v8785, %v8793
    %v8986 = vmax.f32 %v8794, %v8802
    %v8987 = vmax.f32 %v8795, %v8803
    %v8988 = vmax.f32 %v8796, %v8804
    %v8989 = vmax.f32 %v8797, %v8805
    %v8990 = vmax.f32 %v8798, %v8806
    %v8991 = vmax.f32 %v8799, %v8807
    %v8992 = vmax.f32 %v8800, %v8808
    %v8993 = vmax.f32 %v8801, %v8809
    %v8994 = vmax.f32 %v8810, %v8818
    %v8995 = vmax.f32 %v8811, %v8819
    %v8996 = vmax.f32 %v8812, %v8820
    %v8997 = vmax.f32 %v8813, %v8821
    %v8998 = vmax.f32 %v8814, %v8822
    %v8999 = vmax.f32 %v8815, %v8823
    %v9000 = vmax.f32 %v8816, %v8824
    %v9001 = vmax.f32 %v8817, %v8825
    %v9002 = vmax.f32 %v8826, %v8834
    %v9003 = vmax.f32 %v8827, %v8835
    %v9004 = vmax.f32 %v8828, %v8836
    %v9005 = vmax.f32 %v8829, %v8837
    %v9006 = vmax.f32 %v8830, %v8838
    %v9007 = vmax.f32 %v8831, %v8839
    %v9008 = vmax.f32 %v8832, %v8840
    %v9009 = vmax.f32 %v8833, %v8841
    %v9010 = vmax.f32 %v8842, %v8850
    %v9011 = vmax.f32 %v8843, %v8851
    %v9012 = vmax.f32 %v8844, %v8852
    %v9013 = vmax.f32 %v8845, %v8853
    %v9014 = vmax.f32 %v8846, %v8854
    %v9015 = vmax.f32 %v8847, %v8855
    %v9016 = vmax.f32 %v8848, %v8856
    %v9017 = vmax.f32 %v8849, %v8857
    %v9018 = vmax.f32 %v8858, %v8866
    %v9019 = vmax.f32 %v8859, %v8867
    %v9020 = vmax.f32 %v8860, %v8868
    %v9021 = vmax.f32 %v8861, %v8869
    %v9022 = vmax.f32 %v8862, %v8870
    %v9023 = vmax.f32 %v8863, %v8871
    %v9024 = vmax.f32 %v8864, %v8872
    %v9025 = vmax.f32 %v8865, %v8873
    %v9026 = vmax.f32 %v8874, %v8882
    %v9027 = vmax.f32 %v8875, %v8883
    %v9028 = vmax.f32 %v8876, %v8884
    %v9029 = vmax.f32 %v8877, %v8885
    %v9030 = vmax.f32 %v8878, %v8886
    %v9031 = vmax.f32 %v8879, %v8887
    %v9032 = vmax.f32 %v8880, %v8888
    %v9033 = vmax.f32 %v8881, %v8889
    %v9034 = vmax.f32 %v8890, %v8898
    %v9035 = vmax.f32 %v8891, %v8899
    %v9036 = vmax.f32 %v8892, %v8900
    %v9037 = vmax.f32 %v8893, %v8901
    %v9038 = vmax.f32 %v8894, %v8902
    %v9039 = vmax.f32 %v8895, %v8903
    %v9040 = vmax.f32 %v8896, %v8904
    %v9041 = vmax.f32 %v8897, %v8905
    %v9042 = vmax.f32 %v8906, %v8914
    %v9043 = vmax.f32 %v8907, %v8915
    %v9044 = vmax.f32 %v8908, %v8916
    %v9045 = vmax.f32 %v8909, %v8917
    %v9046 = vmax.f32 %v8910, %v8918
    %v9047 = vmax.f32 %v8911, %v8919
    %v9048 = vmax.f32 %v8912, %v8920
    %v9049 = vmax.f32 %v8913, %v8921
    %v9066 = vlaneseq
    %v9067 = vshrl.u32 %v9066, 7
    %v9068 = vsub.s32 0, %v9067
    %v9069 = vrot.slane %v8922, %v9068
    %v9070 = vlaneseq
    %v9071 = vshrl.u32 %v9070, 7
    %v9072 = vsub.s32 0, %v9071
    %v9073 = vrot.slane %v8930, %v9072
    %v9074 = vlaneseq
    %v9075 = vshrl.u32 %v9074, 7
    %v9076 = vsub.s32 0, %v9075
    %v9077 = vrot.slane %v8938, %v9076
    %v9078 = vlaneseq
    %v9079 = vshrl.u32 %v9078, 7
    %v9080 = vsub.s32 0, %v9079
    %v9081 = vrot.slane %v8946, %v9080
    %v9082 = vlaneseq
    %v9083 = vshrl.u32 %v9082, 7
    %v9084 = vsub.s32 0, %v9083
    %v9085 = vrot.slane %v8954, %v9084
    %v9086 = vlaneseq
    %v9087 = vshrl.u32 %v9086, 7
    %v9088 = vsub.s32 0, %v9087
    %v9089 = vrot.slane %v8962, %v9088
    %v9090 = vlaneseq
    %v9091 = vshrl.u32 %v9090, 7
    %v9092 = vsub.s32 0, %v9091
    %v9093 = vrot.slane %v8970, %v9092
    %v9094 = vlaneseq
    %v9095 = vshrl.u32 %v9094, 7
    %v9096 = vsub.s32 0, %v9095
    %v9097 = vrot.slane %v8978, %v9096
    %v9098 = vlaneseq
    %v9099 = vshrl.u32 %v9098, 7
    %v9100 = vsub.s32 0, %v9099
    %v9101 = vrot.slane %v8986, %v9100
    %v9102 = vlaneseq
    %v9103 = vshrl.u32 %v9102, 7
    %v9104 = vsub.s32 0, %v9103
    %v9105 = vrot.slane %v8994, %v9104
    %v9106 = vlaneseq
    %v9107 = vshrl.u32 %v9106, 7
    %v9108 = vsub.s32 0, %v9107
    %v9109 = vrot.slane %v9002, %v9108
    %v9110 = vlaneseq
    %v9111 = vshrl.u32 %v9110, 7
    %v9112 = vsub.s32 0, %v9111
    %v9113 = vrot.slane %v9010, %v9112
    %v9114 = vlaneseq
    %v9115 = vshrl.u32 %v9114, 7
    %v9116 = vsub.s32 0, %v9115
    %v9117 = vrot.slane %v9018, %v9116
    %v9118 = vlaneseq
    %v9119 = vshrl.u32 %v9118, 7
    %v9120 = vsub.s32 0, %v9119
    %v9121 = vrot.slane %v9026, %v9120
    %v9122 = vlaneseq
    %v9123 = vshrl.u32 %v9122, 7
    %v9124 = vsub.s32 0, %v9123
    %v9125 = vrot.slane %v9034, %v9124
    %v9126 = vlaneseq
    %v9127 = vshrl.u32 %v9126, 7
    %v9128 = vsub.s32 0, %v9127
    %v9129 = vrot.slane %v9042, %v9128
    %vm9130 = vcmask 1041409
    %v9131 = vsel %vm9130, %v9073, %v9069
    %vm9132 = vcmask 1042434
    %v9133 = vsel %vm9132, %v9077, %v9131
    %vm9134 = vcmask 1043459
    %v9135 = vsel %vm9134, %v9081, %v9133
    %vm9136 = vcmask 1044484
    %v9137 = vsel %vm9136, %v9085, %v9135
    %vm9138 = vcmask 1045509
    %v9139 = vsel %vm9138, %v9089, %v9137
    %vm9140 = vcmask 1046534
    %v9141 = vsel %vm9140, %v9093, %v9139
    %vm9142 = vcmask 1047559
    %v9143 = vsel %vm9142, %v9097, %v9141
    %v9144 = vsel %vm9130, %v9105, %v9101
    %v9145 = vsel %vm9132, %v9109, %v9144
    %v9146 = vsel %vm9134, %v9113, %v9145
    %v9147 = vsel %vm9136, %v9117, %v9146
    %v9148 = vsel %vm9138, %v9121, %v9147
    %v9149 = vsel %vm9140, %v9125, %v9148
    %v9150 = vsel %vm9142, %v9129, %v9149
    %v9169 = vlaneseq
    %v9170 = vshrl.u32 %v9169, 7
    %v9171 = vsub.s32 0, %v9170
    %v9172 = vrot.slane %v8923, %v9171
    %v9173 = vlaneseq
    %v9174 = vshrl.u32 %v9173, 7
    %v9175 = vsub.s32 0, %v9174
    %v9176 = vrot.slane %v8931, %v9175
    %v9177 = vlaneseq
    %v9178 = vshrl.u32 %v9177, 7
    %v9179 = vsub.s32 0, %v9178
    %v9180 = vrot.slane %v8939, %v9179
    %v9181 = vlaneseq
    %v9182 = vshrl.u32 %v9181, 7
    %v9183 = vsub.s32 0, %v9182
    %v9184 = vrot.slane %v8947, %v9183
    %v9185 = vlaneseq
    %v9186 = vshrl.u32 %v9185, 7
    %v9187 = vsub.s32 0, %v9186
    %v9188 = vrot.slane %v8955, %v9187
    %v9189 = vlaneseq
    %v9190 = vshrl.u32 %v9189, 7
    %v9191 = vsub.s32 0, %v9190
    %v9192 = vrot.slane %v8963, %v9191
    %v9193 = vlaneseq
    %v9194 = vshrl.u32 %v9193, 7
    %v9195 = vsub.s32 0, %v9194
    %v9196 = vrot.slane %v8971, %v9195
    %v9197 = vlaneseq
    %v9198 = vshrl.u32 %v9197, 7
    %v9199 = vsub.s32 0, %v9198
    %v9200 = vrot.slane %v8979, %v9199
    %v9201 = vlaneseq
    %v9202 = vshrl.u32 %v9201, 7
    %v9203 = vsub.s32 0, %v9202
    %v9204 = vrot.slane %v8987, %v9203
    %v9205 = vlaneseq
    %v9206 = vshrl.u32 %v9205, 7
    %v9207 = vsub.s32 0, %v9206
    %v9208 = vrot.slane %v8995, %v9207
    %v9209 = vlaneseq
    %v9210 = vshrl.u32 %v9209, 7
    %v9211 = vsub.s32 0, %v9210
    %v9212 = vrot.slane %v9003, %v9211
    %v9213 = vlaneseq
    %v9214 = vshrl.u32 %v9213, 7
    %v9215 = vsub.s32 0, %v9214
    %v9216 = vrot.slane %v9011, %v9215
    %v9217 = vlaneseq
    %v9218 = vshrl.u32 %v9217, 7
    %v9219 = vsub.s32 0, %v9218
    %v9220 = vrot.slane %v9019, %v9219
    %v9221 = vlaneseq
    %v9222 = vshrl.u32 %v9221, 7
    %v9223 = vsub.s32 0, %v9222
    %v9224 = vrot.slane %v9027, %v9223
    %v9225 = vlaneseq
    %v9226 = vshrl.u32 %v9225, 7
    %v9227 = vsub.s32 0, %v9226
    %v9228 = vrot.slane %v9035, %v9227
    %v9229 = vlaneseq
    %v9230 = vshrl.u32 %v9229, 7
    %v9231 = vsub.s32 0, %v9230
    %v9232 = vrot.slane %v9043, %v9231
    %v9233 = vsel %vm9130, %v9176, %v9172
    %v9234 = vsel %vm9132, %v9180, %v9233
    %v9235 = vsel %vm9134, %v9184, %v9234
    %v9236 = vsel %vm9136, %v9188, %v9235
    %v9237 = vsel %vm9138, %v9192, %v9236
    %v9238 = vsel %vm9140, %v9196, %v9237
    %v9239 = vsel %vm9142, %v9200, %v9238
    %v9240 = vsel %vm9130, %v9208, %v9204
    %v9241 = vsel %vm9132, %v9212, %v9240
    %v9242 = vsel %vm9134, %v9216, %v9241
    %v9243 = vsel %vm9136, %v9220, %v9242
    %v9244 = vsel %vm9138, %v9224, %v9243
    %v9245 = vsel %vm9140, %v9228, %v9244
    %v9246 = vsel %vm9142, %v9232, %v9245
    %9247 = vrot.lane.b32.xlu0 %v9239, 16
    %v9248 = vpop.permute.xlu0 %9247
    %9249 = vrot.lane.b32.xlu0 %v9246, 16
    %v9250 = vpop.permute.xlu0 %9249
    %v9269 = vlaneseq
    %v9270 = vshrl.u32 %v9269, 7
    %v9271 = vsub.s32 0, %v9270
    %v9272 = vrot.slane %v8924, %v9271
    %v9273 = vlaneseq
    %v9274 = vshrl.u32 %v9273, 7
    %v9275 = vsub.s32 0, %v9274
    %v9276 = vrot.slane %v8932, %v9275
    %v9277 = vlaneseq
    %v9278 = vshrl.u32 %v9277, 7
    %v9279 = vsub.s32 0, %v9278
    %v9280 = vrot.slane %v8940, %v9279
    %v9281 = vlaneseq
    %v9282 = vshrl.u32 %v9281, 7
    %v9283 = vsub.s32 0, %v9282
    %v9284 = vrot.slane %v8948, %v9283
    %v9285 = vlaneseq
    %v9286 = vshrl.u32 %v9285, 7
    %v9287 = vsub.s32 0, %v9286
    %v9288 = vrot.slane %v8956, %v9287
    %v9289 = vlaneseq
    %v9290 = vshrl.u32 %v9289, 7
    %v9291 = vsub.s32 0, %v9290
    %v9292 = vrot.slane %v8964, %v9291
    %v9293 = vlaneseq
    %v9294 = vshrl.u32 %v9293, 7
    %v9295 = vsub.s32 0, %v9294
    %v9296 = vrot.slane %v8972, %v9295
    %v9297 = vlaneseq
    %v9298 = vshrl.u32 %v9297, 7
    %v9299 = vsub.s32 0, %v9298
    %v9300 = vrot.slane %v8980, %v9299
    %v9301 = vlaneseq
    %v9302 = vshrl.u32 %v9301, 7
    %v9303 = vsub.s32 0, %v9302
    %v9304 = vrot.slane %v8988, %v9303
    %v9305 = vlaneseq
    %v9306 = vshrl.u32 %v9305, 7
    %v9307 = vsub.s32 0, %v9306
    %v9308 = vrot.slane %v8996, %v9307
    %v9309 = vlaneseq
    %v9310 = vshrl.u32 %v9309, 7
    %v9311 = vsub.s32 0, %v9310
    %v9312 = vrot.slane %v9004, %v9311
    %v9313 = vlaneseq
    %v9314 = vshrl.u32 %v9313, 7
    %v9315 = vsub.s32 0, %v9314
    %v9316 = vrot.slane %v9012, %v9315
    %v9317 = vlaneseq
    %v9318 = vshrl.u32 %v9317, 7
    %v9319 = vsub.s32 0, %v9318
    %v9320 = vrot.slane %v9020, %v9319
    %v9321 = vlaneseq
    %v9322 = vshrl.u32 %v9321, 7
    %v9323 = vsub.s32 0, %v9322
    %v9324 = vrot.slane %v9028, %v9323
    %v9325 = vlaneseq
    %v9326 = vshrl.u32 %v9325, 7
    %v9327 = vsub.s32 0, %v9326
    %v9328 = vrot.slane %v9036, %v9327
    %v9329 = vlaneseq
    %v9330 = vshrl.u32 %v9329, 7
    %v9331 = vsub.s32 0, %v9330
    %v9332 = vrot.slane %v9044, %v9331
    %v9333 = vsel %vm9130, %v9276, %v9272
    %v9334 = vsel %vm9132, %v9280, %v9333
    %v9335 = vsel %vm9134, %v9284, %v9334
    %v9336 = vsel %vm9136, %v9288, %v9335
    %v9337 = vsel %vm9138, %v9292, %v9336
    %v9338 = vsel %vm9140, %v9296, %v9337
    %v9339 = vsel %vm9142, %v9300, %v9338
    %v9340 = vsel %vm9130, %v9308, %v9304
    %v9341 = vsel %vm9132, %v9312, %v9340
    %v9342 = vsel %vm9134, %v9316, %v9341
    %v9343 = vsel %vm9136, %v9320, %v9342
    %v9344 = vsel %vm9138, %v9324, %v9343
    %v9345 = vsel %vm9140, %v9328, %v9344
    %v9346 = vsel %vm9142, %v9332, %v9345
    %9347 = vrot.lane.b32.xlu0 %v9339, 32
    %v9348 = vpop.permute.xlu0 %9347
    %9349 = vrot.lane.b32.xlu0 %v9346, 32
    %v9350 = vpop.permute.xlu0 %9349
    %v9369 = vlaneseq
    %v9370 = vshrl.u32 %v9369, 7
    %v9371 = vsub.s32 0, %v9370
    %v9372 = vrot.slane %v8925, %v9371
    %v9373 = vlaneseq
    %v9374 = vshrl.u32 %v9373, 7
    %v9375 = vsub.s32 0, %v9374
    %v9376 = vrot.slane %v8933, %v9375
    %v9377 = vlaneseq
    %v9378 = vshrl.u32 %v9377, 7
    %v9379 = vsub.s32 0, %v9378
    %v9380 = vrot.slane %v8941, %v9379
    %v9381 = vlaneseq
    %v9382 = vshrl.u32 %v9381, 7
    %v9383 = vsub.s32 0, %v9382
    %v9384 = vrot.slane %v8949, %v9383
    %v9385 = vlaneseq
    %v9386 = vshrl.u32 %v9385, 7
    %v9387 = vsub.s32 0, %v9386
    %v9388 = vrot.slane %v8957, %v9387
    %v9389 = vlaneseq
    %v9390 = vshrl.u32 %v9389, 7
    %v9391 = vsub.s32 0, %v9390
    %v9392 = vrot.slane %v8965, %v9391
    %v9393 = vlaneseq
    %v9394 = vshrl.u32 %v9393, 7
    %v9395 = vsub.s32 0, %v9394
    %v9396 = vrot.slane %v8973, %v9395
    %v9397 = vlaneseq
    %v9398 = vshrl.u32 %v9397, 7
    %v9399 = vsub.s32 0, %v9398
    %v9400 = vrot.slane %v8981, %v9399
    %v9401 = vlaneseq
    %v9402 = vshrl.u32 %v9401, 7
    %v9403 = vsub.s32 0, %v9402
    %v9404 = vrot.slane %v8989, %v9403
    %v9405 = vlaneseq
    %v9406 = vshrl.u32 %v9405, 7
    %v9407 = vsub.s32 0, %v9406
    %v9408 = vrot.slane %v8997, %v9407
    %v9409 = vlaneseq
    %v9410 = vshrl.u32 %v9409, 7
    %v9411 = vsub.s32 0, %v9410
    %v9412 = vrot.slane %v9005, %v9411
    %v9413 = vlaneseq
    %v9414 = vshrl.u32 %v9413, 7
    %v9415 = vsub.s32 0, %v9414
    %v9416 = vrot.slane %v9013, %v9415
    %v9417 = vlaneseq
    %v9418 = vshrl.u32 %v9417, 7
    %v9419 = vsub.s32 0, %v9418
    %v9420 = vrot.slane %v9021, %v9419
    %v9421 = vlaneseq
    %v9422 = vshrl.u32 %v9421, 7
    %v9423 = vsub.s32 0, %v9422
    %v9424 = vrot.slane %v9029, %v9423
    %v9425 = vlaneseq
    %v9426 = vshrl.u32 %v9425, 7
    %v9427 = vsub.s32 0, %v9426
    %v9428 = vrot.slane %v9037, %v9427
    %v9429 = vlaneseq
    %v9430 = vshrl.u32 %v9429, 7
    %v9431 = vsub.s32 0, %v9430
    %v9432 = vrot.slane %v9045, %v9431
    %v9433 = vsel %vm9130, %v9376, %v9372
    %v9434 = vsel %vm9132, %v9380, %v9433
    %v9435 = vsel %vm9134, %v9384, %v9434
    %v9436 = vsel %vm9136, %v9388, %v9435
    %v9437 = vsel %vm9138, %v9392, %v9436
    %v9438 = vsel %vm9140, %v9396, %v9437
    %v9439 = vsel %vm9142, %v9400, %v9438
    %v9440 = vsel %vm9130, %v9408, %v9404
    %v9441 = vsel %vm9132, %v9412, %v9440
    %v9442 = vsel %vm9134, %v9416, %v9441
    %v9443 = vsel %vm9136, %v9420, %v9442
    %v9444 = vsel %vm9138, %v9424, %v9443
    %v9445 = vsel %vm9140, %v9428, %v9444
    %v9446 = vsel %vm9142, %v9432, %v9445
    %9447 = vrot.lane.b32.xlu0 %v9439, 48
    %v9448 = vpop.permute.xlu0 %9447
    %9449 = vrot.lane.b32.xlu0 %v9446, 48
    %v9450 = vpop.permute.xlu0 %9449
    %v9469 = vlaneseq
    %v9470 = vshrl.u32 %v9469, 7
    %v9471 = vsub.s32 0, %v9470
    %v9472 = vrot.slane %v8926, %v9471
    %v9473 = vlaneseq
    %v9474 = vshrl.u32 %v9473, 7
    %v9475 = vsub.s32 0, %v9474
    %v9476 = vrot.slane %v8934, %v9475
    %v9477 = vlaneseq
    %v9478 = vshrl.u32 %v9477, 7
    %v9479 = vsub.s32 0, %v9478
    %v9480 = vrot.slane %v8942, %v9479
    %v9481 = vlaneseq
    %v9482 = vshrl.u32 %v9481, 7
    %v9483 = vsub.s32 0, %v9482
    %v9484 = vrot.slane %v8950, %v9483
    %v9485 = vlaneseq
    %v9486 = vshrl.u32 %v9485, 7
    %v9487 = vsub.s32 0, %v9486
    %v9488 = vrot.slane %v8958, %v9487
    %v9489 = vlaneseq
    %v9490 = vshrl.u32 %v9489, 7
    %v9491 = vsub.s32 0, %v9490
    %v9492 = vrot.slane %v8966, %v9491
    %v9493 = vlaneseq
    %v9494 = vshrl.u32 %v9493, 7
    %v9495 = vsub.s32 0, %v9494
    %v9496 = vrot.slane %v8974, %v9495
    %v9497 = vlaneseq
    %v9498 = vshrl.u32 %v9497, 7
    %v9499 = vsub.s32 0, %v9498
    %v9500 = vrot.slane %v8982, %v9499
    %v9501 = vlaneseq
    %v9502 = vshrl.u32 %v9501, 7
    %v9503 = vsub.s32 0, %v9502
    %v9504 = vrot.slane %v8990, %v9503
    %v9505 = vlaneseq
    %v9506 = vshrl.u32 %v9505, 7
    %v9507 = vsub.s32 0, %v9506
    %v9508 = vrot.slane %v8998, %v9507
    %v9509 = vlaneseq
    %v9510 = vshrl.u32 %v9509, 7
    %v9511 = vsub.s32 0, %v9510
    %v9512 = vrot.slane %v9006, %v9511
    %v9513 = vlaneseq
    %v9514 = vshrl.u32 %v9513, 7
    %v9515 = vsub.s32 0, %v9514
    %v9516 = vrot.slane %v9014, %v9515
    %v9517 = vlaneseq
    %v9518 = vshrl.u32 %v9517, 7
    %v9519 = vsub.s32 0, %v9518
    %v9520 = vrot.slane %v9022, %v9519
    %v9521 = vlaneseq
    %v9522 = vshrl.u32 %v9521, 7
    %v9523 = vsub.s32 0, %v9522
    %v9524 = vrot.slane %v9030, %v9523
    %v9525 = vlaneseq
    %v9526 = vshrl.u32 %v9525, 7
    %v9527 = vsub.s32 0, %v9526
    %v9528 = vrot.slane %v9038, %v9527
    %v9529 = vlaneseq
    %v9530 = vshrl.u32 %v9529, 7
    %v9531 = vsub.s32 0, %v9530
    %v9532 = vrot.slane %v9046, %v9531
    %v9533 = vsel %vm9130, %v9476, %v9472
    %v9534 = vsel %vm9132, %v9480, %v9533
    %v9535 = vsel %vm9134, %v9484, %v9534
    %v9536 = vsel %vm9136, %v9488, %v9535
    %v9537 = vsel %vm9138, %v9492, %v9536
    %v9538 = vsel %vm9140, %v9496, %v9537
    %v9539 = vsel %vm9142, %v9500, %v9538
    %v9540 = vsel %vm9130, %v9508, %v9504
    %v9541 = vsel %vm9132, %v9512, %v9540
    %v9542 = vsel %vm9134, %v9516, %v9541
    %v9543 = vsel %vm9136, %v9520, %v9542
    %v9544 = vsel %vm9138, %v9524, %v9543
    %v9545 = vsel %vm9140, %v9528, %v9544
    %v9546 = vsel %vm9142, %v9532, %v9545
    %9547 = vrot.lane.b32.xlu0 %v9539, 64
    %v9548 = vpop.permute.xlu0 %9547
    %9549 = vrot.lane.b32.xlu0 %v9546, 64
    %v9550 = vpop.permute.xlu0 %9549
    %v9569 = vlaneseq
    %v9570 = vshrl.u32 %v9569, 7
    %v9571 = vsub.s32 0, %v9570
    %v9572 = vrot.slane %v8927, %v9571
    %v9573 = vlaneseq
    %v9574 = vshrl.u32 %v9573, 7
    %v9575 = vsub.s32 0, %v9574
    %v9576 = vrot.slane %v8935, %v9575
    %v9577 = vlaneseq
    %v9578 = vshrl.u32 %v9577, 7
    %v9579 = vsub.s32 0, %v9578
    %v9580 = vrot.slane %v8943, %v9579
    %v9581 = vlaneseq
    %v9582 = vshrl.u32 %v9581, 7
    %v9583 = vsub.s32 0, %v9582
    %v9584 = vrot.slane %v8951, %v9583
    %v9585 = vlaneseq
    %v9586 = vshrl.u32 %v9585, 7
    %v9587 = vsub.s32 0, %v9586
    %v9588 = vrot.slane %v8959, %v9587
    %v9589 = vlaneseq
    %v9590 = vshrl.u32 %v9589, 7
    %v9591 = vsub.s32 0, %v9590
    %v9592 = vrot.slane %v8967, %v9591
    %v9593 = vlaneseq
    %v9594 = vshrl.u32 %v9593, 7
    %v9595 = vsub.s32 0, %v9594
    %v9596 = vrot.slane %v8975, %v9595
    %v9597 = vlaneseq
    %v9598 = vshrl.u32 %v9597, 7
    %v9599 = vsub.s32 0, %v9598
    %v9600 = vrot.slane %v8983, %v9599
    %v9601 = vlaneseq
    %v9602 = vshrl.u32 %v9601, 7
    %v9603 = vsub.s32 0, %v9602
    %v9604 = vrot.slane %v8991, %v9603
    %v9605 = vlaneseq
    %v9606 = vshrl.u32 %v9605, 7
    %v9607 = vsub.s32 0, %v9606
    %v9608 = vrot.slane %v8999, %v9607
    %v9609 = vlaneseq
    %v9610 = vshrl.u32 %v9609, 7
    %v9611 = vsub.s32 0, %v9610
    %v9612 = vrot.slane %v9007, %v9611
    %v9613 = vlaneseq
    %v9614 = vshrl.u32 %v9613, 7
    %v9615 = vsub.s32 0, %v9614
    %v9616 = vrot.slane %v9015, %v9615
    %v9617 = vlaneseq
    %v9618 = vshrl.u32 %v9617, 7
    %v9619 = vsub.s32 0, %v9618
    %v9620 = vrot.slane %v9023, %v9619
    %v9621 = vlaneseq
    %v9622 = vshrl.u32 %v9621, 7
    %v9623 = vsub.s32 0, %v9622
    %v9624 = vrot.slane %v9031, %v9623
    %v9625 = vlaneseq
    %v9626 = vshrl.u32 %v9625, 7
    %v9627 = vsub.s32 0, %v9626
    %v9628 = vrot.slane %v9039, %v9627
    %v9629 = vlaneseq
    %v9630 = vshrl.u32 %v9629, 7
    %v9631 = vsub.s32 0, %v9630
    %v9632 = vrot.slane %v9047, %v9631
    %v9633 = vsel %vm9130, %v9576, %v9572
    %v9634 = vsel %vm9132, %v9580, %v9633
    %v9635 = vsel %vm9134, %v9584, %v9634
    %v9636 = vsel %vm9136, %v9588, %v9635
    %v9637 = vsel %vm9138, %v9592, %v9636
    %v9638 = vsel %vm9140, %v9596, %v9637
    %v9639 = vsel %vm9142, %v9600, %v9638
    %v9640 = vsel %vm9130, %v9608, %v9604
    %v9641 = vsel %vm9132, %v9612, %v9640
    %v9642 = vsel %vm9134, %v9616, %v9641
    %v9643 = vsel %vm9136, %v9620, %v9642
    %v9644 = vsel %vm9138, %v9624, %v9643
    %v9645 = vsel %vm9140, %v9628, %v9644
    %v9646 = vsel %vm9142, %v9632, %v9645
    %9647 = vrot.lane.b32.xlu0 %v9639, 80
    %v9648 = vpop.permute.xlu0 %9647
    %9649 = vrot.lane.b32.xlu0 %v9646, 80
    %v9650 = vpop.permute.xlu0 %9649
    %v9669 = vlaneseq
    %v9670 = vshrl.u32 %v9669, 7
    %v9671 = vsub.s32 0, %v9670
    %v9672 = vrot.slane %v8928, %v9671
    %v9673 = vlaneseq
    %v9674 = vshrl.u32 %v9673, 7
    %v9675 = vsub.s32 0, %v9674
    %v9676 = vrot.slane %v8936, %v9675
    %v9677 = vlaneseq
    %v9678 = vshrl.u32 %v9677, 7
    %v9679 = vsub.s32 0, %v9678
    %v9680 = vrot.slane %v8944, %v9679
    %v9681 = vlaneseq
    %v9682 = vshrl.u32 %v9681, 7
    %v9683 = vsub.s32 0, %v9682
    %v9684 = vrot.slane %v8952, %v9683
    %v9685 = vlaneseq
    %v9686 = vshrl.u32 %v9685, 7
    %v9687 = vsub.s32 0, %v9686
    %v9688 = vrot.slane %v8960, %v9687
    %v9689 = vlaneseq
    %v9690 = vshrl.u32 %v9689, 7
    %v9691 = vsub.s32 0, %v9690
    %v9692 = vrot.slane %v8968, %v9691
    %v9693 = vlaneseq
    %v9694 = vshrl.u32 %v9693, 7
    %v9695 = vsub.s32 0, %v9694
    %v9696 = vrot.slane %v8976, %v9695
    %v9697 = vlaneseq
    %v9698 = vshrl.u32 %v9697, 7
    %v9699 = vsub.s32 0, %v9698
    %v9700 = vrot.slane %v8984, %v9699
    %v9701 = vlaneseq
    %v9702 = vshrl.u32 %v9701, 7
    %v9703 = vsub.s32 0, %v9702
    %v9704 = vrot.slane %v8992, %v9703
    %v9705 = vlaneseq
    %v9706 = vshrl.u32 %v9705, 7
    %v9707 = vsub.s32 0, %v9706
    %v9708 = vrot.slane %v9000, %v9707
    %v9709 = vlaneseq
    %v9710 = vshrl.u32 %v9709, 7
    %v9711 = vsub.s32 0, %v9710
    %v9712 = vrot.slane %v9008, %v9711
    %v9713 = vlaneseq
    %v9714 = vshrl.u32 %v9713, 7
    %v9715 = vsub.s32 0, %v9714
    %v9716 = vrot.slane %v9016, %v9715
    %v9717 = vlaneseq
    %v9718 = vshrl.u32 %v9717, 7
    %v9719 = vsub.s32 0, %v9718
    %v9720 = vrot.slane %v9024, %v9719
    %v9721 = vlaneseq
    %v9722 = vshrl.u32 %v9721, 7
    %v9723 = vsub.s32 0, %v9722
    %v9724 = vrot.slane %v9032, %v9723
    %v9725 = vlaneseq
    %v9726 = vshrl.u32 %v9725, 7
    %v9727 = vsub.s32 0, %v9726
    %v9728 = vrot.slane %v9040, %v9727
    %v9729 = vlaneseq
    %v9730 = vshrl.u32 %v9729, 7
    %v9731 = vsub.s32 0, %v9730
    %v9732 = vrot.slane %v9048, %v9731
    %v9733 = vsel %vm9130, %v9676, %v9672
    %v9734 = vsel %vm9132, %v9680, %v9733
    %v9735 = vsel %vm9134, %v9684, %v9734
    %v9736 = vsel %vm9136, %v9688, %v9735
    %v9737 = vsel %vm9138, %v9692, %v9736
    %v9738 = vsel %vm9140, %v9696, %v9737
    %v9739 = vsel %vm9142, %v9700, %v9738
    %v9740 = vsel %vm9130, %v9708, %v9704
    %v9741 = vsel %vm9132, %v9712, %v9740
    %v9742 = vsel %vm9134, %v9716, %v9741
    %v9743 = vsel %vm9136, %v9720, %v9742
    %v9744 = vsel %vm9138, %v9724, %v9743
    %v9745 = vsel %vm9140, %v9728, %v9744
    %v9746 = vsel %vm9142, %v9732, %v9745
    %9747 = vrot.lane.b32.xlu0 %v9739, 96
    %v9748 = vpop.permute.xlu0 %9747
    %9749 = vrot.lane.b32.xlu0 %v9746, 96
    %v9750 = vpop.permute.xlu0 %9749
    %v9769 = vlaneseq
    %v9770 = vshrl.u32 %v9769, 7
    %v9771 = vsub.s32 0, %v9770
    %v9772 = vrot.slane %v8929, %v9771
    %v9773 = vlaneseq
    %v9774 = vshrl.u32 %v9773, 7
    %v9775 = vsub.s32 0, %v9774
    %v9776 = vrot.slane %v8937, %v9775
    %v9777 = vlaneseq
    %v9778 = vshrl.u32 %v9777, 7
    %v9779 = vsub.s32 0, %v9778
    %v9780 = vrot.slane %v8945, %v9779
    %v9781 = vlaneseq
    %v9782 = vshrl.u32 %v9781, 7
    %v9783 = vsub.s32 0, %v9782
    %v9784 = vrot.slane %v8953, %v9783
    %v9785 = vlaneseq
    %v9786 = vshrl.u32 %v9785, 7
    %v9787 = vsub.s32 0, %v9786
    %v9788 = vrot.slane %v8961, %v9787
    %v9789 = vlaneseq
    %v9790 = vshrl.u32 %v9789, 7
    %v9791 = vsub.s32 0, %v9790
    %v9792 = vrot.slane %v8969, %v9791
    %v9793 = vlaneseq
    %v9794 = vshrl.u32 %v9793, 7
    %v9795 = vsub.s32 0, %v9794
    %v9796 = vrot.slane %v8977, %v9795
    %v9797 = vlaneseq
    %v9798 = vshrl.u32 %v9797, 7
    %v9799 = vsub.s32 0, %v9798
    %v9800 = vrot.slane %v8985, %v9799
    %v9801 = vlaneseq
    %v9802 = vshrl.u32 %v9801, 7
    %v9803 = vsub.s32 0, %v9802
    %v9804 = vrot.slane %v8993, %v9803
    %v9805 = vlaneseq
    %v9806 = vshrl.u32 %v9805, 7
    %v9807 = vsub.s32 0, %v9806
    %v9808 = vrot.slane %v9001, %v9807
    %v9809 = vlaneseq
    %v9810 = vshrl.u32 %v9809, 7
    %v9811 = vsub.s32 0, %v9810
    %v9812 = vrot.slane %v9009, %v9811
    %v9813 = vlaneseq
    %v9814 = vshrl.u32 %v9813, 7
    %v9815 = vsub.s32 0, %v9814
    %v9816 = vrot.slane %v9017, %v9815
    %v9817 = vlaneseq
    %v9818 = vshrl.u32 %v9817, 7
    %v9819 = vsub.s32 0, %v9818
    %v9820 = vrot.slane %v9025, %v9819
    %v9821 = vlaneseq
    %v9822 = vshrl.u32 %v9821, 7
    %v9823 = vsub.s32 0, %v9822
    %v9824 = vrot.slane %v9033, %v9823
    %v9825 = vlaneseq
    %v9826 = vshrl.u32 %v9825, 7
    %v9827 = vsub.s32 0, %v9826
    %v9828 = vrot.slane %v9041, %v9827
    %v9829 = vlaneseq
    %v9830 = vshrl.u32 %v9829, 7
    %v9831 = vsub.s32 0, %v9830
    %v9832 = vrot.slane %v9049, %v9831
    %v9833 = vsel %vm9130, %v9776, %v9772
    %v9834 = vsel %vm9132, %v9780, %v9833
    %v9835 = vsel %vm9134, %v9784, %v9834
    %v9836 = vsel %vm9136, %v9788, %v9835
    %v9837 = vsel %vm9138, %v9792, %v9836
    %v9838 = vsel %vm9140, %v9796, %v9837
    %v9839 = vsel %vm9142, %v9800, %v9838
    %v9840 = vsel %vm9130, %v9808, %v9804
    %v9841 = vsel %vm9132, %v9812, %v9840
    %v9842 = vsel %vm9134, %v9816, %v9841
    %v9843 = vsel %vm9136, %v9820, %v9842
    %v9844 = vsel %vm9138, %v9824, %v9843
    %v9845 = vsel %vm9140, %v9828, %v9844
    %v9846 = vsel %vm9142, %v9832, %v9845
    %9847 = vrot.lane.b32.xlu0 %v9839, 112
    %v9848 = vpop.permute.xlu0 %9847
    %9849 = vrot.lane.b32.xlu0 %v9846, 112
    %v9850 = vpop.permute.xlu0 %9849
    %v9853 = vsel %vm2343, %v9143, %v9248
    %v9854 = vsel %vm2343, %v9150, %v9250
    %v9855 = vsel %vm2603, %v9853, %v9348
    %v9856 = vsel %vm2603, %v9854, %v9350
    %v9857 = vsel %vm5766, %v9855, %v9448
    %v9858 = vsel %vm5766, %v9856, %v9450
    %v9859 = vsel %vm5896, %v9857, %v9548
    %v9860 = vsel %vm5896, %v9858, %v9550
    %vm9861 = vcmask 654336
    %v9862 = vsel %vm9861, %v9859, %v9648
    %v9863 = vsel %vm9861, %v9860, %v9650
    %vm9864 = vcmask 785408
    %v9865 = vsel %vm9864, %v9862, %v9748
    %v9866 = vsel %vm9864, %v9863, %v9750
    %vm9867 = vcmask 916480
    %v9868 = vsel %vm9867, %v9865, %v9848
    %v9869 = vsel %vm9867, %v9866, %v9850
    %v9872 = vrot.slane %v9869, 7
    %v9873 = vsel %vm9130, %v9872, %v9868
    %v9875 = vrot.slane %v9868, 1
    %v9876 = vsel %vm9130, %v9869, %v9875
    %v9878 = vrot.slane %v9868, 2
    %v9879 = vrot.slane %v9869, 1
    %v9880 = vsel %vm9130, %v9879, %v9878
    %v9882 = vrot.slane %v9868, 3
    %v9883 = vrot.slane %v9869, 2
    %v9884 = vsel %vm9130, %v9883, %v9882
    %v9886 = vrot.slane %v9868, 4
    %v9887 = vrot.slane %v9869, 3
    %v9888 = vsel %vm9130, %v9887, %v9886
    %v9890 = vrot.slane %v9868, 5
    %v9891 = vrot.slane %v9869, 4
    %v9892 = vsel %vm9130, %v9891, %v9890
    %v9894 = vrot.slane %v9868, 6
    %v9895 = vrot.slane %v9869, 5
    %v9896 = vsel %vm9130, %v9895, %v9894
    %v9898 = vrot.slane %v9868, 7
    %v9899 = vrot.slane %v9869, 6
    %v9900 = vsel %vm9130, %v9899, %v9898
    %v9902 = vpack.c.bf16 %v9873, %v9873
    %v9903 = vpack.c.bf16 %v9876, %v9876
    %v9904 = vpack.c.bf16 %v9880, %v9880
    %v9905 = vpack.c.bf16 %v9884, %v9884
    %v9906 = vpack.c.bf16 %v9888, %v9888
    %v9907 = vpack.c.bf16 %v9892, %v9892
    %v9908 = vpack.c.bf16 %v9896, %v9896
    %v9909 = vpack.c.bf16 %v9900, %v9900
    %v9910 = vld [vmem:[%s5] sm:$0xf]
    %v9911 = vld [vmem:[%s5 + $0x4] sm:$0xf]
    %v9912 = vld [vmem:[%s5 + $0x8] sm:$0xf]
    %v9913 = vld [vmem:[%s5 + $0xc] sm:$0xf]
    %v9914 = vld [vmem:[%s5 + $0x10] sm:$0xf]
    %v9915 = vld [vmem:[%s5 + $0x14] sm:$0xf]
    %v9916 = vld [vmem:[%s5 + $0x18] sm:$0xf]
    %v9917 = vld [vmem:[%s5 + $0x1c] sm:$0xf]
    %v9918 = vld [vmem:[%s5 + $0x20] sm:$0xf]
    %v9919 = vld [vmem:[%s5 + $0x24] sm:$0xf]
    %v9920 = vld [vmem:[%s5 + $0x28] sm:$0xf]
    %v9921 = vld [vmem:[%s5 + $0x2c] sm:$0xf]
    %v9922 = vld [vmem:[%s5 + $0x30] sm:$0xf]
    %v9923 = vld [vmem:[%s5 + $0x34] sm:$0xf]
    %v9924 = vld [vmem:[%s5 + $0x38] sm:$0xf]
    %v9925 = vld [vmem:[%s5 + $0x3c] sm:$0xf]
    %v9926 = vld [vmem:[%s5 + $0x40] sm:$0xf]
    %v9927 = vld [vmem:[%s5 + $0x44] sm:$0xf]
    %v9928 = vld [vmem:[%s5 + $0x48] sm:$0xf]
    %v9929 = vld [vmem:[%s5 + $0x4c] sm:$0xf]
    %v9930 = vld [vmem:[%s5 + $0x50] sm:$0xf]
    %v9931 = vld [vmem:[%s5 + $0x54] sm:$0xf]
    %v9932 = vld [vmem:[%s5 + $0x58] sm:$0xf]
    %v9933 = vld [vmem:[%s5 + $0x5c] sm:$0xf]
    %v9934 = vld [vmem:[%s5 + $0x60] sm:$0xf]
    %v9935 = vld [vmem:[%s5 + $0x64] sm:$0xf]
    %v9936 = vld [vmem:[%s5 + $0x68] sm:$0xf]
    %v9937 = vld [vmem:[%s5 + $0x6c] sm:$0xf]
    %v9938 = vld [vmem:[%s5 + $0x70] sm:$0xf]
    %v9939 = vld [vmem:[%s5 + $0x74] sm:$0xf]
    %v9940 = vld [vmem:[%s5 + $0x78] sm:$0xf]
    %v9941 = vld [vmem:[%s5 + $0x7c] sm:$0xf]
    %v9942 = vld [vmem:[%s5 + $0x80] sm:$0xf]
    %v9943 = vld [vmem:[%s5 + $0x84] sm:$0xf]
    %v9944 = vld [vmem:[%s5 + $0x88] sm:$0xf]
    %v9945 = vld [vmem:[%s5 + $0x8c] sm:$0xf]
    %v9946 = vld [vmem:[%s5 + $0x90] sm:$0xf]
    %v9947 = vld [vmem:[%s5 + $0x94] sm:$0xf]
    %v9948 = vld [vmem:[%s5 + $0x98] sm:$0xf]
    %v9949 = vld [vmem:[%s5 + $0x9c] sm:$0xf]
    %v9950 = vld [vmem:[%s5 + $0xa0] sm:$0xf]
    %v9951 = vld [vmem:[%s5 + $0xa4] sm:$0xf]
    %v9952 = vld [vmem:[%s5 + $0xa8] sm:$0xf]
    %v9953 = vld [vmem:[%s5 + $0xac] sm:$0xf]
    %v9954 = vld [vmem:[%s5 + $0xb0] sm:$0xf]
    %v9955 = vld [vmem:[%s5 + $0xb4] sm:$0xf]
    %v9956 = vld [vmem:[%s5 + $0xb8] sm:$0xf]
    %v9957 = vld [vmem:[%s5 + $0xbc] sm:$0xf]
    %v9958 = vld [vmem:[%s5 + $0xc0] sm:$0xf]
    %v9959 = vld [vmem:[%s5 + $0xc4] sm:$0xf]
    %v9960 = vld [vmem:[%s5 + $0xc8] sm:$0xf]
    %v9961 = vld [vmem:[%s5 + $0xcc] sm:$0xf]
    %v9962 = vld [vmem:[%s5 + $0xd0] sm:$0xf]
    %v9963 = vld [vmem:[%s5 + $0xd4] sm:$0xf]
    %v9964 = vld [vmem:[%s5 + $0xd8] sm:$0xf]
    %v9965 = vld [vmem:[%s5 + $0xdc] sm:$0xf]
    %v9966 = vld [vmem:[%s5 + $0xe0] sm:$0xf]
    %v9967 = vld [vmem:[%s5 + $0xe4] sm:$0xf]
    %v9968 = vld [vmem:[%s5 + $0xe8] sm:$0xf]
    %v9969 = vld [vmem:[%s5 + $0xec] sm:$0xf]
    %v9970 = vld [vmem:[%s5 + $0xf0] sm:$0xf]
    %v9971 = vld [vmem:[%s5 + $0xf4] sm:$0xf]
    %v9972 = vld [vmem:[%s5 + $0xf8] sm:$0xf]
    %v9973 = vld [vmem:[%s5 + $0xfc] sm:$0xf]
    %v9974 = vld [vmem:[%s5 + $0x100] sm:$0xf]
    %v9975 = vld [vmem:[%s5 + $0x104] sm:$0xf]
    %v9976 = vld [vmem:[%s5 + $0x108] sm:$0xf]
    %v9977 = vld [vmem:[%s5 + $0x10c] sm:$0xf]
    %v9978 = vld [vmem:[%s5 + $0x110] sm:$0xf]
    %v9979 = vld [vmem:[%s5 + $0x114] sm:$0xf]
    %v9980 = vld [vmem:[%s5 + $0x118] sm:$0xf]
    %v9981 = vld [vmem:[%s5 + $0x11c] sm:$0xf]
    %v9982 = vld [vmem:[%s5 + $0x120] sm:$0xf]
    %v9983 = vld [vmem:[%s5 + $0x124] sm:$0xf]
    %v9984 = vld [vmem:[%s5 + $0x128] sm:$0xf]
    %v9985 = vld [vmem:[%s5 + $0x12c] sm:$0xf]
    %v9986 = vld [vmem:[%s5 + $0x130] sm:$0xf]
    %v9987 = vld [vmem:[%s5 + $0x134] sm:$0xf]
    %v9988 = vld [vmem:[%s5 + $0x138] sm:$0xf]
    %v9989 = vld [vmem:[%s5 + $0x13c] sm:$0xf]
    %v9990 = vld [vmem:[%s5 + $0x140] sm:$0xf]
    %v9991 = vld [vmem:[%s5 + $0x144] sm:$0xf]
    %v9992 = vld [vmem:[%s5 + $0x148] sm:$0xf]
    %v9993 = vld [vmem:[%s5 + $0x14c] sm:$0xf]
    %v9994 = vld [vmem:[%s5 + $0x150] sm:$0xf]
    %v9995 = vld [vmem:[%s5 + $0x154] sm:$0xf]
    %v9996 = vld [vmem:[%s5 + $0x158] sm:$0xf]
    %v9997 = vld [vmem:[%s5 + $0x15c] sm:$0xf]
    %v9998 = vld [vmem:[%s5 + $0x160] sm:$0xf]
    %v9999 = vld [vmem:[%s5 + $0x164] sm:$0xf]
    %v10000 = vld [vmem:[%s5 + $0x168] sm:$0xf]
    %v10001 = vld [vmem:[%s5 + $0x16c] sm:$0xf]
    %v10002 = vld [vmem:[%s5 + $0x170] sm:$0xf]
    %v10003 = vld [vmem:[%s5 + $0x174] sm:$0xf]
    %v10004 = vld [vmem:[%s5 + $0x178] sm:$0xf]
    %v10005 = vld [vmem:[%s5 + $0x17c] sm:$0xf]
    %v10006 = vld [vmem:[%s5 + $0x180] sm:$0xf]
    %v10007 = vld [vmem:[%s5 + $0x184] sm:$0xf]
    %v10008 = vld [vmem:[%s5 + $0x188] sm:$0xf]
    %v10009 = vld [vmem:[%s5 + $0x18c] sm:$0xf]
    %v10010 = vld [vmem:[%s5 + $0x190] sm:$0xf]
    %v10011 = vld [vmem:[%s5 + $0x194] sm:$0xf]
    %v10012 = vld [vmem:[%s5 + $0x198] sm:$0xf]
    %v10013 = vld [vmem:[%s5 + $0x19c] sm:$0xf]
    %v10014 = vld [vmem:[%s5 + $0x1a0] sm:$0xf]
    %v10015 = vld [vmem:[%s5 + $0x1a4] sm:$0xf]
    %v10016 = vld [vmem:[%s5 + $0x1a8] sm:$0xf]
    %v10017 = vld [vmem:[%s5 + $0x1ac] sm:$0xf]
    %v10018 = vld [vmem:[%s5 + $0x1b0] sm:$0xf]
    %v10019 = vld [vmem:[%s5 + $0x1b4] sm:$0xf]
    %v10020 = vld [vmem:[%s5 + $0x1b8] sm:$0xf]
    %v10021 = vld [vmem:[%s5 + $0x1bc] sm:$0xf]
    %v10022 = vld [vmem:[%s5 + $0x1c0] sm:$0xf]
    %v10023 = vld [vmem:[%s5 + $0x1c4] sm:$0xf]
    %v10024 = vld [vmem:[%s5 + $0x1c8] sm:$0xf]
    %v10025 = vld [vmem:[%s5 + $0x1cc] sm:$0xf]
    %v10026 = vld [vmem:[%s5 + $0x1d0] sm:$0xf]
    %v10027 = vld [vmem:[%s5 + $0x1d4] sm:$0xf]
    %v10028 = vld [vmem:[%s5 + $0x1d8] sm:$0xf]
    %v10029 = vld [vmem:[%s5 + $0x1dc] sm:$0xf]
    %v10030 = vld [vmem:[%s5 + $0x1e0] sm:$0xf]
    %v10031 = vld [vmem:[%s5 + $0x1e4] sm:$0xf]
    %v10032 = vld [vmem:[%s5 + $0x1e8] sm:$0xf]
    %v10033 = vld [vmem:[%s5 + $0x1ec] sm:$0xf]
    %v10034 = vld [vmem:[%s5 + $0x1f0] sm:$0xf]
    %v10035 = vld [vmem:[%s5 + $0x1f4] sm:$0xf]
    %v10036 = vld [vmem:[%s5 + $0x1f8] sm:$0xf]
    %v10037 = vld [vmem:[%s5 + $0x1fc] sm:$0xf]
    %v10038 = vld [vmem:[%s6] sm:$0x1]
    %v10040 = vlaneseq
    %v10041 = vshrl.u32 %v10040, 7
    %v10042 = vsub.s32 0, %v10041
    %v10043 = vrot.slane %v10038, %v10042
    %v10173 = vunpack.c.l.b16 %v9910
    %v10174 = vunpack.c.l.b16 %v9911
    %v10175 = vunpack.c.l.b16 %v9912
    %v10176 = vunpack.c.l.b16 %v9913
    %v10177 = vunpack.c.l.b16 %v9914
    %v10178 = vunpack.c.l.b16 %v9915
    %v10179 = vunpack.c.l.b16 %v9916
    %v10180 = vunpack.c.l.b16 %v9917
    %v10181 = vunpack.c.l.b16 %v9918
    %v10182 = vunpack.c.l.b16 %v9919
    %v10183 = vunpack.c.l.b16 %v9920
    %v10184 = vunpack.c.l.b16 %v9921
    %v10185 = vunpack.c.l.b16 %v9922
    %v10186 = vunpack.c.l.b16 %v9923
    %v10187 = vunpack.c.l.b16 %v9924
    %v10188 = vunpack.c.l.b16 %v9925
    %v10189 = vunpack.c.l.b16 %v9926
    %v10190 = vunpack.c.l.b16 %v9927
    %v10191 = vunpack.c.l.b16 %v9928
    %v10192 = vunpack.c.l.b16 %v9929
    %v10193 = vunpack.c.l.b16 %v9930
    %v10194 = vunpack.c.l.b16 %v9931
    %v10195 = vunpack.c.l.b16 %v9932
    %v10196 = vunpack.c.l.b16 %v9933
    %v10197 = vunpack.c.l.b16 %v9934
    %v10198 = vunpack.c.l.b16 %v9935
    %v10199 = vunpack.c.l.b16 %v9936
    %v10200 = vunpack.c.l.b16 %v9937
    %v10201 = vunpack.c.l.b16 %v9938
    %v10202 = vunpack.c.l.b16 %v9939
    %v10203 = vunpack.c.l.b16 %v9940
    %v10204 = vunpack.c.l.b16 %v9941
    %v10205 = vunpack.c.l.b16 %v9942
    %v10206 = vunpack.c.l.b16 %v9943
    %v10207 = vunpack.c.l.b16 %v9944
    %v10208 = vunpack.c.l.b16 %v9945
    %v10209 = vunpack.c.l.b16 %v9946
    %v10210 = vunpack.c.l.b16 %v9947
    %v10211 = vunpack.c.l.b16 %v9948
    %v10212 = vunpack.c.l.b16 %v9949
    %v10213 = vunpack.c.l.b16 %v9950
    %v10214 = vunpack.c.l.b16 %v9951
    %v10215 = vunpack.c.l.b16 %v9952
    %v10216 = vunpack.c.l.b16 %v9953
    %v10217 = vunpack.c.l.b16 %v9954
    %v10218 = vunpack.c.l.b16 %v9955
    %v10219 = vunpack.c.l.b16 %v9956
    %v10220 = vunpack.c.l.b16 %v9957
    %v10221 = vunpack.c.l.b16 %v9958
    %v10222 = vunpack.c.l.b16 %v9959
    %v10223 = vunpack.c.l.b16 %v9960
    %v10224 = vunpack.c.l.b16 %v9961
    %v10225 = vunpack.c.l.b16 %v9962
    %v10226 = vunpack.c.l.b16 %v9963
    %v10227 = vunpack.c.l.b16 %v9964
    %v10228 = vunpack.c.l.b16 %v9965
    %v10229 = vunpack.c.l.b16 %v9966
    %v10230 = vunpack.c.l.b16 %v9967
    %v10231 = vunpack.c.l.b16 %v9968
    %v10232 = vunpack.c.l.b16 %v9969
    %v10233 = vunpack.c.l.b16 %v9970
    %v10234 = vunpack.c.l.b16 %v9971
    %v10235 = vunpack.c.l.b16 %v9972
    %v10236 = vunpack.c.l.b16 %v9973
    %v10237 = vunpack.c.l.b16 %v9974
    %v10238 = vunpack.c.l.b16 %v9975
    %v10239 = vunpack.c.l.b16 %v9976
    %v10240 = vunpack.c.l.b16 %v9977
    %v10241 = vunpack.c.l.b16 %v9978
    %v10242 = vunpack.c.l.b16 %v9979
    %v10243 = vunpack.c.l.b16 %v9980
    %v10244 = vunpack.c.l.b16 %v9981
    %v10245 = vunpack.c.l.b16 %v9982
    %v10246 = vunpack.c.l.b16 %v9983
    %v10247 = vunpack.c.l.b16 %v9984
    %v10248 = vunpack.c.l.b16 %v9985
    %v10249 = vunpack.c.l.b16 %v9986
    %v10250 = vunpack.c.l.b16 %v9987
    %v10251 = vunpack.c.l.b16 %v9988
    %v10252 = vunpack.c.l.b16 %v9989
    %v10253 = vunpack.c.l.b16 %v9990
    %v10254 = vunpack.c.l.b16 %v9991
    %v10255 = vunpack.c.l.b16 %v9992
    %v10256 = vunpack.c.l.b16 %v9993
    %v10257 = vunpack.c.l.b16 %v9994
    %v10258 = vunpack.c.l.b16 %v9995
    %v10259 = vunpack.c.l.b16 %v9996
    %v10260 = vunpack.c.l.b16 %v9997
    %v10261 = vunpack.c.l.b16 %v9998
    %v10262 = vunpack.c.l.b16 %v9999
    %v10263 = vunpack.c.l.b16 %v10000
    %v10264 = vunpack.c.l.b16 %v10001
    %v10265 = vunpack.c.l.b16 %v10002
    %v10266 = vunpack.c.l.b16 %v10003
    %v10267 = vunpack.c.l.b16 %v10004
    %v10268 = vunpack.c.l.b16 %v10005
    %v10269 = vunpack.c.l.b16 %v10006
    %v10270 = vunpack.c.l.b16 %v10007
    %v10271 = vunpack.c.l.b16 %v10008
    %v10272 = vunpack.c.l.b16 %v10009
    %v10273 = vunpack.c.l.b16 %v10010
    %v10274 = vunpack.c.l.b16 %v10011
    %v10275 = vunpack.c.l.b16 %v10012
    %v10276 = vunpack.c.l.b16 %v10013
    %v10277 = vunpack.c.l.b16 %v10014
    %v10278 = vunpack.c.l.b16 %v10015
    %v10279 = vunpack.c.l.b16 %v10016
    %v10280 = vunpack.c.l.b16 %v10017
    %v10281 = vunpack.c.l.b16 %v10018
    %v10282 = vunpack.c.l.b16 %v10019
    %v10283 = vunpack.c.l.b16 %v10020
    %v10284 = vunpack.c.l.b16 %v10021
    %v10285 = vunpack.c.l.b16 %v10022
    %v10286 = vunpack.c.l.b16 %v10023
    %v10287 = vunpack.c.l.b16 %v10024
    %v10288 = vunpack.c.l.b16 %v10025
    %v10289 = vunpack.c.l.b16 %v10026
    %v10290 = vunpack.c.l.b16 %v10027
    %v10291 = vunpack.c.l.b16 %v10028
    %v10292 = vunpack.c.l.b16 %v10029
    %v10293 = vunpack.c.l.b16 %v10030
    %v10294 = vunpack.c.l.b16 %v10031
    %v10295 = vunpack.c.l.b16 %v10032
    %v10296 = vunpack.c.l.b16 %v10033
    %v10297 = vunpack.c.l.b16 %v10034
    %v10298 = vunpack.c.l.b16 %v10035
    %v10299 = vunpack.c.l.b16 %v10036
    %v10300 = vunpack.c.l.b16 %v10037
    %v10301 = vpack.c.b16 %v10174, %v10173
    %v10302 = vpack.c.b16 %v10176, %v10175
    %v10303 = vpack.c.b16 %v10178, %v10177
    %v10304 = vpack.c.b16 %v10180, %v10179
    %v10305 = vpack.c.b16 %v10182, %v10181
    %v10306 = vpack.c.b16 %v10184, %v10183
    %v10307 = vpack.c.b16 %v10186, %v10185
    %v10308 = vpack.c.b16 %v10188, %v10187
    %v10309 = vpack.c.b16 %v10190, %v10189
    %v10310 = vpack.c.b16 %v10192, %v10191
    %v10311 = vpack.c.b16 %v10194, %v10193
    %v10312 = vpack.c.b16 %v10196, %v10195
    %v10313 = vpack.c.b16 %v10198, %v10197
    %v10314 = vpack.c.b16 %v10200, %v10199
    %v10315 = vpack.c.b16 %v10202, %v10201
    %v10316 = vpack.c.b16 %v10204, %v10203
    %v10317 = vpack.c.b16 %v10206, %v10205
    %v10318 = vpack.c.b16 %v10208, %v10207
    %v10319 = vpack.c.b16 %v10210, %v10209
    %v10320 = vpack.c.b16 %v10212, %v10211
    %v10321 = vpack.c.b16 %v10214, %v10213
    %v10322 = vpack.c.b16 %v10216, %v10215
    %v10323 = vpack.c.b16 %v10218, %v10217
    %v10324 = vpack.c.b16 %v10220, %v10219
    %v10325 = vpack.c.b16 %v10222, %v10221
    %v10326 = vpack.c.b16 %v10224, %v10223
    %v10327 = vpack.c.b16 %v10226, %v10225
    %v10328 = vpack.c.b16 %v10228, %v10227
    %v10329 = vpack.c.b16 %v10230, %v10229
    %v10330 = vpack.c.b16 %v10232, %v10231
    %v10331 = vpack.c.b16 %v10234, %v10233
    %v10332 = vpack.c.b16 %v10236, %v10235
    %v10333 = vpack.c.b16 %v10238, %v10237
    %v10334 = vpack.c.b16 %v10240, %v10239
    %v10335 = vpack.c.b16 %v10242, %v10241
    %v10336 = vpack.c.b16 %v10244, %v10243
    %v10337 = vpack.c.b16 %v10246, %v10245
    %v10338 = vpack.c.b16 %v10248, %v10247
    %v10339 = vpack.c.b16 %v10250, %v10249
    %v10340 = vpack.c.b16 %v10252, %v10251
    %v10341 = vpack.c.b16 %v10254, %v10253
    %v10342 = vpack.c.b16 %v10256, %v10255
    %v10343 = vpack.c.b16 %v10258, %v10257
    %v10344 = vpack.c.b16 %v10260, %v10259
    %v10345 = vpack.c.b16 %v10262, %v10261
    %v10346 = vpack.c.b16 %v10264, %v10263
    %v10347 = vpack.c.b16 %v10266, %v10265
    %v10348 = vpack.c.b16 %v10268, %v10267
    %v10349 = vpack.c.b16 %v10270, %v10269
    %v10350 = vpack.c.b16 %v10272, %v10271
    %v10351 = vpack.c.b16 %v10274, %v10273
    %v10352 = vpack.c.b16 %v10276, %v10275
    %v10353 = vpack.c.b16 %v10278, %v10277
    %v10354 = vpack.c.b16 %v10280, %v10279
    %v10355 = vpack.c.b16 %v10282, %v10281
    %v10356 = vpack.c.b16 %v10284, %v10283
    %v10357 = vpack.c.b16 %v10286, %v10285
    %v10358 = vpack.c.b16 %v10288, %v10287
    %v10359 = vpack.c.b16 %v10290, %v10289
    %v10360 = vpack.c.b16 %v10292, %v10291
    %v10361 = vpack.c.b16 %v10294, %v10293
    %v10362 = vpack.c.b16 %v10296, %v10295
    %v10363 = vpack.c.b16 %v10298, %v10297
    %v10364 = vpack.c.b16 %v10300, %v10299
    %10429 = vmatprep.subr.bf16.mxu0 0
    %10430 = vmatpush1.bf16.msra.mxu0 %v10301
    %10431 = vmatprep.subr.bf16.mxu0 0
    %10432 = vmatpush1.bf16.msra.mxu0 %v10302
    %10433 = vmatprep.subr.bf16.mxu0 0
    %10434 = vmatpush1.bf16.msra.mxu0 %v10303
    %10435 = vmatprep.subr.bf16.mxu0 0
    %10436 = vmatpush1.bf16.msra.mxu0 %v10304
    %10437 = vmatprep.subr.bf16.mxu0 0
    %10438 = vmatpush1.bf16.msra.mxu0 %v10305
    %10439 = vmatprep.subr.bf16.mxu0 0
    %10440 = vmatpush1.bf16.msra.mxu0 %v10306
    %10441 = vmatprep.subr.bf16.mxu0 0
    %10442 = vmatpush1.bf16.msra.mxu0 %v10307
    %10443 = vmatprep.subr.bf16.mxu0 0
    %10444 = vmatpush1.bf16.msra.mxu0 %v10308
    %10445 = vmatprep.subr.bf16.mxu0 0
    %10446 = vmatpush1.bf16.msra.mxu0 %v10309
    %10447 = vmatprep.subr.bf16.mxu0 0
    %10448 = vmatpush1.bf16.msra.mxu0 %v10310
    %10449 = vmatprep.subr.bf16.mxu0 0
    %10450 = vmatpush1.bf16.msra.mxu0 %v10311
    %10451 = vmatprep.subr.bf16.mxu0 0
    %10452 = vmatpush1.bf16.msra.mxu0 %v10312
    %10453 = vmatprep.subr.bf16.mxu0 0
    %10454 = vmatpush1.bf16.msra.mxu0 %v10313
    %10455 = vmatprep.subr.bf16.mxu0 0
    %10456 = vmatpush1.bf16.msra.mxu0 %v10314
    %10457 = vmatprep.subr.bf16.mxu0 0
    %10458 = vmatpush1.bf16.msra.mxu0 %v10315
    %10459 = vmatprep.subr.bf16.mxu0 0
    %10460 = vmatpush1.bf16.msra.mxu0 %v10316
    %10461 = vmatprep.mubr.bf16.mxu0 %v9903
    %10462 = vmatmul.mubr.bf16.gmra.mrb[0].mxu0 %v9902
    %v10463 = vpop.f32.mrb[0].mxu0
    %v10464 = vadd.f32 %v10043, %v10463
    %v10465 = vpop.f32.mrb[0].mxu0
    %v10466 = vpop.f32.mrb[0].mxu0
    %v10467 = vpop.f32.mrb[0].mxu0
    %10468 = vdwg.mxu0
    %10469 = vmatprep.subr.bf16.mxu0 0
    %10470 = vmatpush1.bf16.msra.mxu0 %v10317
    %10471 = vmatprep.subr.bf16.mxu0 0
    %10472 = vmatpush1.bf16.msra.mxu0 %v10318
    %10473 = vmatprep.subr.bf16.mxu0 0
    %10474 = vmatpush1.bf16.msra.mxu0 %v10319
    %10475 = vmatprep.subr.bf16.mxu0 0
    %10476 = vmatpush1.bf16.msra.mxu0 %v10320
    %10477 = vmatprep.subr.bf16.mxu0 0
    %10478 = vmatpush1.bf16.msra.mxu0 %v10321
    %10479 = vmatprep.subr.bf16.mxu0 0
    %10480 = vmatpush1.bf16.msra.mxu0 %v10322
    %10481 = vmatprep.subr.bf16.mxu0 0
    %10482 = vmatpush1.bf16.msra.mxu0 %v10323
    %10483 = vmatprep.subr.bf16.mxu0 0
    %10484 = vmatpush1.bf16.msra.mxu0 %v10324
    %10485 = vmatprep.subr.bf16.mxu0 0
    %10486 = vmatpush1.bf16.msra.mxu0 %v10325
    %10487 = vmatprep.subr.bf16.mxu0 0
    %10488 = vmatpush1.bf16.msra.mxu0 %v10326
    %10489 = vmatprep.subr.bf16.mxu0 0
    %10490 = vmatpush1.bf16.msra.mxu0 %v10327
    %10491 = vmatprep.subr.bf16.mxu0 0
    %10492 = vmatpush1.bf16.msra.mxu0 %v10328
    %10493 = vmatprep.subr.bf16.mxu0 0
    %10494 = vmatpush1.bf16.msra.mxu0 %v10329
    %10495 = vmatprep.subr.bf16.mxu0 0
    %10496 = vmatpush1.bf16.msra.mxu0 %v10330
    %10497 = vmatprep.subr.bf16.mxu0 0
    %10498 = vmatpush1.bf16.msra.mxu0 %v10331
    %10499 = vmatprep.subr.bf16.mxu0 0
    %10500 = vmatpush1.bf16.msra.mxu0 %v10332
    %10501 = vmatprep.mubr.bf16.mxu0 %v9905
    %10502 = vmatmul.mubr.bf16.gmra.mrb[0].mxu0 %v9904
    %v10503 = vpop.f32.mrb[0].mxu0
    %v10504 = vadd.f32 %v10464, %v10503
    %v10505 = vpop.f32.mrb[0].mxu0
    %v10506 = vpop.f32.mrb[0].mxu0
    %v10507 = vpop.f32.mrb[0].mxu0
    %10508 = vdwg.mxu0
    %10509 = vmatprep.subr.bf16.mxu0 0
    %10510 = vmatpush1.bf16.msra.mxu0 %v10333
    %10511 = vmatprep.subr.bf16.mxu0 0
    %10512 = vmatpush1.bf16.msra.mxu0 %v10334
    %10513 = vmatprep.subr.bf16.mxu0 0
    %10514 = vmatpush1.bf16.msra.mxu0 %v10335
    %10515 = vmatprep.subr.bf16.mxu0 0
    %10516 = vmatpush1.bf16.msra.mxu0 %v10336
    %10517 = vmatprep.subr.bf16.mxu0 0
    %10518 = vmatpush1.bf16.msra.mxu0 %v10337
    %10519 = vmatprep.subr.bf16.mxu0 0
    %10520 = vmatpush1.bf16.msra.mxu0 %v10338
    %10521 = vmatprep.subr.bf16.mxu0 0
    %10522 = vmatpush1.bf16.msra.mxu0 %v10339
    %10523 = vmatprep.subr.bf16.mxu0 0
    %10524 = vmatpush1.bf16.msra.mxu0 %v10340
    %10525 = vmatprep.subr.bf16.mxu0 0
    %10526 = vmatpush1.bf16.msra.mxu0 %v10341
    %10527 = vmatprep.subr.bf16.mxu0 0
    %10528 = vmatpush1.bf16.msra.mxu0 %v10342
    %10529 = vmatprep.subr.bf16.mxu0 0
    %10530 = vmatpush1.bf16.msra.mxu0 %v10343
    %10531 = vmatprep.subr.bf16.mxu0 0
    %10532 = vmatpush1.bf16.msra.mxu0 %v10344
    %10533 = vmatprep.subr.bf16.mxu0 0
    %10534 = vmatpush1.bf16.msra.mxu0 %v10345
    %10535 = vmatprep.subr.bf16.mxu0 0
    %10536 = vmatpush1.bf16.msra.mxu0 %v10346
    %10537 = vmatprep.subr.bf16.mxu0 0
    %10538 = vmatpush1.bf16.msra.mxu0 %v10347
    %10539 = vmatprep.subr.bf16.mxu0 0
    %10540 = vmatpush1.bf16.msra.mxu0 %v10348
    %10541 = vmatprep.mubr.bf16.mxu0 %v9907
    %10542 = vmatmul.mubr.bf16.gmra.mrb[0].mxu0 %v9906
    %v10543 = vpop.f32.mrb[0].mxu0
    %v10544 = vadd.f32 %v10504, %v10543
    %v10545 = vpop.f32.mrb[0].mxu0
    %v10546 = vpop.f32.mrb[0].mxu0
    %v10547 = vpop.f32.mrb[0].mxu0
    %10548 = vdwg.mxu0
    %10549 = vmatprep.subr.bf16.mxu0 0
    %10550 = vmatpush1.bf16.msra.mxu0 %v10349
    %10551 = vmatprep.subr.bf16.mxu0 0
    %10552 = vmatpush1.bf16.msra.mxu0 %v10350
    %10553 = vmatprep.subr.bf16.mxu0 0
    %10554 = vmatpush1.bf16.msra.mxu0 %v10351
    %10555 = vmatprep.subr.bf16.mxu0 0
    %10556 = vmatpush1.bf16.msra.mxu0 %v10352
    %10557 = vmatprep.subr.bf16.mxu0 0
    %10558 = vmatpush1.bf16.msra.mxu0 %v10353
    %10559 = vmatprep.subr.bf16.mxu0 0
    %10560 = vmatpush1.bf16.msra.mxu0 %v10354
    %10561 = vmatprep.subr.bf16.mxu0 0
    %10562 = vmatpush1.bf16.msra.mxu0 %v10355
    %10563 = vmatprep.subr.bf16.mxu0 0
    %10564 = vmatpush1.bf16.msra.mxu0 %v10356
    %10565 = vmatprep.subr.bf16.mxu0 0
    %10566 = vmatpush1.bf16.msra.mxu0 %v10357
    %10567 = vmatprep.subr.bf16.mxu0 0
    %10568 = vmatpush1.bf16.msra.mxu0 %v10358
    %10569 = vmatprep.subr.bf16.mxu0 0
    %10570 = vmatpush1.bf16.msra.mxu0 %v10359
    %10571 = vmatprep.subr.bf16.mxu0 0
    %10572 = vmatpush1.bf16.msra.mxu0 %v10360
    %10573 = vmatprep.subr.bf16.mxu0 0
    %10574 = vmatpush1.bf16.msra.mxu0 %v10361
    %10575 = vmatprep.subr.bf16.mxu0 0
    %10576 = vmatpush1.bf16.msra.mxu0 %v10362
    %10577 = vmatprep.subr.bf16.mxu0 0
    %10578 = vmatpush1.bf16.msra.mxu0 %v10363
    %10579 = vmatprep.subr.bf16.mxu0 0
    %10580 = vmatpush1.bf16.msra.mxu0 %v10364
    %10581 = vmatprep.mubr.bf16.mxu0 %v9909
    %10582 = vmatmul.mubr.bf16.gmra.mrb[0].mxu0 %v9908
    %v10583 = vpop.f32.mrb[0].mxu0
    %v10584 = vadd.f32 %v10544, %v10583
    %v10585 = vpop.f32.mrb[0].mxu0
    %v10586 = vpop.f32.mrb[0].mxu0
    %v10587 = vpop.f32.mrb[0].mxu0
    %10588 = vdwg.mxu0
    %v10589 = vmax.f32 %v10584, 0.0
    %v10590 = vpack.c.bf16 %v10589, %v10589
    %v10591 = vld [vmem:[%s7] sm:$0xf]
    %v10592 = vld [vmem:[%s7 + $0x4] sm:$0xf]
    %v10593 = vld [vmem:[%s7 + $0x8] sm:$0xf]
    %v10594 = vld [vmem:[%s7 + $0xc] sm:$0xf]
    %v10595 = vld [vmem:[%s8] sm:$0x1]
    %v10597 = vlaneseq
    %v10598 = vshrl.u32 %v10597, 7
    %v10599 = vsub.s32 0, %v10598
    %v10600 = vrot.slane %v10595, %v10599
    %v10606 = vunpack.c.l.b16 %v10591
    %v10607 = vunpack.c.l.b16 %v10592
    %v10608 = vunpack.c.l.b16 %v10593
    %v10609 = vunpack.c.l.b16 %v10594
    %v10610 = vpack.c.b16 %v10607, %v10606
    %v10611 = vpack.c.b16 %v10609, %v10608
    %v10615 = vsel %vm2603, %v10590, 0
    %10617 = vmatprep.subr.bf16.mxu0 0
    %10618 = vmatpush1.bf16.msra.mxu0 %v10610
    %10619 = vmatprep.subr.bf16.mxu0 0
    %10620 = vmatpush1.bf16.msra.mxu0 %v10611
    %10621 = vmatprep.subr.bf16.mxu0 0
    %10622 = vmatpush1.bf16.msra.mxu0 0
    %10623 = vmatprep.subr.bf16.mxu0 0
    %10624 = vmatpush1.bf16.msra.mxu0 0
    %10625 = vmatprep.subr.bf16.mxu0 0
    %10626 = vmatpush1.bf16.msra.mxu0 0
    %10627 = vmatprep.subr.bf16.mxu0 0
    %10628 = vmatpush1.bf16.msra.mxu0 0
    %10629 = vmatprep.subr.bf16.mxu0 0
    %10630 = vmatpush1.bf16.msra.mxu0 0
    %10631 = vmatprep.subr.bf16.mxu0 0
    %10632 = vmatpush1.bf16.msra.mxu0 0
    %10633 = vmatprep.subr.bf16.mxu0 0
    %10634 = vmatpush1.bf16.msra.mxu0 0
    %10635 = vmatprep.subr.bf16.mxu0 0
    %10636 = vmatpush1.bf16.msra.mxu0 0
    %10637 = vmatprep.subr.bf16.mxu0 0
    %10638 = vmatpush1.bf16.msra.mxu0 0
    %10639 = vmatprep.subr.bf16.mxu0 0
    %10640 = vmatpush1.bf16.msra.mxu0 0
    %10641 = vmatprep.subr.bf16.mxu0 0
    %10642 = vmatpush1.bf16.msra.mxu0 0
    %10643 = vmatprep.subr.bf16.mxu0 0
    %10644 = vmatpush1.bf16.msra.mxu0 0
    %10645 = vmatprep.subr.bf16.mxu0 0
    %10646 = vmatpush1.bf16.msra.mxu0 0
    %10647 = vmatprep.subr.bf16.mxu0 0
    %10648 = vmatpush1.bf16.msra.mxu0 0
    %10649 = vmatprep.mubr.bf16.mxu0 0
    %10650 = vmatmul.mubr.bf16.gmra.mrb[0].mxu0 %v10615
    %v10651 = vpop.f32.mrb[0].mxu0
    %v10652 = vadd.f32 %v10600, %v10651
    %v10653 = vpop.f32.mrb[0].mxu0
    %v10654 = vpop.f32.mrb[0].mxu0
    %v10655 = vpop.f32.mrb[0].mxu0
    %10656 = vdwg.mxu0
    %10657 = vst [vmem:[#allocation3] sm:$0x3] %v10652
    // Predicated region
    $region38: #{conv_classifier_forward.1} parent=1 // pred_check
      _
    $region39: #{conv_classifier_forward.1} parent=1 // pred_check_branch
      %10659 = sbr.rel (0) target = $region41
    $region40: #{conv_classifier_forward.1} parent=1 // pred_region
      %s10661 = ssub.s32 32, 32
      %10662 = vsyncadd [#allocation4], %s10661
      %s10664 = sshll.u32 [#allocation3], 4
      %s10665 = int_to_ptr.vmem [resolvable:$true] %s10664
      %10667 = dma.vmem_to_hbm [thread:$0]  %s10665, 32, %s9, [#allocation4]
    $region41: #{conv_classifier_forward.1} parent=1 // pred_fallthru
      _
    // Predicated region
    $region42: #{conv_classifier_forward.1} parent=1 // pred_check
      _
    $region43: #{conv_classifier_forward.1} parent=1 // pred_check_branch
      %10669 = sbr.rel (0) target = $region45
    $region44: #{conv_classifier_forward.1} parent=1 // pred_region
      %10670 = dma.done [#allocation4], 32
    $region45: #{conv_classifier_forward.1} parent=1 // pred_fallthru
      _
    %10671 = vsyncpa [#allocation4], 1

</llo_original>
